<compile_context>
chip_gen: v7x
topology: tpu7x:2x2x1
jax: 0.10.0
libtpu: 0.0.40
codegen_flags: <defaults>
</compile_context>

<pallas_src>
import math
import functools

import jax
import jax.numpy as jnp
from jax.experimental import pallas as pl
from jax.experimental.pallas import tpu as pltpu


def _vmem():
    return pl.BlockSpec(memory_space=pltpu.MemorySpace.VMEM)


# ----------------------------------------------------------------------------
# One fused kernel: embeddings + PE + 2N encoder layers + gate + output linear
# ----------------------------------------------------------------------------
def fused_kernel(xt_in_ref, xf_in_ref, pe_ref,
                 et_w_ref, et_b_ref, ef_w_ref, ef_b_ref,
                 wqkv_ref, bqkv_ref, wo_ref, bo_ref,
                 w1_ref, b1_ref, w2_ref, b2_ref, ln_ref,
                 gwt_ref, gwf_ref, gb_ref, owt_ref, owf_ref, ob_ref,
                 out_ref,
                 *, n_layers, h, q, v, batch, t_len, f_len, d_model, eps=1e-5):
    hq = h * q
    hv = h * v
    bf16 = jnp.bfloat16

    def layernorm(y, g, b):
        mu = jnp.mean(y, axis=-1, keepdims=True)
        var = jnp.mean((y - mu) ** 2, axis=-1, keepdims=True)
        return (y - mu) * jax.lax.rsqrt(var + eps) * g + b

    def encoder(x2d, seq_len, layer):
        # x2d: (batch*seq_len, D) f32 — batch folded into the matmul M dimension.
        qkv = jnp.dot(x2d.astype(bf16), wqkv_ref[layer],
                      preferred_element_type=jnp.float32) + bqkv_ref[layer]
        qkv3 = qkv.reshape(batch, seq_len, 2 * hq + hv)   # sublane split, lane dim kept

        head_outs = []
        for i in range(h):
            # 1/sqrt(q) already folded into Wq / bq at init time.
            qi = qkv3[:, :, i * q:(i + 1) * q].astype(bf16)                    # (B, L, q)
            ki = qkv3[:, :, hq + i * q:hq + (i + 1) * q].astype(bf16)          # (B, L, q)
            vi = qkv3[:, :, 2 * hq + i * v:2 * hq + (i + 1) * v].astype(bf16)  # (B, L, v)
            s = jnp.einsum('blq,bmq->blm', qi, ki,
                           preferred_element_type=jnp.float32)                 # (B, L, L)
            s = s - jnp.max(s, axis=-1, keepdims=True)
            p = jnp.exp(s)
            p = p * pl.reciprocal(jnp.sum(p, axis=-1, keepdims=True), approx=True)
            head_outs.append(jnp.einsum('blm,bmv->blv', p.astype(bf16), vi,
                                        preferred_element_type=jnp.float32))
        # concat(heads) @ Wo + bo — one MXU pass instead of h
        attn = jnp.concatenate(head_outs, axis=-1).reshape(batch * seq_len, hv)
        attn = jnp.dot(attn.astype(bf16), wo_ref[layer],
                       preferred_element_type=jnp.float32) + bo_ref[layer]

        ln = ln_ref[layer]                                                      # (4, D)
        y = layernorm(x2d + attn, ln[0:1], ln[1:2])

        hid = jnp.maximum(
            jnp.dot(y.astype(bf16), w1_ref[layer],
                    preferred_element_type=jnp.float32) + b1_ref[layer], 0.0)
        f = jnp.dot(hid.astype(bf16), w2_ref[layer],
                    preferred_element_type=jnp.float32) + b2_ref[layer]
        return layernorm(y + f, ln[2:3], ln[3:4])

    # ---- embeddings (bf16 MXU inputs, f32 accumulate) ----
    xt = jnp.dot(xt_in_ref[...].astype(bf16), et_w_ref[...],
                 preferred_element_type=jnp.float32) + et_b_ref[...]            # (B*T, D)
    # PE passed as (T, D); broadcast-add on the (B, T, D) view (no host tile).
    xt = (xt.reshape(batch, t_len, d_model) + pe_ref[...]).reshape(batch * t_len, d_model)

    xf = jnp.dot(xf_in_ref[...].astype(bf16), ef_w_ref[...],
                 preferred_element_type=jnp.float32) + ef_b_ref[...]            # (B*F, D)

    # ---- interleave the two towers layer-by-layer (independent work per bundle) ----
    for l in range(n_layers):
        xt = encoder(xt, t_len, l)                    # timestep-tower layer l
        xf = encoder(xf, f_len, n_layers + l)         # feature-tower layer l

    # ---- head: gate softmax + gated concat + final linear, fused in-kernel ----
    xt3 = xt.reshape(batch, t_len, d_model)
    xf3 = xf.reshape(batch, f_len, d_model)

    def flat_proj(x3, w_ref):
        # Equivalent to flatten(x3) @ W with W laid out (K, L, D); avoids a
        # sublane->lane reshape by contracting (L, D) with multiply+reduce per unit.
        cols = []
        for k in range(w_ref.shape[0]):
            s = jnp.sum(x3 * w_ref[k][None, :, :], axis=-1)     # (B, L)  lane reduce
            cols.append(jnp.sum(s, axis=-1, keepdims=True))     # (B, 1)  lane reduce
        return jnp.concatenate(cols, axis=-1)                   # (B, K)

    logits = flat_proj(xt3, gwt_ref) + flat_proj(xf3, gwf_ref) + gb_ref[...]    # (B, 2)
    m = jnp.max(logits, axis=-1, keepdims=True)
    e = jnp.exp(logits - m)
    gate = e / jnp.sum(e, axis=-1, keepdims=True)

    # out = Linear(concat([xt_flat*g0, xf_flat*g1])) = g0*(xt_flat@Wot) + g1*(xf_flat@Wof) + b
    out_ref[...] = (gate[:, 0:1] * flat_proj(xt3, owt_ref)
                    + gate[:, 1:2] * flat_proj(xf3, owf_ref)
                    + ob_ref[...])


# ----------------------------------------------------------------------------
# Glue (plain JAX): parameter setup, positional encoding, input layout prep
# ----------------------------------------------------------------------------
def position_encode(L, D):
    assert D % 2 == 0, "d_model must be even for the sinusoidal encoding"
    position = jnp.arange(L, dtype=jnp.float32)[:, None]               # (L, 1)
    temp = jnp.arange(0, D, 2, dtype=jnp.float32) * (-math.log(10000.0) / D)
    temp = jnp.exp(temp)[None, :]                                      # (1, D//2)
    angles = position @ temp                                           # (L, D//2)
    pe = jnp.ones((L, D), jnp.float32)
    pe = pe.at[:, 0::2].set(jnp.sin(angles))
    pe = pe.at[:, 1::2].set(jnp.cos(angles))
    return pe


def init_params(key, d_model, d_hidden, d_feature, d_timestep, q, v, h, N, class_num):
    keys = iter(jax.random.split(key, 256))

    def lin(fan_in, fan_out):
        w = jax.random.normal(next(keys), (fan_in, fan_out), jnp.float32) / math.sqrt(fan_in)
        b = 0.01 * jax.random.normal(next(keys), (1, fan_out), jnp.float32)
        return w, b

    p = {}
    w, b = lin(d_feature, d_model)                       # timestep-wise embedding
    p["emb_t_w"], p["emb_t_b"] = w.astype(jnp.bfloat16), b
    w, b = lin(d_timestep, d_model)                      # feature-wise embedding
    p["emb_f_w"], p["emb_f_b"] = w.astype(jnp.bfloat16), b

    scale = 1.0 / math.sqrt(q)                           # folded into Wq / bq
    wqkv_l, bqkv_l, wo_l, bo_l = [], [], [], []
    w1_l, b1_l, w2_l, b2_l, ln_l = [], [], [], [], []
    # layers 0..N-1 -> timestep tower, layers N..2N-1 -> feature tower
    for _ in range(2 * N):
        wq, bq = lin(d_model, q * h)
        wk, bk = lin(d_model, q * h)
        wv, bv = lin(d_model, v * h)
        wo, bo = lin(v * h, d_model)
        w1, b1 = lin(d_model, d_hidden)
        w2, b2 = lin(d_hidden, d_model)
        wqkv_l.append(jnp.concatenate([wq * scale, wk, wv], axis=1))
        bqkv_l.append(jnp.concatenate([bq * scale, bk, bv], axis=1))
        wo_l.append(wo); bo_l.append(bo)
        w1_l.append(w1); b1_l.append(b1)
        w2_l.append(w2); b2_l.append(b2)
        ln_l.append(jnp.stack([jnp.ones((d_model,), jnp.float32),
                               jnp.zeros((d_model,), jnp.float32),
                               jnp.ones((d_model,), jnp.float32),
                               jnp.zeros((d_model,), jnp.float32)]))
    # MXU weights stored bf16 (half DMA bytes, bf16-native MXU); biases / LN stay f32.
    p["wqkv"] = jnp.stack(wqkv_l).astype(jnp.bfloat16)   # (2N, D, 2hq+hv)
    p["bqkv"] = jnp.stack(bqkv_l)                        # (2N, 1, 2hq+hv)
    p["wo"] = jnp.stack(wo_l).astype(jnp.bfloat16)       # (2N, hv, D)
    p["bo"] = jnp.stack(bo_l)
    p["w1"] = jnp.stack(w1_l).astype(jnp.bfloat16)       # (2N, D, Dh)
    p["b1"] = jnp.stack(b1_l)
    p["w2"] = jnp.stack(w2_l).astype(jnp.bfloat16)       # (2N, Dh, D)
    p["b2"] = jnp.stack(b2_l)
    p["ln"] = jnp.stack(ln_l)                            # (2N, 4, D)

    # Head weights: generated in the PyTorch flat layout (T*D + F*D, K) with concat order
    # [timestep_flat, feature_flat] and flat index l*D+d, then re-laid-out to (K, L, D)
    # for the in-kernel (L, D) contraction.  Kept f32 (VPU path).
    Dt, Df = d_timestep * d_model, d_feature * d_model
    wg, bg = lin(Dt + Df, 2)
    p["gate_wt"] = jnp.transpose(wg[:Dt].reshape(d_timestep, d_model, 2), (2, 0, 1))
    p["gate_wf"] = jnp.transpose(wg[Dt:].reshape(d_feature, d_model, 2), (2, 0, 1))
    p["gate_b"] = bg
    wo_, bo_ = lin(Dt + Df, class_num)
    p["out_wt"] = jnp.transpose(wo_[:Dt].reshape(d_timestep, d_model, class_num), (2, 0, 1))
    p["out_wf"] = jnp.transpose(wo_[Dt:].reshape(d_feature, d_model, class_num), (2, 0, 1))
    p["out_b"] = bo_
    return p


def transformer_forward(x, params, *, d_model, q, v, h, n_layers):
    B, F, T = x.shape

    # Layout prep (tiny XLA ops): channel-first -> per-tower 2D matmul inputs.
    xt_in = jnp.transpose(x, (0, 2, 1)).reshape(B * T, F)     # timestep tower input
    xf_in = x.reshape(B * F, T)                               # feature tower input
    pe = position_encode(T, d_model)                          # (T, D), broadcast in-kernel

    C = params["out_b"].shape[1]
    kernel = functools.partial(fused_kernel, n_layers=n_layers, h=h, q=q, v=v,
                               batch=B, t_len=T, f_len=F, d_model=d_model)
    return pl.pallas_call(
        kernel,
        out_shape=jax.ShapeDtypeStruct((B, C), jnp.float32),
        in_specs=[_vmem()] * 22,
        out_specs=_vmem(),
    )(xt_in, xf_in, pe,
      params["emb_t_w"], params["emb_t_b"], params["emb_f_w"], params["emb_f_b"],
      params["wqkv"], params["bqkv"], params["wo"], params["bo"],
      params["w1"], params["b1"], params["w2"], params["b2"], params["ln"],
      params["gate_wt"], params["gate_wf"], params["gate_b"],
      params["out_wt"], params["out_wf"], params["out_b"])


# ----------------------------------------------------------------------------
if __name__ == "__main__":
    D_MODEL, D_HIDDEN = 32, 64
    D_FEATURE, D_TIMESTEP = 8, 16
    Q, V, H, N_LAYERS, CLASS_NUM = 8, 8, 4, 2, 4
    BATCH = 2

    key = jax.random.PRNGKey(0)
    pkey, xkey = jax.random.split(key)
    params = init_params(pkey, D_MODEL, D_HIDDEN, D_FEATURE, D_TIMESTEP,
                         Q, V, H, N_LAYERS, CLASS_NUM)
    x = jax.random.normal(xkey, (BATCH, D_FEATURE, D_TIMESTEP), jnp.float32)

    fwd = jax.jit(functools.partial(transformer_forward, d_model=D_MODEL,
                                    q=Q, v=V, h=H, n_layers=N_LAYERS))
    out = jax.block_until_ready(fwd(x, params))
    assert out.shape == (BATCH, CLASS_NUM) and out.dtype == jnp.float32
    assert bool(jnp.all(jnp.isfinite(out)))
    print("KERNEL_OK")
</pallas_src>

<mosaic_0001>
module attributes {stable_mosaic.version = 11 : i64} {
  func.func @fused_kernel(%arg0: memref<32x8xf32, #tpu.memory_space<vmem>>, %arg1: memref<16x16xf32, #tpu.memory_space<vmem>>, %arg2: memref<16x32xf32, #tpu.memory_space<vmem>>, %arg3: memref<8x32xbf16, #tpu.memory_space<vmem>>, %arg4: memref<1x32xf32, #tpu.memory_space<vmem>>, %arg5: memref<16x32xbf16, #tpu.memory_space<vmem>>, %arg6: memref<1x32xf32, #tpu.memory_space<vmem>>, %arg7: memref<4x32x96xbf16, #tpu.memory_space<vmem>>, %arg8: memref<4x1x96xf32, #tpu.memory_space<vmem>>, %arg9: memref<4x32x32xbf16, #tpu.memory_space<vmem>>, %arg10: memref<4x1x32xf32, #tpu.memory_space<vmem>>, %arg11: memref<4x32x64xbf16, #tpu.memory_space<vmem>>, %arg12: memref<4x1x64xf32, #tpu.memory_space<vmem>>, %arg13: memref<4x64x32xbf16, #tpu.memory_space<vmem>>, %arg14: memref<4x1x32xf32, #tpu.memory_space<vmem>>, %arg15: memref<4x4x32xf32, #tpu.memory_space<vmem>>, %arg16: memref<2x16x32xf32, #tpu.memory_space<vmem>>, %arg17: memref<2x8x32xf32, #tpu.memory_space<vmem>>, %arg18: memref<1x2xf32, #tpu.memory_space<vmem>>, %arg19: memref<4x16x32xf32, #tpu.memory_space<vmem>>, %arg20: memref<4x8x32xf32, #tpu.memory_space<vmem>>, %arg21: memref<1x4xf32, #tpu.memory_space<vmem>>, %arg22: memref<2x4xf32, #tpu.memory_space<vmem>>) attributes {dimension_semantics = [], scalar_prefetch = 0 : i64, scratch_operands = 0 : i64, tpu.core_type = #tpu.core_type<tc>} {
    %c0 = arith.constant 0 : index
    %c0_0 = arith.constant 0 : index
    %0 = vector.load %arg0[%c0, %c0_0] : memref<32x8xf32, #tpu.memory_space<vmem>>, vector<32x8xf32>
    %1 = arith.truncf %0 : vector<32x8xf32> to vector<32x8xbf16>
    %c0_1 = arith.constant 0 : index
    %c0_2 = arith.constant 0 : index
    %2 = vector.load %arg3[%c0_1, %c0_2] : memref<8x32xbf16, #tpu.memory_space<vmem>>, vector<8x32xbf16>
    %cst = arith.constant dense<0.000000e+00> : vector<32x32xf32>
    %3 = tpu.matmul %1, %2, %cst {dimension_numbers = #tpu.dot_dimension_numbers<[1], [0], [0], [1], [0, 0, 1, 1], [], []>} : vector<32x8xbf16>, vector<8x32xbf16>, vector<32x32xf32> -> vector<32x32xf32>
    %c0_3 = arith.constant 0 : index
    %c0_4 = arith.constant 0 : index
    %4 = vector.load %arg4[%c0_3, %c0_4] : memref<1x32xf32, #tpu.memory_space<vmem>>, vector<1x32xf32>
    %5 = vector.broadcast %4 : vector<1x32xf32> to vector<32x32xf32>
    %6 = arith.addf %3, %5 : vector<32x32xf32>
    %7 = vector.shape_cast %6 : vector<32x32xf32> to vector<2x16x32xf32>
    %c0_5 = arith.constant 0 : index
    %c0_6 = arith.constant 0 : index
    %8 = vector.load %arg2[%c0_5, %c0_6] : memref<16x32xf32, #tpu.memory_space<vmem>>, vector<16x32xf32>
    %9 = vector.shape_cast %8 : vector<16x32xf32> to vector<1x16x32xf32>
    %10 = vector.broadcast %9 : vector<1x16x32xf32> to vector<2x16x32xf32>
    %11 = arith.addf %7, %10 : vector<2x16x32xf32>
    %12 = vector.shape_cast %11 : vector<2x16x32xf32> to vector<32x32xf32>
    %c0_7 = arith.constant 0 : index
    %c0_8 = arith.constant 0 : index
    %13 = vector.load %arg1[%c0_7, %c0_8] : memref<16x16xf32, #tpu.memory_space<vmem>>, vector<16x16xf32>
    %14 = arith.truncf %13 : vector<16x16xf32> to vector<16x16xbf16>
    %c0_9 = arith.constant 0 : index
    %c0_10 = arith.constant 0 : index
    %15 = vector.load %arg5[%c0_9, %c0_10] : memref<16x32xbf16, #tpu.memory_space<vmem>>, vector<16x32xbf16>
    %cst_11 = arith.constant dense<0.000000e+00> : vector<16x32xf32>
    %16 = tpu.matmul %14, %15, %cst_11 {dimension_numbers = #tpu.dot_dimension_numbers<[1], [0], [0], [1], [0, 0, 1, 1], [], []>} : vector<16x16xbf16>, vector<16x32xbf16>, vector<16x32xf32> -> vector<16x32xf32>
    %c0_12 = arith.constant 0 : index
    %c0_13 = arith.constant 0 : index
    %17 = vector.load %arg6[%c0_12, %c0_13] : memref<1x32xf32, #tpu.memory_space<vmem>>, vector<1x32xf32>
    %18 = vector.broadcast %17 : vector<1x32xf32> to vector<16x32xf32>
    %19 = arith.addf %16, %18 : vector<16x32xf32>
    %20 = arith.truncf %12 : vector<32x32xf32> to vector<32x32xbf16>
    %c0_14 = arith.constant 0 : index
    %c0_15 = arith.constant 0 : index
    %c0_16 = arith.constant 0 : index
    %21 = vector.load %arg7[%c0_14, %c0_15, %c0_16] : memref<4x32x96xbf16, #tpu.memory_space<vmem>>, vector<1x32x96xbf16>
    %22 = vector.shape_cast %21 : vector<1x32x96xbf16> to vector<32x96xbf16>
    %cst_17 = arith.constant dense<0.000000e+00> : vector<32x96xf32>
    %23 = tpu.matmul %20, %22, %cst_17 {dimension_numbers = #tpu.dot_dimension_numbers<[1], [0], [0], [1], [0, 0, 1, 1], [], []>} : vector<32x32xbf16>, vector<32x96xbf16>, vector<32x96xf32> -> vector<32x96xf32>
    %c0_18 = arith.constant 0 : index
    %c0_19 = arith.constant 0 : index
    %c0_20 = arith.constant 0 : index
    %24 = vector.load %arg8[%c0_18, %c0_19, %c0_20] : memref<4x1x96xf32, #tpu.memory_space<vmem>>, vector<1x1x96xf32>
    %25 = vector.shape_cast %24 : vector<1x1x96xf32> to vector<1x96xf32>
    %26 = vector.broadcast %25 : vector<1x96xf32> to vector<32x96xf32>
    %27 = arith.addf %23, %26 : vector<32x96xf32>
    %28 = vector.shape_cast %27 : vector<32x96xf32> to vector<2x16x96xf32>
    %29 = vector.extract_strided_slice %28 {offsets = [0, 0, 0], sizes = [2, 16, 8], strides = [1, 1, 1]} : vector<2x16x96xf32> to vector<2x16x8xf32>
    %30 = arith.truncf %29 : vector<2x16x8xf32> to vector<2x16x8xbf16>
    %31 = vector.extract_strided_slice %28 {offsets = [0, 0, 32], sizes = [2, 16, 8], strides = [1, 1, 1]} : vector<2x16x96xf32> to vector<2x16x8xf32>
    %32 = arith.truncf %31 : vector<2x16x8xf32> to vector<2x16x8xbf16>
    %33 = vector.extract_strided_slice %28 {offsets = [0, 0, 64], sizes = [2, 16, 8], strides = [1, 1, 1]} : vector<2x16x96xf32> to vector<2x16x8xf32>
    %34 = arith.truncf %33 : vector<2x16x8xf32> to vector<2x16x8xbf16>
    "tpu.trace_start"() <{level = 10 : i32, message = "blq,bmq->blm"}> : () -> ()
    %cst_21 = arith.constant dense<0.000000e+00> : vector<2x16x16xf32>
    %35 = tpu.matmul %30, %32, %cst_21 {dimension_numbers = #tpu.dot_dimension_numbers<[2], [2], [1], [1], [0, 0, 0, 1, 1, 1], [0], [0]>} : vector<2x16x8xbf16>, vector<2x16x8xbf16>, vector<2x16x16xf32> -> vector<2x16x16xf32>
    "tpu.trace_stop"() : () -> ()
    %cst_22 = arith.constant dense<0xFF800000> : vector<2x16xf32>
    %36 = vector.multi_reduction <maximumf>, %35, %cst_22 [2] : vector<2x16x16xf32> to vector<2x16xf32>
    %37 = vector.shape_cast %36 : vector<2x16xf32> to vector<2x16x1xf32>
    %38 = vector.broadcast %37 : vector<2x16x1xf32> to vector<2x16x16xf32>
    %39 = arith.subf %35, %38 : vector<2x16x16xf32>
    %40 = math.exp %39 : vector<2x16x16xf32>
    %cst_23 = arith.constant dense<0.000000e+00> : vector<2x16xf32>
    %41 = vector.multi_reduction <add>, %40, %cst_23 [2] : vector<2x16x16xf32> to vector<2x16xf32>
    %42 = vector.shape_cast %41 : vector<2x16xf32> to vector<2x16x1xf32>
    %43 = tpu.reciprocal %42 {approx = true} : vector<2x16x1xf32> -> vector<2x16x1xf32>
    %44 = vector.broadcast %43 : vector<2x16x1xf32> to vector<2x16x16xf32>
    %45 = arith.mulf %40, %44 : vector<2x16x16xf32>
    %46 = arith.truncf %45 : vector<2x16x16xf32> to vector<2x16x16xbf16>
    "tpu.trace_start"() <{level = 10 : i32, message = "blm,bmv->blv"}> : () -> ()
    %cst_24 = arith.constant dense<0.000000e+00> : vector<2x16x8xf32>
    %47 = tpu.matmul %46, %34, %cst_24 {dimension_numbers = #tpu.dot_dimension_numbers<[2], [1], [1], [2], [0, 0, 0, 1, 1, 2], [0], [0]>} : vector<2x16x16xbf16>, vector<2x16x8xbf16>, vector<2x16x8xf32> -> vector<2x16x8xf32>
    "tpu.trace_stop"() : () -> ()
    %48 = vector.extract_strided_slice %28 {offsets = [0, 0, 8], sizes = [2, 16, 8], strides = [1, 1, 1]} : vector<2x16x96xf32> to vector<2x16x8xf32>
    %49 = arith.truncf %48 : vector<2x16x8xf32> to vector<2x16x8xbf16>
    %50 = vector.extract_strided_slice %28 {offsets = [0, 0, 40], sizes = [2, 16, 8], strides = [1, 1, 1]} : vector<2x16x96xf32> to vector<2x16x8xf32>
    %51 = arith.truncf %50 : vector<2x16x8xf32> to vector<2x16x8xbf16>
    %52 = vector.extract_strided_slice %28 {offsets = [0, 0, 72], sizes = [2, 16, 8], strides = [1, 1, 1]} : vector<2x16x96xf32> to vector<2x16x8xf32>
    %53 = arith.truncf %52 : vector<2x16x8xf32> to vector<2x16x8xbf16>
    "tpu.trace_start"() <{level = 10 : i32, message = "blq,bmq->blm"}> : () -> ()
    %cst_25 = arith.constant dense<0.000000e+00> : vector<2x16x16xf32>
    %54 = tpu.matmul %49, %51, %cst_25 {dimension_numbers = #tpu.dot_dimension_numbers<[2], [2], [1], [1], [0, 0, 0, 1, 1, 1], [0], [0]>} : vector<2x16x8xbf16>, vector<2x16x8xbf16>, vector<2x16x16xf32> -> vector<2x16x16xf32>
    "tpu.trace_stop"() : () -> ()
    %cst_26 = arith.constant dense<0xFF800000> : vector<2x16xf32>
    %55 = vector.multi_reduction <maximumf>, %54, %cst_26 [2] : vector<2x16x16xf32> to vector<2x16xf32>
    %56 = vector.shape_cast %55 : vector<2x16xf32> to vector<2x16x1xf32>
    %57 = vector.broadcast %56 : vector<2x16x1xf32> to vector<2x16x16xf32>
    %58 = arith.subf %54, %57 : vector<2x16x16xf32>
    %59 = math.exp %58 : vector<2x16x16xf32>
    %cst_27 = arith.constant dense<0.000000e+00> : vector<2x16xf32>
    %60 = vector.multi_reduction <add>, %59, %cst_27 [2] : vector<2x16x16xf32> to vector<2x16xf32>
    %61 = vector.shape_cast %60 : vector<2x16xf32> to vector<2x16x1xf32>
    %62 = tpu.reciprocal %61 {approx = true} : vector<2x16x1xf32> -> vector<2x16x1xf32>
    %63 = vector.broadcast %62 : vector<2x16x1xf32> to vector<2x16x16xf32>
    %64 = arith.mulf %59, %63 : vector<2x16x16xf32>
    %65 = arith.truncf %64 : vector<2x16x16xf32> to vector<2x16x16xbf16>
    "tpu.trace_start"() <{level = 10 : i32, message = "blm,bmv->blv"}> : () -> ()
    %cst_28 = arith.constant dense<0.000000e+00> : vector<2x16x8xf32>
    %66 = tpu.matmul %65, %53, %cst_28 {dimension_numbers = #tpu.dot_dimension_numbers<[2], [1], [1], [2], [0, 0, 0, 1, 1, 2], [0], [0]>} : vector<2x16x16xbf16>, vector<2x16x8xbf16>, vector<2x16x8xf32> -> vector<2x16x8xf32>
    "tpu.trace_stop"() : () -> ()
    %67 = vector.extract_strided_slice %28 {offsets = [0, 0, 16], sizes = [2, 16, 8], strides = [1, 1, 1]} : vector<2x16x96xf32> to vector<2x16x8xf32>
    %68 = arith.truncf %67 : vector<2x16x8xf32> to vector<2x16x8xbf16>
    %69 = vector.extract_strided_slice %28 {offsets = [0, 0, 48], sizes = [2, 16, 8], strides = [1, 1, 1]} : vector<2x16x96xf32> to vector<2x16x8xf32>
    %70 = arith.truncf %69 : vector<2x16x8xf32> to vector<2x16x8xbf16>
    %71 = vector.extract_strided_slice %28 {offsets = [0, 0, 80], sizes = [2, 16, 8], strides = [1, 1, 1]} : vector<2x16x96xf32> to vector<2x16x8xf32>
    %72 = arith.truncf %71 : vector<2x16x8xf32> to vector<2x16x8xbf16>
    "tpu.trace_start"() <{level = 10 : i32, message = "blq,bmq->blm"}> : () -> ()
    %cst_29 = arith.constant dense<0.000000e+00> : vector<2x16x16xf32>
    %73 = tpu.matmul %68, %70, %cst_29 {dimension_numbers = #tpu.dot_dimension_numbers<[2], [2], [1], [1], [0, 0, 0, 1, 1, 1], [0], [0]>} : vector<2x16x8xbf16>, vector<2x16x8xbf16>, vector<2x16x16xf32> -> vector<2x16x16xf32>
    "tpu.trace_stop"() : () -> ()
    %cst_30 = arith.constant dense<0xFF800000> : vector<2x16xf32>
    %74 = vector.multi_reduction <maximumf>, %73, %cst_30 [2] : vector<2x16x16xf32> to vector<2x16xf32>
    %75 = vector.shape_cast %74 : vector<2x16xf32> to vector<2x16x1xf32>
    %76 = vector.broadcast %75 : vector<2x16x1xf32> to vector<2x16x16xf32>
    %77 = arith.subf %73, %76 : vector<2x16x16xf32>
    %78 = math.exp %77 : vector<2x16x16xf32>
    %cst_31 = arith.constant dense<0.000000e+00> : vector<2x16xf32>
    %79 = vector.multi_reduction <add>, %78, %cst_31 [2] : vector<2x16x16xf32> to vector<2x16xf32>
    %80 = vector.shape_cast %79 : vector<2x16xf32> to vector<2x16x1xf32>
    %81 = tpu.reciprocal %80 {approx = true} : vector<2x16x1xf32> -> vector<2x16x1xf32>
    %82 = vector.broadcast %81 : vector<2x16x1xf32> to vector<2x16x16xf32>
    %83 = arith.mulf %78, %82 : vector<2x16x16xf32>
    %84 = arith.truncf %83 : vector<2x16x16xf32> to vector<2x16x16xbf16>
    "tpu.trace_start"() <{level = 10 : i32, message = "blm,bmv->blv"}> : () -> ()
    %cst_32 = arith.constant dense<0.000000e+00> : vector<2x16x8xf32>
    %85 = tpu.matmul %84, %72, %cst_32 {dimension_numbers = #tpu.dot_dimension_numbers<[2], [1], [1], [2], [0, 0, 0, 1, 1, 2], [0], [0]>} : vector<2x16x16xbf16>, vector<2x16x8xbf16>, vector<2x16x8xf32> -> vector<2x16x8xf32>
    "tpu.trace_stop"() : () -> ()
    %86 = vector.extract_strided_slice %28 {offsets = [0, 0, 24], sizes = [2, 16, 8], strides = [1, 1, 1]} : vector<2x16x96xf32> to vector<2x16x8xf32>
    %87 = arith.truncf %86 : vector<2x16x8xf32> to vector<2x16x8xbf16>
    %88 = vector.extract_strided_slice %28 {offsets = [0, 0, 56], sizes = [2, 16, 8], strides = [1, 1, 1]} : vector<2x16x96xf32> to vector<2x16x8xf32>
    %89 = arith.truncf %88 : vector<2x16x8xf32> to vector<2x16x8xbf16>
    %90 = vector.extract_strided_slice %28 {offsets = [0, 0, 88], sizes = [2, 16, 8], strides = [1, 1, 1]} : vector<2x16x96xf32> to vector<2x16x8xf32>
    %91 = arith.truncf %90 : vector<2x16x8xf32> to vector<2x16x8xbf16>
    "tpu.trace_start"() <{level = 10 : i32, message = "blq,bmq->blm"}> : () -> ()
    %cst_33 = arith.constant dense<0.000000e+00> : vector<2x16x16xf32>
    %92 = tpu.matmul %87, %89, %cst_33 {dimension_numbers = #tpu.dot_dimension_numbers<[2], [2], [1], [1], [0, 0, 0, 1, 1, 1], [0], [0]>} : vector<2x16x8xbf16>, vector<2x16x8xbf16>, vector<2x16x16xf32> -> vector<2x16x16xf32>
    "tpu.trace_stop"() : () -> ()
    %cst_34 = arith.constant dense<0xFF800000> : vector<2x16xf32>
    %93 = vector.multi_reduction <maximumf>, %92, %cst_34 [2] : vector<2x16x16xf32> to vector<2x16xf32>
    %94 = vector.shape_cast %93 : vector<2x16xf32> to vector<2x16x1xf32>
    %95 = vector.broadcast %94 : vector<2x16x1xf32> to vector<2x16x16xf32>
    %96 = arith.subf %92, %95 : vector<2x16x16xf32>
    %97 = math.exp %96 : vector<2x16x16xf32>
    %cst_35 = arith.constant dense<0.000000e+00> : vector<2x16xf32>
    %98 = vector.multi_reduction <add>, %97, %cst_35 [2] : vector<2x16x16xf32> to vector<2x16xf32>
    %99 = vector.shape_cast %98 : vector<2x16xf32> to vector<2x16x1xf32>
    %100 = tpu.reciprocal %99 {approx = true} : vector<2x16x1xf32> -> vector<2x16x1xf32>
    %101 = vector.broadcast %100 : vector<2x16x1xf32> to vector<2x16x16xf32>
    %102 = arith.mulf %97, %101 : vector<2x16x16xf32>
    %103 = arith.truncf %102 : vector<2x16x16xf32> to vector<2x16x16xbf16>
    "tpu.trace_start"() <{level = 10 : i32, message = "blm,bmv->blv"}> : () -> ()
    %cst_36 = arith.constant dense<0.000000e+00> : vector<2x16x8xf32>
    %104 = tpu.matmul %103, %91, %cst_36 {dimension_numbers = #tpu.dot_dimension_numbers<[2], [1], [1], [2], [0, 0, 0, 1, 1, 2], [0], [0]>} : vector<2x16x16xbf16>, vector<2x16x8xbf16>, vector<2x16x8xf32> -> vector<2x16x8xf32>
    "tpu.trace_stop"() : () -> ()
    %105 = tpu.concatenate %47, %66, %85, %104 in 2 : vector<2x16x8xf32>, vector<2x16x8xf32>, vector<2x16x8xf32>, vector<2x16x8xf32> -> vector<2x16x32xf32>
    %106 = vector.shape_cast %105 : vector<2x16x32xf32> to vector<32x32xf32>
    %107 = arith.truncf %106 : vector<32x32xf32> to vector<32x32xbf16>
    %c0_37 = arith.constant 0 : index
    %c0_38 = arith.constant 0 : index
    %c0_39 = arith.constant 0 : index
    %108 = vector.load %arg9[%c0_37, %c0_38, %c0_39] : memref<4x32x32xbf16, #tpu.memory_space<vmem>>, vector<1x32x32xbf16>
    %109 = vector.shape_cast %108 : vector<1x32x32xbf16> to vector<32x32xbf16>
    %cst_40 = arith.constant dense<0.000000e+00> : vector<32x32xf32>
    %110 = tpu.matmul %107, %109, %cst_40 {dimension_numbers = #tpu.dot_dimension_numbers<[1], [0], [0], [1], [0, 0, 1, 1], [], []>} : vector<32x32xbf16>, vector<32x32xbf16>, vector<32x32xf32> -> vector<32x32xf32>
    %c0_41 = arith.constant 0 : index
    %c0_42 = arith.constant 0 : index
    %c0_43 = arith.constant 0 : index
    %111 = vector.load %arg10[%c0_41, %c0_42, %c0_43] : memref<4x1x32xf32, #tpu.memory_space<vmem>>, vector<1x1x32xf32>
    %112 = vector.shape_cast %111 : vector<1x1x32xf32> to vector<1x32xf32>
    %113 = vector.broadcast %112 : vector<1x32xf32> to vector<32x32xf32>
    %114 = arith.addf %110, %113 : vector<32x32xf32>
    %c0_44 = arith.constant 0 : index
    %c0_45 = arith.constant 0 : index
    %c0_46 = arith.constant 0 : index
    %115 = vector.load %arg15[%c0_44, %c0_45, %c0_46] : memref<4x4x32xf32, #tpu.memory_space<vmem>>, vector<1x4x32xf32>
    %116 = vector.shape_cast %115 : vector<1x4x32xf32> to vector<4x32xf32>
    %117 = arith.addf %12, %114 : vector<32x32xf32>
    %118 = vector.extract_strided_slice %116 {offsets = [0, 0], sizes = [1, 32], strides = [1, 1]} : vector<4x32xf32> to vector<1x32xf32>
    %119 = vector.extract_strided_slice %116 {offsets = [1, 0], sizes = [1, 32], strides = [1, 1]} : vector<4x32xf32> to vector<1x32xf32>
    %cst_47 = arith.constant dense<0.000000e+00> : vector<32xf32>
    %120 = vector.multi_reduction <add>, %117, %cst_47 [1] : vector<32x32xf32> to vector<32xf32>
    %121 = vector.shape_cast %120 : vector<32xf32> to vector<32x1xf32>
    %cst_48 = arith.constant 3.200000e+01 : f32
    %122 = vector.broadcast %cst_48 : f32 to vector<32x1xf32>
    %123 = arith.divf %121, %122 : vector<32x1xf32>
    %124 = vector.broadcast %123 : vector<32x1xf32> to vector<32x32xf32>
    %125 = arith.subf %117, %124 : vector<32x32xf32>
    %126 = arith.mulf %125, %125 : vector<32x32xf32>
    %cst_49 = arith.constant dense<0.000000e+00> : vector<32xf32>
    %127 = vector.multi_reduction <add>, %126, %cst_49 [1] : vector<32x32xf32> to vector<32xf32>
    %128 = vector.shape_cast %127 : vector<32xf32> to vector<32x1xf32>
    %cst_50 = arith.constant 3.200000e+01 : f32
    %129 = vector.broadcast %cst_50 : f32 to vector<32x1xf32>
    %130 = arith.divf %128, %129 : vector<32x1xf32>
    %131 = vector.broadcast %123 : vector<32x1xf32> to vector<32x32xf32>
    %132 = arith.subf %117, %131 : vector<32x32xf32>
    %cst_51 = arith.constant 9.99999974E-6 : f32
    %133 = vector.broadcast %cst_51 : f32 to vector<32x1xf32>
    %134 = arith.addf %130, %133 : vector<32x1xf32>
    %135 = math.rsqrt %134 : vector<32x1xf32>
    %136 = vector.broadcast %135 : vector<32x1xf32> to vector<32x32xf32>
    %137 = arith.mulf %132, %136 : vector<32x32xf32>
    %138 = vector.broadcast %118 : vector<1x32xf32> to vector<32x32xf32>
    %139 = arith.mulf %137, %138 : vector<32x32xf32>
    %140 = vector.broadcast %119 : vector<1x32xf32> to vector<32x32xf32>
    %141 = arith.addf %139, %140 : vector<32x32xf32>
    %142 = arith.truncf %141 : vector<32x32xf32> to vector<32x32xbf16>
    %c0_52 = arith.constant 0 : index
    %c0_53 = arith.constant 0 : index
    %c0_54 = arith.constant 0 : index
    %143 = vector.load %arg11[%c0_52, %c0_53, %c0_54] : memref<4x32x64xbf16, #tpu.memory_space<vmem>>, vector<1x32x64xbf16>
    %144 = vector.shape_cast %143 : vector<1x32x64xbf16> to vector<32x64xbf16>
    %cst_55 = arith.constant dense<0.000000e+00> : vector<32x64xf32>
    %145 = tpu.matmul %142, %144, %cst_55 {dimension_numbers = #tpu.dot_dimension_numbers<[1], [0], [0], [1], [0, 0, 1, 1], [], []>} : vector<32x32xbf16>, vector<32x64xbf16>, vector<32x64xf32> -> vector<32x64xf32>
    %c0_56 = arith.constant 0 : index
    %c0_57 = arith.constant 0 : index
    %c0_58 = arith.constant 0 : index
    %146 = vector.load %arg12[%c0_56, %c0_57, %c0_58] : memref<4x1x64xf32, #tpu.memory_space<vmem>>, vector<1x1x64xf32>
    %147 = vector.shape_cast %146 : vector<1x1x64xf32> to vector<1x64xf32>
    %148 = vector.broadcast %147 : vector<1x64xf32> to vector<32x64xf32>
    %149 = arith.addf %145, %148 : vector<32x64xf32>
    %cst_59 = arith.constant 0.000000e+00 : f32
    %150 = vector.broadcast %cst_59 : f32 to vector<32x64xf32>
    %151 = arith.maximumf %149, %150 : vector<32x64xf32>
    %152 = arith.truncf %151 : vector<32x64xf32> to vector<32x64xbf16>
    %c0_60 = arith.constant 0 : index
    %c0_61 = arith.constant 0 : index
    %c0_62 = arith.constant 0 : index
    %153 = vector.load %arg13[%c0_60, %c0_61, %c0_62] : memref<4x64x32xbf16, #tpu.memory_space<vmem>>, vector<1x64x32xbf16>
    %154 = vector.shape_cast %153 : vector<1x64x32xbf16> to vector<64x32xbf16>
    %cst_63 = arith.constant dense<0.000000e+00> : vector<32x32xf32>
    %155 = tpu.matmul %152, %154, %cst_63 {dimension_numbers = #tpu.dot_dimension_numbers<[1], [0], [0], [1], [0, 0, 1, 1], [], []>} : vector<32x64xbf16>, vector<64x32xbf16>, vector<32x32xf32> -> vector<32x32xf32>
    %c0_64 = arith.constant 0 : index
    %c0_65 = arith.constant 0 : index
    %c0_66 = arith.constant 0 : index
    %156 = vector.load %arg14[%c0_64, %c0_65, %c0_66] : memref<4x1x32xf32, #tpu.memory_space<vmem>>, vector<1x1x32xf32>
    %157 = vector.shape_cast %156 : vector<1x1x32xf32> to vector<1x32xf32>
    %158 = vector.broadcast %157 : vector<1x32xf32> to vector<32x32xf32>
    %159 = arith.addf %155, %158 : vector<32x32xf32>
    %160 = arith.addf %141, %159 : vector<32x32xf32>
    %161 = vector.extract_strided_slice %116 {offsets = [2, 0], sizes = [1, 32], strides = [1, 1]} : vector<4x32xf32> to vector<1x32xf32>
    %162 = vector.extract_strided_slice %116 {offsets = [3, 0], sizes = [1, 32], strides = [1, 1]} : vector<4x32xf32> to vector<1x32xf32>
    %cst_67 = arith.constant dense<0.000000e+00> : vector<32xf32>
    %163 = vector.multi_reduction <add>, %160, %cst_67 [1] : vector<32x32xf32> to vector<32xf32>
    %164 = vector.shape_cast %163 : vector<32xf32> to vector<32x1xf32>
    %cst_68 = arith.constant 3.200000e+01 : f32
    %165 = vector.broadcast %cst_68 : f32 to vector<32x1xf32>
    %166 = arith.divf %164, %165 : vector<32x1xf32>
    %167 = vector.broadcast %166 : vector<32x1xf32> to vector<32x32xf32>
    %168 = arith.subf %160, %167 : vector<32x32xf32>
    %169 = arith.mulf %168, %168 : vector<32x32xf32>
    %cst_69 = arith.constant dense<0.000000e+00> : vector<32xf32>
    %170 = vector.multi_reduction <add>, %169, %cst_69 [1] : vector<32x32xf32> to vector<32xf32>
    %171 = vector.shape_cast %170 : vector<32xf32> to vector<32x1xf32>
    %cst_70 = arith.constant 3.200000e+01 : f32
    %172 = vector.broadcast %cst_70 : f32 to vector<32x1xf32>
    %173 = arith.divf %171, %172 : vector<32x1xf32>
    %174 = vector.broadcast %166 : vector<32x1xf32> to vector<32x32xf32>
    %175 = arith.subf %160, %174 : vector<32x32xf32>
    %cst_71 = arith.constant 9.99999974E-6 : f32
    %176 = vector.broadcast %cst_71 : f32 to vector<32x1xf32>
    %177 = arith.addf %173, %176 : vector<32x1xf32>
    %178 = math.rsqrt %177 : vector<32x1xf32>
    %179 = vector.broadcast %178 : vector<32x1xf32> to vector<32x32xf32>
    %180 = arith.mulf %175, %179 : vector<32x32xf32>
    %181 = vector.broadcast %161 : vector<1x32xf32> to vector<32x32xf32>
    %182 = arith.mulf %180, %181 : vector<32x32xf32>
    %183 = vector.broadcast %162 : vector<1x32xf32> to vector<32x32xf32>
    %184 = arith.addf %182, %183 : vector<32x32xf32>
    %185 = arith.truncf %19 : vector<16x32xf32> to vector<16x32xbf16>
    %c2 = arith.constant 2 : index
    %c0_72 = arith.constant 0 : index
    %c0_73 = arith.constant 0 : index
    %186 = vector.load %arg7[%c2, %c0_72, %c0_73] : memref<4x32x96xbf16, #tpu.memory_space<vmem>>, vector<1x32x96xbf16>
    %187 = vector.shape_cast %186 : vector<1x32x96xbf16> to vector<32x96xbf16>
    %cst_74 = arith.constant dense<0.000000e+00> : vector<16x96xf32>
    %188 = tpu.matmul %185, %187, %cst_74 {dimension_numbers = #tpu.dot_dimension_numbers<[1], [0], [0], [1], [0, 0, 1, 1], [], []>} : vector<16x32xbf16>, vector<32x96xbf16>, vector<16x96xf32> -> vector<16x96xf32>
    %c2_75 = arith.constant 2 : index
    %c0_76 = arith.constant 0 : index
    %c0_77 = arith.constant 0 : index
    %189 = vector.load %arg8[%c2_75, %c0_76, %c0_77] : memref<4x1x96xf32, #tpu.memory_space<vmem>>, vector<1x1x96xf32>
    %190 = vector.shape_cast %189 : vector<1x1x96xf32> to vector<1x96xf32>
    %191 = vector.broadcast %190 : vector<1x96xf32> to vector<16x96xf32>
    %192 = arith.addf %188, %191 : vector<16x96xf32>
    %193 = vector.shape_cast %192 : vector<16x96xf32> to vector<2x8x96xf32>
    %194 = vector.extract_strided_slice %193 {offsets = [0, 0, 0], sizes = [2, 8, 8], strides = [1, 1, 1]} : vector<2x8x96xf32> to vector<2x8x8xf32>
    %195 = arith.truncf %194 : vector<2x8x8xf32> to vector<2x8x8xbf16>
    %196 = vector.extract_strided_slice %193 {offsets = [0, 0, 32], sizes = [2, 8, 8], strides = [1, 1, 1]} : vector<2x8x96xf32> to vector<2x8x8xf32>
    %197 = arith.truncf %196 : vector<2x8x8xf32> to vector<2x8x8xbf16>
    %198 = vector.extract_strided_slice %193 {offsets = [0, 0, 64], sizes = [2, 8, 8], strides = [1, 1, 1]} : vector<2x8x96xf32> to vector<2x8x8xf32>
    %199 = arith.truncf %198 : vector<2x8x8xf32> to vector<2x8x8xbf16>
    "tpu.trace_start"() <{level = 10 : i32, message = "blq,bmq->blm"}> : () -> ()
    %cst_78 = arith.constant dense<0.000000e+00> : vector<2x8x8xf32>
    %200 = tpu.matmul %195, %197, %cst_78 {dimension_numbers = #tpu.dot_dimension_numbers<[2], [2], [1], [1], [0, 0, 0, 1, 1, 1], [0], [0]>} : vector<2x8x8xbf16>, vector<2x8x8xbf16>, vector<2x8x8xf32> -> vector<2x8x8xf32>
    "tpu.trace_stop"() : () -> ()
    %cst_79 = arith.constant dense<0xFF800000> : vector<2x8xf32>
    %201 = vector.multi_reduction <maximumf>, %200, %cst_79 [2] : vector<2x8x8xf32> to vector<2x8xf32>
    %202 = vector.shape_cast %201 : vector<2x8xf32> to vector<2x8x1xf32>
    %203 = vector.broadcast %202 : vector<2x8x1xf32> to vector<2x8x8xf32>
    %204 = arith.subf %200, %203 : vector<2x8x8xf32>
    %205 = math.exp %204 : vector<2x8x8xf32>
    %cst_80 = arith.constant dense<0.000000e+00> : vector<2x8xf32>
    %206 = vector.multi_reduction <add>, %205, %cst_80 [2] : vector<2x8x8xf32> to vector<2x8xf32>
    %207 = vector.shape_cast %206 : vector<2x8xf32> to vector<2x8x1xf32>
    %208 = tpu.reciprocal %207 {approx = true} : vector<2x8x1xf32> -> vector<2x8x1xf32>
    %209 = vector.broadcast %208 : vector<2x8x1xf32> to vector<2x8x8xf32>
    %210 = arith.mulf %205, %209 : vector<2x8x8xf32>
    %211 = arith.truncf %210 : vector<2x8x8xf32> to vector<2x8x8xbf16>
    "tpu.trace_start"() <{level = 10 : i32, message = "blm,bmv->blv"}> : () -> ()
    %cst_81 = arith.constant dense<0.000000e+00> : vector<2x8x8xf32>
    %212 = tpu.matmul %211, %199, %cst_81 {dimension_numbers = #tpu.dot_dimension_numbers<[2], [1], [1], [2], [0, 0, 0, 1, 1, 2], [0], [0]>} : vector<2x8x8xbf16>, vector<2x8x8xbf16>, vector<2x8x8xf32> -> vector<2x8x8xf32>
    "tpu.trace_stop"() : () -> ()
    %213 = vector.extract_strided_slice %193 {offsets = [0, 0, 8], sizes = [2, 8, 8], strides = [1, 1, 1]} : vector<2x8x96xf32> to vector<2x8x8xf32>
    %214 = arith.truncf %213 : vector<2x8x8xf32> to vector<2x8x8xbf16>
    %215 = vector.extract_strided_slice %193 {offsets = [0, 0, 40], sizes = [2, 8, 8], strides = [1, 1, 1]} : vector<2x8x96xf32> to vector<2x8x8xf32>
    %216 = arith.truncf %215 : vector<2x8x8xf32> to vector<2x8x8xbf16>
    %217 = vector.extract_strided_slice %193 {offsets = [0, 0, 72], sizes = [2, 8, 8], strides = [1, 1, 1]} : vector<2x8x96xf32> to vector<2x8x8xf32>
    %218 = arith.truncf %217 : vector<2x8x8xf32> to vector<2x8x8xbf16>
    "tpu.trace_start"() <{level = 10 : i32, message = "blq,bmq->blm"}> : () -> ()
    %cst_82 = arith.constant dense<0.000000e+00> : vector<2x8x8xf32>
    %219 = tpu.matmul %214, %216, %cst_82 {dimension_numbers = #tpu.dot_dimension_numbers<[2], [2], [1], [1], [0, 0, 0, 1, 1, 1], [0], [0]>} : vector<2x8x8xbf16>, vector<2x8x8xbf16>, vector<2x8x8xf32> -> vector<2x8x8xf32>
    "tpu.trace_stop"() : () -> ()
    %cst_83 = arith.constant dense<0xFF800000> : vector<2x8xf32>
    %220 = vector.multi_reduction <maximumf>, %219, %cst_83 [2] : vector<2x8x8xf32> to vector<2x8xf32>
    %221 = vector.shape_cast %220 : vector<2x8xf32> to vector<2x8x1xf32>
    %222 = vector.broadcast %221 : vector<2x8x1xf32> to vector<2x8x8xf32>
    %223 = arith.subf %219, %222 : vector<2x8x8xf32>
    %224 = math.exp %223 : vector<2x8x8xf32>
    %cst_84 = arith.constant dense<0.000000e+00> : vector<2x8xf32>
    %225 = vector.multi_reduction <add>, %224, %cst_84 [2] : vector<2x8x8xf32> to vector<2x8xf32>
    %226 = vector.shape_cast %225 : vector<2x8xf32> to vector<2x8x1xf32>
    %227 = tpu.reciprocal %226 {approx = true} : vector<2x8x1xf32> -> vector<2x8x1xf32>
    %228 = vector.broadcast %227 : vector<2x8x1xf32> to vector<2x8x8xf32>
    %229 = arith.mulf %224, %228 : vector<2x8x8xf32>
    %230 = arith.truncf %229 : vector<2x8x8xf32> to vector<2x8x8xbf16>
    "tpu.trace_start"() <{level = 10 : i32, message = "blm,bmv->blv"}> : () -> ()
    %cst_85 = arith.constant dense<0.000000e+00> : vector<2x8x8xf32>
    %231 = tpu.matmul %230, %218, %cst_85 {dimension_numbers = #tpu.dot_dimension_numbers<[2], [1], [1], [2], [0, 0, 0, 1, 1, 2], [0], [0]>} : vector<2x8x8xbf16>, vector<2x8x8xbf16>, vector<2x8x8xf32> -> vector<2x8x8xf32>
    "tpu.trace_stop"() : () -> ()
    %232 = vector.extract_strided_slice %193 {offsets = [0, 0, 16], sizes = [2, 8, 8], strides = [1, 1, 1]} : vector<2x8x96xf32> to vector<2x8x8xf32>
    %233 = arith.truncf %232 : vector<2x8x8xf32> to vector<2x8x8xbf16>
    %234 = vector.extract_strided_slice %193 {offsets = [0, 0, 48], sizes = [2, 8, 8], strides = [1, 1, 1]} : vector<2x8x96xf32> to vector<2x8x8xf32>
    %235 = arith.truncf %234 : vector<2x8x8xf32> to vector<2x8x8xbf16>
    %236 = vector.extract_strided_slice %193 {offsets = [0, 0, 80], sizes = [2, 8, 8], strides = [1, 1, 1]} : vector<2x8x96xf32> to vector<2x8x8xf32>
    %237 = arith.truncf %236 : vector<2x8x8xf32> to vector<2x8x8xbf16>
    "tpu.trace_start"() <{level = 10 : i32, message = "blq,bmq->blm"}> : () -> ()
    %cst_86 = arith.constant dense<0.000000e+00> : vector<2x8x8xf32>
    %238 = tpu.matmul %233, %235, %cst_86 {dimension_numbers = #tpu.dot_dimension_numbers<[2], [2], [1], [1], [0, 0, 0, 1, 1, 1], [0], [0]>} : vector<2x8x8xbf16>, vector<2x8x8xbf16>, vector<2x8x8xf32> -> vector<2x8x8xf32>
    "tpu.trace_stop"() : () -> ()
    %cst_87 = arith.constant dense<0xFF800000> : vector<2x8xf32>
    %239 = vector.multi_reduction <maximumf>, %238, %cst_87 [2] : vector<2x8x8xf32> to vector<2x8xf32>
    %240 = vector.shape_cast %239 : vector<2x8xf32> to vector<2x8x1xf32>
    %241 = vector.broadcast %240 : vector<2x8x1xf32> to vector<2x8x8xf32>
    %242 = arith.subf %238, %241 : vector<2x8x8xf32>
    %243 = math.exp %242 : vector<2x8x8xf32>
    %cst_88 = arith.constant dense<0.000000e+00> : vector<2x8xf32>
    %244 = vector.multi_reduction <add>, %243, %cst_88 [2] : vector<2x8x8xf32> to vector<2x8xf32>
    %245 = vector.shape_cast %244 : vector<2x8xf32> to vector<2x8x1xf32>
    %246 = tpu.reciprocal %245 {approx = true} : vector<2x8x1xf32> -> vector<2x8x1xf32>
    %247 = vector.broadcast %246 : vector<2x8x1xf32> to vector<2x8x8xf32>
    %248 = arith.mulf %243, %247 : vector<2x8x8xf32>
    %249 = arith.truncf %248 : vector<2x8x8xf32> to vector<2x8x8xbf16>
    "tpu.trace_start"() <{level = 10 : i32, message = "blm,bmv->blv"}> : () -> ()
    %cst_89 = arith.constant dense<0.000000e+00> : vector<2x8x8xf32>
    %250 = tpu.matmul %249, %237, %cst_89 {dimension_numbers = #tpu.dot_dimension_numbers<[2], [1], [1], [2], [0, 0, 0, 1, 1, 2], [0], [0]>} : vector<2x8x8xbf16>, vector<2x8x8xbf16>, vector<2x8x8xf32> -> vector<2x8x8xf32>
    "tpu.trace_stop"() : () -> ()
    %251 = vector.extract_strided_slice %193 {offsets = [0, 0, 24], sizes = [2, 8, 8], strides = [1, 1, 1]} : vector<2x8x96xf32> to vector<2x8x8xf32>
    %252 = arith.truncf %251 : vector<2x8x8xf32> to vector<2x8x8xbf16>
    %253 = vector.extract_strided_slice %193 {offsets = [0, 0, 56], sizes = [2, 8, 8], strides = [1, 1, 1]} : vector<2x8x96xf32> to vector<2x8x8xf32>
    %254 = arith.truncf %253 : vector<2x8x8xf32> to vector<2x8x8xbf16>
    %255 = vector.extract_strided_slice %193 {offsets = [0, 0, 88], sizes = [2, 8, 8], strides = [1, 1, 1]} : vector<2x8x96xf32> to vector<2x8x8xf32>
    %256 = arith.truncf %255 : vector<2x8x8xf32> to vector<2x8x8xbf16>
    "tpu.trace_start"() <{level = 10 : i32, message = "blq,bmq->blm"}> : () -> ()
    %cst_90 = arith.constant dense<0.000000e+00> : vector<2x8x8xf32>
    %257 = tpu.matmul %252, %254, %cst_90 {dimension_numbers = #tpu.dot_dimension_numbers<[2], [2], [1], [1], [0, 0, 0, 1, 1, 1], [0], [0]>} : vector<2x8x8xbf16>, vector<2x8x8xbf16>, vector<2x8x8xf32> -> vector<2x8x8xf32>
    "tpu.trace_stop"() : () -> ()
    %cst_91 = arith.constant dense<0xFF800000> : vector<2x8xf32>
    %258 = vector.multi_reduction <maximumf>, %257, %cst_91 [2] : vector<2x8x8xf32> to vector<2x8xf32>
    %259 = vector.shape_cast %258 : vector<2x8xf32> to vector<2x8x1xf32>
    %260 = vector.broadcast %259 : vector<2x8x1xf32> to vector<2x8x8xf32>
    %261 = arith.subf %257, %260 : vector<2x8x8xf32>
    %262 = math.exp %261 : vector<2x8x8xf32>
    %cst_92 = arith.constant dense<0.000000e+00> : vector<2x8xf32>
    %263 = vector.multi_reduction <add>, %262, %cst_92 [2] : vector<2x8x8xf32> to vector<2x8xf32>
    %264 = vector.shape_cast %263 : vector<2x8xf32> to vector<2x8x1xf32>
    %265 = tpu.reciprocal %264 {approx = true} : vector<2x8x1xf32> -> vector<2x8x1xf32>
    %266 = vector.broadcast %265 : vector<2x8x1xf32> to vector<2x8x8xf32>
    %267 = arith.mulf %262, %266 : vector<2x8x8xf32>
    %268 = arith.truncf %267 : vector<2x8x8xf32> to vector<2x8x8xbf16>
    "tpu.trace_start"() <{level = 10 : i32, message = "blm,bmv->blv"}> : () -> ()
    %cst_93 = arith.constant dense<0.000000e+00> : vector<2x8x8xf32>
    %269 = tpu.matmul %268, %256, %cst_93 {dimension_numbers = #tpu.dot_dimension_numbers<[2], [1], [1], [2], [0, 0, 0, 1, 1, 2], [0], [0]>} : vector<2x8x8xbf16>, vector<2x8x8xbf16>, vector<2x8x8xf32> -> vector<2x8x8xf32>
    "tpu.trace_stop"() : () -> ()
    %270 = tpu.concatenate %212, %231, %250, %269 in 2 : vector<2x8x8xf32>, vector<2x8x8xf32>, vector<2x8x8xf32>, vector<2x8x8xf32> -> vector<2x8x32xf32>
    %271 = vector.shape_cast %270 : vector<2x8x32xf32> to vector<16x32xf32>
    %272 = arith.truncf %271 : vector<16x32xf32> to vector<16x32xbf16>
    %c2_94 = arith.constant 2 : index
    %c0_95 = arith.constant 0 : index
    %c0_96 = arith.constant 0 : index
    %273 = vector.load %arg9[%c2_94, %c0_95, %c0_96] : memref<4x32x32xbf16, #tpu.memory_space<vmem>>, vector<1x32x32xbf16>
    %274 = vector.shape_cast %273 : vector<1x32x32xbf16> to vector<32x32xbf16>
    %cst_97 = arith.constant dense<0.000000e+00> : vector<16x32xf32>
    %275 = tpu.matmul %272, %274, %cst_97 {dimension_numbers = #tpu.dot_dimension_numbers<[1], [0], [0], [1], [0, 0, 1, 1], [], []>} : vector<16x32xbf16>, vector<32x32xbf16>, vector<16x32xf32> -> vector<16x32xf32>
    %c2_98 = arith.constant 2 : index
    %c0_99 = arith.constant 0 : index
    %c0_100 = arith.constant 0 : index
    %276 = vector.load %arg10[%c2_98, %c0_99, %c0_100] : memref<4x1x32xf32, #tpu.memory_space<vmem>>, vector<1x1x32xf32>
    %277 = vector.shape_cast %276 : vector<1x1x32xf32> to vector<1x32xf32>
    %278 = vector.broadcast %277 : vector<1x32xf32> to vector<16x32xf32>
    %279 = arith.addf %275, %278 : vector<16x32xf32>
    %c2_101 = arith.constant 2 : index
    %c0_102 = arith.constant 0 : index
    %c0_103 = arith.constant 0 : index
    %280 = vector.load %arg15[%c2_101, %c0_102, %c0_103] : memref<4x4x32xf32, #tpu.memory_space<vmem>>, vector<1x4x32xf32>
    %281 = vector.shape_cast %280 : vector<1x4x32xf32> to vector<4x32xf32>
    %282 = arith.addf %19, %279 : vector<16x32xf32>
    %283 = vector.extract_strided_slice %281 {offsets = [0, 0], sizes = [1, 32], strides = [1, 1]} : vector<4x32xf32> to vector<1x32xf32>
    %284 = vector.extract_strided_slice %281 {offsets = [1, 0], sizes = [1, 32], strides = [1, 1]} : vector<4x32xf32> to vector<1x32xf32>
    %cst_104 = arith.constant dense<0.000000e+00> : vector<16xf32>
    %285 = vector.multi_reduction <add>, %282, %cst_104 [1] : vector<16x32xf32> to vector<16xf32>
    %286 = vector.shape_cast %285 : vector<16xf32> to vector<16x1xf32>
    %cst_105 = arith.constant 3.200000e+01 : f32
    %287 = vector.broadcast %cst_105 : f32 to vector<16x1xf32>
    %288 = arith.divf %286, %287 : vector<16x1xf32>
    %289 = vector.broadcast %288 : vector<16x1xf32> to vector<16x32xf32>
    %290 = arith.subf %282, %289 : vector<16x32xf32>
    %291 = arith.mulf %290, %290 : vector<16x32xf32>
    %cst_106 = arith.constant dense<0.000000e+00> : vector<16xf32>
    %292 = vector.multi_reduction <add>, %291, %cst_106 [1] : vector<16x32xf32> to vector<16xf32>
    %293 = vector.shape_cast %292 : vector<16xf32> to vector<16x1xf32>
    %cst_107 = arith.constant 3.200000e+01 : f32
    %294 = vector.broadcast %cst_107 : f32 to vector<16x1xf32>
    %295 = arith.divf %293, %294 : vector<16x1xf32>
    %296 = vector.broadcast %288 : vector<16x1xf32> to vector<16x32xf32>
    %297 = arith.subf %282, %296 : vector<16x32xf32>
    %cst_108 = arith.constant 9.99999974E-6 : f32
    %298 = vector.broadcast %cst_108 : f32 to vector<16x1xf32>
    %299 = arith.addf %295, %298 : vector<16x1xf32>
    %300 = math.rsqrt %299 : vector<16x1xf32>
    %301 = vector.broadcast %300 : vector<16x1xf32> to vector<16x32xf32>
    %302 = arith.mulf %297, %301 : vector<16x32xf32>
    %303 = vector.broadcast %283 : vector<1x32xf32> to vector<16x32xf32>
    %304 = arith.mulf %302, %303 : vector<16x32xf32>
    %305 = vector.broadcast %284 : vector<1x32xf32> to vector<16x32xf32>
    %306 = arith.addf %304, %305 : vector<16x32xf32>
    %307 = arith.truncf %306 : vector<16x32xf32> to vector<16x32xbf16>
    %c2_109 = arith.constant 2 : index
    %c0_110 = arith.constant 0 : index
    %c0_111 = arith.constant 0 : index
    %308 = vector.load %arg11[%c2_109, %c0_110, %c0_111] : memref<4x32x64xbf16, #tpu.memory_space<vmem>>, vector<1x32x64xbf16>
    %309 = vector.shape_cast %308 : vector<1x32x64xbf16> to vector<32x64xbf16>
    %cst_112 = arith.constant dense<0.000000e+00> : vector<16x64xf32>
    %310 = tpu.matmul %307, %309, %cst_112 {dimension_numbers = #tpu.dot_dimension_numbers<[1], [0], [0], [1], [0, 0, 1, 1], [], []>} : vector<16x32xbf16>, vector<32x64xbf16>, vector<16x64xf32> -> vector<16x64xf32>
    %c2_113 = arith.constant 2 : index
    %c0_114 = arith.constant 0 : index
    %c0_115 = arith.constant 0 : index
    %311 = vector.load %arg12[%c2_113, %c0_114, %c0_115] : memref<4x1x64xf32, #tpu.memory_space<vmem>>, vector<1x1x64xf32>
    %312 = vector.shape_cast %311 : vector<1x1x64xf32> to vector<1x64xf32>
    %313 = vector.broadcast %312 : vector<1x64xf32> to vector<16x64xf32>
    %314 = arith.addf %310, %313 : vector<16x64xf32>
    %cst_116 = arith.constant 0.000000e+00 : f32
    %315 = vector.broadcast %cst_116 : f32 to vector<16x64xf32>
    %316 = arith.maximumf %314, %315 : vector<16x64xf32>
    %317 = arith.truncf %316 : vector<16x64xf32> to vector<16x64xbf16>
    %c2_117 = arith.constant 2 : index
    %c0_118 = arith.constant 0 : index
    %c0_119 = arith.constant 0 : index
    %318 = vector.load %arg13[%c2_117, %c0_118, %c0_119] : memref<4x64x32xbf16, #tpu.memory_space<vmem>>, vector<1x64x32xbf16>
    %319 = vector.shape_cast %318 : vector<1x64x32xbf16> to vector<64x32xbf16>
    %cst_120 = arith.constant dense<0.000000e+00> : vector<16x32xf32>
    %320 = tpu.matmul %317, %319, %cst_120 {dimension_numbers = #tpu.dot_dimension_numbers<[1], [0], [0], [1], [0, 0, 1, 1], [], []>} : vector<16x64xbf16>, vector<64x32xbf16>, vector<16x32xf32> -> vector<16x32xf32>
    %c2_121 = arith.constant 2 : index
    %c0_122 = arith.constant 0 : index
    %c0_123 = arith.constant 0 : index
    %321 = vector.load %arg14[%c2_121, %c0_122, %c0_123] : memref<4x1x32xf32, #tpu.memory_space<vmem>>, vector<1x1x32xf32>
    %322 = vector.shape_cast %321 : vector<1x1x32xf32> to vector<1x32xf32>
    %323 = vector.broadcast %322 : vector<1x32xf32> to vector<16x32xf32>
    %324 = arith.addf %320, %323 : vector<16x32xf32>
    %325 = arith.addf %306, %324 : vector<16x32xf32>
    %326 = vector.extract_strided_slice %281 {offsets = [2, 0], sizes = [1, 32], strides = [1, 1]} : vector<4x32xf32> to vector<1x32xf32>
    %327 = vector.extract_strided_slice %281 {offsets = [3, 0], sizes = [1, 32], strides = [1, 1]} : vector<4x32xf32> to vector<1x32xf32>
    %cst_124 = arith.constant dense<0.000000e+00> : vector<16xf32>
    %328 = vector.multi_reduction <add>, %325, %cst_124 [1] : vector<16x32xf32> to vector<16xf32>
    %329 = vector.shape_cast %328 : vector<16xf32> to vector<16x1xf32>
    %cst_125 = arith.constant 3.200000e+01 : f32
    %330 = vector.broadcast %cst_125 : f32 to vector<16x1xf32>
    %331 = arith.divf %329, %330 : vector<16x1xf32>
    %332 = vector.broadcast %331 : vector<16x1xf32> to vector<16x32xf32>
    %333 = arith.subf %325, %332 : vector<16x32xf32>
    %334 = arith.mulf %333, %333 : vector<16x32xf32>
    %cst_126 = arith.constant dense<0.000000e+00> : vector<16xf32>
    %335 = vector.multi_reduction <add>, %334, %cst_126 [1] : vector<16x32xf32> to vector<16xf32>
    %336 = vector.shape_cast %335 : vector<16xf32> to vector<16x1xf32>
    %cst_127 = arith.constant 3.200000e+01 : f32
    %337 = vector.broadcast %cst_127 : f32 to vector<16x1xf32>
    %338 = arith.divf %336, %337 : vector<16x1xf32>
    %339 = vector.broadcast %331 : vector<16x1xf32> to vector<16x32xf32>
    %340 = arith.subf %325, %339 : vector<16x32xf32>
    %cst_128 = arith.constant 9.99999974E-6 : f32
    %341 = vector.broadcast %cst_128 : f32 to vector<16x1xf32>
    %342 = arith.addf %338, %341 : vector<16x1xf32>
    %343 = math.rsqrt %342 : vector<16x1xf32>
    %344 = vector.broadcast %343 : vector<16x1xf32> to vector<16x32xf32>
    %345 = arith.mulf %340, %344 : vector<16x32xf32>
    %346 = vector.broadcast %326 : vector<1x32xf32> to vector<16x32xf32>
    %347 = arith.mulf %345, %346 : vector<16x32xf32>
    %348 = vector.broadcast %327 : vector<1x32xf32> to vector<16x32xf32>
    %349 = arith.addf %347, %348 : vector<16x32xf32>
    %350 = arith.truncf %184 : vector<32x32xf32> to vector<32x32xbf16>
    %c1 = arith.constant 1 : index
    %c0_129 = arith.constant 0 : index
    %c0_130 = arith.constant 0 : index
    %351 = vector.load %arg7[%c1, %c0_129, %c0_130] : memref<4x32x96xbf16, #tpu.memory_space<vmem>>, vector<1x32x96xbf16>
    %352 = vector.shape_cast %351 : vector<1x32x96xbf16> to vector<32x96xbf16>
    %cst_131 = arith.constant dense<0.000000e+00> : vector<32x96xf32>
    %353 = tpu.matmul %350, %352, %cst_131 {dimension_numbers = #tpu.dot_dimension_numbers<[1], [0], [0], [1], [0, 0, 1, 1], [], []>} : vector<32x32xbf16>, vector<32x96xbf16>, vector<32x96xf32> -> vector<32x96xf32>
    %c1_132 = arith.constant 1 : index
    %c0_133 = arith.constant 0 : index
    %c0_134 = arith.constant 0 : index
    %354 = vector.load %arg8[%c1_132, %c0_133, %c0_134] : memref<4x1x96xf32, #tpu.memory_space<vmem>>, vector<1x1x96xf32>
    %355 = vector.shape_cast %354 : vector<1x1x96xf32> to vector<1x96xf32>
    %356 = vector.broadcast %355 : vector<1x96xf32> to vector<32x96xf32>
    %357 = arith.addf %353, %356 : vector<32x96xf32>
    %358 = vector.shape_cast %357 : vector<32x96xf32> to vector<2x16x96xf32>
    %359 = vector.extract_strided_slice %358 {offsets = [0, 0, 0], sizes = [2, 16, 8], strides = [1, 1, 1]} : vector<2x16x96xf32> to vector<2x16x8xf32>
    %360 = arith.truncf %359 : vector<2x16x8xf32> to vector<2x16x8xbf16>
    %361 = vector.extract_strided_slice %358 {offsets = [0, 0, 32], sizes = [2, 16, 8], strides = [1, 1, 1]} : vector<2x16x96xf32> to vector<2x16x8xf32>
    %362 = arith.truncf %361 : vector<2x16x8xf32> to vector<2x16x8xbf16>
    %363 = vector.extract_strided_slice %358 {offsets = [0, 0, 64], sizes = [2, 16, 8], strides = [1, 1, 1]} : vector<2x16x96xf32> to vector<2x16x8xf32>
    %364 = arith.truncf %363 : vector<2x16x8xf32> to vector<2x16x8xbf16>
    "tpu.trace_start"() <{level = 10 : i32, message = "blq,bmq->blm"}> : () -> ()
    %cst_135 = arith.constant dense<0.000000e+00> : vector<2x16x16xf32>
    %365 = tpu.matmul %360, %362, %cst_135 {dimension_numbers = #tpu.dot_dimension_numbers<[2], [2], [1], [1], [0, 0, 0, 1, 1, 1], [0], [0]>} : vector<2x16x8xbf16>, vector<2x16x8xbf16>, vector<2x16x16xf32> -> vector<2x16x16xf32>
    "tpu.trace_stop"() : () -> ()
    %cst_136 = arith.constant dense<0xFF800000> : vector<2x16xf32>
    %366 = vector.multi_reduction <maximumf>, %365, %cst_136 [2] : vector<2x16x16xf32> to vector<2x16xf32>
    %367 = vector.shape_cast %366 : vector<2x16xf32> to vector<2x16x1xf32>
    %368 = vector.broadcast %367 : vector<2x16x1xf32> to vector<2x16x16xf32>
    %369 = arith.subf %365, %368 : vector<2x16x16xf32>
    %370 = math.exp %369 : vector<2x16x16xf32>
    %cst_137 = arith.constant dense<0.000000e+00> : vector<2x16xf32>
    %371 = vector.multi_reduction <add>, %370, %cst_137 [2] : vector<2x16x16xf32> to vector<2x16xf32>
    %372 = vector.shape_cast %371 : vector<2x16xf32> to vector<2x16x1xf32>
    %373 = tpu.reciprocal %372 {approx = true} : vector<2x16x1xf32> -> vector<2x16x1xf32>
    %374 = vector.broadcast %373 : vector<2x16x1xf32> to vector<2x16x16xf32>
    %375 = arith.mulf %370, %374 : vector<2x16x16xf32>
    %376 = arith.truncf %375 : vector<2x16x16xf32> to vector<2x16x16xbf16>
    "tpu.trace_start"() <{level = 10 : i32, message = "blm,bmv->blv"}> : () -> ()
    %cst_138 = arith.constant dense<0.000000e+00> : vector<2x16x8xf32>
    %377 = tpu.matmul %376, %364, %cst_138 {dimension_numbers = #tpu.dot_dimension_numbers<[2], [1], [1], [2], [0, 0, 0, 1, 1, 2], [0], [0]>} : vector<2x16x16xbf16>, vector<2x16x8xbf16>, vector<2x16x8xf32> -> vector<2x16x8xf32>
    "tpu.trace_stop"() : () -> ()
    %378 = vector.extract_strided_slice %358 {offsets = [0, 0, 8], sizes = [2, 16, 8], strides = [1, 1, 1]} : vector<2x16x96xf32> to vector<2x16x8xf32>
    %379 = arith.truncf %378 : vector<2x16x8xf32> to vector<2x16x8xbf16>
    %380 = vector.extract_strided_slice %358 {offsets = [0, 0, 40], sizes = [2, 16, 8], strides = [1, 1, 1]} : vector<2x16x96xf32> to vector<2x16x8xf32>
    %381 = arith.truncf %380 : vector<2x16x8xf32> to vector<2x16x8xbf16>
    %382 = vector.extract_strided_slice %358 {offsets = [0, 0, 72], sizes = [2, 16, 8], strides = [1, 1, 1]} : vector<2x16x96xf32> to vector<2x16x8xf32>
    %383 = arith.truncf %382 : vector<2x16x8xf32> to vector<2x16x8xbf16>
    "tpu.trace_start"() <{level = 10 : i32, message = "blq,bmq->blm"}> : () -> ()
    %cst_139 = arith.constant dense<0.000000e+00> : vector<2x16x16xf32>
    %384 = tpu.matmul %379, %381, %cst_139 {dimension_numbers = #tpu.dot_dimension_numbers<[2], [2], [1], [1], [0, 0, 0, 1, 1, 1], [0], [0]>} : vector<2x16x8xbf16>, vector<2x16x8xbf16>, vector<2x16x16xf32> -> vector<2x16x16xf32>
    "tpu.trace_stop"() : () -> ()
    %cst_140 = arith.constant dense<0xFF800000> : vector<2x16xf32>
    %385 = vector.multi_reduction <maximumf>, %384, %cst_140 [2] : vector<2x16x16xf32> to vector<2x16xf32>
    %386 = vector.shape_cast %385 : vector<2x16xf32> to vector<2x16x1xf32>
    %387 = vector.broadcast %386 : vector<2x16x1xf32> to vector<2x16x16xf32>
    %388 = arith.subf %384, %387 : vector<2x16x16xf32>
    %389 = math.exp %388 : vector<2x16x16xf32>
    %cst_141 = arith.constant dense<0.000000e+00> : vector<2x16xf32>
    %390 = vector.multi_reduction <add>, %389, %cst_141 [2] : vector<2x16x16xf32> to vector<2x16xf32>
    %391 = vector.shape_cast %390 : vector<2x16xf32> to vector<2x16x1xf32>
    %392 = tpu.reciprocal %391 {approx = true} : vector<2x16x1xf32> -> vector<2x16x1xf32>
    %393 = vector.broadcast %392 : vector<2x16x1xf32> to vector<2x16x16xf32>
    %394 = arith.mulf %389, %393 : vector<2x16x16xf32>
    %395 = arith.truncf %394 : vector<2x16x16xf32> to vector<2x16x16xbf16>
    "tpu.trace_start"() <{level = 10 : i32, message = "blm,bmv->blv"}> : () -> ()
    %cst_142 = arith.constant dense<0.000000e+00> : vector<2x16x8xf32>
    %396 = tpu.matmul %395, %383, %cst_142 {dimension_numbers = #tpu.dot_dimension_numbers<[2], [1], [1], [2], [0, 0, 0, 1, 1, 2], [0], [0]>} : vector<2x16x16xbf16>, vector<2x16x8xbf16>, vector<2x16x8xf32> -> vector<2x16x8xf32>
    "tpu.trace_stop"() : () -> ()
    %397 = vector.extract_strided_slice %358 {offsets = [0, 0, 16], sizes = [2, 16, 8], strides = [1, 1, 1]} : vector<2x16x96xf32> to vector<2x16x8xf32>
    %398 = arith.truncf %397 : vector<2x16x8xf32> to vector<2x16x8xbf16>
    %399 = vector.extract_strided_slice %358 {offsets = [0, 0, 48], sizes = [2, 16, 8], strides = [1, 1, 1]} : vector<2x16x96xf32> to vector<2x16x8xf32>
    %400 = arith.truncf %399 : vector<2x16x8xf32> to vector<2x16x8xbf16>
    %401 = vector.extract_strided_slice %358 {offsets = [0, 0, 80], sizes = [2, 16, 8], strides = [1, 1, 1]} : vector<2x16x96xf32> to vector<2x16x8xf32>
    %402 = arith.truncf %401 : vector<2x16x8xf32> to vector<2x16x8xbf16>
    "tpu.trace_start"() <{level = 10 : i32, message = "blq,bmq->blm"}> : () -> ()
    %cst_143 = arith.constant dense<0.000000e+00> : vector<2x16x16xf32>
    %403 = tpu.matmul %398, %400, %cst_143 {dimension_numbers = #tpu.dot_dimension_numbers<[2], [2], [1], [1], [0, 0, 0, 1, 1, 1], [0], [0]>} : vector<2x16x8xbf16>, vector<2x16x8xbf16>, vector<2x16x16xf32> -> vector<2x16x16xf32>
    "tpu.trace_stop"() : () -> ()
    %cst_144 = arith.constant dense<0xFF800000> : vector<2x16xf32>
    %404 = vector.multi_reduction <maximumf>, %403, %cst_144 [2] : vector<2x16x16xf32> to vector<2x16xf32>
    %405 = vector.shape_cast %404 : vector<2x16xf32> to vector<2x16x1xf32>
    %406 = vector.broadcast %405 : vector<2x16x1xf32> to vector<2x16x16xf32>
    %407 = arith.subf %403, %406 : vector<2x16x16xf32>
    %408 = math.exp %407 : vector<2x16x16xf32>
    %cst_145 = arith.constant dense<0.000000e+00> : vector<2x16xf32>
    %409 = vector.multi_reduction <add>, %408, %cst_145 [2] : vector<2x16x16xf32> to vector<2x16xf32>
    %410 = vector.shape_cast %409 : vector<2x16xf32> to vector<2x16x1xf32>
    %411 = tpu.reciprocal %410 {approx = true} : vector<2x16x1xf32> -> vector<2x16x1xf32>
    %412 = vector.broadcast %411 : vector<2x16x1xf32> to vector<2x16x16xf32>
    %413 = arith.mulf %408, %412 : vector<2x16x16xf32>
    %414 = arith.truncf %413 : vector<2x16x16xf32> to vector<2x16x16xbf16>
    "tpu.trace_start"() <{level = 10 : i32, message = "blm,bmv->blv"}> : () -> ()
    %cst_146 = arith.constant dense<0.000000e+00> : vector<2x16x8xf32>
    %415 = tpu.matmul %414, %402, %cst_146 {dimension_numbers = #tpu.dot_dimension_numbers<[2], [1], [1], [2], [0, 0, 0, 1, 1, 2], [0], [0]>} : vector<2x16x16xbf16>, vector<2x16x8xbf16>, vector<2x16x8xf32> -> vector<2x16x8xf32>
    "tpu.trace_stop"() : () -> ()
    %416 = vector.extract_strided_slice %358 {offsets = [0, 0, 24], sizes = [2, 16, 8], strides = [1, 1, 1]} : vector<2x16x96xf32> to vector<2x16x8xf32>
    %417 = arith.truncf %416 : vector<2x16x8xf32> to vector<2x16x8xbf16>
    %418 = vector.extract_strided_slice %358 {offsets = [0, 0, 56], sizes = [2, 16, 8], strides = [1, 1, 1]} : vector<2x16x96xf32> to vector<2x16x8xf32>
    %419 = arith.truncf %418 : vector<2x16x8xf32> to vector<2x16x8xbf16>
    %420 = vector.extract_strided_slice %358 {offsets = [0, 0, 88], sizes = [2, 16, 8], strides = [1, 1, 1]} : vector<2x16x96xf32> to vector<2x16x8xf32>
    %421 = arith.truncf %420 : vector<2x16x8xf32> to vector<2x16x8xbf16>
    "tpu.trace_start"() <{level = 10 : i32, message = "blq,bmq->blm"}> : () -> ()
    %cst_147 = arith.constant dense<0.000000e+00> : vector<2x16x16xf32>
    %422 = tpu.matmul %417, %419, %cst_147 {dimension_numbers = #tpu.dot_dimension_numbers<[2], [2], [1], [1], [0, 0, 0, 1, 1, 1], [0], [0]>} : vector<2x16x8xbf16>, vector<2x16x8xbf16>, vector<2x16x16xf32> -> vector<2x16x16xf32>
    "tpu.trace_stop"() : () -> ()
    %cst_148 = arith.constant dense<0xFF800000> : vector<2x16xf32>
    %423 = vector.multi_reduction <maximumf>, %422, %cst_148 [2] : vector<2x16x16xf32> to vector<2x16xf32>
    %424 = vector.shape_cast %423 : vector<2x16xf32> to vector<2x16x1xf32>
    %425 = vector.broadcast %424 : vector<2x16x1xf32> to vector<2x16x16xf32>
    %426 = arith.subf %422, %425 : vector<2x16x16xf32>
    %427 = math.exp %426 : vector<2x16x16xf32>
    %cst_149 = arith.constant dense<0.000000e+00> : vector<2x16xf32>
    %428 = vector.multi_reduction <add>, %427, %cst_149 [2] : vector<2x16x16xf32> to vector<2x16xf32>
    %429 = vector.shape_cast %428 : vector<2x16xf32> to vector<2x16x1xf32>
    %430 = tpu.reciprocal %429 {approx = true} : vector<2x16x1xf32> -> vector<2x16x1xf32>
    %431 = vector.broadcast %430 : vector<2x16x1xf32> to vector<2x16x16xf32>
    %432 = arith.mulf %427, %431 : vector<2x16x16xf32>
    %433 = arith.truncf %432 : vector<2x16x16xf32> to vector<2x16x16xbf16>
    "tpu.trace_start"() <{level = 10 : i32, message = "blm,bmv->blv"}> : () -> ()
    %cst_150 = arith.constant dense<0.000000e+00> : vector<2x16x8xf32>
    %434 = tpu.matmul %433, %421, %cst_150 {dimension_numbers = #tpu.dot_dimension_numbers<[2], [1], [1], [2], [0, 0, 0, 1, 1, 2], [0], [0]>} : vector<2x16x16xbf16>, vector<2x16x8xbf16>, vector<2x16x8xf32> -> vector<2x16x8xf32>
    "tpu.trace_stop"() : () -> ()
    %435 = tpu.concatenate %377, %396, %415, %434 in 2 : vector<2x16x8xf32>, vector<2x16x8xf32>, vector<2x16x8xf32>, vector<2x16x8xf32> -> vector<2x16x32xf32>
    %436 = vector.shape_cast %435 : vector<2x16x32xf32> to vector<32x32xf32>
    %437 = arith.truncf %436 : vector<32x32xf32> to vector<32x32xbf16>
    %c1_151 = arith.constant 1 : index
    %c0_152 = arith.constant 0 : index
    %c0_153 = arith.constant 0 : index
    %438 = vector.load %arg9[%c1_151, %c0_152, %c0_153] : memref<4x32x32xbf16, #tpu.memory_space<vmem>>, vector<1x32x32xbf16>
    %439 = vector.shape_cast %438 : vector<1x32x32xbf16> to vector<32x32xbf16>
    %cst_154 = arith.constant dense<0.000000e+00> : vector<32x32xf32>
    %440 = tpu.matmul %437, %439, %cst_154 {dimension_numbers = #tpu.dot_dimension_numbers<[1], [0], [0], [1], [0, 0, 1, 1], [], []>} : vector<32x32xbf16>, vector<32x32xbf16>, vector<32x32xf32> -> vector<32x32xf32>
    %c1_155 = arith.constant 1 : index
    %c0_156 = arith.constant 0 : index
    %c0_157 = arith.constant 0 : index
    %441 = vector.load %arg10[%c1_155, %c0_156, %c0_157] : memref<4x1x32xf32, #tpu.memory_space<vmem>>, vector<1x1x32xf32>
    %442 = vector.shape_cast %441 : vector<1x1x32xf32> to vector<1x32xf32>
    %443 = vector.broadcast %442 : vector<1x32xf32> to vector<32x32xf32>
    %444 = arith.addf %440, %443 : vector<32x32xf32>
    %c1_158 = arith.constant 1 : index
    %c0_159 = arith.constant 0 : index
    %c0_160 = arith.constant 0 : index
    %445 = vector.load %arg15[%c1_158, %c0_159, %c0_160] : memref<4x4x32xf32, #tpu.memory_space<vmem>>, vector<1x4x32xf32>
    %446 = vector.shape_cast %445 : vector<1x4x32xf32> to vector<4x32xf32>
    %447 = arith.addf %184, %444 : vector<32x32xf32>
    %448 = vector.extract_strided_slice %446 {offsets = [0, 0], sizes = [1, 32], strides = [1, 1]} : vector<4x32xf32> to vector<1x32xf32>
    %449 = vector.extract_strided_slice %446 {offsets = [1, 0], sizes = [1, 32], strides = [1, 1]} : vector<4x32xf32> to vector<1x32xf32>
    %cst_161 = arith.constant dense<0.000000e+00> : vector<32xf32>
    %450 = vector.multi_reduction <add>, %447, %cst_161 [1] : vector<32x32xf32> to vector<32xf32>
    %451 = vector.shape_cast %450 : vector<32xf32> to vector<32x1xf32>
    %cst_162 = arith.constant 3.200000e+01 : f32
    %452 = vector.broadcast %cst_162 : f32 to vector<32x1xf32>
    %453 = arith.divf %451, %452 : vector<32x1xf32>
    %454 = vector.broadcast %453 : vector<32x1xf32> to vector<32x32xf32>
    %455 = arith.subf %447, %454 : vector<32x32xf32>
    %456 = arith.mulf %455, %455 : vector<32x32xf32>
    %cst_163 = arith.constant dense<0.000000e+00> : vector<32xf32>
    %457 = vector.multi_reduction <add>, %456, %cst_163 [1] : vector<32x32xf32> to vector<32xf32>
    %458 = vector.shape_cast %457 : vector<32xf32> to vector<32x1xf32>
    %cst_164 = arith.constant 3.200000e+01 : f32
    %459 = vector.broadcast %cst_164 : f32 to vector<32x1xf32>
    %460 = arith.divf %458, %459 : vector<32x1xf32>
    %461 = vector.broadcast %453 : vector<32x1xf32> to vector<32x32xf32>
    %462 = arith.subf %447, %461 : vector<32x32xf32>
    %cst_165 = arith.constant 9.99999974E-6 : f32
    %463 = vector.broadcast %cst_165 : f32 to vector<32x1xf32>
    %464 = arith.addf %460, %463 : vector<32x1xf32>
    %465 = math.rsqrt %464 : vector<32x1xf32>
    %466 = vector.broadcast %465 : vector<32x1xf32> to vector<32x32xf32>
    %467 = arith.mulf %462, %466 : vector<32x32xf32>
    %468 = vector.broadcast %448 : vector<1x32xf32> to vector<32x32xf32>
    %469 = arith.mulf %467, %468 : vector<32x32xf32>
    %470 = vector.broadcast %449 : vector<1x32xf32> to vector<32x32xf32>
    %471 = arith.addf %469, %470 : vector<32x32xf32>
    %472 = arith.truncf %471 : vector<32x32xf32> to vector<32x32xbf16>
    %c1_166 = arith.constant 1 : index
    %c0_167 = arith.constant 0 : index
    %c0_168 = arith.constant 0 : index
    %473 = vector.load %arg11[%c1_166, %c0_167, %c0_168] : memref<4x32x64xbf16, #tpu.memory_space<vmem>>, vector<1x32x64xbf16>
    %474 = vector.shape_cast %473 : vector<1x32x64xbf16> to vector<32x64xbf16>
    %cst_169 = arith.constant dense<0.000000e+00> : vector<32x64xf32>
    %475 = tpu.matmul %472, %474, %cst_169 {dimension_numbers = #tpu.dot_dimension_numbers<[1], [0], [0], [1], [0, 0, 1, 1], [], []>} : vector<32x32xbf16>, vector<32x64xbf16>, vector<32x64xf32> -> vector<32x64xf32>
    %c1_170 = arith.constant 1 : index
    %c0_171 = arith.constant 0 : index
    %c0_172 = arith.constant 0 : index
    %476 = vector.load %arg12[%c1_170, %c0_171, %c0_172] : memref<4x1x64xf32, #tpu.memory_space<vmem>>, vector<1x1x64xf32>
    %477 = vector.shape_cast %476 : vector<1x1x64xf32> to vector<1x64xf32>
    %478 = vector.broadcast %477 : vector<1x64xf32> to vector<32x64xf32>
    %479 = arith.addf %475, %478 : vector<32x64xf32>
    %cst_173 = arith.constant 0.000000e+00 : f32
    %480 = vector.broadcast %cst_173 : f32 to vector<32x64xf32>
    %481 = arith.maximumf %479, %480 : vector<32x64xf32>
    %482 = arith.truncf %481 : vector<32x64xf32> to vector<32x64xbf16>
    %c1_174 = arith.constant 1 : index
    %c0_175 = arith.constant 0 : index
    %c0_176 = arith.constant 0 : index
    %483 = vector.load %arg13[%c1_174, %c0_175, %c0_176] : memref<4x64x32xbf16, #tpu.memory_space<vmem>>, vector<1x64x32xbf16>
    %484 = vector.shape_cast %483 : vector<1x64x32xbf16> to vector<64x32xbf16>
    %cst_177 = arith.constant dense<0.000000e+00> : vector<32x32xf32>
    %485 = tpu.matmul %482, %484, %cst_177 {dimension_numbers = #tpu.dot_dimension_numbers<[1], [0], [0], [1], [0, 0, 1, 1], [], []>} : vector<32x64xbf16>, vector<64x32xbf16>, vector<32x32xf32> -> vector<32x32xf32>
    %c1_178 = arith.constant 1 : index
    %c0_179 = arith.constant 0 : index
    %c0_180 = arith.constant 0 : index
    %486 = vector.load %arg14[%c1_178, %c0_179, %c0_180] : memref<4x1x32xf32, #tpu.memory_space<vmem>>, vector<1x1x32xf32>
    %487 = vector.shape_cast %486 : vector<1x1x32xf32> to vector<1x32xf32>
    %488 = vector.broadcast %487 : vector<1x32xf32> to vector<32x32xf32>
    %489 = arith.addf %485, %488 : vector<32x32xf32>
    %490 = arith.addf %471, %489 : vector<32x32xf32>
    %491 = vector.extract_strided_slice %446 {offsets = [2, 0], sizes = [1, 32], strides = [1, 1]} : vector<4x32xf32> to vector<1x32xf32>
    %492 = vector.extract_strided_slice %446 {offsets = [3, 0], sizes = [1, 32], strides = [1, 1]} : vector<4x32xf32> to vector<1x32xf32>
    %cst_181 = arith.constant dense<0.000000e+00> : vector<32xf32>
    %493 = vector.multi_reduction <add>, %490, %cst_181 [1] : vector<32x32xf32> to vector<32xf32>
    %494 = vector.shape_cast %493 : vector<32xf32> to vector<32x1xf32>
    %cst_182 = arith.constant 3.200000e+01 : f32
    %495 = vector.broadcast %cst_182 : f32 to vector<32x1xf32>
    %496 = arith.divf %494, %495 : vector<32x1xf32>
    %497 = vector.broadcast %496 : vector<32x1xf32> to vector<32x32xf32>
    %498 = arith.subf %490, %497 : vector<32x32xf32>
    %499 = arith.mulf %498, %498 : vector<32x32xf32>
    %cst_183 = arith.constant dense<0.000000e+00> : vector<32xf32>
    %500 = vector.multi_reduction <add>, %499, %cst_183 [1] : vector<32x32xf32> to vector<32xf32>
    %501 = vector.shape_cast %500 : vector<32xf32> to vector<32x1xf32>
    %cst_184 = arith.constant 3.200000e+01 : f32
    %502 = vector.broadcast %cst_184 : f32 to vector<32x1xf32>
    %503 = arith.divf %501, %502 : vector<32x1xf32>
    %504 = vector.broadcast %496 : vector<32x1xf32> to vector<32x32xf32>
    %505 = arith.subf %490, %504 : vector<32x32xf32>
    %cst_185 = arith.constant 9.99999974E-6 : f32
    %506 = vector.broadcast %cst_185 : f32 to vector<32x1xf32>
    %507 = arith.addf %503, %506 : vector<32x1xf32>
    %508 = math.rsqrt %507 : vector<32x1xf32>
    %509 = vector.broadcast %508 : vector<32x1xf32> to vector<32x32xf32>
    %510 = arith.mulf %505, %509 : vector<32x32xf32>
    %511 = vector.broadcast %491 : vector<1x32xf32> to vector<32x32xf32>
    %512 = arith.mulf %510, %511 : vector<32x32xf32>
    %513 = vector.broadcast %492 : vector<1x32xf32> to vector<32x32xf32>
    %514 = arith.addf %512, %513 : vector<32x32xf32>
    %515 = arith.truncf %349 : vector<16x32xf32> to vector<16x32xbf16>
    %c3 = arith.constant 3 : index
    %c0_186 = arith.constant 0 : index
    %c0_187 = arith.constant 0 : index
    %516 = vector.load %arg7[%c3, %c0_186, %c0_187] : memref<4x32x96xbf16, #tpu.memory_space<vmem>>, vector<1x32x96xbf16>
    %517 = vector.shape_cast %516 : vector<1x32x96xbf16> to vector<32x96xbf16>
    %cst_188 = arith.constant dense<0.000000e+00> : vector<16x96xf32>
    %518 = tpu.matmul %515, %517, %cst_188 {dimension_numbers = #tpu.dot_dimension_numbers<[1], [0], [0], [1], [0, 0, 1, 1], [], []>} : vector<16x32xbf16>, vector<32x96xbf16>, vector<16x96xf32> -> vector<16x96xf32>
    %c3_189 = arith.constant 3 : index
    %c0_190 = arith.constant 0 : index
    %c0_191 = arith.constant 0 : index
    %519 = vector.load %arg8[%c3_189, %c0_190, %c0_191] : memref<4x1x96xf32, #tpu.memory_space<vmem>>, vector<1x1x96xf32>
    %520 = vector.shape_cast %519 : vector<1x1x96xf32> to vector<1x96xf32>
    %521 = vector.broadcast %520 : vector<1x96xf32> to vector<16x96xf32>
    %522 = arith.addf %518, %521 : vector<16x96xf32>
    %523 = vector.shape_cast %522 : vector<16x96xf32> to vector<2x8x96xf32>
    %524 = vector.extract_strided_slice %523 {offsets = [0, 0, 0], sizes = [2, 8, 8], strides = [1, 1, 1]} : vector<2x8x96xf32> to vector<2x8x8xf32>
    %525 = arith.truncf %524 : vector<2x8x8xf32> to vector<2x8x8xbf16>
    %526 = vector.extract_strided_slice %523 {offsets = [0, 0, 32], sizes = [2, 8, 8], strides = [1, 1, 1]} : vector<2x8x96xf32> to vector<2x8x8xf32>
    %527 = arith.truncf %526 : vector<2x8x8xf32> to vector<2x8x8xbf16>
    %528 = vector.extract_strided_slice %523 {offsets = [0, 0, 64], sizes = [2, 8, 8], strides = [1, 1, 1]} : vector<2x8x96xf32> to vector<2x8x8xf32>
    %529 = arith.truncf %528 : vector<2x8x8xf32> to vector<2x8x8xbf16>
    "tpu.trace_start"() <{level = 10 : i32, message = "blq,bmq->blm"}> : () -> ()
    %cst_192 = arith.constant dense<0.000000e+00> : vector<2x8x8xf32>
    %530 = tpu.matmul %525, %527, %cst_192 {dimension_numbers = #tpu.dot_dimension_numbers<[2], [2], [1], [1], [0, 0, 0, 1, 1, 1], [0], [0]>} : vector<2x8x8xbf16>, vector<2x8x8xbf16>, vector<2x8x8xf32> -> vector<2x8x8xf32>
    "tpu.trace_stop"() : () -> ()
    %cst_193 = arith.constant dense<0xFF800000> : vector<2x8xf32>
    %531 = vector.multi_reduction <maximumf>, %530, %cst_193 [2] : vector<2x8x8xf32> to vector<2x8xf32>
    %532 = vector.shape_cast %531 : vector<2x8xf32> to vector<2x8x1xf32>
    %533 = vector.broadcast %532 : vector<2x8x1xf32> to vector<2x8x8xf32>
    %534 = arith.subf %530, %533 : vector<2x8x8xf32>
    %535 = math.exp %534 : vector<2x8x8xf32>
    %cst_194 = arith.constant dense<0.000000e+00> : vector<2x8xf32>
    %536 = vector.multi_reduction <add>, %535, %cst_194 [2] : vector<2x8x8xf32> to vector<2x8xf32>
    %537 = vector.shape_cast %536 : vector<2x8xf32> to vector<2x8x1xf32>
    %538 = tpu.reciprocal %537 {approx = true} : vector<2x8x1xf32> -> vector<2x8x1xf32>
    %539 = vector.broadcast %538 : vector<2x8x1xf32> to vector<2x8x8xf32>
    %540 = arith.mulf %535, %539 : vector<2x8x8xf32>
    %541 = arith.truncf %540 : vector<2x8x8xf32> to vector<2x8x8xbf16>
    "tpu.trace_start"() <{level = 10 : i32, message = "blm,bmv->blv"}> : () -> ()
    %cst_195 = arith.constant dense<0.000000e+00> : vector<2x8x8xf32>
    %542 = tpu.matmul %541, %529, %cst_195 {dimension_numbers = #tpu.dot_dimension_numbers<[2], [1], [1], [2], [0, 0, 0, 1, 1, 2], [0], [0]>} : vector<2x8x8xbf16>, vector<2x8x8xbf16>, vector<2x8x8xf32> -> vector<2x8x8xf32>
    "tpu.trace_stop"() : () -> ()
    %543 = vector.extract_strided_slice %523 {offsets = [0, 0, 8], sizes = [2, 8, 8], strides = [1, 1, 1]} : vector<2x8x96xf32> to vector<2x8x8xf32>
    %544 = arith.truncf %543 : vector<2x8x8xf32> to vector<2x8x8xbf16>
    %545 = vector.extract_strided_slice %523 {offsets = [0, 0, 40], sizes = [2, 8, 8], strides = [1, 1, 1]} : vector<2x8x96xf32> to vector<2x8x8xf32>
    %546 = arith.truncf %545 : vector<2x8x8xf32> to vector<2x8x8xbf16>
    %547 = vector.extract_strided_slice %523 {offsets = [0, 0, 72], sizes = [2, 8, 8], strides = [1, 1, 1]} : vector<2x8x96xf32> to vector<2x8x8xf32>
    %548 = arith.truncf %547 : vector<2x8x8xf32> to vector<2x8x8xbf16>
    "tpu.trace_start"() <{level = 10 : i32, message = "blq,bmq->blm"}> : () -> ()
    %cst_196 = arith.constant dense<0.000000e+00> : vector<2x8x8xf32>
    %549 = tpu.matmul %544, %546, %cst_196 {dimension_numbers = #tpu.dot_dimension_numbers<[2], [2], [1], [1], [0, 0, 0, 1, 1, 1], [0], [0]>} : vector<2x8x8xbf16>, vector<2x8x8xbf16>, vector<2x8x8xf32> -> vector<2x8x8xf32>
    "tpu.trace_stop"() : () -> ()
    %cst_197 = arith.constant dense<0xFF800000> : vector<2x8xf32>
    %550 = vector.multi_reduction <maximumf>, %549, %cst_197 [2] : vector<2x8x8xf32> to vector<2x8xf32>
    %551 = vector.shape_cast %550 : vector<2x8xf32> to vector<2x8x1xf32>
    %552 = vector.broadcast %551 : vector<2x8x1xf32> to vector<2x8x8xf32>
    %553 = arith.subf %549, %552 : vector<2x8x8xf32>
    %554 = math.exp %553 : vector<2x8x8xf32>
    %cst_198 = arith.constant dense<0.000000e+00> : vector<2x8xf32>
    %555 = vector.multi_reduction <add>, %554, %cst_198 [2] : vector<2x8x8xf32> to vector<2x8xf32>
    %556 = vector.shape_cast %555 : vector<2x8xf32> to vector<2x8x1xf32>
    %557 = tpu.reciprocal %556 {approx = true} : vector<2x8x1xf32> -> vector<2x8x1xf32>
    %558 = vector.broadcast %557 : vector<2x8x1xf32> to vector<2x8x8xf32>
    %559 = arith.mulf %554, %558 : vector<2x8x8xf32>
    %560 = arith.truncf %559 : vector<2x8x8xf32> to vector<2x8x8xbf16>
    "tpu.trace_start"() <{level = 10 : i32, message = "blm,bmv->blv"}> : () -> ()
    %cst_199 = arith.constant dense<0.000000e+00> : vector<2x8x8xf32>
    %561 = tpu.matmul %560, %548, %cst_199 {dimension_numbers = #tpu.dot_dimension_numbers<[2], [1], [1], [2], [0, 0, 0, 1, 1, 2], [0], [0]>} : vector<2x8x8xbf16>, vector<2x8x8xbf16>, vector<2x8x8xf32> -> vector<2x8x8xf32>
    "tpu.trace_stop"() : () -> ()
    %562 = vector.extract_strided_slice %523 {offsets = [0, 0, 16], sizes = [2, 8, 8], strides = [1, 1, 1]} : vector<2x8x96xf32> to vector<2x8x8xf32>
    %563 = arith.truncf %562 : vector<2x8x8xf32> to vector<2x8x8xbf16>
    %564 = vector.extract_strided_slice %523 {offsets = [0, 0, 48], sizes = [2, 8, 8], strides = [1, 1, 1]} : vector<2x8x96xf32> to vector<2x8x8xf32>
    %565 = arith.truncf %564 : vector<2x8x8xf32> to vector<2x8x8xbf16>
    %566 = vector.extract_strided_slice %523 {offsets = [0, 0, 80], sizes = [2, 8, 8], strides = [1, 1, 1]} : vector<2x8x96xf32> to vector<2x8x8xf32>
    %567 = arith.truncf %566 : vector<2x8x8xf32> to vector<2x8x8xbf16>
    "tpu.trace_start"() <{level = 10 : i32, message = "blq,bmq->blm"}> : () -> ()
    %cst_200 = arith.constant dense<0.000000e+00> : vector<2x8x8xf32>
    %568 = tpu.matmul %563, %565, %cst_200 {dimension_numbers = #tpu.dot_dimension_numbers<[2], [2], [1], [1], [0, 0, 0, 1, 1, 1], [0], [0]>} : vector<2x8x8xbf16>, vector<2x8x8xbf16>, vector<2x8x8xf32> -> vector<2x8x8xf32>
    "tpu.trace_stop"() : () -> ()
    %cst_201 = arith.constant dense<0xFF800000> : vector<2x8xf32>
    %569 = vector.multi_reduction <maximumf>, %568, %cst_201 [2] : vector<2x8x8xf32> to vector<2x8xf32>
    %570 = vector.shape_cast %569 : vector<2x8xf32> to vector<2x8x1xf32>
    %571 = vector.broadcast %570 : vector<2x8x1xf32> to vector<2x8x8xf32>
    %572 = arith.subf %568, %571 : vector<2x8x8xf32>
    %573 = math.exp %572 : vector<2x8x8xf32>
    %cst_202 = arith.constant dense<0.000000e+00> : vector<2x8xf32>
    %574 = vector.multi_reduction <add>, %573, %cst_202 [2] : vector<2x8x8xf32> to vector<2x8xf32>
    %575 = vector.shape_cast %574 : vector<2x8xf32> to vector<2x8x1xf32>
    %576 = tpu.reciprocal %575 {approx = true} : vector<2x8x1xf32> -> vector<2x8x1xf32>
    %577 = vector.broadcast %576 : vector<2x8x1xf32> to vector<2x8x8xf32>
    %578 = arith.mulf %573, %577 : vector<2x8x8xf32>
    %579 = arith.truncf %578 : vector<2x8x8xf32> to vector<2x8x8xbf16>
    "tpu.trace_start"() <{level = 10 : i32, message = "blm,bmv->blv"}> : () -> ()
    %cst_203 = arith.constant dense<0.000000e+00> : vector<2x8x8xf32>
    %580 = tpu.matmul %579, %567, %cst_203 {dimension_numbers = #tpu.dot_dimension_numbers<[2], [1], [1], [2], [0, 0, 0, 1, 1, 2], [0], [0]>} : vector<2x8x8xbf16>, vector<2x8x8xbf16>, vector<2x8x8xf32> -> vector<2x8x8xf32>
    "tpu.trace_stop"() : () -> ()
    %581 = vector.extract_strided_slice %523 {offsets = [0, 0, 24], sizes = [2, 8, 8], strides = [1, 1, 1]} : vector<2x8x96xf32> to vector<2x8x8xf32>
    %582 = arith.truncf %581 : vector<2x8x8xf32> to vector<2x8x8xbf16>
    %583 = vector.extract_strided_slice %523 {offsets = [0, 0, 56], sizes = [2, 8, 8], strides = [1, 1, 1]} : vector<2x8x96xf32> to vector<2x8x8xf32>
    %584 = arith.truncf %583 : vector<2x8x8xf32> to vector<2x8x8xbf16>
    %585 = vector.extract_strided_slice %523 {offsets = [0, 0, 88], sizes = [2, 8, 8], strides = [1, 1, 1]} : vector<2x8x96xf32> to vector<2x8x8xf32>
    %586 = arith.truncf %585 : vector<2x8x8xf32> to vector<2x8x8xbf16>
    "tpu.trace_start"() <{level = 10 : i32, message = "blq,bmq->blm"}> : () -> ()
    %cst_204 = arith.constant dense<0.000000e+00> : vector<2x8x8xf32>
    %587 = tpu.matmul %582, %584, %cst_204 {dimension_numbers = #tpu.dot_dimension_numbers<[2], [2], [1], [1], [0, 0, 0, 1, 1, 1], [0], [0]>} : vector<2x8x8xbf16>, vector<2x8x8xbf16>, vector<2x8x8xf32> -> vector<2x8x8xf32>
    "tpu.trace_stop"() : () -> ()
    %cst_205 = arith.constant dense<0xFF800000> : vector<2x8xf32>
    %588 = vector.multi_reduction <maximumf>, %587, %cst_205 [2] : vector<2x8x8xf32> to vector<2x8xf32>
    %589 = vector.shape_cast %588 : vector<2x8xf32> to vector<2x8x1xf32>
    %590 = vector.broadcast %589 : vector<2x8x1xf32> to vector<2x8x8xf32>
    %591 = arith.subf %587, %590 : vector<2x8x8xf32>
    %592 = math.exp %591 : vector<2x8x8xf32>
    %cst_206 = arith.constant dense<0.000000e+00> : vector<2x8xf32>
    %593 = vector.multi_reduction <add>, %592, %cst_206 [2] : vector<2x8x8xf32> to vector<2x8xf32>
    %594 = vector.shape_cast %593 : vector<2x8xf32> to vector<2x8x1xf32>
    %595 = tpu.reciprocal %594 {approx = true} : vector<2x8x1xf32> -> vector<2x8x1xf32>
    %596 = vector.broadcast %595 : vector<2x8x1xf32> to vector<2x8x8xf32>
    %597 = arith.mulf %592, %596 : vector<2x8x8xf32>
    %598 = arith.truncf %597 : vector<2x8x8xf32> to vector<2x8x8xbf16>
    "tpu.trace_start"() <{level = 10 : i32, message = "blm,bmv->blv"}> : () -> ()
    %cst_207 = arith.constant dense<0.000000e+00> : vector<2x8x8xf32>
    %599 = tpu.matmul %598, %586, %cst_207 {dimension_numbers = #tpu.dot_dimension_numbers<[2], [1], [1], [2], [0, 0, 0, 1, 1, 2], [0], [0]>} : vector<2x8x8xbf16>, vector<2x8x8xbf16>, vector<2x8x8xf32> -> vector<2x8x8xf32>
    "tpu.trace_stop"() : () -> ()
    %600 = tpu.concatenate %542, %561, %580, %599 in 2 : vector<2x8x8xf32>, vector<2x8x8xf32>, vector<2x8x8xf32>, vector<2x8x8xf32> -> vector<2x8x32xf32>
    %601 = vector.shape_cast %600 : vector<2x8x32xf32> to vector<16x32xf32>
    %602 = arith.truncf %601 : vector<16x32xf32> to vector<16x32xbf16>
    %c3_208 = arith.constant 3 : index
    %c0_209 = arith.constant 0 : index
    %c0_210 = arith.constant 0 : index
    %603 = vector.load %arg9[%c3_208, %c0_209, %c0_210] : memref<4x32x32xbf16, #tpu.memory_space<vmem>>, vector<1x32x32xbf16>
    %604 = vector.shape_cast %603 : vector<1x32x32xbf16> to vector<32x32xbf16>
    %cst_211 = arith.constant dense<0.000000e+00> : vector<16x32xf32>
    %605 = tpu.matmul %602, %604, %cst_211 {dimension_numbers = #tpu.dot_dimension_numbers<[1], [0], [0], [1], [0, 0, 1, 1], [], []>} : vector<16x32xbf16>, vector<32x32xbf16>, vector<16x32xf32> -> vector<16x32xf32>
    %c3_212 = arith.constant 3 : index
    %c0_213 = arith.constant 0 : index
    %c0_214 = arith.constant 0 : index
    %606 = vector.load %arg10[%c3_212, %c0_213, %c0_214] : memref<4x1x32xf32, #tpu.memory_space<vmem>>, vector<1x1x32xf32>
    %607 = vector.shape_cast %606 : vector<1x1x32xf32> to vector<1x32xf32>
    %608 = vector.broadcast %607 : vector<1x32xf32> to vector<16x32xf32>
    %609 = arith.addf %605, %608 : vector<16x32xf32>
    %c3_215 = arith.constant 3 : index
    %c0_216 = arith.constant 0 : index
    %c0_217 = arith.constant 0 : index
    %610 = vector.load %arg15[%c3_215, %c0_216, %c0_217] : memref<4x4x32xf32, #tpu.memory_space<vmem>>, vector<1x4x32xf32>
    %611 = vector.shape_cast %610 : vector<1x4x32xf32> to vector<4x32xf32>
    %612 = arith.addf %349, %609 : vector<16x32xf32>
    %613 = vector.extract_strided_slice %611 {offsets = [0, 0], sizes = [1, 32], strides = [1, 1]} : vector<4x32xf32> to vector<1x32xf32>
    %614 = vector.extract_strided_slice %611 {offsets = [1, 0], sizes = [1, 32], strides = [1, 1]} : vector<4x32xf32> to vector<1x32xf32>
    %cst_218 = arith.constant dense<0.000000e+00> : vector<16xf32>
    %615 = vector.multi_reduction <add>, %612, %cst_218 [1] : vector<16x32xf32> to vector<16xf32>
    %616 = vector.shape_cast %615 : vector<16xf32> to vector<16x1xf32>
    %cst_219 = arith.constant 3.200000e+01 : f32
    %617 = vector.broadcast %cst_219 : f32 to vector<16x1xf32>
    %618 = arith.divf %616, %617 : vector<16x1xf32>
    %619 = vector.broadcast %618 : vector<16x1xf32> to vector<16x32xf32>
    %620 = arith.subf %612, %619 : vector<16x32xf32>
    %621 = arith.mulf %620, %620 : vector<16x32xf32>
    %cst_220 = arith.constant dense<0.000000e+00> : vector<16xf32>
    %622 = vector.multi_reduction <add>, %621, %cst_220 [1] : vector<16x32xf32> to vector<16xf32>
    %623 = vector.shape_cast %622 : vector<16xf32> to vector<16x1xf32>
    %cst_221 = arith.constant 3.200000e+01 : f32
    %624 = vector.broadcast %cst_221 : f32 to vector<16x1xf32>
    %625 = arith.divf %623, %624 : vector<16x1xf32>
    %626 = vector.broadcast %618 : vector<16x1xf32> to vector<16x32xf32>
    %627 = arith.subf %612, %626 : vector<16x32xf32>
    %cst_222 = arith.constant 9.99999974E-6 : f32
    %628 = vector.broadcast %cst_222 : f32 to vector<16x1xf32>
    %629 = arith.addf %625, %628 : vector<16x1xf32>
    %630 = math.rsqrt %629 : vector<16x1xf32>
    %631 = vector.broadcast %630 : vector<16x1xf32> to vector<16x32xf32>
    %632 = arith.mulf %627, %631 : vector<16x32xf32>
    %633 = vector.broadcast %613 : vector<1x32xf32> to vector<16x32xf32>
    %634 = arith.mulf %632, %633 : vector<16x32xf32>
    %635 = vector.broadcast %614 : vector<1x32xf32> to vector<16x32xf32>
    %636 = arith.addf %634, %635 : vector<16x32xf32>
    %637 = arith.truncf %636 : vector<16x32xf32> to vector<16x32xbf16>
    %c3_223 = arith.constant 3 : index
    %c0_224 = arith.constant 0 : index
    %c0_225 = arith.constant 0 : index
    %638 = vector.load %arg11[%c3_223, %c0_224, %c0_225] : memref<4x32x64xbf16, #tpu.memory_space<vmem>>, vector<1x32x64xbf16>
    %639 = vector.shape_cast %638 : vector<1x32x64xbf16> to vector<32x64xbf16>
    %cst_226 = arith.constant dense<0.000000e+00> : vector<16x64xf32>
    %640 = tpu.matmul %637, %639, %cst_226 {dimension_numbers = #tpu.dot_dimension_numbers<[1], [0], [0], [1], [0, 0, 1, 1], [], []>} : vector<16x32xbf16>, vector<32x64xbf16>, vector<16x64xf32> -> vector<16x64xf32>
    %c3_227 = arith.constant 3 : index
    %c0_228 = arith.constant 0 : index
    %c0_229 = arith.constant 0 : index
    %641 = vector.load %arg12[%c3_227, %c0_228, %c0_229] : memref<4x1x64xf32, #tpu.memory_space<vmem>>, vector<1x1x64xf32>
    %642 = vector.shape_cast %641 : vector<1x1x64xf32> to vector<1x64xf32>
    %643 = vector.broadcast %642 : vector<1x64xf32> to vector<16x64xf32>
    %644 = arith.addf %640, %643 : vector<16x64xf32>
    %cst_230 = arith.constant 0.000000e+00 : f32
    %645 = vector.broadcast %cst_230 : f32 to vector<16x64xf32>
    %646 = arith.maximumf %644, %645 : vector<16x64xf32>
    %647 = arith.truncf %646 : vector<16x64xf32> to vector<16x64xbf16>
    %c3_231 = arith.constant 3 : index
    %c0_232 = arith.constant 0 : index
    %c0_233 = arith.constant 0 : index
    %648 = vector.load %arg13[%c3_231, %c0_232, %c0_233] : memref<4x64x32xbf16, #tpu.memory_space<vmem>>, vector<1x64x32xbf16>
    %649 = vector.shape_cast %648 : vector<1x64x32xbf16> to vector<64x32xbf16>
    %cst_234 = arith.constant dense<0.000000e+00> : vector<16x32xf32>
    %650 = tpu.matmul %647, %649, %cst_234 {dimension_numbers = #tpu.dot_dimension_numbers<[1], [0], [0], [1], [0, 0, 1, 1], [], []>} : vector<16x64xbf16>, vector<64x32xbf16>, vector<16x32xf32> -> vector<16x32xf32>
    %c3_235 = arith.constant 3 : index
    %c0_236 = arith.constant 0 : index
    %c0_237 = arith.constant 0 : index
    %651 = vector.load %arg14[%c3_235, %c0_236, %c0_237] : memref<4x1x32xf32, #tpu.memory_space<vmem>>, vector<1x1x32xf32>
    %652 = vector.shape_cast %651 : vector<1x1x32xf32> to vector<1x32xf32>
    %653 = vector.broadcast %652 : vector<1x32xf32> to vector<16x32xf32>
    %654 = arith.addf %650, %653 : vector<16x32xf32>
    %655 = arith.addf %636, %654 : vector<16x32xf32>
    %656 = vector.extract_strided_slice %611 {offsets = [2, 0], sizes = [1, 32], strides = [1, 1]} : vector<4x32xf32> to vector<1x32xf32>
    %657 = vector.extract_strided_slice %611 {offsets = [3, 0], sizes = [1, 32], strides = [1, 1]} : vector<4x32xf32> to vector<1x32xf32>
    %cst_238 = arith.constant dense<0.000000e+00> : vector<16xf32>
    %658 = vector.multi_reduction <add>, %655, %cst_238 [1] : vector<16x32xf32> to vector<16xf32>
    %659 = vector.shape_cast %658 : vector<16xf32> to vector<16x1xf32>
    %cst_239 = arith.constant 3.200000e+01 : f32
    %660 = vector.broadcast %cst_239 : f32 to vector<16x1xf32>
    %661 = arith.divf %659, %660 : vector<16x1xf32>
    %662 = vector.broadcast %661 : vector<16x1xf32> to vector<16x32xf32>
    %663 = arith.subf %655, %662 : vector<16x32xf32>
    %664 = arith.mulf %663, %663 : vector<16x32xf32>
    %cst_240 = arith.constant dense<0.000000e+00> : vector<16xf32>
    %665 = vector.multi_reduction <add>, %664, %cst_240 [1] : vector<16x32xf32> to vector<16xf32>
    %666 = vector.shape_cast %665 : vector<16xf32> to vector<16x1xf32>
    %cst_241 = arith.constant 3.200000e+01 : f32
    %667 = vector.broadcast %cst_241 : f32 to vector<16x1xf32>
    %668 = arith.divf %666, %667 : vector<16x1xf32>
    %669 = vector.broadcast %661 : vector<16x1xf32> to vector<16x32xf32>
    %670 = arith.subf %655, %669 : vector<16x32xf32>
    %cst_242 = arith.constant 9.99999974E-6 : f32
    %671 = vector.broadcast %cst_242 : f32 to vector<16x1xf32>
    %672 = arith.addf %668, %671 : vector<16x1xf32>
    %673 = math.rsqrt %672 : vector<16x1xf32>
    %674 = vector.broadcast %673 : vector<16x1xf32> to vector<16x32xf32>
    %675 = arith.mulf %670, %674 : vector<16x32xf32>
    %676 = vector.broadcast %656 : vector<1x32xf32> to vector<16x32xf32>
    %677 = arith.mulf %675, %676 : vector<16x32xf32>
    %678 = vector.broadcast %657 : vector<1x32xf32> to vector<16x32xf32>
    %679 = arith.addf %677, %678 : vector<16x32xf32>
    %680 = vector.shape_cast %514 : vector<32x32xf32> to vector<2x16x32xf32>
    %681 = vector.shape_cast %679 : vector<16x32xf32> to vector<2x8x32xf32>
    %c0_243 = arith.constant 0 : index
    %c0_244 = arith.constant 0 : index
    %c0_245 = arith.constant 0 : index
    %682 = vector.load %arg16[%c0_243, %c0_244, %c0_245] : memref<2x16x32xf32, #tpu.memory_space<vmem>>, vector<1x16x32xf32>
    %683 = vector.shape_cast %682 : vector<1x16x32xf32> to vector<16x32xf32>
    %684 = vector.shape_cast %683 : vector<16x32xf32> to vector<1x16x32xf32>
    %685 = vector.broadcast %684 : vector<1x16x32xf32> to vector<2x16x32xf32>
    %686 = arith.mulf %680, %685 : vector<2x16x32xf32>
    %cst_246 = arith.constant dense<0.000000e+00> : vector<2x16xf32>
    %687 = vector.multi_reduction <add>, %686, %cst_246 [2] : vector<2x16x32xf32> to vector<2x16xf32>
    %cst_247 = arith.constant dense<0.000000e+00> : vector<2xf32>
    %688 = vector.multi_reduction <add>, %687, %cst_247 [1] : vector<2x16xf32> to vector<2xf32>
    %689 = vector.shape_cast %688 : vector<2xf32> to vector<2x1xf32>
    %c1_248 = arith.constant 1 : index
    %c0_249 = arith.constant 0 : index
    %c0_250 = arith.constant 0 : index
    %690 = vector.load %arg16[%c1_248, %c0_249, %c0_250] : memref<2x16x32xf32, #tpu.memory_space<vmem>>, vector<1x16x32xf32>
    %691 = vector.shape_cast %690 : vector<1x16x32xf32> to vector<16x32xf32>
    %692 = vector.shape_cast %691 : vector<16x32xf32> to vector<1x16x32xf32>
    %693 = vector.broadcast %692 : vector<1x16x32xf32> to vector<2x16x32xf32>
    %694 = arith.mulf %680, %693 : vector<2x16x32xf32>
    %cst_251 = arith.constant dense<0.000000e+00> : vector<2x16xf32>
    %695 = vector.multi_reduction <add>, %694, %cst_251 [2] : vector<2x16x32xf32> to vector<2x16xf32>
    %cst_252 = arith.constant dense<0.000000e+00> : vector<2xf32>
    %696 = vector.multi_reduction <add>, %695, %cst_252 [1] : vector<2x16xf32> to vector<2xf32>
    %697 = vector.shape_cast %696 : vector<2xf32> to vector<2x1xf32>
    %698 = tpu.concatenate %689, %697 in 1 : vector<2x1xf32>, vector<2x1xf32> -> vector<2x2xf32>
    %c0_253 = arith.constant 0 : index
    %c0_254 = arith.constant 0 : index
    %c0_255 = arith.constant 0 : index
    %699 = vector.load %arg17[%c0_253, %c0_254, %c0_255] : memref<2x8x32xf32, #tpu.memory_space<vmem>>, vector<1x8x32xf32>
    %700 = vector.shape_cast %699 : vector<1x8x32xf32> to vector<8x32xf32>
    %701 = vector.shape_cast %700 : vector<8x32xf32> to vector<1x8x32xf32>
    %702 = vector.broadcast %701 : vector<1x8x32xf32> to vector<2x8x32xf32>
    %703 = arith.mulf %681, %702 : vector<2x8x32xf32>
    %cst_256 = arith.constant dense<0.000000e+00> : vector<2x8xf32>
    %704 = vector.multi_reduction <add>, %703, %cst_256 [2] : vector<2x8x32xf32> to vector<2x8xf32>
    %cst_257 = arith.constant dense<0.000000e+00> : vector<2xf32>
    %705 = vector.multi_reduction <add>, %704, %cst_257 [1] : vector<2x8xf32> to vector<2xf32>
    %706 = vector.shape_cast %705 : vector<2xf32> to vector<2x1xf32>
    %c1_258 = arith.constant 1 : index
    %c0_259 = arith.constant 0 : index
    %c0_260 = arith.constant 0 : index
    %707 = vector.load %arg17[%c1_258, %c0_259, %c0_260] : memref<2x8x32xf32, #tpu.memory_space<vmem>>, vector<1x8x32xf32>
    %708 = vector.shape_cast %707 : vector<1x8x32xf32> to vector<8x32xf32>
    %709 = vector.shape_cast %708 : vector<8x32xf32> to vector<1x8x32xf32>
    %710 = vector.broadcast %709 : vector<1x8x32xf32> to vector<2x8x32xf32>
    %711 = arith.mulf %681, %710 : vector<2x8x32xf32>
    %cst_261 = arith.constant dense<0.000000e+00> : vector<2x8xf32>
    %712 = vector.multi_reduction <add>, %711, %cst_261 [2] : vector<2x8x32xf32> to vector<2x8xf32>
    %cst_262 = arith.constant dense<0.000000e+00> : vector<2xf32>
    %713 = vector.multi_reduction <add>, %712, %cst_262 [1] : vector<2x8xf32> to vector<2xf32>
    %714 = vector.shape_cast %713 : vector<2xf32> to vector<2x1xf32>
    %715 = tpu.concatenate %706, %714 in 1 : vector<2x1xf32>, vector<2x1xf32> -> vector<2x2xf32>
    %716 = arith.addf %698, %715 : vector<2x2xf32>
    %c0_263 = arith.constant 0 : index
    %c0_264 = arith.constant 0 : index
    %717 = vector.load %arg18[%c0_263, %c0_264] : memref<1x2xf32, #tpu.memory_space<vmem>>, vector<1x2xf32>
    %718 = vector.broadcast %717 : vector<1x2xf32> to vector<2x2xf32>
    %719 = arith.addf %716, %718 : vector<2x2xf32>
    %cst_265 = arith.constant dense<0xFF800000> : vector<2xf32>
    %720 = vector.multi_reduction <maximumf>, %719, %cst_265 [1] : vector<2x2xf32> to vector<2xf32>
    %721 = vector.shape_cast %720 : vector<2xf32> to vector<2x1xf32>
    %722 = vector.broadcast %721 : vector<2x1xf32> to vector<2x2xf32>
    %723 = arith.subf %719, %722 : vector<2x2xf32>
    %724 = math.exp %723 : vector<2x2xf32>
    %cst_266 = arith.constant dense<0.000000e+00> : vector<2xf32>
    %725 = vector.multi_reduction <add>, %724, %cst_266 [1] : vector<2x2xf32> to vector<2xf32>
    %726 = vector.shape_cast %725 : vector<2xf32> to vector<2x1xf32>
    %727 = vector.broadcast %726 : vector<2x1xf32> to vector<2x2xf32>
    %728 = arith.divf %724, %727 : vector<2x2xf32>
    %729 = vector.extract_strided_slice %728 {offsets = [0, 0], sizes = [2, 1], strides = [1, 1]} : vector<2x2xf32> to vector<2x1xf32>
    %c0_267 = arith.constant 0 : index
    %c0_268 = arith.constant 0 : index
    %c0_269 = arith.constant 0 : index
    %730 = vector.load %arg19[%c0_267, %c0_268, %c0_269] : memref<4x16x32xf32, #tpu.memory_space<vmem>>, vector<1x16x32xf32>
    %731 = vector.shape_cast %730 : vector<1x16x32xf32> to vector<16x32xf32>
    %732 = vector.shape_cast %731 : vector<16x32xf32> to vector<1x16x32xf32>
    %733 = vector.broadcast %732 : vector<1x16x32xf32> to vector<2x16x32xf32>
    %734 = arith.mulf %680, %733 : vector<2x16x32xf32>
    %cst_270 = arith.constant dense<0.000000e+00> : vector<2x16xf32>
    %735 = vector.multi_reduction <add>, %734, %cst_270 [2] : vector<2x16x32xf32> to vector<2x16xf32>
    %cst_271 = arith.constant dense<0.000000e+00> : vector<2xf32>
    %736 = vector.multi_reduction <add>, %735, %cst_271 [1] : vector<2x16xf32> to vector<2xf32>
    %737 = vector.shape_cast %736 : vector<2xf32> to vector<2x1xf32>
    %c1_272 = arith.constant 1 : index
    %c0_273 = arith.constant 0 : index
    %c0_274 = arith.constant 0 : index
    %738 = vector.load %arg19[%c1_272, %c0_273, %c0_274] : memref<4x16x32xf32, #tpu.memory_space<vmem>>, vector<1x16x32xf32>
    %739 = vector.shape_cast %738 : vector<1x16x32xf32> to vector<16x32xf32>
    %740 = vector.shape_cast %739 : vector<16x32xf32> to vector<1x16x32xf32>
    %741 = vector.broadcast %740 : vector<1x16x32xf32> to vector<2x16x32xf32>
    %742 = arith.mulf %680, %741 : vector<2x16x32xf32>
    %cst_275 = arith.constant dense<0.000000e+00> : vector<2x16xf32>
    %743 = vector.multi_reduction <add>, %742, %cst_275 [2] : vector<2x16x32xf32> to vector<2x16xf32>
    %cst_276 = arith.constant dense<0.000000e+00> : vector<2xf32>
    %744 = vector.multi_reduction <add>, %743, %cst_276 [1] : vector<2x16xf32> to vector<2xf32>
    %745 = vector.shape_cast %744 : vector<2xf32> to vector<2x1xf32>
    %c2_277 = arith.constant 2 : index
    %c0_278 = arith.constant 0 : index
    %c0_279 = arith.constant 0 : index
    %746 = vector.load %arg19[%c2_277, %c0_278, %c0_279] : memref<4x16x32xf32, #tpu.memory_space<vmem>>, vector<1x16x32xf32>
    %747 = vector.shape_cast %746 : vector<1x16x32xf32> to vector<16x32xf32>
    %748 = vector.shape_cast %747 : vector<16x32xf32> to vector<1x16x32xf32>
    %749 = vector.broadcast %748 : vector<1x16x32xf32> to vector<2x16x32xf32>
    %750 = arith.mulf %680, %749 : vector<2x16x32xf32>
    %cst_280 = arith.constant dense<0.000000e+00> : vector<2x16xf32>
    %751 = vector.multi_reduction <add>, %750, %cst_280 [2] : vector<2x16x32xf32> to vector<2x16xf32>
    %cst_281 = arith.constant dense<0.000000e+00> : vector<2xf32>
    %752 = vector.multi_reduction <add>, %751, %cst_281 [1] : vector<2x16xf32> to vector<2xf32>
    %753 = vector.shape_cast %752 : vector<2xf32> to vector<2x1xf32>
    %c3_282 = arith.constant 3 : index
    %c0_283 = arith.constant 0 : index
    %c0_284 = arith.constant 0 : index
    %754 = vector.load %arg19[%c3_282, %c0_283, %c0_284] : memref<4x16x32xf32, #tpu.memory_space<vmem>>, vector<1x16x32xf32>
    %755 = vector.shape_cast %754 : vector<1x16x32xf32> to vector<16x32xf32>
    %756 = vector.shape_cast %755 : vector<16x32xf32> to vector<1x16x32xf32>
    %757 = vector.broadcast %756 : vector<1x16x32xf32> to vector<2x16x32xf32>
    %758 = arith.mulf %680, %757 : vector<2x16x32xf32>
    %cst_285 = arith.constant dense<0.000000e+00> : vector<2x16xf32>
    %759 = vector.multi_reduction <add>, %758, %cst_285 [2] : vector<2x16x32xf32> to vector<2x16xf32>
    %cst_286 = arith.constant dense<0.000000e+00> : vector<2xf32>
    %760 = vector.multi_reduction <add>, %759, %cst_286 [1] : vector<2x16xf32> to vector<2xf32>
    %761 = vector.shape_cast %760 : vector<2xf32> to vector<2x1xf32>
    %762 = tpu.concatenate %737, %745, %753, %761 in 1 : vector<2x1xf32>, vector<2x1xf32>, vector<2x1xf32>, vector<2x1xf32> -> vector<2x4xf32>
    %763 = vector.broadcast %729 : vector<2x1xf32> to vector<2x4xf32>
    %764 = arith.mulf %763, %762 : vector<2x4xf32>
    %765 = vector.extract_strided_slice %728 {offsets = [0, 1], sizes = [2, 1], strides = [1, 1]} : vector<2x2xf32> to vector<2x1xf32>
    %c0_287 = arith.constant 0 : index
    %c0_288 = arith.constant 0 : index
    %c0_289 = arith.constant 0 : index
    %766 = vector.load %arg20[%c0_287, %c0_288, %c0_289] : memref<4x8x32xf32, #tpu.memory_space<vmem>>, vector<1x8x32xf32>
    %767 = vector.shape_cast %766 : vector<1x8x32xf32> to vector<8x32xf32>
    %768 = vector.shape_cast %767 : vector<8x32xf32> to vector<1x8x32xf32>
    %769 = vector.broadcast %768 : vector<1x8x32xf32> to vector<2x8x32xf32>
    %770 = arith.mulf %681, %769 : vector<2x8x32xf32>
    %cst_290 = arith.constant dense<0.000000e+00> : vector<2x8xf32>
    %771 = vector.multi_reduction <add>, %770, %cst_290 [2] : vector<2x8x32xf32> to vector<2x8xf32>
    %cst_291 = arith.constant dense<0.000000e+00> : vector<2xf32>
    %772 = vector.multi_reduction <add>, %771, %cst_291 [1] : vector<2x8xf32> to vector<2xf32>
    %773 = vector.shape_cast %772 : vector<2xf32> to vector<2x1xf32>
    %c1_292 = arith.constant 1 : index
    %c0_293 = arith.constant 0 : index
    %c0_294 = arith.constant 0 : index
    %774 = vector.load %arg20[%c1_292, %c0_293, %c0_294] : memref<4x8x32xf32, #tpu.memory_space<vmem>>, vector<1x8x32xf32>
    %775 = vector.shape_cast %774 : vector<1x8x32xf32> to vector<8x32xf32>
    %776 = vector.shape_cast %775 : vector<8x32xf32> to vector<1x8x32xf32>
    %777 = vector.broadcast %776 : vector<1x8x32xf32> to vector<2x8x32xf32>
    %778 = arith.mulf %681, %777 : vector<2x8x32xf32>
    %cst_295 = arith.constant dense<0.000000e+00> : vector<2x8xf32>
    %779 = vector.multi_reduction <add>, %778, %cst_295 [2] : vector<2x8x32xf32> to vector<2x8xf32>
    %cst_296 = arith.constant dense<0.000000e+00> : vector<2xf32>
    %780 = vector.multi_reduction <add>, %779, %cst_296 [1] : vector<2x8xf32> to vector<2xf32>
    %781 = vector.shape_cast %780 : vector<2xf32> to vector<2x1xf32>
    %c2_297 = arith.constant 2 : index
    %c0_298 = arith.constant 0 : index
    %c0_299 = arith.constant 0 : index
    %782 = vector.load %arg20[%c2_297, %c0_298, %c0_299] : memref<4x8x32xf32, #tpu.memory_space<vmem>>, vector<1x8x32xf32>
    %783 = vector.shape_cast %782 : vector<1x8x32xf32> to vector<8x32xf32>
    %784 = vector.shape_cast %783 : vector<8x32xf32> to vector<1x8x32xf32>
    %785 = vector.broadcast %784 : vector<1x8x32xf32> to vector<2x8x32xf32>
    %786 = arith.mulf %681, %785 : vector<2x8x32xf32>
    %cst_300 = arith.constant dense<0.000000e+00> : vector<2x8xf32>
    %787 = vector.multi_reduction <add>, %786, %cst_300 [2] : vector<2x8x32xf32> to vector<2x8xf32>
    %cst_301 = arith.constant dense<0.000000e+00> : vector<2xf32>
    %788 = vector.multi_reduction <add>, %787, %cst_301 [1] : vector<2x8xf32> to vector<2xf32>
    %789 = vector.shape_cast %788 : vector<2xf32> to vector<2x1xf32>
    %c3_302 = arith.constant 3 : index
    %c0_303 = arith.constant 0 : index
    %c0_304 = arith.constant 0 : index
    %790 = vector.load %arg20[%c3_302, %c0_303, %c0_304] : memref<4x8x32xf32, #tpu.memory_space<vmem>>, vector<1x8x32xf32>
    %791 = vector.shape_cast %790 : vector<1x8x32xf32> to vector<8x32xf32>
    %792 = vector.shape_cast %791 : vector<8x32xf32> to vector<1x8x32xf32>
    %793 = vector.broadcast %792 : vector<1x8x32xf32> to vector<2x8x32xf32>
    %794 = arith.mulf %681, %793 : vector<2x8x32xf32>
    %cst_305 = arith.constant dense<0.000000e+00> : vector<2x8xf32>
    %795 = vector.multi_reduction <add>, %794, %cst_305 [2] : vector<2x8x32xf32> to vector<2x8xf32>
    %cst_306 = arith.constant dense<0.000000e+00> : vector<2xf32>
    %796 = vector.multi_reduction <add>, %795, %cst_306 [1] : vector<2x8xf32> to vector<2xf32>
    %797 = vector.shape_cast %796 : vector<2xf32> to vector<2x1xf32>
    %798 = tpu.concatenate %773, %781, %789, %797 in 1 : vector<2x1xf32>, vector<2x1xf32>, vector<2x1xf32>, vector<2x1xf32> -> vector<2x4xf32>
    %799 = vector.broadcast %765 : vector<2x1xf32> to vector<2x4xf32>
    %800 = arith.mulf %799, %798 : vector<2x4xf32>
    %801 = arith.addf %764, %800 : vector<2x4xf32>
    %c0_307 = arith.constant 0 : index
    %c0_308 = arith.constant 0 : index
    %802 = vector.load %arg21[%c0_307, %c0_308] : memref<1x4xf32, #tpu.memory_space<vmem>>, vector<1x4xf32>
    %803 = vector.broadcast %802 : vector<1x4xf32> to vector<2x4xf32>
    %804 = arith.addf %801, %803 : vector<2x4xf32>
    %c0_309 = arith.constant 0 : index
    %c0_310 = arith.constant 0 : index
    %805 = vector.load %arg22[%c0_309, %c0_310] : memref<2x4xf32, #tpu.memory_space<vmem>>, vector<2x4xf32>
    tpu.vector_store %arg22[%c0_309, %c0_310], %804 {strides = array<i32>} : memref<2x4xf32, #tpu.memory_space<vmem>>, vector<2x4xf32>,
    return
  }
}

</mosaic_0001>

<llo_original>
// kernel: transformer_forward.1
$region0: #{transformer_forward.1}
  #allocation0 [shape = 'u32[]', space=smem, size = 0x4, offset = 0x4, fixed_abs, tag = 'smem constant byte address 0x4 - core index']
  #allocation1 [shape = 'u32[144,128]{1,0:T(1,128)}', space=vmem, size = 0x12000, scoped, tag = 'internal scratch']
  %s0 = inlined_call_operand.vmem [shape: f32[32,8], index: 0, kind: input, shape index: {}]
  %s1 = inlined_call_operand.vmem [shape: f32[16,16], index: 1, kind: input, shape index: {}]
  %s2 = inlined_call_operand.vmem [shape: f32[16,32], index: 2, kind: input, shape index: {}]
  %s3 = inlined_call_operand.hbm [shape: bf16[8,32], index: 3, kind: input, shape index: {}]
  %s4 = inlined_call_operand.vmem [shape: f32[1,32], index: 4, kind: input, shape index: {}]
  %s5 = inlined_call_operand.hbm [shape: bf16[16,32], index: 5, kind: input, shape index: {}]
  %s6 = inlined_call_operand.vmem [shape: f32[1,32], index: 6, kind: input, shape index: {}]
  %s7 = inlined_call_operand.vmem [shape: bf16[4,32,96], index: 7, kind: input, shape index: {}]
  %s8 = inlined_call_operand.hbm [shape: f32[4,1,96], index: 8, kind: input, shape index: {}]
  %s9 = inlined_call_operand.vmem [shape: bf16[4,32,32], index: 9, kind: input, shape index: {}]
  %s10 = inlined_call_operand.hbm [shape: f32[4,1,32], index: 10, kind: input, shape index: {}]
  %s11 = inlined_call_operand.vmem [shape: bf16[4,32,64], index: 11, kind: input, shape index: {}]
  %s12 = inlined_call_operand.hbm [shape: f32[4,1,64], index: 12, kind: input, shape index: {}]
  %s13 = inlined_call_operand.vmem [shape: bf16[4,64,32], index: 13, kind: input, shape index: {}]
  %s14 = inlined_call_operand.hbm [shape: f32[4,1,32], index: 14, kind: input, shape index: {}]
  %s15 = inlined_call_operand.vmem [shape: f32[4,4,32], index: 15, kind: input, shape index: {}]
  %s16 = inlined_call_operand.vmem [shape: f32[2,16,32], index: 16, kind: input, shape index: {}]
  %s17 = inlined_call_operand.hbm [shape: f32[2,8,32], index: 17, kind: input, shape index: {}]
  %s18 = inlined_call_operand.vmem [shape: f32[1,2], index: 18, kind: input, shape index: {}]
  %s19 = inlined_call_operand.vmem [shape: f32[4,16,32], index: 19, kind: input, shape index: {}]
  %s20 = inlined_call_operand.vmem [shape: f32[4,8,32], index: 20, kind: input, shape index: {}]
  %s21 = inlined_call_operand.hbm [shape: f32[1,4], index: 21, kind: input, shape index: {}]
  %s22 = inlined_call_operand.hbm [shape: f32[2,4], index: 22, kind: output, shape index: {}]
  %s23 = sld [smem:[#allocation0]]
  $region130: #{transformer_forward.1} parent=0
    _
  %s25 = ssub.s32 1, %s23
  %s26 = scalar_select 0, %s25, %s23
  $region1: #{transformer_forward.1} parent=0
    #allocation2 [shape = 'u8[2048]{0}', space=vmem, size = 0x800, scoped, tag = 'input window, operand 3, single buffered']
    #allocation3 [shape = 's32[1]{0}', space=sflag, size = 0x4, scoped, tag = 'scoped memory for transformer_forward.1']
    #allocation4 [shape = 's32[1]{0}', space=sflag, size = 0x4, scoped, tag = 'scoped memory for transformer_forward.1']
    #allocation5 [shape = 'u8[4096]{0}', space=vmem, size = 0x1000, scoped, tag = 'input window, operand 5, single buffered']
    #allocation6 [shape = 's32[1]{0}', space=sflag, size = 0x4, scoped, tag = 'scoped memory for transformer_forward.1']
    #allocation7 [shape = 'u8[2048]{0}', space=vmem, size = 0x800, scoped, tag = 'input window, operand 8, single buffered']
    #allocation8 [shape = 'u8[2048]{0}', space=vmem, size = 0x800, scoped, tag = 'input window, operand 10, single buffered']
    #allocation9 [shape = 's32[1]{0}', space=sflag, size = 0x4, scoped, tag = 'scoped memory for transformer_forward.1']
    #allocation10 [shape = 'u8[2048]{0}', space=vmem, size = 0x800, scoped, tag = 'input window, operand 12, single buffered']
    #allocation11 [shape = 'u8[2048]{0}', space=vmem, size = 0x800, scoped, tag = 'input window, operand 14, single buffered']
    #allocation12 [shape = 's32[1]{0}', space=sflag, size = 0x4, scoped, tag = 'scoped memory for transformer_forward.1']
    #allocation13 [shape = 'u8[8192]{0}', space=vmem, size = 0x2000, scoped, tag = 'input window, operand 17, single buffered']
    #allocation14 [shape = 'u8[512]{0}', space=vmem, size = 0x400, scoped, tag = 'input window, operand 21, single buffered']
    #allocation15 [shape = 's32[1]{0}', space=sflag, size = 0x4, scoped, tag = 'scoped memory for transformer_forward.1']
    #allocation16 [shape = 'u8[1024]{0}', space=vmem, size = 0x400, scoped, tag = 'output window, operand 0, single buffered']
    %27 = vsyncpa [#allocation3], 0
    %28 = vsyncpa [#allocation6], 0
    %29 = vsyncpa [#allocation9], 0
    %30 = vsyncpa [#allocation12], 0
    %31 = vsyncpa [#allocation15], 0
    %32 = vsyncpa [#allocation4], 0
    // Predicated region
    $region2: #{transformer_forward.1} parent=1 // pred_check
      _
    $region3: #{transformer_forward.1} parent=1 // pred_check_branch
      %34 = sbr.rel (0) target = $region5
    $region4: #{transformer_forward.1} parent=1 // pred_region
      _
    $region5: #{transformer_forward.1} parent=1 // pred_fallthru
      _
    // Predicated region
    $region6: #{transformer_forward.1} parent=1 // pred_check
      _
    $region7: #{transformer_forward.1} parent=1 // pred_check_branch
      %36 = sbr.rel (0) target = $region9
    $region8: #{transformer_forward.1} parent=1 // pred_region
      _
    $region9: #{transformer_forward.1} parent=1 // pred_fallthru
      _
    // Predicated region
    $region10: #{transformer_forward.1} parent=1 // pred_check
      _
    $region11: #{transformer_forward.1} parent=1 // pred_check_branch
      %38 = sbr.rel (0) target = $region13
    $region12: #{transformer_forward.1} parent=1 // pred_region
      _
    $region13: #{transformer_forward.1} parent=1 // pred_fallthru
      _
    // Predicated region
    $region14: #{transformer_forward.1} parent=1 // pred_check
      _
    $region15: #{transformer_forward.1} parent=1 // pred_check_branch
      %40 = sbr.rel (0) target = $region17
    $region16: #{transformer_forward.1} parent=1 // pred_region
      %s42 = ssub.s32 64, 64
      %43 = vsyncadd [#allocation3], %s42
      %s45 = sshll.u32 [#allocation2], 4
      %s46 = int_to_ptr.vmem [resolvable:$true] %s45
      %48 = dma.hbm_to_vmem [thread:$0]  %s3, 64, %s46, [#allocation3]
    $region17: #{transformer_forward.1} parent=1 // pred_fallthru
      _
    // Predicated region
    $region18: #{transformer_forward.1} parent=1 // pred_check
      _
    $region19: #{transformer_forward.1} parent=1 // pred_check_branch
      %50 = sbr.rel (0) target = $region21
    $region20: #{transformer_forward.1} parent=1 // pred_region
      _
    $region21: #{transformer_forward.1} parent=1 // pred_fallthru
      _
    // Predicated region
    $region22: #{transformer_forward.1} parent=1 // pred_check
      _
    $region23: #{transformer_forward.1} parent=1 // pred_check_branch
      %52 = sbr.rel (0) target = $region25
    $region24: #{transformer_forward.1} parent=1 // pred_region
      %s54 = ssub.s32 128, 128
      %55 = vsyncadd [#allocation6], %s54
      %s56 = sshll.u32 [#allocation5], 4
      %s57 = int_to_ptr.vmem [resolvable:$true] %s56
      %62 = dma.hbm_to_vmem [thread:$0]  %s5, 128, %s57, [#allocation6], 64, 64, 4
    $region25: #{transformer_forward.1} parent=1 // pred_fallthru
      _
    // Predicated region
    $region26: #{transformer_forward.1} parent=1 // pred_check
      _
    $region27: #{transformer_forward.1} parent=1 // pred_check_branch
      %64 = sbr.rel (0) target = $region29
    $region28: #{transformer_forward.1} parent=1 // pred_region
      _
    $region29: #{transformer_forward.1} parent=1 // pred_fallthru
      _
    // Predicated region
    $region30: #{transformer_forward.1} parent=1 // pred_check
      _
    $region31: #{transformer_forward.1} parent=1 // pred_check_branch
      %66 = sbr.rel (0) target = $region33
    $region32: #{transformer_forward.1} parent=1 // pred_region
      _
    $region33: #{transformer_forward.1} parent=1 // pred_fallthru
      _
    // Predicated region
    $region34: #{transformer_forward.1} parent=1 // pred_check
      _
    $region35: #{transformer_forward.1} parent=1 // pred_check_branch
      %68 = sbr.rel (0) target = $region37
    $region36: #{transformer_forward.1} parent=1 // pred_region
      %s70 = ssub.s32 64, 64
      %71 = vsyncadd [#allocation6], %s70
      %s72 = sshll.u32 [#allocation7], 4
      %s73 = int_to_ptr.vmem [resolvable:$true] %s72
      %78 = dma.hbm_to_vmem [thread:$0]  %s8, 64, %s73, [#allocation6], 16, 16, 1
    $region37: #{transformer_forward.1} parent=1 // pred_fallthru
      _
    // Predicated region
    $region38: #{transformer_forward.1} parent=1 // pred_check
      _
    $region39: #{transformer_forward.1} parent=1 // pred_check_branch
      %80 = sbr.rel (0) target = $region41
    $region40: #{transformer_forward.1} parent=1 // pred_region
      _
    $region41: #{transformer_forward.1} parent=1 // pred_fallthru
      _
    // Predicated region
    $region42: #{transformer_forward.1} parent=1 // pred_check
      _
    $region43: #{transformer_forward.1} parent=1 // pred_check_branch
      %82 = sbr.rel (0) target = $region45
    $region44: #{transformer_forward.1} parent=1 // pred_region
      %s84 = ssub.s32 64, 64
      %85 = vsyncadd [#allocation9], %s84
      %s86 = sshll.u32 [#allocation8], 4
      %s87 = int_to_ptr.vmem [resolvable:$true] %s86
      %92 = dma.hbm_to_vmem [thread:$0]  %s10, 64, %s87, [#allocation9], 16, 16, 1
    $region45: #{transformer_forward.1} parent=1 // pred_fallthru
      _
    // Predicated region
    $region46: #{transformer_forward.1} parent=1 // pred_check
      _
    $region47: #{transformer_forward.1} parent=1 // pred_check_branch
      %94 = sbr.rel (0) target = $region49
    $region48: #{transformer_forward.1} parent=1 // pred_region
      _
    $region49: #{transformer_forward.1} parent=1 // pred_fallthru
      _
    // Predicated region
    $region50: #{transformer_forward.1} parent=1 // pred_check
      _
    $region51: #{transformer_forward.1} parent=1 // pred_check_branch
      %96 = sbr.rel (0) target = $region53
    $region52: #{transformer_forward.1} parent=1 // pred_region
      %s98 = ssub.s32 64, 64
      %99 = vsyncadd [#allocation9], %s98
      %s100 = sshll.u32 [#allocation10], 4
      %s101 = int_to_ptr.vmem [resolvable:$true] %s100
      %106 = dma.hbm_to_vmem [thread:$0]  %s12, 64, %s101, [#allocation9], 16, 16, 1
    $region53: #{transformer_forward.1} parent=1 // pred_fallthru
      _
    // Predicated region
    $region54: #{transformer_forward.1} parent=1 // pred_check
      _
    $region55: #{transformer_forward.1} parent=1 // pred_check_branch
      %108 = sbr.rel (0) target = $region57
    $region56: #{transformer_forward.1} parent=1 // pred_region
      _
    $region57: #{transformer_forward.1} parent=1 // pred_fallthru
      _
    // Predicated region
    $region58: #{transformer_forward.1} parent=1 // pred_check
      _
    $region59: #{transformer_forward.1} parent=1 // pred_check_branch
      %110 = sbr.rel (0) target = $region61
    $region60: #{transformer_forward.1} parent=1 // pred_region
      %s112 = ssub.s32 64, 64
      %113 = vsyncadd [#allocation12], %s112
      %s114 = sshll.u32 [#allocation11], 4
      %s115 = int_to_ptr.vmem [resolvable:$true] %s114
      %120 = dma.hbm_to_vmem [thread:$0]  %s14, 64, %s115, [#allocation12], 16, 16, 1
    $region61: #{transformer_forward.1} parent=1 // pred_fallthru
      _
    // Predicated region
    $region62: #{transformer_forward.1} parent=1 // pred_check
      _
    $region63: #{transformer_forward.1} parent=1 // pred_check_branch
      %122 = sbr.rel (0) target = $region65
    $region64: #{transformer_forward.1} parent=1 // pred_region
      _
    $region65: #{transformer_forward.1} parent=1 // pred_fallthru
      _
    // Predicated region
    $region66: #{transformer_forward.1} parent=1 // pred_check
      _
    $region67: #{transformer_forward.1} parent=1 // pred_check_branch
      %124 = sbr.rel (0) target = $region69
    $region68: #{transformer_forward.1} parent=1 // pred_region
      _
    $region69: #{transformer_forward.1} parent=1 // pred_fallthru
      _
    // Predicated region
    $region70: #{transformer_forward.1} parent=1 // pred_check
      _
    $region71: #{transformer_forward.1} parent=1 // pred_check_branch
      %126 = sbr.rel (0) target = $region73
    $region72: #{transformer_forward.1} parent=1 // pred_region
      %s128 = ssub.s32 256, 256
      %129 = vsyncadd [#allocation12], %s128
      %s130 = sshll.u32 [#allocation13], 4
      %s131 = int_to_ptr.vmem [resolvable:$true] %s130
      %136 = dma.hbm_to_vmem [thread:$0]  %s17, 256, %s131, [#allocation12], 128, 128, 8
    $region73: #{transformer_forward.1} parent=1 // pred_fallthru
      _
    // Predicated region
    $region74: #{transformer_forward.1} parent=1 // pred_check
      _
    $region75: #{transformer_forward.1} parent=1 // pred_check_branch
      %138 = sbr.rel (0) target = $region77
    $region76: #{transformer_forward.1} parent=1 // pred_region
      _
    $region77: #{transformer_forward.1} parent=1 // pred_fallthru
      _
    // Predicated region
    $region78: #{transformer_forward.1} parent=1 // pred_check
      _
    $region79: #{transformer_forward.1} parent=1 // pred_check_branch
      %140 = sbr.rel (0) target = $region81
    $region80: #{transformer_forward.1} parent=1 // pred_region
      _
    $region81: #{transformer_forward.1} parent=1 // pred_fallthru
      _
    // Predicated region
    $region82: #{transformer_forward.1} parent=1 // pred_check
      _
    $region83: #{transformer_forward.1} parent=1 // pred_check_branch
      %142 = sbr.rel (0) target = $region85
    $region84: #{transformer_forward.1} parent=1 // pred_region
      _
    $region85: #{transformer_forward.1} parent=1 // pred_fallthru
      _
    // Predicated region
    $region86: #{transformer_forward.1} parent=1 // pred_check
      _
    $region87: #{transformer_forward.1} parent=1 // pred_check_branch
      %144 = sbr.rel (0) target = $region89
    $region88: #{transformer_forward.1} parent=1 // pred_region
      %s146 = ssub.s32 16, 16
      %147 = vsyncadd [#allocation15], %s146
      %s149 = sshll.u32 [#allocation14], 4
      %s150 = int_to_ptr.vmem [resolvable:$true] %s149
      %152 = dma.hbm_to_vmem [thread:$0]  %s21, 16, %s150, [#allocation15]
    $region89: #{transformer_forward.1} parent=1 // pred_fallthru
      _
    // Predicated region
    $region90: #{transformer_forward.1} parent=1 // pred_check
      _
    $region91: #{transformer_forward.1} parent=1 // pred_check_branch
      %154 = sbr.rel (0) target = $region93
    $region92: #{transformer_forward.1} parent=1 // pred_region
      %155 = dma.done [#allocation3], 64
    $region93: #{transformer_forward.1} parent=1 // pred_fallthru
      _
    // Predicated region
    $region94: #{transformer_forward.1} parent=1 // pred_check
      _
    $region95: #{transformer_forward.1} parent=1 // pred_check_branch
      %157 = sbr.rel (0) target = $region97
    $region96: #{transformer_forward.1} parent=1 // pred_region
      %158 = dma.done [#allocation6], 128
    $region97: #{transformer_forward.1} parent=1 // pred_fallthru
      _
    // Predicated region
    $region98: #{transformer_forward.1} parent=1 // pred_check
      _
    $region99: #{transformer_forward.1} parent=1 // pred_check_branch
      %160 = sbr.rel (0) target = $region101
    $region100: #{transformer_forward.1} parent=1 // pred_region
      %161 = dma.done [#allocation6], 64
    $region101: #{transformer_forward.1} parent=1 // pred_fallthru
      _
    // Predicated region
    $region102: #{transformer_forward.1} parent=1 // pred_check
      _
    $region103: #{transformer_forward.1} parent=1 // pred_check_branch
      %163 = sbr.rel (0) target = $region105
    $region104: #{transformer_forward.1} parent=1 // pred_region
      %164 = dma.done [#allocation9], 64
    $region105: #{transformer_forward.1} parent=1 // pred_fallthru
      _
    // Predicated region
    $region106: #{transformer_forward.1} parent=1 // pred_check
      _
    $region107: #{transformer_forward.1} parent=1 // pred_check_branch
      %166 = sbr.rel (0) target = $region109
    $region108: #{transformer_forward.1} parent=1 // pred_region
      %167 = dma.done [#allocation9], 64
    $region109: #{transformer_forward.1} parent=1 // pred_fallthru
      _
    // Predicated region
    $region110: #{transformer_forward.1} parent=1 // pred_check
      _
    $region111: #{transformer_forward.1} parent=1 // pred_check_branch
      %169 = sbr.rel (0) target = $region113
    $region112: #{transformer_forward.1} parent=1 // pred_region
      %170 = dma.done [#allocation12], 64
    $region113: #{transformer_forward.1} parent=1 // pred_fallthru
      _
    // Predicated region
    $region114: #{transformer_forward.1} parent=1 // pred_check
      _
    $region115: #{transformer_forward.1} parent=1 // pred_check_branch
      %172 = sbr.rel (0) target = $region117
    $region116: #{transformer_forward.1} parent=1 // pred_region
      %173 = dma.done [#allocation12], 256
    $region117: #{transformer_forward.1} parent=1 // pred_fallthru
      _
    // Predicated region
    $region118: #{transformer_forward.1} parent=1 // pred_check
      _
    $region119: #{transformer_forward.1} parent=1 // pred_check_branch
      %175 = sbr.rel (0) target = $region121
    $region120: #{transformer_forward.1} parent=1 // pred_region
      %176 = dma.done [#allocation15], 16
    $region121: #{transformer_forward.1} parent=1 // pred_fallthru
      _
    %v178 = vld [vmem:[%s0] sm:$0xff]
    %v179 = vld [vmem:[%s0 + $0x8] sm:$0xff]
    %v180 = vld [vmem:[%s0 + $0x10] sm:$0xff]
    %v181 = vld [vmem:[%s0 + $0x18] sm:$0xff]
    %v182 = vpack.c.bf16 %v179, %v178
    %v183 = vpack.c.bf16 %v181, %v180
    %v184 = vld [vmem:[#allocation2] sm:$0xf]
    %v185 = vld [vmem:[%s4] sm:$0x1]
    %v187 = vlaneseq
    %v188 = vshrl.u32 %v187, 7
    %v189 = vsub.s32 0, %v188
    %v190 = vrot.slane %v185, %v189
    %vm192 = vcmask 64512
    %v194 = vsel %vm192, %v182, 0
    %v197 = vsel %vm192, %v183, 0
    %vm199 = vcmask 1043456
    %v201 = vsel %vm199, %v184, 0
    %203 = vmatprep.subr.bf16.mxu0 0
    %204 = vmatpush1.bf16.msra.mxu0 %v201
    %205 = vmatprep.subr.bf16.mxu0 0
    %206 = vmatpush1.bf16.msra.mxu0 0
    %207 = vmatprep.subr.bf16.mxu0 0
    %208 = vmatpush1.bf16.msra.mxu0 0
    %209 = vmatprep.subr.bf16.mxu0 0
    %210 = vmatpush1.bf16.msra.mxu0 0
    %211 = vmatprep.subr.bf16.mxu0 0
    %212 = vmatpush1.bf16.msra.mxu0 0
    %213 = vmatprep.subr.bf16.mxu0 0
    %214 = vmatpush1.bf16.msra.mxu0 0
    %215 = vmatprep.subr.bf16.mxu0 0
    %216 = vmatpush1.bf16.msra.mxu0 0
    %217 = vmatprep.subr.bf16.mxu0 0
    %218 = vmatpush1.bf16.msra.mxu0 0
    %219 = vmatprep.subr.bf16.mxu0 0
    %220 = vmatpush1.bf16.msra.mxu0 0
    %221 = vmatprep.subr.bf16.mxu0 0
    %222 = vmatpush1.bf16.msra.mxu0 0
    %223 = vmatprep.subr.bf16.mxu0 0
    %224 = vmatpush1.bf16.msra.mxu0 0
    %225 = vmatprep.subr.bf16.mxu0 0
    %226 = vmatpush1.bf16.msra.mxu0 0
    %227 = vmatprep.subr.bf16.mxu0 0
    %228 = vmatpush1.bf16.msra.mxu0 0
    %229 = vmatprep.subr.bf16.mxu0 0
    %230 = vmatpush1.bf16.msra.mxu0 0
    %231 = vmatprep.subr.bf16.mxu0 0
    %232 = vmatpush1.bf16.msra.mxu0 0
    %233 = vmatprep.subr.bf16.mxu0 0
    %234 = vmatpush1.bf16.msra.mxu0 0
    %235 = vmatprep.mubr.bf16.mxu0 0
    %236 = vmatmul.mubr.bf16.gmra.mrb[0].mxu0 %v194
    %v237 = vpop.f32.mrb[0].mxu0
    %v238 = vadd.f32 %v190, %v237
    %v239 = vpop.f32.mrb[0].mxu0
    %v240 = vpop.f32.mrb[0].mxu0
    %v241 = vadd.f32 %v190, %v240
    %v242 = vpop.f32.mrb[0].mxu0
    %243 = vmatprep.mubr.bf16.mxu0 0
    %244 = vmatmul.mubr.bf16.gmra.mrb[0].mxu0 %v197
    %v245 = vpop.f32.mrb[0].mxu0
    %v246 = vadd.f32 %v190, %v245
    %v247 = vpop.f32.mrb[0].mxu0
    %v248 = vpop.f32.mrb[0].mxu0
    %v249 = vadd.f32 %v190, %v248
    %v250 = vpop.f32.mrb[0].mxu0
    %251 = vdwg.mxu0
    %v252 = vld [vmem:[%s2] sm:$0xff]
    %v253 = vld [vmem:[%s2 + $0x8] sm:$0xff]
    %v254 = vadd.f32 %v238, %v252
    %v255 = vadd.f32 %v241, %v253
    %v256 = vadd.f32 %v246, %v252
    %v257 = vadd.f32 %v249, %v253
    %v258 = vld [vmem:[%s1] sm:$0xff]
    %v259 = vld [vmem:[%s1 + $0x8] sm:$0xff]
    %v260 = vpack.c.bf16 %v259, %v258
    %v261 = vld [vmem:[#allocation5] sm:$0xf]
    %v262 = vld [vmem:[#allocation5 + $0x4] sm:$0xf]
    %v263 = vld [vmem:[%s6] sm:$0x1]
    %v265 = vlaneseq
    %v266 = vshrl.u32 %v265, 7
    %v267 = vsub.s32 0, %v266
    %v268 = vrot.slane %v263, %v267
    %v272 = vunpack.c.l.b16 %v261
    %v273 = vunpack.c.l.b16 %v262
    %v274 = vpack.c.b16 %v273, %v272
    %vm276 = vcmask 130048
    %v278 = vsel %vm276, %v260, 0
    %280 = vmatprep.subr.bf16.mxu0 0
    %281 = vmatpush1.bf16.msra.mxu0 %v274
    %282 = vmatprep.subr.bf16.mxu0 0
    %283 = vmatpush1.bf16.msra.mxu0 0
    %284 = vmatprep.subr.bf16.mxu0 0
    %285 = vmatpush1.bf16.msra.mxu0 0
    %286 = vmatprep.subr.bf16.mxu0 0
    %287 = vmatpush1.bf16.msra.mxu0 0
    %288 = vmatprep.subr.bf16.mxu0 0
    %289 = vmatpush1.bf16.msra.mxu0 0
    %290 = vmatprep.subr.bf16.mxu0 0
    %291 = vmatpush1.bf16.msra.mxu0 0
    %292 = vmatprep.subr.bf16.mxu0 0
    %293 = vmatpush1.bf16.msra.mxu0 0
    %294 = vmatprep.subr.bf16.mxu0 0
    %295 = vmatpush1.bf16.msra.mxu0 0
    %296 = vmatprep.subr.bf16.mxu0 0
    %297 = vmatpush1.bf16.msra.mxu0 0
    %298 = vmatprep.subr.bf16.mxu0 0
    %299 = vmatpush1.bf16.msra.mxu0 0
    %300 = vmatprep.subr.bf16.mxu0 0
    %301 = vmatpush1.bf16.msra.mxu0 0
    %302 = vmatprep.subr.bf16.mxu0 0
    %303 = vmatpush1.bf16.msra.mxu0 0
    %304 = vmatprep.subr.bf16.mxu0 0
    %305 = vmatpush1.bf16.msra.mxu0 0
    %306 = vmatprep.subr.bf16.mxu0 0
    %307 = vmatpush1.bf16.msra.mxu0 0
    %308 = vmatprep.subr.bf16.mxu0 0
    %309 = vmatpush1.bf16.msra.mxu0 0
    %310 = vmatprep.subr.bf16.mxu0 0
    %311 = vmatpush1.bf16.msra.mxu0 0
    %312 = vmatprep.mubr.bf16.mxu0 0
    %313 = vmatmul.mubr.bf16.gmra.mrb[0].mxu0 %v278
    %v314 = vpop.f32.mrb[0].mxu0
    %v315 = vadd.f32 %v268, %v314
    %v316 = vpop.f32.mrb[0].mxu0
    %v317 = vpop.f32.mrb[0].mxu0
    %v318 = vadd.f32 %v268, %v317
    %v319 = vpop.f32.mrb[0].mxu0
    %320 = vdwg.mxu0
    %v321 = vpack.c.bf16 %v255, %v254
    %v322 = vpack.c.bf16 %v257, %v256
    %v323 = vld [vmem:[%s7] sm:$0xf]
    %v324 = vld [vmem:[%s7 + $0x4] sm:$0xf]
    %v325 = vld [vmem:[%s7 + $0x8] sm:$0xf]
    %v326 = vld [vmem:[%s7 + $0xc] sm:$0xf]
    %v327 = vld [vmem:[#allocation7] sm:$0x1]
    %v329 = vlaneseq
    %v330 = vshrl.u32 %v329, 7
    %v331 = vsub.s32 0, %v330
    %v332 = vrot.slane %v327, %v331
    %v338 = vunpack.c.l.b16 %v323
    %v339 = vunpack.c.l.b16 %v324
    %v340 = vunpack.c.l.b16 %v325
    %v341 = vunpack.c.l.b16 %v326
    %v342 = vpack.c.b16 %v339, %v338
    %v343 = vpack.c.b16 %v341, %v340
    %vm346 = vcmask 261120
    %v348 = vsel %vm346, %v321, 0
    %v351 = vsel %vm346, %v322, 0
    %353 = vmatprep.subr.bf16.mxu0 0
    %354 = vmatpush1.bf16.msra.mxu0 %v342
    %355 = vmatprep.subr.bf16.mxu0 0
    %356 = vmatpush1.bf16.msra.mxu0 %v343
    %357 = vmatprep.subr.bf16.mxu0 0
    %358 = vmatpush1.bf16.msra.mxu0 0
    %359 = vmatprep.subr.bf16.mxu0 0
    %360 = vmatpush1.bf16.msra.mxu0 0
    %361 = vmatprep.subr.bf16.mxu0 0
    %362 = vmatpush1.bf16.msra.mxu0 0
    %363 = vmatprep.subr.bf16.mxu0 0
    %364 = vmatpush1.bf16.msra.mxu0 0
    %365 = vmatprep.subr.bf16.mxu0 0
    %366 = vmatpush1.bf16.msra.mxu0 0
    %367 = vmatprep.subr.bf16.mxu0 0
    %368 = vmatpush1.bf16.msra.mxu0 0
    %369 = vmatprep.subr.bf16.mxu0 0
    %370 = vmatpush1.bf16.msra.mxu0 0
    %371 = vmatprep.subr.bf16.mxu0 0
    %372 = vmatpush1.bf16.msra.mxu0 0
    %373 = vmatprep.subr.bf16.mxu0 0
    %374 = vmatpush1.bf16.msra.mxu0 0
    %375 = vmatprep.subr.bf16.mxu0 0
    %376 = vmatpush1.bf16.msra.mxu0 0
    %377 = vmatprep.subr.bf16.mxu0 0
    %378 = vmatpush1.bf16.msra.mxu0 0
    %379 = vmatprep.subr.bf16.mxu0 0
    %380 = vmatpush1.bf16.msra.mxu0 0
    %381 = vmatprep.subr.bf16.mxu0 0
    %382 = vmatpush1.bf16.msra.mxu0 0
    %383 = vmatprep.subr.bf16.mxu0 0
    %384 = vmatpush1.bf16.msra.mxu0 0
    %385 = vmatprep.mubr.bf16.mxu0 0
    %386 = vmatmul.mubr.bf16.gmra.mrb[0].mxu0 %v348
    %v387 = vpop.f32.mrb[0].mxu0
    %v388 = vadd.f32 %v332, %v387
    %v389 = vpop.f32.mrb[0].mxu0
    %v390 = vpop.f32.mrb[0].mxu0
    %v391 = vadd.f32 %v332, %v390
    %v392 = vpop.f32.mrb[0].mxu0
    %393 = vmatprep.mubr.bf16.mxu0 0
    %394 = vmatmul.mubr.bf16.gmra.mrb[0].mxu0 %v351
    %v395 = vpop.f32.mrb[0].mxu0
    %v396 = vadd.f32 %v332, %v395
    %v397 = vpop.f32.mrb[0].mxu0
    %v398 = vpop.f32.mrb[0].mxu0
    %v399 = vadd.f32 %v332, %v398
    %v400 = vpop.f32.mrb[0].mxu0
    %401 = vdwg.mxu0
    %v402 = vpack.c.bf16 %v391, %v388
    %v403 = vpack.c.bf16 %v399, %v396
    %405 = vrot.lane.b32.xlu0 %v402, 96
    %v406 = vpop.permute.xlu0 %405
    %v408 = vsel %vm192, %v402, 0
    %v411 = vsel %vm192, %v406, 0
    %413 = vmatprep.subr.bf16.mxu0 0
    %414 = vmatpush1.bf16.xpose.msra.mxu0 %v411
    %415 = vmatprep.subr.bf16.mxu0 0
    %416 = vmatpush1.bf16.xpose.msra.mxu0 0
    %417 = vmatprep.subr.bf16.mxu0 0
    %418 = vmatpush1.bf16.xpose.msra.mxu0 0
    %419 = vmatprep.subr.bf16.mxu0 0
    %420 = vmatpush1.bf16.xpose.msra.mxu0 0
    %421 = vmatprep.subr.bf16.mxu0 0
    %422 = vmatpush1.bf16.xpose.msra.mxu0 0
    %423 = vmatprep.subr.bf16.mxu0 0
    %424 = vmatpush1.bf16.xpose.msra.mxu0 0
    %425 = vmatprep.subr.bf16.mxu0 0
    %426 = vmatpush1.bf16.xpose.msra.mxu0 0
    %427 = vmatprep.subr.bf16.mxu0 0
    %428 = vmatpush1.bf16.xpose.msra.mxu0 0
    %429 = vmatprep.subr.bf16.mxu0 0
    %430 = vmatpush1.bf16.xpose.msra.mxu0 0
    %431 = vmatprep.subr.bf16.mxu0 0
    %432 = vmatpush1.bf16.xpose.msra.mxu0 0
    %433 = vmatprep.subr.bf16.mxu0 0
    %434 = vmatpush1.bf16.xpose.msra.mxu0 0
    %435 = vmatprep.subr.bf16.mxu0 0
    %436 = vmatpush1.bf16.xpose.msra.mxu0 0
    %437 = vmatprep.subr.bf16.mxu0 0
    %438 = vmatpush1.bf16.xpose.msra.mxu0 0
    %439 = vmatprep.subr.bf16.mxu0 0
    %440 = vmatpush1.bf16.xpose.msra.mxu0 0
    %441 = vmatprep.subr.bf16.mxu0 0
    %442 = vmatpush1.bf16.xpose.msra.mxu0 0
    %443 = vmatprep.subr.bf16.mxu0 0
    %444 = vmatpush1.bf16.xpose.msra.mxu0 0
    %445 = vmatprep.mubr.bf16.mxu0 0
    %446 = vmatmul.mubr.bf16.gmra.mrb[0].mxu0 %v408
    %v447 = vpop.f32.mrb[0].mxu0
    %v448 = vadd.f32 0.0, %v447
    %v449 = vpop.f32.mrb[0].mxu0
    %v450 = vpop.f32.mrb[0].mxu0
    %v451 = vadd.f32 0.0, %v450
    %v452 = vpop.f32.mrb[0].mxu0
    %453 = vdwg.mxu0
    %455 = vrot.lane.b32.xlu0 %v403, 96
    %v456 = vpop.permute.xlu0 %455
    %v458 = vsel %vm192, %v403, 0
    %v461 = vsel %vm192, %v456, 0
    %463 = vmatprep.subr.bf16.mxu0 0
    %464 = vmatpush1.bf16.xpose.msra.mxu0 %v461
    %465 = vmatprep.subr.bf16.mxu0 0
    %466 = vmatpush1.bf16.xpose.msra.mxu0 0
    %467 = vmatprep.subr.bf16.mxu0 0
    %468 = vmatpush1.bf16.xpose.msra.mxu0 0
    %469 = vmatprep.subr.bf16.mxu0 0
    %470 = vmatpush1.bf16.xpose.msra.mxu0 0
    %471 = vmatprep.subr.bf16.mxu0 0
    %472 = vmatpush1.bf16.xpose.msra.mxu0 0
    %473 = vmatprep.subr.bf16.mxu0 0
    %474 = vmatpush1.bf16.xpose.msra.mxu0 0
    %475 = vmatprep.subr.bf16.mxu0 0
    %476 = vmatpush1.bf16.xpose.msra.mxu0 0
    %477 = vmatprep.subr.bf16.mxu0 0
    %478 = vmatpush1.bf16.xpose.msra.mxu0 0
    %479 = vmatprep.subr.bf16.mxu0 0
    %480 = vmatpush1.bf16.xpose.msra.mxu0 0
    %481 = vmatprep.subr.bf16.mxu0 0
    %482 = vmatpush1.bf16.xpose.msra.mxu0 0
    %483 = vmatprep.subr.bf16.mxu0 0
    %484 = vmatpush1.bf16.xpose.msra.mxu0 0
    %485 = vmatprep.subr.bf16.mxu0 0
    %486 = vmatpush1.bf16.xpose.msra.mxu0 0
    %487 = vmatprep.subr.bf16.mxu0 0
    %488 = vmatpush1.bf16.xpose.msra.mxu0 0
    %489 = vmatprep.subr.bf16.mxu0 0
    %490 = vmatpush1.bf16.xpose.msra.mxu0 0
    %491 = vmatprep.subr.bf16.mxu0 0
    %492 = vmatpush1.bf16.xpose.msra.mxu0 0
    %493 = vmatprep.subr.bf16.mxu0 0
    %494 = vmatpush1.bf16.xpose.msra.mxu0 0
    %495 = vmatprep.mubr.bf16.mxu0 0
    %496 = vmatmul.mubr.bf16.gmra.mrb[0].mxu0 %v458
    %v497 = vpop.f32.mrb[0].mxu0
    %v498 = vadd.f32 0.0, %v497
    %v499 = vpop.f32.mrb[0].mxu0
    %v500 = vpop.f32.mrb[0].mxu0
    %v501 = vadd.f32 0.0, %v500
    %v502 = vpop.f32.mrb[0].mxu0
    %503 = vdwg.mxu0
    %v504 = vsel %vm276, %v448, -inf
    %505 = vmax.xlane.f32.xlu0 %v504
    %v506 = vpop.xlane.xlu0 %505
    %v507 = vsel %vm276, %v451, -inf
    %508 = vmax.xlane.f32.xlu0 %v507
    %v509 = vpop.xlane.xlu0 %508
    %v510 = vsel %vm276, %v498, -inf
    %511 = vmax.xlane.f32.xlu0 %v510
    %v512 = vpop.xlane.xlu0 %511
    %v513 = vsel %vm276, %v501, -inf
    %514 = vmax.xlane.f32.xlu0 %v513
    %v515 = vpop.xlane.xlu0 %514
    %v516 = vsub.f32 %v448, %v506
    %v517 = vsub.f32 %v451, %v509
    %v518 = vsub.f32 %v498, %v512
    %v519 = vsub.f32 %v501, %v515
    %v520 = vmul.f32 %v516, 1.442695
    %v521 = vpow.pop %v520
    %v522 = vmul.f32 %v517, 1.442695
    %v523 = vpow.pop %v522
    %v524 = vmul.f32 %v518, 1.442695
    %v525 = vpow.pop %v524
    %v526 = vmul.f32 %v519, 1.442695
    %v527 = vpow.pop %v526
    %v528 = vsel %vm276, %v521, 0.0
    %529 = vadd.xlane.f32.xlu0 %v528
    %v530 = vpop.xlane.xlu0 %529
    %v531 = vsel %vm276, %v523, 0.0
    %532 = vadd.xlane.f32.xlu0 %v531
    %v533 = vpop.xlane.xlu0 %532
    %v534 = vsel %vm276, %v525, 0.0
    %535 = vadd.xlane.f32.xlu0 %v534
    %v536 = vpop.xlane.xlu0 %535
    %v537 = vsel %vm276, %v527, 0.0
    %538 = vadd.xlane.f32.xlu0 %v537
    %v539 = vpop.xlane.xlu0 %538
    %v540 = vrcp.pop %v530
    %v541 = vrcp.pop %v533
    %v542 = vrcp.pop %v536
    %v543 = vrcp.pop %v539
    %v544 = vmul.f32 %v521, %v540
    %v545 = vmul.f32 %v523, %v541
    %v546 = vmul.f32 %v525, %v542
    %v547 = vmul.f32 %v527, %v543
    %v548 = vpack.c.bf16 %v545, %v544
    %v549 = vpack.c.bf16 %v547, %v546
    %550 = vrot.lane.b32.xlu0 %v402, 64
    %v551 = vpop.permute.xlu0 %550
    %v554 = vsel %vm276, %v548, 0
    %556 = vmatprep.subr.bf16.mxu0 0
    %557 = vmatpush1.bf16.msra.mxu0 %v551
    %558 = vmatprep.subr.bf16.mxu0 0
    %559 = vmatpush1.bf16.msra.mxu0 0
    %560 = vmatprep.subr.bf16.mxu0 0
    %561 = vmatpush1.bf16.msra.mxu0 0
    %562 = vmatprep.subr.bf16.mxu0 0
    %563 = vmatpush1.bf16.msra.mxu0 0
    %564 = vmatprep.subr.bf16.mxu0 0
    %565 = vmatpush1.bf16.msra.mxu0 0
    %566 = vmatprep.subr.bf16.mxu0 0
    %567 = vmatpush1.bf16.msra.mxu0 0
    %568 = vmatprep.subr.bf16.mxu0 0
    %569 = vmatpush1.bf16.msra.mxu0 0
    %570 = vmatprep.subr.bf16.mxu0 0
    %571 = vmatpush1.bf16.msra.mxu0 0
    %572 = vmatprep.subr.bf16.mxu0 0
    %573 = vmatpush1.bf16.msra.mxu0 0
    %574 = vmatprep.subr.bf16.mxu0 0
    %575 = vmatpush1.bf16.msra.mxu0 0
    %576 = vmatprep.subr.bf16.mxu0 0
    %577 = vmatpush1.bf16.msra.mxu0 0
    %578 = vmatprep.subr.bf16.mxu0 0
    %579 = vmatpush1.bf16.msra.mxu0 0
    %580 = vmatprep.subr.bf16.mxu0 0
    %581 = vmatpush1.bf16.msra.mxu0 0
    %582 = vmatprep.subr.bf16.mxu0 0
    %583 = vmatpush1.bf16.msra.mxu0 0
    %584 = vmatprep.subr.bf16.mxu0 0
    %585 = vmatpush1.bf16.msra.mxu0 0
    %586 = vmatprep.subr.bf16.mxu0 0
    %587 = vmatpush1.bf16.msra.mxu0 0
    %588 = vmatprep.mubr.bf16.mxu0 0
    %589 = vmatmul.mubr.bf16.gmra.mrb[0].mxu0 %v554
    %v590 = vpop.f32.mrb[0].mxu0
    %v591 = vadd.f32 0.0, %v590
    %v592 = vpop.f32.mrb[0].mxu0
    %v593 = vpop.f32.mrb[0].mxu0
    %v594 = vadd.f32 0.0, %v593
    %v595 = vpop.f32.mrb[0].mxu0
    %596 = vdwg.mxu0
    %597 = vrot.lane.b32.xlu0 %v403, 64
    %v598 = vpop.permute.xlu0 %597
    %v601 = vsel %vm276, %v549, 0
    %603 = vmatprep.subr.bf16.mxu0 0
    %604 = vmatpush1.bf16.msra.mxu0 %v598
    %605 = vmatprep.subr.bf16.mxu0 0
    %606 = vmatpush1.bf16.msra.mxu0 0
    %607 = vmatprep.subr.bf16.mxu0 0
    %608 = vmatpush1.bf16.msra.mxu0 0
    %609 = vmatprep.subr.bf16.mxu0 0
    %610 = vmatpush1.bf16.msra.mxu0 0
    %611 = vmatprep.subr.bf16.mxu0 0
    %612 = vmatpush1.bf16.msra.mxu0 0
    %613 = vmatprep.subr.bf16.mxu0 0
    %614 = vmatpush1.bf16.msra.mxu0 0
    %615 = vmatprep.subr.bf16.mxu0 0
    %616 = vmatpush1.bf16.msra.mxu0 0
    %617 = vmatprep.subr.bf16.mxu0 0
    %618 = vmatpush1.bf16.msra.mxu0 0
    %619 = vmatprep.subr.bf16.mxu0 0
    %620 = vmatpush1.bf16.msra.mxu0 0
    %621 = vmatprep.subr.bf16.mxu0 0
    %622 = vmatpush1.bf16.msra.mxu0 0
    %623 = vmatprep.subr.bf16.mxu0 0
    %624 = vmatpush1.bf16.msra.mxu0 0
    %625 = vmatprep.subr.bf16.mxu0 0
    %626 = vmatpush1.bf16.msra.mxu0 0
    %627 = vmatprep.subr.bf16.mxu0 0
    %628 = vmatpush1.bf16.msra.mxu0 0
    %629 = vmatprep.subr.bf16.mxu0 0
    %630 = vmatpush1.bf16.msra.mxu0 0
    %631 = vmatprep.subr.bf16.mxu0 0
    %632 = vmatpush1.bf16.msra.mxu0 0
    %633 = vmatprep.subr.bf16.mxu0 0
    %634 = vmatpush1.bf16.msra.mxu0 0
    %635 = vmatprep.mubr.bf16.mxu0 0
    %636 = vmatmul.mubr.bf16.gmra.mrb[0].mxu0 %v601
    %v637 = vpop.f32.mrb[0].mxu0
    %v638 = vadd.f32 0.0, %v637
    %v639 = vpop.f32.mrb[0].mxu0
    %v640 = vpop.f32.mrb[0].mxu0
    %v641 = vadd.f32 0.0, %v640
    %v642 = vpop.f32.mrb[0].mxu0
    %643 = vdwg.mxu0
    %644 = vrot.lane.b32.xlu0 %v402, 120
    %v645 = vpop.permute.xlu0 %644
    %646 = vrot.lane.b32.xlu0 %v402, 88
    %v647 = vpop.permute.xlu0 %646
    %v649 = vsel %vm192, %v645, 0
    %v652 = vsel %vm192, %v647, 0
    %654 = vmatprep.subr.bf16.mxu0 0
    %655 = vmatpush1.bf16.xpose.msra.mxu0 %v652
    %656 = vmatprep.subr.bf16.mxu0 0
    %657 = vmatpush1.bf16.xpose.msra.mxu0 0
    %658 = vmatprep.subr.bf16.mxu0 0
    %659 = vmatpush1.bf16.xpose.msra.mxu0 0
    %660 = vmatprep.subr.bf16.mxu0 0
    %661 = vmatpush1.bf16.xpose.msra.mxu0 0
    %662 = vmatprep.subr.bf16.mxu0 0
    %663 = vmatpush1.bf16.xpose.msra.mxu0 0
    %664 = vmatprep.subr.bf16.mxu0 0
    %665 = vmatpush1.bf16.xpose.msra.mxu0 0
    %666 = vmatprep.subr.bf16.mxu0 0
    %667 = vmatpush1.bf16.xpose.msra.mxu0 0
    %668 = vmatprep.subr.bf16.mxu0 0
    %669 = vmatpush1.bf16.xpose.msra.mxu0 0
    %670 = vmatprep.subr.bf16.mxu0 0
    %671 = vmatpush1.bf16.xpose.msra.mxu0 0
    %672 = vmatprep.subr.bf16.mxu0 0
    %673 = vmatpush1.bf16.xpose.msra.mxu0 0
    %674 = vmatprep.subr.bf16.mxu0 0
    %675 = vmatpush1.bf16.xpose.msra.mxu0 0
    %676 = vmatprep.subr.bf16.mxu0 0
    %677 = vmatpush1.bf16.xpose.msra.mxu0 0
    %678 = vmatprep.subr.bf16.mxu0 0
    %679 = vmatpush1.bf16.xpose.msra.mxu0 0
    %680 = vmatprep.subr.bf16.mxu0 0
    %681 = vmatpush1.bf16.xpose.msra.mxu0 0
    %682 = vmatprep.subr.bf16.mxu0 0
    %683 = vmatpush1.bf16.xpose.msra.mxu0 0
    %684 = vmatprep.subr.bf16.mxu0 0
    %685 = vmatpush1.bf16.xpose.msra.mxu0 0
    %686 = vmatprep.mubr.bf16.mxu0 0
    %687 = vmatmul.mubr.bf16.gmra.mrb[0].mxu0 %v649
    %v688 = vpop.f32.mrb[0].mxu0
    %v689 = vadd.f32 0.0, %v688
    %v690 = vpop.f32.mrb[0].mxu0
    %v691 = vpop.f32.mrb[0].mxu0
    %v692 = vadd.f32 0.0, %v691
    %v693 = vpop.f32.mrb[0].mxu0
    %694 = vdwg.mxu0
    %695 = vrot.lane.b32.xlu0 %v403, 120
    %v696 = vpop.permute.xlu0 %695
    %697 = vrot.lane.b32.xlu0 %v403, 88
    %v698 = vpop.permute.xlu0 %697
    %v700 = vsel %vm192, %v696, 0
    %v703 = vsel %vm192, %v698, 0
    %705 = vmatprep.subr.bf16.mxu0 0
    %706 = vmatpush1.bf16.xpose.msra.mxu0 %v703
    %707 = vmatprep.subr.bf16.mxu0 0
    %708 = vmatpush1.bf16.xpose.msra.mxu0 0
    %709 = vmatprep.subr.bf16.mxu0 0
    %710 = vmatpush1.bf16.xpose.msra.mxu0 0
    %711 = vmatprep.subr.bf16.mxu0 0
    %712 = vmatpush1.bf16.xpose.msra.mxu0 0
    %713 = vmatprep.subr.bf16.mxu0 0
    %714 = vmatpush1.bf16.xpose.msra.mxu0 0
    %715 = vmatprep.subr.bf16.mxu0 0
    %716 = vmatpush1.bf16.xpose.msra.mxu0 0
    %717 = vmatprep.subr.bf16.mxu0 0
    %718 = vmatpush1.bf16.xpose.msra.mxu0 0
    %719 = vmatprep.subr.bf16.mxu0 0
    %720 = vmatpush1.bf16.xpose.msra.mxu0 0
    %721 = vmatprep.subr.bf16.mxu0 0
    %722 = vmatpush1.bf16.xpose.msra.mxu0 0
    %723 = vmatprep.subr.bf16.mxu0 0
    %724 = vmatpush1.bf16.xpose.msra.mxu0 0
    %725 = vmatprep.subr.bf16.mxu0 0
    %726 = vmatpush1.bf16.xpose.msra.mxu0 0
    %727 = vmatprep.subr.bf16.mxu0 0
    %728 = vmatpush1.bf16.xpose.msra.mxu0 0
    %729 = vmatprep.subr.bf16.mxu0 0
    %730 = vmatpush1.bf16.xpose.msra.mxu0 0
    %731 = vmatprep.subr.bf16.mxu0 0
    %732 = vmatpush1.bf16.xpose.msra.mxu0 0
    %733 = vmatprep.subr.bf16.mxu0 0
    %734 = vmatpush1.bf16.xpose.msra.mxu0 0
    %735 = vmatprep.subr.bf16.mxu0 0
    %736 = vmatpush1.bf16.xpose.msra.mxu0 0
    %737 = vmatprep.mubr.bf16.mxu0 0
    %738 = vmatmul.mubr.bf16.gmra.mrb[0].mxu0 %v700
    %v739 = vpop.f32.mrb[0].mxu0
    %v740 = vadd.f32 0.0, %v739
    %v741 = vpop.f32.mrb[0].mxu0
    %v742 = vpop.f32.mrb[0].mxu0
    %v743 = vadd.f32 0.0, %v742
    %v744 = vpop.f32.mrb[0].mxu0
    %745 = vdwg.mxu0
    %v746 = vsel %vm276, %v689, -inf
    %747 = vmax.xlane.f32.xlu0 %v746
    %v748 = vpop.xlane.xlu0 %747
    %v749 = vsel %vm276, %v692, -inf
    %750 = vmax.xlane.f32.xlu0 %v749
    %v751 = vpop.xlane.xlu0 %750
    %v752 = vsel %vm276, %v740, -inf
    %753 = vmax.xlane.f32.xlu0 %v752
    %v754 = vpop.xlane.xlu0 %753
    %v755 = vsel %vm276, %v743, -inf
    %756 = vmax.xlane.f32.xlu0 %v755
    %v757 = vpop.xlane.xlu0 %756
    %v758 = vsub.f32 %v689, %v748
    %v759 = vsub.f32 %v692, %v751
    %v760 = vsub.f32 %v740, %v754
    %v761 = vsub.f32 %v743, %v757
    %v762 = vmul.f32 %v758, 1.442695
    %v763 = vpow.pop %v762
    %v764 = vmul.f32 %v759, 1.442695
    %v765 = vpow.pop %v764
    %v766 = vmul.f32 %v760, 1.442695
    %v767 = vpow.pop %v766
    %v768 = vmul.f32 %v761, 1.442695
    %v769 = vpow.pop %v768
    %v770 = vsel %vm276, %v763, 0.0
    %771 = vadd.xlane.f32.xlu0 %v770
    %v772 = vpop.xlane.xlu0 %771
    %v773 = vsel %vm276, %v765, 0.0
    %774 = vadd.xlane.f32.xlu0 %v773
    %v775 = vpop.xlane.xlu0 %774
    %v776 = vsel %vm276, %v767, 0.0
    %777 = vadd.xlane.f32.xlu0 %v776
    %v778 = vpop.xlane.xlu0 %777
    %v779 = vsel %vm276, %v769, 0.0
    %780 = vadd.xlane.f32.xlu0 %v779
    %v781 = vpop.xlane.xlu0 %780
    %v782 = vrcp.pop %v772
    %v783 = vrcp.pop %v775
    %v784 = vrcp.pop %v778
    %v785 = vrcp.pop %v781
    %v786 = vmul.f32 %v763, %v782
    %v787 = vmul.f32 %v765, %v783
    %v788 = vmul.f32 %v767, %v784
    %v789 = vmul.f32 %v769, %v785
    %v790 = vpack.c.bf16 %v787, %v786
    %v791 = vpack.c.bf16 %v789, %v788
    %792 = vrot.lane.b32.xlu0 %v402, 56
    %v793 = vpop.permute.xlu0 %792
    %v796 = vsel %vm276, %v790, 0
    %798 = vmatprep.subr.bf16.mxu0 0
    %799 = vmatpush1.bf16.msra.mxu0 %v793
    %800 = vmatprep.subr.bf16.mxu0 0
    %801 = vmatpush1.bf16.msra.mxu0 0
    %802 = vmatprep.subr.bf16.mxu0 0
    %803 = vmatpush1.bf16.msra.mxu0 0
    %804 = vmatprep.subr.bf16.mxu0 0
    %805 = vmatpush1.bf16.msra.mxu0 0
    %806 = vmatprep.subr.bf16.mxu0 0
    %807 = vmatpush1.bf16.msra.mxu0 0
    %808 = vmatprep.subr.bf16.mxu0 0
    %809 = vmatpush1.bf16.msra.mxu0 0
    %810 = vmatprep.subr.bf16.mxu0 0
    %811 = vmatpush1.bf16.msra.mxu0 0
    %812 = vmatprep.subr.bf16.mxu0 0
    %813 = vmatpush1.bf16.msra.mxu0 0
    %814 = vmatprep.subr.bf16.mxu0 0
    %815 = vmatpush1.bf16.msra.mxu0 0
    %816 = vmatprep.subr.bf16.mxu0 0
    %817 = vmatpush1.bf16.msra.mxu0 0
    %818 = vmatprep.subr.bf16.mxu0 0
    %819 = vmatpush1.bf16.msra.mxu0 0
    %820 = vmatprep.subr.bf16.mxu0 0
    %821 = vmatpush1.bf16.msra.mxu0 0
    %822 = vmatprep.subr.bf16.mxu0 0
    %823 = vmatpush1.bf16.msra.mxu0 0
    %824 = vmatprep.subr.bf16.mxu0 0
    %825 = vmatpush1.bf16.msra.mxu0 0
    %826 = vmatprep.subr.bf16.mxu0 0
    %827 = vmatpush1.bf16.msra.mxu0 0
    %828 = vmatprep.subr.bf16.mxu0 0
    %829 = vmatpush1.bf16.msra.mxu0 0
    %830 = vmatprep.mubr.bf16.mxu0 0
    %831 = vmatmul.mubr.bf16.gmra.mrb[0].mxu0 %v796
    %v832 = vpop.f32.mrb[0].mxu0
    %v833 = vadd.f32 0.0, %v832
    %v834 = vpop.f32.mrb[0].mxu0
    %v835 = vpop.f32.mrb[0].mxu0
    %v836 = vadd.f32 0.0, %v835
    %v837 = vpop.f32.mrb[0].mxu0
    %838 = vdwg.mxu0
    %839 = vrot.lane.b32.xlu0 %v403, 56
    %v840 = vpop.permute.xlu0 %839
    %v843 = vsel %vm276, %v791, 0
    %845 = vmatprep.subr.bf16.mxu0 0
    %846 = vmatpush1.bf16.msra.mxu0 %v840
    %847 = vmatprep.subr.bf16.mxu0 0
    %848 = vmatpush1.bf16.msra.mxu0 0
    %849 = vmatprep.subr.bf16.mxu0 0
    %850 = vmatpush1.bf16.msra.mxu0 0
    %851 = vmatprep.subr.bf16.mxu0 0
    %852 = vmatpush1.bf16.msra.mxu0 0
    %853 = vmatprep.subr.bf16.mxu0 0
    %854 = vmatpush1.bf16.msra.mxu0 0
    %855 = vmatprep.subr.bf16.mxu0 0
    %856 = vmatpush1.bf16.msra.mxu0 0
    %857 = vmatprep.subr.bf16.mxu0 0
    %858 = vmatpush1.bf16.msra.mxu0 0
    %859 = vmatprep.subr.bf16.mxu0 0
    %860 = vmatpush1.bf16.msra.mxu0 0
    %861 = vmatprep.subr.bf16.mxu0 0
    %862 = vmatpush1.bf16.msra.mxu0 0
    %863 = vmatprep.subr.bf16.mxu0 0
    %864 = vmatpush1.bf16.msra.mxu0 0
    %865 = vmatprep.subr.bf16.mxu0 0
    %866 = vmatpush1.bf16.msra.mxu0 0
    %867 = vmatprep.subr.bf16.mxu0 0
    %868 = vmatpush1.bf16.msra.mxu0 0
    %869 = vmatprep.subr.bf16.mxu0 0
    %870 = vmatpush1.bf16.msra.mxu0 0
    %871 = vmatprep.subr.bf16.mxu0 0
    %872 = vmatpush1.bf16.msra.mxu0 0
    %873 = vmatprep.subr.bf16.mxu0 0
    %874 = vmatpush1.bf16.msra.mxu0 0
    %875 = vmatprep.subr.bf16.mxu0 0
    %876 = vmatpush1.bf16.msra.mxu0 0
    %877 = vmatprep.mubr.bf16.mxu0 0
    %878 = vmatmul.mubr.bf16.gmra.mrb[0].mxu0 %v843
    %v879 = vpop.f32.mrb[0].mxu0
    %v880 = vadd.f32 0.0, %v879
    %v881 = vpop.f32.mrb[0].mxu0
    %v882 = vpop.f32.mrb[0].mxu0
    %v883 = vadd.f32 0.0, %v882
    %v884 = vpop.f32.mrb[0].mxu0
    %885 = vdwg.mxu0
    %886 = vrot.lane.b32.xlu0 %v402, 112
    %v887 = vpop.permute.xlu0 %886
    %888 = vrot.lane.b32.xlu0 %v402, 80
    %v889 = vpop.permute.xlu0 %888
    %v891 = vsel %vm192, %v887, 0
    %v894 = vsel %vm192, %v889, 0
    %896 = vmatprep.subr.bf16.mxu0 0
    %897 = vmatpush1.bf16.xpose.msra.mxu0 %v894
    %898 = vmatprep.subr.bf16.mxu0 0
    %899 = vmatpush1.bf16.xpose.msra.mxu0 0
    %900 = vmatprep.subr.bf16.mxu0 0
    %901 = vmatpush1.bf16.xpose.msra.mxu0 0
    %902 = vmatprep.subr.bf16.mxu0 0
    %903 = vmatpush1.bf16.xpose.msra.mxu0 0
    %904 = vmatprep.subr.bf16.mxu0 0
    %905 = vmatpush1.bf16.xpose.msra.mxu0 0
    %906 = vmatprep.subr.bf16.mxu0 0
    %907 = vmatpush1.bf16.xpose.msra.mxu0 0
    %908 = vmatprep.subr.bf16.mxu0 0
    %909 = vmatpush1.bf16.xpose.msra.mxu0 0
    %910 = vmatprep.subr.bf16.mxu0 0
    %911 = vmatpush1.bf16.xpose.msra.mxu0 0
    %912 = vmatprep.subr.bf16.mxu0 0
    %913 = vmatpush1.bf16.xpose.msra.mxu0 0
    %914 = vmatprep.subr.bf16.mxu0 0
    %915 = vmatpush1.bf16.xpose.msra.mxu0 0
    %916 = vmatprep.subr.bf16.mxu0 0
    %917 = vmatpush1.bf16.xpose.msra.mxu0 0
    %918 = vmatprep.subr.bf16.mxu0 0
    %919 = vmatpush1.bf16.xpose.msra.mxu0 0
    %920 = vmatprep.subr.bf16.mxu0 0
    %921 = vmatpush1.bf16.xpose.msra.mxu0 0
    %922 = vmatprep.subr.bf16.mxu0 0
    %923 = vmatpush1.bf16.xpose.msra.mxu0 0
    %924 = vmatprep.subr.bf16.mxu0 0
    %925 = vmatpush1.bf16.xpose.msra.mxu0 0
    %926 = vmatprep.subr.bf16.mxu0 0
    %927 = vmatpush1.bf16.xpose.msra.mxu0 0
    %928 = vmatprep.mubr.bf16.mxu0 0
    %929 = vmatmul.mubr.bf16.gmra.mrb[0].mxu0 %v891
    %v930 = vpop.f32.mrb[0].mxu0
    %v931 = vadd.f32 0.0, %v930
    %v932 = vpop.f32.mrb[0].mxu0
    %v933 = vpop.f32.mrb[0].mxu0
    %v934 = vadd.f32 0.0, %v933
    %v935 = vpop.f32.mrb[0].mxu0
    %936 = vdwg.mxu0
    %937 = vrot.lane.b32.xlu0 %v403, 112
    %v938 = vpop.permute.xlu0 %937
    %939 = vrot.lane.b32.xlu0 %v403, 80
    %v940 = vpop.permute.xlu0 %939
    %v942 = vsel %vm192, %v938, 0
    %v945 = vsel %vm192, %v940, 0
    %947 = vmatprep.subr.bf16.mxu0 0
    %948 = vmatpush1.bf16.xpose.msra.mxu0 %v945
    %949 = vmatprep.subr.bf16.mxu0 0
    %950 = vmatpush1.bf16.xpose.msra.mxu0 0
    %951 = vmatprep.subr.bf16.mxu0 0
    %952 = vmatpush1.bf16.xpose.msra.mxu0 0
    %953 = vmatprep.subr.bf16.mxu0 0
    %954 = vmatpush1.bf16.xpose.msra.mxu0 0
    %955 = vmatprep.subr.bf16.mxu0 0
    %956 = vmatpush1.bf16.xpose.msra.mxu0 0
    %957 = vmatprep.subr.bf16.mxu0 0
    %958 = vmatpush1.bf16.xpose.msra.mxu0 0
    %959 = vmatprep.subr.bf16.mxu0 0
    %960 = vmatpush1.bf16.xpose.msra.mxu0 0
    %961 = vmatprep.subr.bf16.mxu0 0
    %962 = vmatpush1.bf16.xpose.msra.mxu0 0
    %963 = vmatprep.subr.bf16.mxu0 0
    %964 = vmatpush1.bf16.xpose.msra.mxu0 0
    %965 = vmatprep.subr.bf16.mxu0 0
    %966 = vmatpush1.bf16.xpose.msra.mxu0 0
    %967 = vmatprep.subr.bf16.mxu0 0
    %968 = vmatpush1.bf16.xpose.msra.mxu0 0
    %969 = vmatprep.subr.bf16.mxu0 0
    %970 = vmatpush1.bf16.xpose.msra.mxu0 0
    %971 = vmatprep.subr.bf16.mxu0 0
    %972 = vmatpush1.bf16.xpose.msra.mxu0 0
    %973 = vmatprep.subr.bf16.mxu0 0
    %974 = vmatpush1.bf16.xpose.msra.mxu0 0
    %975 = vmatprep.subr.bf16.mxu0 0
    %976 = vmatpush1.bf16.xpose.msra.mxu0 0
    %977 = vmatprep.subr.bf16.mxu0 0
    %978 = vmatpush1.bf16.xpose.msra.mxu0 0
    %979 = vmatprep.mubr.bf16.mxu0 0
    %980 = vmatmul.mubr.bf16.gmra.mrb[0].mxu0 %v942
    %v981 = vpop.f32.mrb[0].mxu0
    %v982 = vadd.f32 0.0, %v981
    %v983 = vpop.f32.mrb[0].mxu0
    %v984 = vpop.f32.mrb[0].mxu0
    %v985 = vadd.f32 0.0, %v984
    %v986 = vpop.f32.mrb[0].mxu0
    %987 = vdwg.mxu0
    %v988 = vsel %vm276, %v931, -inf
    %989 = vmax.xlane.f32.xlu0 %v988
    %v990 = vpop.xlane.xlu0 %989
    %v991 = vsel %vm276, %v934, -inf
    %992 = vmax.xlane.f32.xlu0 %v991
    %v993 = vpop.xlane.xlu0 %992
    %v994 = vsel %vm276, %v982, -inf
    %995 = vmax.xlane.f32.xlu0 %v994
    %v996 = vpop.xlane.xlu0 %995
    %v997 = vsel %vm276, %v985, -inf
    %998 = vmax.xlane.f32.xlu0 %v997
    %v999 = vpop.xlane.xlu0 %998
    %v1000 = vsub.f32 %v931, %v990
    %v1001 = vsub.f32 %v934, %v993
    %v1002 = vsub.f32 %v982, %v996
    %v1003 = vsub.f32 %v985, %v999
    %v1004 = vmul.f32 %v1000, 1.442695
    %v1005 = vpow.pop %v1004
    %v1006 = vmul.f32 %v1001, 1.442695
    %v1007 = vpow.pop %v1006
    %v1008 = vmul.f32 %v1002, 1.442695
    %v1009 = vpow.pop %v1008
    %v1010 = vmul.f32 %v1003, 1.442695
    %v1011 = vpow.pop %v1010
    %v1012 = vsel %vm276, %v1005, 0.0
    %1013 = vadd.xlane.f32.xlu0 %v1012
    %v1014 = vpop.xlane.xlu0 %1013
    %v1015 = vsel %vm276, %v1007, 0.0
    %1016 = vadd.xlane.f32.xlu0 %v1015
    %v1017 = vpop.xlane.xlu0 %1016
    %v1018 = vsel %vm276, %v1009, 0.0
    %1019 = vadd.xlane.f32.xlu0 %v1018
    %v1020 = vpop.xlane.xlu0 %1019
    %v1021 = vsel %vm276, %v1011, 0.0
    %1022 = vadd.xlane.f32.xlu0 %v1021
    %v1023 = vpop.xlane.xlu0 %1022
    %v1024 = vrcp.pop %v1014
    %v1025 = vrcp.pop %v1017
    %v1026 = vrcp.pop %v1020
    %v1027 = vrcp.pop %v1023
    %v1028 = vmul.f32 %v1005, %v1024
    %v1029 = vmul.f32 %v1007, %v1025
    %v1030 = vmul.f32 %v1009, %v1026
    %v1031 = vmul.f32 %v1011, %v1027
    %v1032 = vpack.c.bf16 %v1029, %v1028
    %v1033 = vpack.c.bf16 %v1031, %v1030
    %1034 = vrot.lane.b32.xlu0 %v402, 48
    %v1035 = vpop.permute.xlu0 %1034
    %v1038 = vsel %vm276, %v1032, 0
    %1040 = vmatprep.subr.bf16.mxu0 0
    %1041 = vmatpush1.bf16.msra.mxu0 %v1035
    %1042 = vmatprep.subr.bf16.mxu0 0
    %1043 = vmatpush1.bf16.msra.mxu0 0
    %1044 = vmatprep.subr.bf16.mxu0 0
    %1045 = vmatpush1.bf16.msra.mxu0 0
    %1046 = vmatprep.subr.bf16.mxu0 0
    %1047 = vmatpush1.bf16.msra.mxu0 0
    %1048 = vmatprep.subr.bf16.mxu0 0
    %1049 = vmatpush1.bf16.msra.mxu0 0
    %1050 = vmatprep.subr.bf16.mxu0 0
    %1051 = vmatpush1.bf16.msra.mxu0 0
    %1052 = vmatprep.subr.bf16.mxu0 0
    %1053 = vmatpush1.bf16.msra.mxu0 0
    %1054 = vmatprep.subr.bf16.mxu0 0
    %1055 = vmatpush1.bf16.msra.mxu0 0
    %1056 = vmatprep.subr.bf16.mxu0 0
    %1057 = vmatpush1.bf16.msra.mxu0 0
    %1058 = vmatprep.subr.bf16.mxu0 0
    %1059 = vmatpush1.bf16.msra.mxu0 0
    %1060 = vmatprep.subr.bf16.mxu0 0
    %1061 = vmatpush1.bf16.msra.mxu0 0
    %1062 = vmatprep.subr.bf16.mxu0 0
    %1063 = vmatpush1.bf16.msra.mxu0 0
    %1064 = vmatprep.subr.bf16.mxu0 0
    %1065 = vmatpush1.bf16.msra.mxu0 0
    %1066 = vmatprep.subr.bf16.mxu0 0
    %1067 = vmatpush1.bf16.msra.mxu0 0
    %1068 = vmatprep.subr.bf16.mxu0 0
    %1069 = vmatpush1.bf16.msra.mxu0 0
    %1070 = vmatprep.subr.bf16.mxu0 0
    %1071 = vmatpush1.bf16.msra.mxu0 0
    %1072 = vmatprep.mubr.bf16.mxu0 0
    %1073 = vmatmul.mubr.bf16.gmra.mrb[0].mxu0 %v1038
    %v1074 = vpop.f32.mrb[0].mxu0
    %v1075 = vadd.f32 0.0, %v1074
    %v1076 = vpop.f32.mrb[0].mxu0
    %v1077 = vpop.f32.mrb[0].mxu0
    %v1078 = vadd.f32 0.0, %v1077
    %v1079 = vpop.f32.mrb[0].mxu0
    %1080 = vdwg.mxu0
    %1081 = vrot.lane.b32.xlu0 %v403, 48
    %v1082 = vpop.permute.xlu0 %1081
    %v1085 = vsel %vm276, %v1033, 0
    %1087 = vmatprep.subr.bf16.mxu0 0
    %1088 = vmatpush1.bf16.msra.mxu0 %v1082
    %1089 = vmatprep.subr.bf16.mxu0 0
    %1090 = vmatpush1.bf16.msra.mxu0 0
    %1091 = vmatprep.subr.bf16.mxu0 0
    %1092 = vmatpush1.bf16.msra.mxu0 0
    %1093 = vmatprep.subr.bf16.mxu0 0
    %1094 = vmatpush1.bf16.msra.mxu0 0
    %1095 = vmatprep.subr.bf16.mxu0 0
    %1096 = vmatpush1.bf16.msra.mxu0 0
    %1097 = vmatprep.subr.bf16.mxu0 0
    %1098 = vmatpush1.bf16.msra.mxu0 0
    %1099 = vmatprep.subr.bf16.mxu0 0
    %1100 = vmatpush1.bf16.msra.mxu0 0
    %1101 = vmatprep.subr.bf16.mxu0 0
    %1102 = vmatpush1.bf16.msra.mxu0 0
    %1103 = vmatprep.subr.bf16.mxu0 0
    %1104 = vmatpush1.bf16.msra.mxu0 0
    %1105 = vmatprep.subr.bf16.mxu0 0
    %1106 = vmatpush1.bf16.msra.mxu0 0
    %1107 = vmatprep.subr.bf16.mxu0 0
    %1108 = vmatpush1.bf16.msra.mxu0 0
    %1109 = vmatprep.subr.bf16.mxu0 0
    %1110 = vmatpush1.bf16.msra.mxu0 0
    %1111 = vmatprep.subr.bf16.mxu0 0
    %1112 = vmatpush1.bf16.msra.mxu0 0
    %1113 = vmatprep.subr.bf16.mxu0 0
    %1114 = vmatpush1.bf16.msra.mxu0 0
    %1115 = vmatprep.subr.bf16.mxu0 0
    %1116 = vmatpush1.bf16.msra.mxu0 0
    %1117 = vmatprep.subr.bf16.mxu0 0
    %1118 = vmatpush1.bf16.msra.mxu0 0
    %1119 = vmatprep.mubr.bf16.mxu0 0
    %1120 = vmatmul.mubr.bf16.gmra.mrb[0].mxu0 %v1085
    %v1121 = vpop.f32.mrb[0].mxu0
    %v1122 = vadd.f32 0.0, %v1121
    %v1123 = vpop.f32.mrb[0].mxu0
    %v1124 = vpop.f32.mrb[0].mxu0
    %v1125 = vadd.f32 0.0, %v1124
    %v1126 = vpop.f32.mrb[0].mxu0
    %1127 = vdwg.mxu0
    %1128 = vrot.lane.b32.xlu0 %v402, 104
    %v1129 = vpop.permute.xlu0 %1128
    %1130 = vrot.lane.b32.xlu0 %v402, 72
    %v1131 = vpop.permute.xlu0 %1130
    %v1133 = vsel %vm192, %v1129, 0
    %v1136 = vsel %vm192, %v1131, 0
    %1138 = vmatprep.subr.bf16.mxu0 0
    %1139 = vmatpush1.bf16.xpose.msra.mxu0 %v1136
    %1140 = vmatprep.subr.bf16.mxu0 0
    %1141 = vmatpush1.bf16.xpose.msra.mxu0 0
    %1142 = vmatprep.subr.bf16.mxu0 0
    %1143 = vmatpush1.bf16.xpose.msra.mxu0 0
    %1144 = vmatprep.subr.bf16.mxu0 0
    %1145 = vmatpush1.bf16.xpose.msra.mxu0 0
    %1146 = vmatprep.subr.bf16.mxu0 0
    %1147 = vmatpush1.bf16.xpose.msra.mxu0 0
    %1148 = vmatprep.subr.bf16.mxu0 0
    %1149 = vmatpush1.bf16.xpose.msra.mxu0 0
    %1150 = vmatprep.subr.bf16.mxu0 0
    %1151 = vmatpush1.bf16.xpose.msra.mxu0 0
    %1152 = vmatprep.subr.bf16.mxu0 0
    %1153 = vmatpush1.bf16.xpose.msra.mxu0 0
    %1154 = vmatprep.subr.bf16.mxu0 0
    %1155 = vmatpush1.bf16.xpose.msra.mxu0 0
    %1156 = vmatprep.subr.bf16.mxu0 0
    %1157 = vmatpush1.bf16.xpose.msra.mxu0 0
    %1158 = vmatprep.subr.bf16.mxu0 0
    %1159 = vmatpush1.bf16.xpose.msra.mxu0 0
    %1160 = vmatprep.subr.bf16.mxu0 0
    %1161 = vmatpush1.bf16.xpose.msra.mxu0 0
    %1162 = vmatprep.subr.bf16.mxu0 0
    %1163 = vmatpush1.bf16.xpose.msra.mxu0 0
    %1164 = vmatprep.subr.bf16.mxu0 0
    %1165 = vmatpush1.bf16.xpose.msra.mxu0 0
    %1166 = vmatprep.subr.bf16.mxu0 0
    %1167 = vmatpush1.bf16.xpose.msra.mxu0 0
    %1168 = vmatprep.subr.bf16.mxu0 0
    %1169 = vmatpush1.bf16.xpose.msra.mxu0 0
    %1170 = vmatprep.mubr.bf16.mxu0 0
    %1171 = vmatmul.mubr.bf16.gmra.mrb[0].mxu0 %v1133
    %v1172 = vpop.f32.mrb[0].mxu0
    %v1173 = vadd.f32 0.0, %v1172
    %v1174 = vpop.f32.mrb[0].mxu0
    %v1175 = vpop.f32.mrb[0].mxu0
    %v1176 = vadd.f32 0.0, %v1175
    %v1177 = vpop.f32.mrb[0].mxu0
    %1178 = vdwg.mxu0
    %1179 = vrot.lane.b32.xlu0 %v403, 104
    %v1180 = vpop.permute.xlu0 %1179
    %1181 = vrot.lane.b32.xlu0 %v403, 72
    %v1182 = vpop.permute.xlu0 %1181
    %v1184 = vsel %vm192, %v1180, 0
    %v1187 = vsel %vm192, %v1182, 0
    %1189 = vmatprep.subr.bf16.mxu0 0
    %1190 = vmatpush1.bf16.xpose.msra.mxu0 %v1187
    %1191 = vmatprep.subr.bf16.mxu0 0
    %1192 = vmatpush1.bf16.xpose.msra.mxu0 0
    %1193 = vmatprep.subr.bf16.mxu0 0
    %1194 = vmatpush1.bf16.xpose.msra.mxu0 0
    %1195 = vmatprep.subr.bf16.mxu0 0
    %1196 = vmatpush1.bf16.xpose.msra.mxu0 0
    %1197 = vmatprep.subr.bf16.mxu0 0
    %1198 = vmatpush1.bf16.xpose.msra.mxu0 0
    %1199 = vmatprep.subr.bf16.mxu0 0
    %1200 = vmatpush1.bf16.xpose.msra.mxu0 0
    %1201 = vmatprep.subr.bf16.mxu0 0
    %1202 = vmatpush1.bf16.xpose.msra.mxu0 0
    %1203 = vmatprep.subr.bf16.mxu0 0
    %1204 = vmatpush1.bf16.xpose.msra.mxu0 0
    %1205 = vmatprep.subr.bf16.mxu0 0
    %1206 = vmatpush1.bf16.xpose.msra.mxu0 0
    %1207 = vmatprep.subr.bf16.mxu0 0
    %1208 = vmatpush1.bf16.xpose.msra.mxu0 0
    %1209 = vmatprep.subr.bf16.mxu0 0
    %1210 = vmatpush1.bf16.xpose.msra.mxu0 0
    %1211 = vmatprep.subr.bf16.mxu0 0
    %1212 = vmatpush1.bf16.xpose.msra.mxu0 0
    %1213 = vmatprep.subr.bf16.mxu0 0
    %1214 = vmatpush1.bf16.xpose.msra.mxu0 0
    %1215 = vmatprep.subr.bf16.mxu0 0
    %1216 = vmatpush1.bf16.xpose.msra.mxu0 0
    %1217 = vmatprep.subr.bf16.mxu0 0
    %1218 = vmatpush1.bf16.xpose.msra.mxu0 0
    %1219 = vmatprep.subr.bf16.mxu0 0
    %1220 = vmatpush1.bf16.xpose.msra.mxu0 0
    %1221 = vmatprep.mubr.bf16.mxu0 0
    %1222 = vmatmul.mubr.bf16.gmra.mrb[0].mxu0 %v1184
    %v1223 = vpop.f32.mrb[0].mxu0
    %v1224 = vadd.f32 0.0, %v1223
    %v1225 = vpop.f32.mrb[0].mxu0
    %v1226 = vpop.f32.mrb[0].mxu0
    %v1227 = vadd.f32 0.0, %v1226
    %v1228 = vpop.f32.mrb[0].mxu0
    %1229 = vdwg.mxu0
    %v1230 = vsel %vm276, %v1173, -inf
    %1231 = vmax.xlane.f32.xlu0 %v1230
    %v1232 = vpop.xlane.xlu0 %1231
    %v1233 = vsel %vm276, %v1176, -inf
    %1234 = vmax.xlane.f32.xlu0 %v1233
    %v1235 = vpop.xlane.xlu0 %1234
    %v1236 = vsel %vm276, %v1224, -inf
    %1237 = vmax.xlane.f32.xlu0 %v1236
    %v1238 = vpop.xlane.xlu0 %1237
    %v1239 = vsel %vm276, %v1227, -inf
    %1240 = vmax.xlane.f32.xlu0 %v1239
    %v1241 = vpop.xlane.xlu0 %1240
    %v1242 = vsub.f32 %v1173, %v1232
    %v1243 = vsub.f32 %v1176, %v1235
    %v1244 = vsub.f32 %v1224, %v1238
    %v1245 = vsub.f32 %v1227, %v1241
    %v1246 = vmul.f32 %v1242, 1.442695
    %v1247 = vpow.pop %v1246
    %v1248 = vmul.f32 %v1243, 1.442695
    %v1249 = vpow.pop %v1248
    %v1250 = vmul.f32 %v1244, 1.442695
    %v1251 = vpow.pop %v1250
    %v1252 = vmul.f32 %v1245, 1.442695
    %v1253 = vpow.pop %v1252
    %v1254 = vsel %vm276, %v1247, 0.0
    %1255 = vadd.xlane.f32.xlu0 %v1254
    %v1256 = vpop.xlane.xlu0 %1255
    %v1257 = vsel %vm276, %v1249, 0.0
    %1258 = vadd.xlane.f32.xlu0 %v1257
    %v1259 = vpop.xlane.xlu0 %1258
    %v1260 = vsel %vm276, %v1251, 0.0
    %1261 = vadd.xlane.f32.xlu0 %v1260
    %v1262 = vpop.xlane.xlu0 %1261
    %v1263 = vsel %vm276, %v1253, 0.0
    %1264 = vadd.xlane.f32.xlu0 %v1263
    %v1265 = vpop.xlane.xlu0 %1264
    %v1266 = vrcp.pop %v1256
    %v1267 = vrcp.pop %v1259
    %v1268 = vrcp.pop %v1262
    %v1269 = vrcp.pop %v1265
    %v1270 = vmul.f32 %v1247, %v1266
    %v1271 = vmul.f32 %v1249, %v1267
    %v1272 = vmul.f32 %v1251, %v1268
    %v1273 = vmul.f32 %v1253, %v1269
    %v1274 = vpack.c.bf16 %v1271, %v1270
    %v1275 = vpack.c.bf16 %v1273, %v1272
    %1276 = vrot.lane.b32.xlu0 %v402, 40
    %v1277 = vpop.permute.xlu0 %1276
    %v1280 = vsel %vm276, %v1274, 0
    %1282 = vmatprep.subr.bf16.mxu0 0
    %1283 = vmatpush1.bf16.msra.mxu0 %v1277
    %1284 = vmatprep.subr.bf16.mxu0 0
    %1285 = vmatpush1.bf16.msra.mxu0 0
    %1286 = vmatprep.subr.bf16.mxu0 0
    %1287 = vmatpush1.bf16.msra.mxu0 0
    %1288 = vmatprep.subr.bf16.mxu0 0
    %1289 = vmatpush1.bf16.msra.mxu0 0
    %1290 = vmatprep.subr.bf16.mxu0 0
    %1291 = vmatpush1.bf16.msra.mxu0 0
    %1292 = vmatprep.subr.bf16.mxu0 0
    %1293 = vmatpush1.bf16.msra.mxu0 0
    %1294 = vmatprep.subr.bf16.mxu0 0
    %1295 = vmatpush1.bf16.msra.mxu0 0
    %1296 = vmatprep.subr.bf16.mxu0 0
    %1297 = vmatpush1.bf16.msra.mxu0 0
    %1298 = vmatprep.subr.bf16.mxu0 0
    %1299 = vmatpush1.bf16.msra.mxu0 0
    %1300 = vmatprep.subr.bf16.mxu0 0
    %1301 = vmatpush1.bf16.msra.mxu0 0
    %1302 = vmatprep.subr.bf16.mxu0 0
    %1303 = vmatpush1.bf16.msra.mxu0 0
    %1304 = vmatprep.subr.bf16.mxu0 0
    %1305 = vmatpush1.bf16.msra.mxu0 0
    %1306 = vmatprep.subr.bf16.mxu0 0
    %1307 = vmatpush1.bf16.msra.mxu0 0
    %1308 = vmatprep.subr.bf16.mxu0 0
    %1309 = vmatpush1.bf16.msra.mxu0 0
    %1310 = vmatprep.subr.bf16.mxu0 0
    %1311 = vmatpush1.bf16.msra.mxu0 0
    %1312 = vmatprep.subr.bf16.mxu0 0
    %1313 = vmatpush1.bf16.msra.mxu0 0
    %1314 = vmatprep.mubr.bf16.mxu0 0
    %1315 = vmatmul.mubr.bf16.gmra.mrb[0].mxu0 %v1280
    %v1316 = vpop.f32.mrb[0].mxu0
    %v1317 = vadd.f32 0.0, %v1316
    %v1318 = vpop.f32.mrb[0].mxu0
    %v1319 = vpop.f32.mrb[0].mxu0
    %v1320 = vadd.f32 0.0, %v1319
    %v1321 = vpop.f32.mrb[0].mxu0
    %1322 = vdwg.mxu0
    %1323 = vrot.lane.b32.xlu0 %v403, 40
    %v1324 = vpop.permute.xlu0 %1323
    %v1327 = vsel %vm276, %v1275, 0
    %1329 = vmatprep.subr.bf16.mxu0 0
    %1330 = vmatpush1.bf16.msra.mxu0 %v1324
    %1331 = vmatprep.subr.bf16.mxu0 0
    %1332 = vmatpush1.bf16.msra.mxu0 0
    %1333 = vmatprep.subr.bf16.mxu0 0
    %1334 = vmatpush1.bf16.msra.mxu0 0
    %1335 = vmatprep.subr.bf16.mxu0 0
    %1336 = vmatpush1.bf16.msra.mxu0 0
    %1337 = vmatprep.subr.bf16.mxu0 0
    %1338 = vmatpush1.bf16.msra.mxu0 0
    %1339 = vmatprep.subr.bf16.mxu0 0
    %1340 = vmatpush1.bf16.msra.mxu0 0
    %1341 = vmatprep.subr.bf16.mxu0 0
    %1342 = vmatpush1.bf16.msra.mxu0 0
    %1343 = vmatprep.subr.bf16.mxu0 0
    %1344 = vmatpush1.bf16.msra.mxu0 0
    %1345 = vmatprep.subr.bf16.mxu0 0
    %1346 = vmatpush1.bf16.msra.mxu0 0
    %1347 = vmatprep.subr.bf16.mxu0 0
    %1348 = vmatpush1.bf16.msra.mxu0 0
    %1349 = vmatprep.subr.bf16.mxu0 0
    %1350 = vmatpush1.bf16.msra.mxu0 0
    %1351 = vmatprep.subr.bf16.mxu0 0
    %1352 = vmatpush1.bf16.msra.mxu0 0
    %1353 = vmatprep.subr.bf16.mxu0 0
    %1354 = vmatpush1.bf16.msra.mxu0 0
    %1355 = vmatprep.subr.bf16.mxu0 0
    %1356 = vmatpush1.bf16.msra.mxu0 0
    %1357 = vmatprep.subr.bf16.mxu0 0
    %1358 = vmatpush1.bf16.msra.mxu0 0
    %1359 = vmatprep.subr.bf16.mxu0 0
    %1360 = vmatpush1.bf16.msra.mxu0 0
    %1361 = vmatprep.mubr.bf16.mxu0 0
    %1362 = vmatmul.mubr.bf16.gmra.mrb[0].mxu0 %v1327
    %v1363 = vpop.f32.mrb[0].mxu0
    %v1364 = vadd.f32 0.0, %v1363
    %v1365 = vpop.f32.mrb[0].mxu0
    %v1366 = vpop.f32.mrb[0].mxu0
    %v1367 = vadd.f32 0.0, %v1366
    %v1368 = vpop.f32.mrb[0].mxu0
    %1369 = vdwg.mxu0
    %1374 = vrot.lane.b32.xlu0 %v833, 8
    %v1375 = vpop.permute.xlu0 %1374
    %1376 = vrot.lane.b32.xlu0 %v836, 8
    %v1377 = vpop.permute.xlu0 %1376
    %1378 = vrot.lane.b32.xlu0 %v880, 8
    %v1379 = vpop.permute.xlu0 %1378
    %1380 = vrot.lane.b32.xlu0 %v883, 8
    %v1381 = vpop.permute.xlu0 %1380
    %1390 = vrot.lane.b32.xlu0 %v1075, 16
    %v1391 = vpop.permute.xlu0 %1390
    %1392 = vrot.lane.b32.xlu0 %v1078, 16
    %v1393 = vpop.permute.xlu0 %1392
    %1394 = vrot.lane.b32.xlu0 %v1122, 16
    %v1395 = vpop.permute.xlu0 %1394
    %1396 = vrot.lane.b32.xlu0 %v1125, 16
    %v1397 = vpop.permute.xlu0 %1396
    %1406 = vrot.lane.b32.xlu0 %v1317, 24
    %v1407 = vpop.permute.xlu0 %1406
    %1408 = vrot.lane.b32.xlu0 %v1320, 24
    %v1409 = vpop.permute.xlu0 %1408
    %1410 = vrot.lane.b32.xlu0 %v1364, 24
    %v1411 = vpop.permute.xlu0 %1410
    %1412 = vrot.lane.b32.xlu0 %v1367, 24
    %v1413 = vpop.permute.xlu0 %1412
    %v1418 = vsel %vm192, %v591, %v1375
    %v1419 = vsel %vm192, %v594, %v1377
    %v1420 = vsel %vm192, %v638, %v1379
    %v1421 = vsel %vm192, %v641, %v1381
    %v1422 = vsel %vm276, %v1418, %v1391
    %v1423 = vsel %vm276, %v1419, %v1393
    %v1424 = vsel %vm276, %v1420, %v1395
    %v1425 = vsel %vm276, %v1421, %v1397
    %vm1426 = vcmask 195584
    %v1427 = vsel %vm1426, %v1422, %v1407
    %v1428 = vsel %vm1426, %v1423, %v1409
    %v1429 = vsel %vm1426, %v1424, %v1411
    %v1430 = vsel %vm1426, %v1425, %v1413
    %v1431 = vpack.c.bf16 %v1428, %v1427
    %v1432 = vpack.c.bf16 %v1430, %v1429
    %v1433 = vld [vmem:[%s9] sm:$0xf]
    %v1434 = vld [vmem:[%s9 + $0x4] sm:$0xf]
    %v1435 = vld [vmem:[%s9 + $0x8] sm:$0xf]
    %v1436 = vld [vmem:[%s9 + $0xc] sm:$0xf]
    %v1437 = vld [vmem:[#allocation8] sm:$0x1]
    %v1439 = vlaneseq
    %v1440 = vshrl.u32 %v1439, 7
    %v1441 = vsub.s32 0, %v1440
    %v1442 = vrot.slane %v1437, %v1441
    %v1448 = vunpack.c.l.b16 %v1433
    %v1449 = vunpack.c.l.b16 %v1434
    %v1450 = vunpack.c.l.b16 %v1435
    %v1451 = vunpack.c.l.b16 %v1436
    %v1452 = vpack.c.b16 %v1449, %v1448
    %v1453 = vpack.c.b16 %v1451, %v1450
    %v1457 = vsel %vm346, %v1431, 0
    %v1460 = vsel %vm346, %v1432, 0
    %1462 = vmatprep.subr.bf16.mxu0 0
    %1463 = vmatpush1.bf16.msra.mxu0 %v1452
    %1464 = vmatprep.subr.bf16.mxu0 0
    %1465 = vmatpush1.bf16.msra.mxu0 %v1453
    %1466 = vmatprep.subr.bf16.mxu0 0
    %1467 = vmatpush1.bf16.msra.mxu0 0
    %1468 = vmatprep.subr.bf16.mxu0 0
    %1469 = vmatpush1.bf16.msra.mxu0 0
    %1470 = vmatprep.subr.bf16.mxu0 0
    %1471 = vmatpush1.bf16.msra.mxu0 0
    %1472 = vmatprep.subr.bf16.mxu0 0
    %1473 = vmatpush1.bf16.msra.mxu0 0
    %1474 = vmatprep.subr.bf16.mxu0 0
    %1475 = vmatpush1.bf16.msra.mxu0 0
    %1476 = vmatprep.subr.bf16.mxu0 0
    %1477 = vmatpush1.bf16.msra.mxu0 0
    %1478 = vmatprep.subr.bf16.mxu0 0
    %1479 = vmatpush1.bf16.msra.mxu0 0
    %1480 = vmatprep.subr.bf16.mxu0 0
    %1481 = vmatpush1.bf16.msra.mxu0 0
    %1482 = vmatprep.subr.bf16.mxu0 0
    %1483 = vmatpush1.bf16.msra.mxu0 0
    %1484 = vmatprep.subr.bf16.mxu0 0
    %1485 = vmatpush1.bf16.msra.mxu0 0
    %1486 = vmatprep.subr.bf16.mxu0 0
    %1487 = vmatpush1.bf16.msra.mxu0 0
    %1488 = vmatprep.subr.bf16.mxu0 0
    %1489 = vmatpush1.bf16.msra.mxu0 0
    %1490 = vmatprep.subr.bf16.mxu0 0
    %1491 = vmatpush1.bf16.msra.mxu0 0
    %1492 = vmatprep.subr.bf16.mxu0 0
    %1493 = vmatpush1.bf16.msra.mxu0 0
    %1494 = vmatprep.mubr.bf16.mxu0 0
    %1495 = vmatmul.mubr.bf16.gmra.mrb[0].mxu0 %v1457
    %v1496 = vpop.f32.mrb[0].mxu0
    %v1497 = vadd.f32 %v1442, %v1496
    %v1498 = vpop.f32.mrb[0].mxu0
    %v1499 = vpop.f32.mrb[0].mxu0
    %v1500 = vadd.f32 %v1442, %v1499
    %v1501 = vpop.f32.mrb[0].mxu0
    %1502 = vmatprep.mubr.bf16.mxu0 0
    %1503 = vmatmul.mubr.bf16.gmra.mrb[0].mxu0 %v1460
    %v1504 = vpop.f32.mrb[0].mxu0
    %v1505 = vadd.f32 %v1442, %v1504
    %v1506 = vpop.f32.mrb[0].mxu0
    %v1507 = vpop.f32.mrb[0].mxu0
    %v1508 = vadd.f32 %v1442, %v1507
    %v1509 = vpop.f32.mrb[0].mxu0
    %1510 = vdwg.mxu0
    %v1511 = vld [vmem:[%s15] sm:$0xf]
    %v1512 = vadd.f32 %v254, %v1497
    %v1513 = vadd.f32 %v255, %v1500
    %v1514 = vadd.f32 %v256, %v1505
    %v1515 = vadd.f32 %v257, %v1508
    %v1516 = vsel %vm346, %v1512, 0.0
    %1517 = vadd.xlane.f32.xlu0 %v1516
    %v1518 = vpop.xlane.xlu0 %1517
    %v1519 = vsel %vm346, %v1513, 0.0
    %1520 = vadd.xlane.f32.xlu0 %v1519
    %v1521 = vpop.xlane.xlu0 %1520
    %v1522 = vsel %vm346, %v1514, 0.0
    %1523 = vadd.xlane.f32.xlu0 %v1522
    %v1524 = vpop.xlane.xlu0 %1523
    %v1525 = vsel %vm346, %v1515, 0.0
    %1526 = vadd.xlane.f32.xlu0 %v1525
    %v1527 = vpop.xlane.xlu0 %1526
    %v1528 = vrcp.pop 32.0
    %v1529 = vmul.f32 %v1518, %v1528
    %v1530 = vmul.f32 %v1521, %v1528
    %v1531 = vmul.f32 %v1524, %v1528
    %v1532 = vmul.f32 %v1527, %v1528
    %v1533 = vsub.f32 %v1512, %v1529
    %v1534 = vsub.f32 %v1513, %v1530
    %v1535 = vsub.f32 %v1514, %v1531
    %v1536 = vsub.f32 %v1515, %v1532
    %v1537 = vmul.f32 %v1533, %v1533
    %v1538 = vmul.f32 %v1534, %v1534
    %v1539 = vmul.f32 %v1535, %v1535
    %v1540 = vmul.f32 %v1536, %v1536
    %v1541 = vsel %vm346, %v1537, 0.0
    %1542 = vadd.xlane.f32.xlu0 %v1541
    %v1543 = vpop.xlane.xlu0 %1542
    %v1544 = vsel %vm346, %v1538, 0.0
    %1545 = vadd.xlane.f32.xlu0 %v1544
    %v1546 = vpop.xlane.xlu0 %1545
    %v1547 = vsel %vm346, %v1539, 0.0
    %1548 = vadd.xlane.f32.xlu0 %v1547
    %v1549 = vpop.xlane.xlu0 %1548
    %v1550 = vsel %vm346, %v1540, 0.0
    %1551 = vadd.xlane.f32.xlu0 %v1550
    %v1552 = vpop.xlane.xlu0 %1551
    %v1553 = vmul.f32 %v1543, %v1528
    %v1554 = vmul.f32 %v1546, %v1528
    %v1555 = vmul.f32 %v1549, %v1528
    %v1556 = vmul.f32 %v1552, %v1528
    %v1557 = vadd.f32 %v1553, 1e-05
    %v1558 = vadd.f32 %v1554, 1e-05
    %v1559 = vadd.f32 %v1555, 1e-05
    %v1560 = vadd.f32 %v1556, 1e-05
    %v1561 = vrsqrt.pop %v1557
    %v1562 = vrsqrt.pop %v1558
    %v1563 = vrsqrt.pop %v1559
    %v1564 = vrsqrt.pop %v1560
    %v1565 = vmul.f32 %v1533, %v1561
    %v1566 = vmul.f32 %v1534, %v1562
    %v1567 = vmul.f32 %v1535, %v1563
    %v1568 = vmul.f32 %v1536, %v1564
    %v1569 = vlaneseq
    %v1570 = vshrl.u32 %v1569, 7
    %v1571 = vsub.s32 0, %v1570
    %v1572 = vrot.slane %v1511, %v1571
    %v1573 = vmul.f32 %v1565, %v1572
    %v1574 = vmul.f32 %v1566, %v1572
    %v1575 = vmul.f32 %v1567, %v1572
    %v1576 = vmul.f32 %v1568, %v1572
    %v1577 = vlaneseq
    %v1578 = vshrl.u32 %v1577, 7
    %v1579 = vsub.s32 1, %v1578
    %v1580 = vrot.slane %v1511, %v1579
    %v1581 = vadd.f32 %v1573, %v1580
    %v1582 = vadd.f32 %v1574, %v1580
    %v1583 = vadd.f32 %v1575, %v1580
    %v1584 = vadd.f32 %v1576, %v1580
    %v1585 = vpack.c.bf16 %v1582, %v1581
    %v1586 = vpack.c.bf16 %v1584, %v1583
    %v1587 = vld [vmem:[%s11] sm:$0xf]
    %v1588 = vld [vmem:[%s11 + $0x4] sm:$0xf]
    %v1589 = vld [vmem:[%s11 + $0x8] sm:$0xf]
    %v1590 = vld [vmem:[%s11 + $0xc] sm:$0xf]
    %v1591 = vld [vmem:[#allocation10] sm:$0x1]
    %v1593 = vlaneseq
    %v1594 = vshrl.u32 %v1593, 7
    %v1595 = vsub.s32 0, %v1594
    %v1596 = vrot.slane %v1591, %v1595
    %v1602 = vunpack.c.l.b16 %v1587
    %v1603 = vunpack.c.l.b16 %v1588
    %v1604 = vunpack.c.l.b16 %v1589
    %v1605 = vunpack.c.l.b16 %v1590
    %v1606 = vpack.c.b16 %v1603, %v1602
    %v1607 = vpack.c.b16 %v1605, %v1604
    %v1611 = vsel %vm346, %v1585, 0
    %v1614 = vsel %vm346, %v1586, 0
    %1616 = vmatprep.subr.bf16.mxu0 0
    %1617 = vmatpush1.bf16.msra.mxu0 %v1606
    %1618 = vmatprep.subr.bf16.mxu0 0
    %1619 = vmatpush1.bf16.msra.mxu0 %v1607
    %1620 = vmatprep.subr.bf16.mxu0 0
    %1621 = vmatpush1.bf16.msra.mxu0 0
    %1622 = vmatprep.subr.bf16.mxu0 0
    %1623 = vmatpush1.bf16.msra.mxu0 0
    %1624 = vmatprep.subr.bf16.mxu0 0
    %1625 = vmatpush1.bf16.msra.mxu0 0
    %1626 = vmatprep.subr.bf16.mxu0 0
    %1627 = vmatpush1.bf16.msra.mxu0 0
    %1628 = vmatprep.subr.bf16.mxu0 0
    %1629 = vmatpush1.bf16.msra.mxu0 0
    %1630 = vmatprep.subr.bf16.mxu0 0
    %1631 = vmatpush1.bf16.msra.mxu0 0
    %1632 = vmatprep.subr.bf16.mxu0 0
    %1633 = vmatpush1.bf16.msra.mxu0 0
    %1634 = vmatprep.subr.bf16.mxu0 0
    %1635 = vmatpush1.bf16.msra.mxu0 0
    %1636 = vmatprep.subr.bf16.mxu0 0
    %1637 = vmatpush1.bf16.msra.mxu0 0
    %1638 = vmatprep.subr.bf16.mxu0 0
    %1639 = vmatpush1.bf16.msra.mxu0 0
    %1640 = vmatprep.subr.bf16.mxu0 0
    %1641 = vmatpush1.bf16.msra.mxu0 0
    %1642 = vmatprep.subr.bf16.mxu0 0
    %1643 = vmatpush1.bf16.msra.mxu0 0
    %1644 = vmatprep.subr.bf16.mxu0 0
    %1645 = vmatpush1.bf16.msra.mxu0 0
    %1646 = vmatprep.subr.bf16.mxu0 0
    %1647 = vmatpush1.bf16.msra.mxu0 0
    %1648 = vmatprep.mubr.bf16.mxu0 0
    %1649 = vmatmul.mubr.bf16.gmra.mrb[0].mxu0 %v1611
    %v1650 = vpop.f32.mrb[0].mxu0
    %v1651 = vadd.f32 %v1596, %v1650
    %v1652 = vpop.f32.mrb[0].mxu0
    %v1653 = vpop.f32.mrb[0].mxu0
    %v1654 = vadd.f32 %v1596, %v1653
    %v1655 = vpop.f32.mrb[0].mxu0
    %1656 = vmatprep.mubr.bf16.mxu0 0
    %1657 = vmatmul.mubr.bf16.gmra.mrb[0].mxu0 %v1614
    %v1658 = vpop.f32.mrb[0].mxu0
    %v1659 = vadd.f32 %v1596, %v1658
    %v1660 = vpop.f32.mrb[0].mxu0
    %v1661 = vpop.f32.mrb[0].mxu0
    %v1662 = vadd.f32 %v1596, %v1661
    %v1663 = vpop.f32.mrb[0].mxu0
    %1664 = vdwg.mxu0
    %v1665 = vmax.f32 %v1651, 0.0
    %v1666 = vmax.f32 %v1654, 0.0
    %v1667 = vmax.f32 %v1659, 0.0
    %v1668 = vmax.f32 %v1662, 0.0
    %v1669 = vpack.c.bf16 %v1666, %v1665
    %v1670 = vpack.c.bf16 %v1668, %v1667
    %v1671 = vld [vmem:[%s13] sm:$0xf]
    %v1672 = vld [vmem:[%s13 + $0x4] sm:$0xf]
    %v1673 = vld [vmem:[%s13 + $0x8] sm:$0xf]
    %v1674 = vld [vmem:[%s13 + $0xc] sm:$0xf]
    %v1675 = vld [vmem:[%s13 + $0x10] sm:$0xf]
    %v1676 = vld [vmem:[%s13 + $0x14] sm:$0xf]
    %v1677 = vld [vmem:[%s13 + $0x18] sm:$0xf]
    %v1678 = vld [vmem:[%s13 + $0x1c] sm:$0xf]
    %v1679 = vld [vmem:[#allocation11] sm:$0x1]
    %v1681 = vlaneseq
    %v1682 = vshrl.u32 %v1681, 7
    %v1683 = vsub.s32 0, %v1682
    %v1684 = vrot.slane %v1679, %v1683
    %v1694 = vunpack.c.l.b16 %v1671
    %v1695 = vunpack.c.l.b16 %v1672
    %v1696 = vunpack.c.l.b16 %v1673
    %v1697 = vunpack.c.l.b16 %v1674
    %v1698 = vunpack.c.l.b16 %v1675
    %v1699 = vunpack.c.l.b16 %v1676
    %v1700 = vunpack.c.l.b16 %v1677
    %v1701 = vunpack.c.l.b16 %v1678
    %v1702 = vpack.c.b16 %v1695, %v1694
    %v1703 = vpack.c.b16 %v1697, %v1696
    %v1704 = vpack.c.b16 %v1699, %v1698
    %v1705 = vpack.c.b16 %v1701, %v1700
    %vm1710 = vcmask 523264
    %v1712 = vsel %vm1710, %v1669, 0
    %v1715 = vsel %vm1710, %v1670, 0
    %1717 = vmatprep.subr.bf16.mxu0 0
    %1718 = vmatpush1.bf16.msra.mxu0 %v1702
    %1719 = vmatprep.subr.bf16.mxu0 0
    %1720 = vmatpush1.bf16.msra.mxu0 %v1703
    %1721 = vmatprep.subr.bf16.mxu0 0
    %1722 = vmatpush1.bf16.msra.mxu0 %v1704
    %1723 = vmatprep.subr.bf16.mxu0 0
    %1724 = vmatpush1.bf16.msra.mxu0 %v1705
    %1725 = vmatprep.subr.bf16.mxu0 0
    %1726 = vmatpush1.bf16.msra.mxu0 0
    %1727 = vmatprep.subr.bf16.mxu0 0
    %1728 = vmatpush1.bf16.msra.mxu0 0
    %1729 = vmatprep.subr.bf16.mxu0 0
    %1730 = vmatpush1.bf16.msra.mxu0 0
    %1731 = vmatprep.subr.bf16.mxu0 0
    %1732 = vmatpush1.bf16.msra.mxu0 0
    %1733 = vmatprep.subr.bf16.mxu0 0
    %1734 = vmatpush1.bf16.msra.mxu0 0
    %1735 = vmatprep.subr.bf16.mxu0 0
    %1736 = vmatpush1.bf16.msra.mxu0 0
    %1737 = vmatprep.subr.bf16.mxu0 0
    %1738 = vmatpush1.bf16.msra.mxu0 0
    %1739 = vmatprep.subr.bf16.mxu0 0
    %1740 = vmatpush1.bf16.msra.mxu0 0
    %1741 = vmatprep.subr.bf16.mxu0 0
    %1742 = vmatpush1.bf16.msra.mxu0 0
    %1743 = vmatprep.subr.bf16.mxu0 0
    %1744 = vmatpush1.bf16.msra.mxu0 0
    %1745 = vmatprep.subr.bf16.mxu0 0
    %1746 = vmatpush1.bf16.msra.mxu0 0
    %1747 = vmatprep.subr.bf16.mxu0 0
    %1748 = vmatpush1.bf16.msra.mxu0 0
    %1749 = vmatprep.mubr.bf16.mxu0 0
    %1750 = vmatmul.mubr.bf16.gmra.mrb[0].mxu0 %v1712
    %v1751 = vpop.f32.mrb[0].mxu0
    %v1752 = vadd.f32 %v1684, %v1751
    %v1753 = vpop.f32.mrb[0].mxu0
    %v1754 = vpop.f32.mrb[0].mxu0
    %v1755 = vadd.f32 %v1684, %v1754
    %v1756 = vpop.f32.mrb[0].mxu0
    %1757 = vmatprep.mubr.bf16.mxu0 0
    %1758 = vmatmul.mubr.bf16.gmra.mrb[0].mxu0 %v1715
    %v1759 = vpop.f32.mrb[0].mxu0
    %v1760 = vadd.f32 %v1684, %v1759
    %v1761 = vpop.f32.mrb[0].mxu0
    %v1762 = vpop.f32.mrb[0].mxu0
    %v1763 = vadd.f32 %v1684, %v1762
    %v1764 = vpop.f32.mrb[0].mxu0
    %1765 = vdwg.mxu0
    %v1766 = vadd.f32 %v1581, %v1752
    %v1767 = vadd.f32 %v1582, %v1755
    %v1768 = vadd.f32 %v1583, %v1760
    %v1769 = vadd.f32 %v1584, %v1763
    %v1770 = vsel %vm346, %v1766, 0.0
    %1771 = vadd.xlane.f32.xlu0 %v1770
    %v1772 = vpop.xlane.xlu0 %1771
    %v1773 = vsel %vm346, %v1767, 0.0
    %1774 = vadd.xlane.f32.xlu0 %v1773
    %v1775 = vpop.xlane.xlu0 %1774
    %v1776 = vsel %vm346, %v1768, 0.0
    %1777 = vadd.xlane.f32.xlu0 %v1776
    %v1778 = vpop.xlane.xlu0 %1777
    %v1779 = vsel %vm346, %v1769, 0.0
    %1780 = vadd.xlane.f32.xlu0 %v1779
    %v1781 = vpop.xlane.xlu0 %1780
    %v1782 = vmul.f32 %v1772, %v1528
    %v1783 = vmul.f32 %v1775, %v1528
    %v1784 = vmul.f32 %v1778, %v1528
    %v1785 = vmul.f32 %v1781, %v1528
    %v1786 = vsub.f32 %v1766, %v1782
    %v1787 = vsub.f32 %v1767, %v1783
    %v1788 = vsub.f32 %v1768, %v1784
    %v1789 = vsub.f32 %v1769, %v1785
    %v1790 = vmul.f32 %v1786, %v1786
    %v1791 = vmul.f32 %v1787, %v1787
    %v1792 = vmul.f32 %v1788, %v1788
    %v1793 = vmul.f32 %v1789, %v1789
    %v1794 = vsel %vm346, %v1790, 0.0
    %1795 = vadd.xlane.f32.xlu0 %v1794
    %v1796 = vpop.xlane.xlu0 %1795
    %v1797 = vsel %vm346, %v1791, 0.0
    %1798 = vadd.xlane.f32.xlu0 %v1797
    %v1799 = vpop.xlane.xlu0 %1798
    %v1800 = vsel %vm346, %v1792, 0.0
    %1801 = vadd.xlane.f32.xlu0 %v1800
    %v1802 = vpop.xlane.xlu0 %1801
    %v1803 = vsel %vm346, %v1793, 0.0
    %1804 = vadd.xlane.f32.xlu0 %v1803
    %v1805 = vpop.xlane.xlu0 %1804
    %v1806 = vmul.f32 %v1796, %v1528
    %v1807 = vmul.f32 %v1799, %v1528
    %v1808 = vmul.f32 %v1802, %v1528
    %v1809 = vmul.f32 %v1805, %v1528
    %v1810 = vadd.f32 %v1806, 1e-05
    %v1811 = vadd.f32 %v1807, 1e-05
    %v1812 = vadd.f32 %v1808, 1e-05
    %v1813 = vadd.f32 %v1809, 1e-05
    %v1814 = vrsqrt.pop %v1810
    %v1815 = vrsqrt.pop %v1811
    %v1816 = vrsqrt.pop %v1812
    %v1817 = vrsqrt.pop %v1813
    %v1818 = vmul.f32 %v1786, %v1814
    %v1819 = vmul.f32 %v1787, %v1815
    %v1820 = vmul.f32 %v1788, %v1816
    %v1821 = vmul.f32 %v1789, %v1817
    %v1822 = vlaneseq
    %v1823 = vshrl.u32 %v1822, 7
    %v1824 = vsub.s32 2, %v1823
    %v1825 = vrot.slane %v1511, %v1824
    %v1826 = vmul.f32 %v1818, %v1825
    %v1827 = vmul.f32 %v1819, %v1825
    %v1828 = vmul.f32 %v1820, %v1825
    %v1829 = vmul.f32 %v1821, %v1825
    %v1830 = vlaneseq
    %v1831 = vshrl.u32 %v1830, 7
    %v1832 = vsub.s32 3, %v1831
    %v1833 = vrot.slane %v1511, %v1832
    %v1834 = vadd.f32 %v1826, %v1833
    %v1835 = vadd.f32 %v1827, %v1833
    %v1836 = vadd.f32 %v1828, %v1833
    %v1837 = vadd.f32 %v1829, %v1833
    %v1838 = vpack.c.bf16 %v318, %v315
    %s1839 = scalar_lea.vmem %s7, 32
    %v1840 = vld [vmem:[%s1839] sm:$0xf]
    %v1841 = vld [vmem:[%s1839 + $0x4] sm:$0xf]
    %v1842 = vld [vmem:[%s1839 + $0x8] sm:$0xf]
    %v1843 = vld [vmem:[%s1839 + $0xc] sm:$0xf]
    %s1844 = scalar_lea.vmem [#allocation7], 2
    %v1845 = vld [vmem:[%s1844] sm:$0x1]
    %v1847 = vlaneseq
    %v1848 = vshrl.u32 %v1847, 7
    %v1849 = vsub.s32 0, %v1848
    %v1850 = vrot.slane %v1845, %v1849
    %v1856 = vunpack.c.l.b16 %v1840
    %v1857 = vunpack.c.l.b16 %v1841
    %v1858 = vunpack.c.l.b16 %v1842
    %v1859 = vunpack.c.l.b16 %v1843
    %v1860 = vpack.c.b16 %v1857, %v1856
    %v1861 = vpack.c.b16 %v1859, %v1858
    %v1865 = vsel %vm346, %v1838, 0
    %1867 = vmatprep.subr.bf16.mxu0 0
    %1868 = vmatpush1.bf16.msra.mxu0 %v1860
    %1869 = vmatprep.subr.bf16.mxu0 0
    %1870 = vmatpush1.bf16.msra.mxu0 %v1861
    %1871 = vmatprep.subr.bf16.mxu0 0
    %1872 = vmatpush1.bf16.msra.mxu0 0
    %1873 = vmatprep.subr.bf16.mxu0 0
    %1874 = vmatpush1.bf16.msra.mxu0 0
    %1875 = vmatprep.subr.bf16.mxu0 0
    %1876 = vmatpush1.bf16.msra.mxu0 0
    %1877 = vmatprep.subr.bf16.mxu0 0
    %1878 = vmatpush1.bf16.msra.mxu0 0
    %1879 = vmatprep.subr.bf16.mxu0 0
    %1880 = vmatpush1.bf16.msra.mxu0 0
    %1881 = vmatprep.subr.bf16.mxu0 0
    %1882 = vmatpush1.bf16.msra.mxu0 0
    %1883 = vmatprep.subr.bf16.mxu0 0
    %1884 = vmatpush1.bf16.msra.mxu0 0
    %1885 = vmatprep.subr.bf16.mxu0 0
    %1886 = vmatpush1.bf16.msra.mxu0 0
    %1887 = vmatprep.subr.bf16.mxu0 0
    %1888 = vmatpush1.bf16.msra.mxu0 0
    %1889 = vmatprep.subr.bf16.mxu0 0
    %1890 = vmatpush1.bf16.msra.mxu0 0
    %1891 = vmatprep.subr.bf16.mxu0 0
    %1892 = vmatpush1.bf16.msra.mxu0 0
    %1893 = vmatprep.subr.bf16.mxu0 0
    %1894 = vmatpush1.bf16.msra.mxu0 0
    %1895 = vmatprep.subr.bf16.mxu0 0
    %1896 = vmatpush1.bf16.msra.mxu0 0
    %1897 = vmatprep.subr.bf16.mxu0 0
    %1898 = vmatpush1.bf16.msra.mxu0 0
    %1899 = vmatprep.mubr.bf16.mxu0 0
    %1900 = vmatmul.mubr.bf16.gmra.mrb[0].mxu0 %v1865
    %v1901 = vpop.f32.mrb[0].mxu0
    %v1902 = vadd.f32 %v1850, %v1901
    %v1903 = vpop.f32.mrb[0].mxu0
    %v1904 = vpop.f32.mrb[0].mxu0
    %v1905 = vadd.f32 %v1850, %v1904
    %v1906 = vpop.f32.mrb[0].mxu0
    %1907 = vdwg.mxu0
    %v1908 = vpack.c.bf16 %v1902, %v1902
    %v1909 = vpack.c.bf16 %v1905, %v1905
    %1911 = vrot.lane.b32.xlu0 %v1908, 96
    %v1912 = vpop.permute.xlu0 %1911
    %v1914 = vsel %vm192, %v1908, 0
    %v1917 = vsel %vm192, %v1912, 0
    %1919 = vmatprep.subr.bf16.mxu0 0
    %1920 = vmatpush1.bf16.xpose.msra.mxu0 %v1917
    %1921 = vmatprep.subr.bf16.mxu0 0
    %1922 = vmatpush1.bf16.xpose.msra.mxu0 0
    %1923 = vmatprep.subr.bf16.mxu0 0
    %1924 = vmatpush1.bf16.xpose.msra.mxu0 0
    %1925 = vmatprep.subr.bf16.mxu0 0
    %1926 = vmatpush1.bf16.xpose.msra.mxu0 0
    %1927 = vmatprep.subr.bf16.mxu0 0
    %1928 = vmatpush1.bf16.xpose.msra.mxu0 0
    %1929 = vmatprep.subr.bf16.mxu0 0
    %1930 = vmatpush1.bf16.xpose.msra.mxu0 0
    %1931 = vmatprep.subr.bf16.mxu0 0
    %1932 = vmatpush1.bf16.xpose.msra.mxu0 0
    %1933 = vmatprep.subr.bf16.mxu0 0
    %1934 = vmatpush1.bf16.xpose.msra.mxu0 0
    %1935 = vmatprep.subr.bf16.mxu0 0
    %1936 = vmatpush1.bf16.xpose.msra.mxu0 0
    %1937 = vmatprep.subr.bf16.mxu0 0
    %1938 = vmatpush1.bf16.xpose.msra.mxu0 0
    %1939 = vmatprep.subr.bf16.mxu0 0
    %1940 = vmatpush1.bf16.xpose.msra.mxu0 0
    %1941 = vmatprep.subr.bf16.mxu0 0
    %1942 = vmatpush1.bf16.xpose.msra.mxu0 0
    %1943 = vmatprep.subr.bf16.mxu0 0
    %1944 = vmatpush1.bf16.xpose.msra.mxu0 0
    %1945 = vmatprep.subr.bf16.mxu0 0
    %1946 = vmatpush1.bf16.xpose.msra.mxu0 0
    %1947 = vmatprep.subr.bf16.mxu0 0
    %1948 = vmatpush1.bf16.xpose.msra.mxu0 0
    %1949 = vmatprep.subr.bf16.mxu0 0
    %1950 = vmatpush1.bf16.xpose.msra.mxu0 0
    %1951 = vmatprep.mubr.bf16.mxu0 0
    %1952 = vmatmul.mubr.bf16.gmra.mrb[0].mxu0 %v1914
    %v1953 = vpop.f32.mrb[0].mxu0
    %v1954 = vadd.f32 0.0, %v1953
    %v1955 = vpop.f32.mrb[0].mxu0
    %v1956 = vpop.f32.mrb[0].mxu0
    %v1957 = vpop.f32.mrb[0].mxu0
    %1958 = vdwg.mxu0
    %1960 = vrot.lane.b32.xlu0 %v1909, 96
    %v1961 = vpop.permute.xlu0 %1960
    %v1963 = vsel %vm192, %v1909, 0
    %v1966 = vsel %vm192, %v1961, 0
    %1968 = vmatprep.subr.bf16.mxu0 0
    %1969 = vmatpush1.bf16.xpose.msra.mxu0 %v1966
    %1970 = vmatprep.subr.bf16.mxu0 0
    %1971 = vmatpush1.bf16.xpose.msra.mxu0 0
    %1972 = vmatprep.subr.bf16.mxu0 0
    %1973 = vmatpush1.bf16.xpose.msra.mxu0 0
    %1974 = vmatprep.subr.bf16.mxu0 0
    %1975 = vmatpush1.bf16.xpose.msra.mxu0 0
    %1976 = vmatprep.subr.bf16.mxu0 0
    %1977 = vmatpush1.bf16.xpose.msra.mxu0 0
    %1978 = vmatprep.subr.bf16.mxu0 0
    %1979 = vmatpush1.bf16.xpose.msra.mxu0 0
    %1980 = vmatprep.subr.bf16.mxu0 0
    %1981 = vmatpush1.bf16.xpose.msra.mxu0 0
    %1982 = vmatprep.subr.bf16.mxu0 0
    %1983 = vmatpush1.bf16.xpose.msra.mxu0 0
    %1984 = vmatprep.subr.bf16.mxu0 0
    %1985 = vmatpush1.bf16.xpose.msra.mxu0 0
    %1986 = vmatprep.subr.bf16.mxu0 0
    %1987 = vmatpush1.bf16.xpose.msra.mxu0 0
    %1988 = vmatprep.subr.bf16.mxu0 0
    %1989 = vmatpush1.bf16.xpose.msra.mxu0 0
    %1990 = vmatprep.subr.bf16.mxu0 0
    %1991 = vmatpush1.bf16.xpose.msra.mxu0 0
    %1992 = vmatprep.subr.bf16.mxu0 0
    %1993 = vmatpush1.bf16.xpose.msra.mxu0 0
    %1994 = vmatprep.subr.bf16.mxu0 0
    %1995 = vmatpush1.bf16.xpose.msra.mxu0 0
    %1996 = vmatprep.subr.bf16.mxu0 0
    %1997 = vmatpush1.bf16.xpose.msra.mxu0 0
    %1998 = vmatprep.subr.bf16.mxu0 0
    %1999 = vmatpush1.bf16.xpose.msra.mxu0 0
    %2000 = vmatprep.mubr.bf16.mxu0 0
    %2001 = vmatmul.mubr.bf16.gmra.mrb[0].mxu0 %v1963
    %v2002 = vpop.f32.mrb[0].mxu0
    %v2003 = vadd.f32 0.0, %v2002
    %v2004 = vpop.f32.mrb[0].mxu0
    %v2005 = vpop.f32.mrb[0].mxu0
    %v2006 = vpop.f32.mrb[0].mxu0
    %2007 = vdwg.mxu0
    %v2008 = vsel %vm192, %v1954, -inf
    %2009 = vmax.xlane.f32.xlu0 %v2008
    %v2010 = vpop.xlane.xlu0 %2009
    %v2011 = vsel %vm192, %v2003, -inf
    %2012 = vmax.xlane.f32.xlu0 %v2011
    %v2013 = vpop.xlane.xlu0 %2012
    %v2014 = vsub.f32 %v1954, %v2010
    %v2015 = vsub.f32 %v2003, %v2013
    %v2016 = vmul.f32 %v2014, 1.442695
    %v2017 = vpow.pop %v2016
    %v2018 = vmul.f32 %v2015, 1.442695
    %v2019 = vpow.pop %v2018
    %v2020 = vsel %vm192, %v2017, 0.0
    %2021 = vadd.xlane.f32.xlu0 %v2020
    %v2022 = vpop.xlane.xlu0 %2021
    %v2023 = vsel %vm192, %v2019, 0.0
    %2024 = vadd.xlane.f32.xlu0 %v2023
    %v2025 = vpop.xlane.xlu0 %2024
    %v2026 = vrcp.pop %v2022
    %v2027 = vrcp.pop %v2025
    %v2028 = vmul.f32 %v2017, %v2026
    %v2029 = vmul.f32 %v2019, %v2027
    %v2030 = vpack.c.bf16 %v2028, %v2028
    %v2031 = vpack.c.bf16 %v2029, %v2029
    %2032 = vrot.lane.b32.xlu0 %v1908, 64
    %v2033 = vpop.permute.xlu0 %2032
    %v2035 = vsel %vm192, %v2030, 0
    %v2038 = vsel %vm199, %v2033, 0
    %2040 = vmatprep.subr.bf16.mxu0 0
    %2041 = vmatpush1.bf16.msra.mxu0 %v2038
    %2042 = vmatprep.subr.bf16.mxu0 0
    %2043 = vmatpush1.bf16.msra.mxu0 0
    %2044 = vmatprep.subr.bf16.mxu0 0
    %2045 = vmatpush1.bf16.msra.mxu0 0
    %2046 = vmatprep.subr.bf16.mxu0 0
    %2047 = vmatpush1.bf16.msra.mxu0 0
    %2048 = vmatprep.subr.bf16.mxu0 0
    %2049 = vmatpush1.bf16.msra.mxu0 0
    %2050 = vmatprep.subr.bf16.mxu0 0
    %2051 = vmatpush1.bf16.msra.mxu0 0
    %2052 = vmatprep.subr.bf16.mxu0 0
    %2053 = vmatpush1.bf16.msra.mxu0 0
    %2054 = vmatprep.subr.bf16.mxu0 0
    %2055 = vmatpush1.bf16.msra.mxu0 0
    %2056 = vmatprep.subr.bf16.mxu0 0
    %2057 = vmatpush1.bf16.msra.mxu0 0
    %2058 = vmatprep.subr.bf16.mxu0 0
    %2059 = vmatpush1.bf16.msra.mxu0 0
    %2060 = vmatprep.subr.bf16.mxu0 0
    %2061 = vmatpush1.bf16.msra.mxu0 0
    %2062 = vmatprep.subr.bf16.mxu0 0
    %2063 = vmatpush1.bf16.msra.mxu0 0
    %2064 = vmatprep.subr.bf16.mxu0 0
    %2065 = vmatpush1.bf16.msra.mxu0 0
    %2066 = vmatprep.subr.bf16.mxu0 0
    %2067 = vmatpush1.bf16.msra.mxu0 0
    %2068 = vmatprep.subr.bf16.mxu0 0
    %2069 = vmatpush1.bf16.msra.mxu0 0
    %2070 = vmatprep.subr.bf16.mxu0 0
    %2071 = vmatpush1.bf16.msra.mxu0 0
    %2072 = vmatprep.mubr.bf16.mxu0 0
    %2073 = vmatmul.mubr.bf16.gmra.mrb[0].mxu0 %v2035
    %v2074 = vpop.f32.mrb[0].mxu0
    %v2075 = vadd.f32 0.0, %v2074
    %v2076 = vpop.f32.mrb[0].mxu0
    %v2077 = vpop.f32.mrb[0].mxu0
    %v2078 = vpop.f32.mrb[0].mxu0
    %2079 = vdwg.mxu0
    %2080 = vrot.lane.b32.xlu0 %v1909, 64
    %v2081 = vpop.permute.xlu0 %2080
    %v2083 = vsel %vm192, %v2031, 0
    %v2086 = vsel %vm199, %v2081, 0
    %2088 = vmatprep.subr.bf16.mxu0 0
    %2089 = vmatpush1.bf16.msra.mxu0 %v2086
    %2090 = vmatprep.subr.bf16.mxu0 0
    %2091 = vmatpush1.bf16.msra.mxu0 0
    %2092 = vmatprep.subr.bf16.mxu0 0
    %2093 = vmatpush1.bf16.msra.mxu0 0
    %2094 = vmatprep.subr.bf16.mxu0 0
    %2095 = vmatpush1.bf16.msra.mxu0 0
    %2096 = vmatprep.subr.bf16.mxu0 0
    %2097 = vmatpush1.bf16.msra.mxu0 0
    %2098 = vmatprep.subr.bf16.mxu0 0
    %2099 = vmatpush1.bf16.msra.mxu0 0
    %2100 = vmatprep.subr.bf16.mxu0 0
    %2101 = vmatpush1.bf16.msra.mxu0 0
    %2102 = vmatprep.subr.bf16.mxu0 0
    %2103 = vmatpush1.bf16.msra.mxu0 0
    %2104 = vmatprep.subr.bf16.mxu0 0
    %2105 = vmatpush1.bf16.msra.mxu0 0
    %2106 = vmatprep.subr.bf16.mxu0 0
    %2107 = vmatpush1.bf16.msra.mxu0 0
    %2108 = vmatprep.subr.bf16.mxu0 0
    %2109 = vmatpush1.bf16.msra.mxu0 0
    %2110 = vmatprep.subr.bf16.mxu0 0
    %2111 = vmatpush1.bf16.msra.mxu0 0
    %2112 = vmatprep.subr.bf16.mxu0 0
    %2113 = vmatpush1.bf16.msra.mxu0 0
    %2114 = vmatprep.subr.bf16.mxu0 0
    %2115 = vmatpush1.bf16.msra.mxu0 0
    %2116 = vmatprep.subr.bf16.mxu0 0
    %2117 = vmatpush1.bf16.msra.mxu0 0
    %2118 = vmatprep.subr.bf16.mxu0 0
    %2119 = vmatpush1.bf16.msra.mxu0 0
    %2120 = vmatprep.mubr.bf16.mxu0 0
    %2121 = vmatmul.mubr.bf16.gmra.mrb[0].mxu0 %v2083
    %v2122 = vpop.f32.mrb[0].mxu0
    %v2123 = vadd.f32 0.0, %v2122
    %v2124 = vpop.f32.mrb[0].mxu0
    %v2125 = vpop.f32.mrb[0].mxu0
    %v2126 = vpop.f32.mrb[0].mxu0
    %2127 = vdwg.mxu0
    %2128 = vrot.lane.b32.xlu0 %v1908, 120
    %v2129 = vpop.permute.xlu0 %2128
    %2130 = vrot.lane.b32.xlu0 %v1908, 88
    %v2131 = vpop.permute.xlu0 %2130
    %v2133 = vsel %vm192, %v2129, 0
    %v2136 = vsel %vm192, %v2131, 0
    %2138 = vmatprep.subr.bf16.mxu0 0
    %2139 = vmatpush1.bf16.xpose.msra.mxu0 %v2136
    %2140 = vmatprep.subr.bf16.mxu0 0
    %2141 = vmatpush1.bf16.xpose.msra.mxu0 0
    %2142 = vmatprep.subr.bf16.mxu0 0
    %2143 = vmatpush1.bf16.xpose.msra.mxu0 0
    %2144 = vmatprep.subr.bf16.mxu0 0
    %2145 = vmatpush1.bf16.xpose.msra.mxu0 0
    %2146 = vmatprep.subr.bf16.mxu0 0
    %2147 = vmatpush1.bf16.xpose.msra.mxu0 0
    %2148 = vmatprep.subr.bf16.mxu0 0
    %2149 = vmatpush1.bf16.xpose.msra.mxu0 0
    %2150 = vmatprep.subr.bf16.mxu0 0
    %2151 = vmatpush1.bf16.xpose.msra.mxu0 0
    %2152 = vmatprep.subr.bf16.mxu0 0
    %2153 = vmatpush1.bf16.xpose.msra.mxu0 0
    %2154 = vmatprep.subr.bf16.mxu0 0
    %2155 = vmatpush1.bf16.xpose.msra.mxu0 0
    %2156 = vmatprep.subr.bf16.mxu0 0
    %2157 = vmatpush1.bf16.xpose.msra.mxu0 0
    %2158 = vmatprep.subr.bf16.mxu0 0
    %2159 = vmatpush1.bf16.xpose.msra.mxu0 0
    %2160 = vmatprep.subr.bf16.mxu0 0
    %2161 = vmatpush1.bf16.xpose.msra.mxu0 0
    %2162 = vmatprep.subr.bf16.mxu0 0
    %2163 = vmatpush1.bf16.xpose.msra.mxu0 0
    %2164 = vmatprep.subr.bf16.mxu0 0
    %2165 = vmatpush1.bf16.xpose.msra.mxu0 0
    %2166 = vmatprep.subr.bf16.mxu0 0
    %2167 = vmatpush1.bf16.xpose.msra.mxu0 0
    %2168 = vmatprep.subr.bf16.mxu0 0
    %2169 = vmatpush1.bf16.xpose.msra.mxu0 0
    %2170 = vmatprep.mubr.bf16.mxu0 0
    %2171 = vmatmul.mubr.bf16.gmra.mrb[0].mxu0 %v2133
    %v2172 = vpop.f32.mrb[0].mxu0
    %v2173 = vadd.f32 0.0, %v2172
    %v2174 = vpop.f32.mrb[0].mxu0
    %v2175 = vpop.f32.mrb[0].mxu0
    %v2176 = vpop.f32.mrb[0].mxu0
    %2177 = vdwg.mxu0
    %2178 = vrot.lane.b32.xlu0 %v1909, 120
    %v2179 = vpop.permute.xlu0 %2178
    %2180 = vrot.lane.b32.xlu0 %v1909, 88
    %v2181 = vpop.permute.xlu0 %2180
    %v2183 = vsel %vm192, %v2179, 0
    %v2186 = vsel %vm192, %v2181, 0
    %2188 = vmatprep.subr.bf16.mxu0 0
    %2189 = vmatpush1.bf16.xpose.msra.mxu0 %v2186
    %2190 = vmatprep.subr.bf16.mxu0 0
    %2191 = vmatpush1.bf16.xpose.msra.mxu0 0
    %2192 = vmatprep.subr.bf16.mxu0 0
    %2193 = vmatpush1.bf16.xpose.msra.mxu0 0
    %2194 = vmatprep.subr.bf16.mxu0 0
    %2195 = vmatpush1.bf16.xpose.msra.mxu0 0
    %2196 = vmatprep.subr.bf16.mxu0 0
    %2197 = vmatpush1.bf16.xpose.msra.mxu0 0
    %2198 = vmatprep.subr.bf16.mxu0 0
    %2199 = vmatpush1.bf16.xpose.msra.mxu0 0
    %2200 = vmatprep.subr.bf16.mxu0 0
    %2201 = vmatpush1.bf16.xpose.msra.mxu0 0
    %2202 = vmatprep.subr.bf16.mxu0 0
    %2203 = vmatpush1.bf16.xpose.msra.mxu0 0
    %2204 = vmatprep.subr.bf16.mxu0 0
    %2205 = vmatpush1.bf16.xpose.msra.mxu0 0
    %2206 = vmatprep.subr.bf16.mxu0 0
    %2207 = vmatpush1.bf16.xpose.msra.mxu0 0
    %2208 = vmatprep.subr.bf16.mxu0 0
    %2209 = vmatpush1.bf16.xpose.msra.mxu0 0
    %2210 = vmatprep.subr.bf16.mxu0 0
    %2211 = vmatpush1.bf16.xpose.msra.mxu0 0
    %2212 = vmatprep.subr.bf16.mxu0 0
    %2213 = vmatpush1.bf16.xpose.msra.mxu0 0
    %2214 = vmatprep.subr.bf16.mxu0 0
    %2215 = vmatpush1.bf16.xpose.msra.mxu0 0
    %2216 = vmatprep.subr.bf16.mxu0 0
    %2217 = vmatpush1.bf16.xpose.msra.mxu0 0
    %2218 = vmatprep.subr.bf16.mxu0 0
    %2219 = vmatpush1.bf16.xpose.msra.mxu0 0
    %2220 = vmatprep.mubr.bf16.mxu0 0
    %2221 = vmatmul.mubr.bf16.gmra.mrb[0].mxu0 %v2183
    %v2222 = vpop.f32.mrb[0].mxu0
    %v2223 = vadd.f32 0.0, %v2222
    %v2224 = vpop.f32.mrb[0].mxu0
    %v2225 = vpop.f32.mrb[0].mxu0
    %v2226 = vpop.f32.mrb[0].mxu0
    %2227 = vdwg.mxu0
    %v2228 = vsel %vm192, %v2173, -inf
    %2229 = vmax.xlane.f32.xlu0 %v2228
    %v2230 = vpop.xlane.xlu0 %2229
    %v2231 = vsel %vm192, %v2223, -inf
    %2232 = vmax.xlane.f32.xlu0 %v2231
    %v2233 = vpop.xlane.xlu0 %2232
    %v2234 = vsub.f32 %v2173, %v2230
    %v2235 = vsub.f32 %v2223, %v2233
    %v2236 = vmul.f32 %v2234, 1.442695
    %v2237 = vpow.pop %v2236
    %v2238 = vmul.f32 %v2235, 1.442695
    %v2239 = vpow.pop %v2238
    %v2240 = vsel %vm192, %v2237, 0.0
    %2241 = vadd.xlane.f32.xlu0 %v2240
    %v2242 = vpop.xlane.xlu0 %2241
    %v2243 = vsel %vm192, %v2239, 0.0
    %2244 = vadd.xlane.f32.xlu0 %v2243
    %v2245 = vpop.xlane.xlu0 %2244
    %v2246 = vrcp.pop %v2242
    %v2247 = vrcp.pop %v2245
    %v2248 = vmul.f32 %v2237, %v2246
    %v2249 = vmul.f32 %v2239, %v2247
    %v2250 = vpack.c.bf16 %v2248, %v2248
    %v2251 = vpack.c.bf16 %v2249, %v2249
    %2252 = vrot.lane.b32.xlu0 %v1908, 56
    %v2253 = vpop.permute.xlu0 %2252
    %v2255 = vsel %vm192, %v2250, 0
    %v2258 = vsel %vm199, %v2253, 0
    %2260 = vmatprep.subr.bf16.mxu0 0
    %2261 = vmatpush1.bf16.msra.mxu0 %v2258
    %2262 = vmatprep.subr.bf16.mxu0 0
    %2263 = vmatpush1.bf16.msra.mxu0 0
    %2264 = vmatprep.subr.bf16.mxu0 0
    %2265 = vmatpush1.bf16.msra.mxu0 0
    %2266 = vmatprep.subr.bf16.mxu0 0
    %2267 = vmatpush1.bf16.msra.mxu0 0
    %2268 = vmatprep.subr.bf16.mxu0 0
    %2269 = vmatpush1.bf16.msra.mxu0 0
    %2270 = vmatprep.subr.bf16.mxu0 0
    %2271 = vmatpush1.bf16.msra.mxu0 0
    %2272 = vmatprep.subr.bf16.mxu0 0
    %2273 = vmatpush1.bf16.msra.mxu0 0
    %2274 = vmatprep.subr.bf16.mxu0 0
    %2275 = vmatpush1.bf16.msra.mxu0 0
    %2276 = vmatprep.subr.bf16.mxu0 0
    %2277 = vmatpush1.bf16.msra.mxu0 0
    %2278 = vmatprep.subr.bf16.mxu0 0
    %2279 = vmatpush1.bf16.msra.mxu0 0
    %2280 = vmatprep.subr.bf16.mxu0 0
    %2281 = vmatpush1.bf16.msra.mxu0 0
    %2282 = vmatprep.subr.bf16.mxu0 0
    %2283 = vmatpush1.bf16.msra.mxu0 0
    %2284 = vmatprep.subr.bf16.mxu0 0
    %2285 = vmatpush1.bf16.msra.mxu0 0
    %2286 = vmatprep.subr.bf16.mxu0 0
    %2287 = vmatpush1.bf16.msra.mxu0 0
    %2288 = vmatprep.subr.bf16.mxu0 0
    %2289 = vmatpush1.bf16.msra.mxu0 0
    %2290 = vmatprep.subr.bf16.mxu0 0
    %2291 = vmatpush1.bf16.msra.mxu0 0
    %2292 = vmatprep.mubr.bf16.mxu0 0
    %2293 = vmatmul.mubr.bf16.gmra.mrb[0].mxu0 %v2255
    %v2294 = vpop.f32.mrb[0].mxu0
    %v2295 = vadd.f32 0.0, %v2294
    %v2296 = vpop.f32.mrb[0].mxu0
    %v2297 = vpop.f32.mrb[0].mxu0
    %v2298 = vpop.f32.mrb[0].mxu0
    %2299 = vdwg.mxu0
    %2300 = vrot.lane.b32.xlu0 %v1909, 56
    %v2301 = vpop.permute.xlu0 %2300
    %v2303 = vsel %vm192, %v2251, 0
    %v2306 = vsel %vm199, %v2301, 0
    %2308 = vmatprep.subr.bf16.mxu0 0
    %2309 = vmatpush1.bf16.msra.mxu0 %v2306
    %2310 = vmatprep.subr.bf16.mxu0 0
    %2311 = vmatpush1.bf16.msra.mxu0 0
    %2312 = vmatprep.subr.bf16.mxu0 0
    %2313 = vmatpush1.bf16.msra.mxu0 0
    %2314 = vmatprep.subr.bf16.mxu0 0
    %2315 = vmatpush1.bf16.msra.mxu0 0
    %2316 = vmatprep.subr.bf16.mxu0 0
    %2317 = vmatpush1.bf16.msra.mxu0 0
    %2318 = vmatprep.subr.bf16.mxu0 0
    %2319 = vmatpush1.bf16.msra.mxu0 0
    %2320 = vmatprep.subr.bf16.mxu0 0
    %2321 = vmatpush1.bf16.msra.mxu0 0
    %2322 = vmatprep.subr.bf16.mxu0 0
    %2323 = vmatpush1.bf16.msra.mxu0 0
    %2324 = vmatprep.subr.bf16.mxu0 0
    %2325 = vmatpush1.bf16.msra.mxu0 0
    %2326 = vmatprep.subr.bf16.mxu0 0
    %2327 = vmatpush1.bf16.msra.mxu0 0
    %2328 = vmatprep.subr.bf16.mxu0 0
    %2329 = vmatpush1.bf16.msra.mxu0 0
    %2330 = vmatprep.subr.bf16.mxu0 0
    %2331 = vmatpush1.bf16.msra.mxu0 0
    %2332 = vmatprep.subr.bf16.mxu0 0
    %2333 = vmatpush1.bf16.msra.mxu0 0
    %2334 = vmatprep.subr.bf16.mxu0 0
    %2335 = vmatpush1.bf16.msra.mxu0 0
    %2336 = vmatprep.subr.bf16.mxu0 0
    %2337 = vmatpush1.bf16.msra.mxu0 0
    %2338 = vmatprep.subr.bf16.mxu0 0
    %2339 = vmatpush1.bf16.msra.mxu0 0
    %2340 = vmatprep.mubr.bf16.mxu0 0
    %2341 = vmatmul.mubr.bf16.gmra.mrb[0].mxu0 %v2303
    %v2342 = vpop.f32.mrb[0].mxu0
    %v2343 = vadd.f32 0.0, %v2342
    %v2344 = vpop.f32.mrb[0].mxu0
    %v2345 = vpop.f32.mrb[0].mxu0
    %v2346 = vpop.f32.mrb[0].mxu0
    %2347 = vdwg.mxu0
    %2348 = vrot.lane.b32.xlu0 %v1908, 112
    %v2349 = vpop.permute.xlu0 %2348
    %2350 = vrot.lane.b32.xlu0 %v1908, 80
    %v2351 = vpop.permute.xlu0 %2350
    %v2353 = vsel %vm192, %v2349, 0
    %v2356 = vsel %vm192, %v2351, 0
    %2358 = vmatprep.subr.bf16.mxu0 0
    %2359 = vmatpush1.bf16.xpose.msra.mxu0 %v2356
    %2360 = vmatprep.subr.bf16.mxu0 0
    %2361 = vmatpush1.bf16.xpose.msra.mxu0 0
    %2362 = vmatprep.subr.bf16.mxu0 0
    %2363 = vmatpush1.bf16.xpose.msra.mxu0 0
    %2364 = vmatprep.subr.bf16.mxu0 0
    %2365 = vmatpush1.bf16.xpose.msra.mxu0 0
    %2366 = vmatprep.subr.bf16.mxu0 0
    %2367 = vmatpush1.bf16.xpose.msra.mxu0 0
    %2368 = vmatprep.subr.bf16.mxu0 0
    %2369 = vmatpush1.bf16.xpose.msra.mxu0 0
    %2370 = vmatprep.subr.bf16.mxu0 0
    %2371 = vmatpush1.bf16.xpose.msra.mxu0 0
    %2372 = vmatprep.subr.bf16.mxu0 0
    %2373 = vmatpush1.bf16.xpose.msra.mxu0 0
    %2374 = vmatprep.subr.bf16.mxu0 0
    %2375 = vmatpush1.bf16.xpose.msra.mxu0 0
    %2376 = vmatprep.subr.bf16.mxu0 0
    %2377 = vmatpush1.bf16.xpose.msra.mxu0 0
    %2378 = vmatprep.subr.bf16.mxu0 0
    %2379 = vmatpush1.bf16.xpose.msra.mxu0 0
    %2380 = vmatprep.subr.bf16.mxu0 0
    %2381 = vmatpush1.bf16.xpose.msra.mxu0 0
    %2382 = vmatprep.subr.bf16.mxu0 0
    %2383 = vmatpush1.bf16.xpose.msra.mxu0 0
    %2384 = vmatprep.subr.bf16.mxu0 0
    %2385 = vmatpush1.bf16.xpose.msra.mxu0 0
    %2386 = vmatprep.subr.bf16.mxu0 0
    %2387 = vmatpush1.bf16.xpose.msra.mxu0 0
    %2388 = vmatprep.subr.bf16.mxu0 0
    %2389 = vmatpush1.bf16.xpose.msra.mxu0 0
    %2390 = vmatprep.mubr.bf16.mxu0 0
    %2391 = vmatmul.mubr.bf16.gmra.mrb[0].mxu0 %v2353
    %v2392 = vpop.f32.mrb[0].mxu0
    %v2393 = vadd.f32 0.0, %v2392
    %v2394 = vpop.f32.mrb[0].mxu0
    %v2395 = vpop.f32.mrb[0].mxu0
    %v2396 = vpop.f32.mrb[0].mxu0
    %2397 = vdwg.mxu0
    %2398 = vrot.lane.b32.xlu0 %v1909, 112
    %v2399 = vpop.permute.xlu0 %2398
    %2400 = vrot.lane.b32.xlu0 %v1909, 80
    %v2401 = vpop.permute.xlu0 %2400
    %v2403 = vsel %vm192, %v2399, 0
    %v2406 = vsel %vm192, %v2401, 0
    %2408 = vmatprep.subr.bf16.mxu0 0
    %2409 = vmatpush1.bf16.xpose.msra.mxu0 %v2406
    %2410 = vmatprep.subr.bf16.mxu0 0
    %2411 = vmatpush1.bf16.xpose.msra.mxu0 0
    %2412 = vmatprep.subr.bf16.mxu0 0
    %2413 = vmatpush1.bf16.xpose.msra.mxu0 0
    %2414 = vmatprep.subr.bf16.mxu0 0
    %2415 = vmatpush1.bf16.xpose.msra.mxu0 0
    %2416 = vmatprep.subr.bf16.mxu0 0
    %2417 = vmatpush1.bf16.xpose.msra.mxu0 0
    %2418 = vmatprep.subr.bf16.mxu0 0
    %2419 = vmatpush1.bf16.xpose.msra.mxu0 0
    %2420 = vmatprep.subr.bf16.mxu0 0
    %2421 = vmatpush1.bf16.xpose.msra.mxu0 0
    %2422 = vmatprep.subr.bf16.mxu0 0
    %2423 = vmatpush1.bf16.xpose.msra.mxu0 0
    %2424 = vmatprep.subr.bf16.mxu0 0
    %2425 = vmatpush1.bf16.xpose.msra.mxu0 0
    %2426 = vmatprep.subr.bf16.mxu0 0
    %2427 = vmatpush1.bf16.xpose.msra.mxu0 0
    %2428 = vmatprep.subr.bf16.mxu0 0
    %2429 = vmatpush1.bf16.xpose.msra.mxu0 0
    %2430 = vmatprep.subr.bf16.mxu0 0
    %2431 = vmatpush1.bf16.xpose.msra.mxu0 0
    %2432 = vmatprep.subr.bf16.mxu0 0
    %2433 = vmatpush1.bf16.xpose.msra.mxu0 0
    %2434 = vmatprep.subr.bf16.mxu0 0
    %2435 = vmatpush1.bf16.xpose.msra.mxu0 0
    %2436 = vmatprep.subr.bf16.mxu0 0
    %2437 = vmatpush1.bf16.xpose.msra.mxu0 0
    %2438 = vmatprep.subr.bf16.mxu0 0
    %2439 = vmatpush1.bf16.xpose.msra.mxu0 0
    %2440 = vmatprep.mubr.bf16.mxu0 0
    %2441 = vmatmul.mubr.bf16.gmra.mrb[0].mxu0 %v2403
    %v2442 = vpop.f32.mrb[0].mxu0
    %v2443 = vadd.f32 0.0, %v2442
    %v2444 = vpop.f32.mrb[0].mxu0
    %v2445 = vpop.f32.mrb[0].mxu0
    %v2446 = vpop.f32.mrb[0].mxu0
    %2447 = vdwg.mxu0
    %v2448 = vsel %vm192, %v2393, -inf
    %2449 = vmax.xlane.f32.xlu0 %v2448
    %v2450 = vpop.xlane.xlu0 %2449
    %v2451 = vsel %vm192, %v2443, -inf
    %2452 = vmax.xlane.f32.xlu0 %v2451
    %v2453 = vpop.xlane.xlu0 %2452
    %v2454 = vsub.f32 %v2393, %v2450
    %v2455 = vsub.f32 %v2443, %v2453
    %v2456 = vmul.f32 %v2454, 1.442695
    %v2457 = vpow.pop %v2456
    %v2458 = vmul.f32 %v2455, 1.442695
    %v2459 = vpow.pop %v2458
    %v2460 = vsel %vm192, %v2457, 0.0
    %2461 = vadd.xlane.f32.xlu0 %v2460
    %v2462 = vpop.xlane.xlu0 %2461
    %v2463 = vsel %vm192, %v2459, 0.0
    %2464 = vadd.xlane.f32.xlu0 %v2463
    %v2465 = vpop.xlane.xlu0 %2464
    %v2466 = vrcp.pop %v2462
    %v2467 = vrcp.pop %v2465
    %v2468 = vmul.f32 %v2457, %v2466
    %v2469 = vmul.f32 %v2459, %v2467
    %v2470 = vpack.c.bf16 %v2468, %v2468
    %v2471 = vpack.c.bf16 %v2469, %v2469
    %2472 = vrot.lane.b32.xlu0 %v1908, 48
    %v2473 = vpop.permute.xlu0 %2472
    %v2475 = vsel %vm192, %v2470, 0
    %v2478 = vsel %vm199, %v2473, 0
    %2480 = vmatprep.subr.bf16.mxu0 0
    %2481 = vmatpush1.bf16.msra.mxu0 %v2478
    %2482 = vmatprep.subr.bf16.mxu0 0
    %2483 = vmatpush1.bf16.msra.mxu0 0
    %2484 = vmatprep.subr.bf16.mxu0 0
    %2485 = vmatpush1.bf16.msra.mxu0 0
    %2486 = vmatprep.subr.bf16.mxu0 0
    %2487 = vmatpush1.bf16.msra.mxu0 0
    %2488 = vmatprep.subr.bf16.mxu0 0
    %2489 = vmatpush1.bf16.msra.mxu0 0
    %2490 = vmatprep.subr.bf16.mxu0 0
    %2491 = vmatpush1.bf16.msra.mxu0 0
    %2492 = vmatprep.subr.bf16.mxu0 0
    %2493 = vmatpush1.bf16.msra.mxu0 0
    %2494 = vmatprep.subr.bf16.mxu0 0
    %2495 = vmatpush1.bf16.msra.mxu0 0
    %2496 = vmatprep.subr.bf16.mxu0 0
    %2497 = vmatpush1.bf16.msra.mxu0 0
    %2498 = vmatprep.subr.bf16.mxu0 0
    %2499 = vmatpush1.bf16.msra.mxu0 0
    %2500 = vmatprep.subr.bf16.mxu0 0
    %2501 = vmatpush1.bf16.msra.mxu0 0
    %2502 = vmatprep.subr.bf16.mxu0 0
    %2503 = vmatpush1.bf16.msra.mxu0 0
    %2504 = vmatprep.subr.bf16.mxu0 0
    %2505 = vmatpush1.bf16.msra.mxu0 0
    %2506 = vmatprep.subr.bf16.mxu0 0
    %2507 = vmatpush1.bf16.msra.mxu0 0
    %2508 = vmatprep.subr.bf16.mxu0 0
    %2509 = vmatpush1.bf16.msra.mxu0 0
    %2510 = vmatprep.subr.bf16.mxu0 0
    %2511 = vmatpush1.bf16.msra.mxu0 0
    %2512 = vmatprep.mubr.bf16.mxu0 0
    %2513 = vmatmul.mubr.bf16.gmra.mrb[0].mxu0 %v2475
    %v2514 = vpop.f32.mrb[0].mxu0
    %v2515 = vadd.f32 0.0, %v2514
    %v2516 = vpop.f32.mrb[0].mxu0
    %v2517 = vpop.f32.mrb[0].mxu0
    %v2518 = vpop.f32.mrb[0].mxu0
    %2519 = vdwg.mxu0
    %2520 = vrot.lane.b32.xlu0 %v1909, 48
    %v2521 = vpop.permute.xlu0 %2520
    %v2523 = vsel %vm192, %v2471, 0
    %v2526 = vsel %vm199, %v2521, 0
    %2528 = vmatprep.subr.bf16.mxu0 0
    %2529 = vmatpush1.bf16.msra.mxu0 %v2526
    %2530 = vmatprep.subr.bf16.mxu0 0
    %2531 = vmatpush1.bf16.msra.mxu0 0
    %2532 = vmatprep.subr.bf16.mxu0 0
    %2533 = vmatpush1.bf16.msra.mxu0 0
    %2534 = vmatprep.subr.bf16.mxu0 0
    %2535 = vmatpush1.bf16.msra.mxu0 0
    %2536 = vmatprep.subr.bf16.mxu0 0
    %2537 = vmatpush1.bf16.msra.mxu0 0
    %2538 = vmatprep.subr.bf16.mxu0 0
    %2539 = vmatpush1.bf16.msra.mxu0 0
    %2540 = vmatprep.subr.bf16.mxu0 0
    %2541 = vmatpush1.bf16.msra.mxu0 0
    %2542 = vmatprep.subr.bf16.mxu0 0
    %2543 = vmatpush1.bf16.msra.mxu0 0
    %2544 = vmatprep.subr.bf16.mxu0 0
    %2545 = vmatpush1.bf16.msra.mxu0 0
    %2546 = vmatprep.subr.bf16.mxu0 0
    %2547 = vmatpush1.bf16.msra.mxu0 0
    %2548 = vmatprep.subr.bf16.mxu0 0
    %2549 = vmatpush1.bf16.msra.mxu0 0
    %2550 = vmatprep.subr.bf16.mxu0 0
    %2551 = vmatpush1.bf16.msra.mxu0 0
    %2552 = vmatprep.subr.bf16.mxu0 0
    %2553 = vmatpush1.bf16.msra.mxu0 0
    %2554 = vmatprep.subr.bf16.mxu0 0
    %2555 = vmatpush1.bf16.msra.mxu0 0
    %2556 = vmatprep.subr.bf16.mxu0 0
    %2557 = vmatpush1.bf16.msra.mxu0 0
    %2558 = vmatprep.subr.bf16.mxu0 0
    %2559 = vmatpush1.bf16.msra.mxu0 0
    %2560 = vmatprep.mubr.bf16.mxu0 0
    %2561 = vmatmul.mubr.bf16.gmra.mrb[0].mxu0 %v2523
    %v2562 = vpop.f32.mrb[0].mxu0
    %v2563 = vadd.f32 0.0, %v2562
    %v2564 = vpop.f32.mrb[0].mxu0
    %v2565 = vpop.f32.mrb[0].mxu0
    %v2566 = vpop.f32.mrb[0].mxu0
    %2567 = vdwg.mxu0
    %2568 = vrot.lane.b32.xlu0 %v1908, 104
    %v2569 = vpop.permute.xlu0 %2568
    %2570 = vrot.lane.b32.xlu0 %v1908, 72
    %v2571 = vpop.permute.xlu0 %2570
    %v2573 = vsel %vm192, %v2569, 0
    %v2576 = vsel %vm192, %v2571, 0
    %2578 = vmatprep.subr.bf16.mxu0 0
    %2579 = vmatpush1.bf16.xpose.msra.mxu0 %v2576
    %2580 = vmatprep.subr.bf16.mxu0 0
    %2581 = vmatpush1.bf16.xpose.msra.mxu0 0
    %2582 = vmatprep.subr.bf16.mxu0 0
    %2583 = vmatpush1.bf16.xpose.msra.mxu0 0
    %2584 = vmatprep.subr.bf16.mxu0 0
    %2585 = vmatpush1.bf16.xpose.msra.mxu0 0
    %2586 = vmatprep.subr.bf16.mxu0 0
    %2587 = vmatpush1.bf16.xpose.msra.mxu0 0
    %2588 = vmatprep.subr.bf16.mxu0 0
    %2589 = vmatpush1.bf16.xpose.msra.mxu0 0
    %2590 = vmatprep.subr.bf16.mxu0 0
    %2591 = vmatpush1.bf16.xpose.msra.mxu0 0
    %2592 = vmatprep.subr.bf16.mxu0 0
    %2593 = vmatpush1.bf16.xpose.msra.mxu0 0
    %2594 = vmatprep.subr.bf16.mxu0 0
    %2595 = vmatpush1.bf16.xpose.msra.mxu0 0
    %2596 = vmatprep.subr.bf16.mxu0 0
    %2597 = vmatpush1.bf16.xpose.msra.mxu0 0
    %2598 = vmatprep.subr.bf16.mxu0 0
    %2599 = vmatpush1.bf16.xpose.msra.mxu0 0
    %2600 = vmatprep.subr.bf16.mxu0 0
    %2601 = vmatpush1.bf16.xpose.msra.mxu0 0
    %2602 = vmatprep.subr.bf16.mxu0 0
    %2603 = vmatpush1.bf16.xpose.msra.mxu0 0
    %2604 = vmatprep.subr.bf16.mxu0 0
    %2605 = vmatpush1.bf16.xpose.msra.mxu0 0
    %2606 = vmatprep.subr.bf16.mxu0 0
    %2607 = vmatpush1.bf16.xpose.msra.mxu0 0
    %2608 = vmatprep.subr.bf16.mxu0 0
    %2609 = vmatpush1.bf16.xpose.msra.mxu0 0
    %2610 = vmatprep.mubr.bf16.mxu0 0
    %2611 = vmatmul.mubr.bf16.gmra.mrb[0].mxu0 %v2573
    %v2612 = vpop.f32.mrb[0].mxu0
    %v2613 = vadd.f32 0.0, %v2612
    %v2614 = vpop.f32.mrb[0].mxu0
    %v2615 = vpop.f32.mrb[0].mxu0
    %v2616 = vpop.f32.mrb[0].mxu0
    %2617 = vdwg.mxu0
    %2618 = vrot.lane.b32.xlu0 %v1909, 104
    %v2619 = vpop.permute.xlu0 %2618
    %2620 = vrot.lane.b32.xlu0 %v1909, 72
    %v2621 = vpop.permute.xlu0 %2620
    %v2623 = vsel %vm192, %v2619, 0
    %v2626 = vsel %vm192, %v2621, 0
    %2628 = vmatprep.subr.bf16.mxu0 0
    %2629 = vmatpush1.bf16.xpose.msra.mxu0 %v2626
    %2630 = vmatprep.subr.bf16.mxu0 0
    %2631 = vmatpush1.bf16.xpose.msra.mxu0 0
    %2632 = vmatprep.subr.bf16.mxu0 0
    %2633 = vmatpush1.bf16.xpose.msra.mxu0 0
    %2634 = vmatprep.subr.bf16.mxu0 0
    %2635 = vmatpush1.bf16.xpose.msra.mxu0 0
    %2636 = vmatprep.subr.bf16.mxu0 0
    %2637 = vmatpush1.bf16.xpose.msra.mxu0 0
    %2638 = vmatprep.subr.bf16.mxu0 0
    %2639 = vmatpush1.bf16.xpose.msra.mxu0 0
    %2640 = vmatprep.subr.bf16.mxu0 0
    %2641 = vmatpush1.bf16.xpose.msra.mxu0 0
    %2642 = vmatprep.subr.bf16.mxu0 0
    %2643 = vmatpush1.bf16.xpose.msra.mxu0 0
    %2644 = vmatprep.subr.bf16.mxu0 0
    %2645 = vmatpush1.bf16.xpose.msra.mxu0 0
    %2646 = vmatprep.subr.bf16.mxu0 0
    %2647 = vmatpush1.bf16.xpose.msra.mxu0 0
    %2648 = vmatprep.subr.bf16.mxu0 0
    %2649 = vmatpush1.bf16.xpose.msra.mxu0 0
    %2650 = vmatprep.subr.bf16.mxu0 0
    %2651 = vmatpush1.bf16.xpose.msra.mxu0 0
    %2652 = vmatprep.subr.bf16.mxu0 0
    %2653 = vmatpush1.bf16.xpose.msra.mxu0 0
    %2654 = vmatprep.subr.bf16.mxu0 0
    %2655 = vmatpush1.bf16.xpose.msra.mxu0 0
    %2656 = vmatprep.subr.bf16.mxu0 0
    %2657 = vmatpush1.bf16.xpose.msra.mxu0 0
    %2658 = vmatprep.subr.bf16.mxu0 0
    %2659 = vmatpush1.bf16.xpose.msra.mxu0 0
    %2660 = vmatprep.mubr.bf16.mxu0 0
    %2661 = vmatmul.mubr.bf16.gmra.mrb[0].mxu0 %v2623
    %v2662 = vpop.f32.mrb[0].mxu0
    %v2663 = vadd.f32 0.0, %v2662
    %v2664 = vpop.f32.mrb[0].mxu0
    %v2665 = vpop.f32.mrb[0].mxu0
    %v2666 = vpop.f32.mrb[0].mxu0
    %2667 = vdwg.mxu0
    %v2668 = vsel %vm192, %v2613, -inf
    %2669 = vmax.xlane.f32.xlu0 %v2668
    %v2670 = vpop.xlane.xlu0 %2669
    %v2671 = vsel %vm192, %v2663, -inf
    %2672 = vmax.xlane.f32.xlu0 %v2671
    %v2673 = vpop.xlane.xlu0 %2672
    %v2674 = vsub.f32 %v2613, %v2670
    %v2675 = vsub.f32 %v2663, %v2673
    %v2676 = vmul.f32 %v2674, 1.442695
    %v2677 = vpow.pop %v2676
    %v2678 = vmul.f32 %v2675, 1.442695
    %v2679 = vpow.pop %v2678
    %v2680 = vsel %vm192, %v2677, 0.0
    %2681 = vadd.xlane.f32.xlu0 %v2680
    %v2682 = vpop.xlane.xlu0 %2681
    %v2683 = vsel %vm192, %v2679, 0.0
    %2684 = vadd.xlane.f32.xlu0 %v2683
    %v2685 = vpop.xlane.xlu0 %2684
    %v2686 = vrcp.pop %v2682
    %v2687 = vrcp.pop %v2685
    %v2688 = vmul.f32 %v2677, %v2686
    %v2689 = vmul.f32 %v2679, %v2687
    %v2690 = vpack.c.bf16 %v2688, %v2688
    %v2691 = vpack.c.bf16 %v2689, %v2689
    %2692 = vrot.lane.b32.xlu0 %v1908, 40
    %v2693 = vpop.permute.xlu0 %2692
    %v2695 = vsel %vm192, %v2690, 0
    %v2698 = vsel %vm199, %v2693, 0
    %2700 = vmatprep.subr.bf16.mxu0 0
    %2701 = vmatpush1.bf16.msra.mxu0 %v2698
    %2702 = vmatprep.subr.bf16.mxu0 0
    %2703 = vmatpush1.bf16.msra.mxu0 0
    %2704 = vmatprep.subr.bf16.mxu0 0
    %2705 = vmatpush1.bf16.msra.mxu0 0
    %2706 = vmatprep.subr.bf16.mxu0 0
    %2707 = vmatpush1.bf16.msra.mxu0 0
    %2708 = vmatprep.subr.bf16.mxu0 0
    %2709 = vmatpush1.bf16.msra.mxu0 0
    %2710 = vmatprep.subr.bf16.mxu0 0
    %2711 = vmatpush1.bf16.msra.mxu0 0
    %2712 = vmatprep.subr.bf16.mxu0 0
    %2713 = vmatpush1.bf16.msra.mxu0 0
    %2714 = vmatprep.subr.bf16.mxu0 0
    %2715 = vmatpush1.bf16.msra.mxu0 0
    %2716 = vmatprep.subr.bf16.mxu0 0
    %2717 = vmatpush1.bf16.msra.mxu0 0
    %2718 = vmatprep.subr.bf16.mxu0 0
    %2719 = vmatpush1.bf16.msra.mxu0 0
    %2720 = vmatprep.subr.bf16.mxu0 0
    %2721 = vmatpush1.bf16.msra.mxu0 0
    %2722 = vmatprep.subr.bf16.mxu0 0
    %2723 = vmatpush1.bf16.msra.mxu0 0
    %2724 = vmatprep.subr.bf16.mxu0 0
    %2725 = vmatpush1.bf16.msra.mxu0 0
    %2726 = vmatprep.subr.bf16.mxu0 0
    %2727 = vmatpush1.bf16.msra.mxu0 0
    %2728 = vmatprep.subr.bf16.mxu0 0
    %2729 = vmatpush1.bf16.msra.mxu0 0
    %2730 = vmatprep.subr.bf16.mxu0 0
    %2731 = vmatpush1.bf16.msra.mxu0 0
    %2732 = vmatprep.mubr.bf16.mxu0 0
    %2733 = vmatmul.mubr.bf16.gmra.mrb[0].mxu0 %v2695
    %v2734 = vpop.f32.mrb[0].mxu0
    %v2735 = vadd.f32 0.0, %v2734
    %v2736 = vpop.f32.mrb[0].mxu0
    %v2737 = vpop.f32.mrb[0].mxu0
    %v2738 = vpop.f32.mrb[0].mxu0
    %2739 = vdwg.mxu0
    %2740 = vrot.lane.b32.xlu0 %v1909, 40
    %v2741 = vpop.permute.xlu0 %2740
    %v2743 = vsel %vm192, %v2691, 0
    %v2746 = vsel %vm199, %v2741, 0
    %2748 = vmatprep.subr.bf16.mxu0 0
    %2749 = vmatpush1.bf16.msra.mxu0 %v2746
    %2750 = vmatprep.subr.bf16.mxu0 0
    %2751 = vmatpush1.bf16.msra.mxu0 0
    %2752 = vmatprep.subr.bf16.mxu0 0
    %2753 = vmatpush1.bf16.msra.mxu0 0
    %2754 = vmatprep.subr.bf16.mxu0 0
    %2755 = vmatpush1.bf16.msra.mxu0 0
    %2756 = vmatprep.subr.bf16.mxu0 0
    %2757 = vmatpush1.bf16.msra.mxu0 0
    %2758 = vmatprep.subr.bf16.mxu0 0
    %2759 = vmatpush1.bf16.msra.mxu0 0
    %2760 = vmatprep.subr.bf16.mxu0 0
    %2761 = vmatpush1.bf16.msra.mxu0 0
    %2762 = vmatprep.subr.bf16.mxu0 0
    %2763 = vmatpush1.bf16.msra.mxu0 0
    %2764 = vmatprep.subr.bf16.mxu0 0
    %2765 = vmatpush1.bf16.msra.mxu0 0
    %2766 = vmatprep.subr.bf16.mxu0 0
    %2767 = vmatpush1.bf16.msra.mxu0 0
    %2768 = vmatprep.subr.bf16.mxu0 0
    %2769 = vmatpush1.bf16.msra.mxu0 0
    %2770 = vmatprep.subr.bf16.mxu0 0
    %2771 = vmatpush1.bf16.msra.mxu0 0
    %2772 = vmatprep.subr.bf16.mxu0 0
    %2773 = vmatpush1.bf16.msra.mxu0 0
    %2774 = vmatprep.subr.bf16.mxu0 0
    %2775 = vmatpush1.bf16.msra.mxu0 0
    %2776 = vmatprep.subr.bf16.mxu0 0
    %2777 = vmatpush1.bf16.msra.mxu0 0
    %2778 = vmatprep.subr.bf16.mxu0 0
    %2779 = vmatpush1.bf16.msra.mxu0 0
    %2780 = vmatprep.mubr.bf16.mxu0 0
    %2781 = vmatmul.mubr.bf16.gmra.mrb[0].mxu0 %v2743
    %v2782 = vpop.f32.mrb[0].mxu0
    %v2783 = vadd.f32 0.0, %v2782
    %v2784 = vpop.f32.mrb[0].mxu0
    %v2785 = vpop.f32.mrb[0].mxu0
    %v2786 = vpop.f32.mrb[0].mxu0
    %2787 = vdwg.mxu0
    %2790 = vrot.lane.b32.xlu0 %v2295, 8
    %v2791 = vpop.permute.xlu0 %2790
    %2792 = vrot.lane.b32.xlu0 %v2343, 8
    %v2793 = vpop.permute.xlu0 %2792
    %2798 = vrot.lane.b32.xlu0 %v2515, 16
    %v2799 = vpop.permute.xlu0 %2798
    %2800 = vrot.lane.b32.xlu0 %v2563, 16
    %v2801 = vpop.permute.xlu0 %2800
    %2806 = vrot.lane.b32.xlu0 %v2735, 24
    %v2807 = vpop.permute.xlu0 %2806
    %2808 = vrot.lane.b32.xlu0 %v2783, 24
    %v2809 = vpop.permute.xlu0 %2808
    %v2812 = vsel %vm192, %v2075, %v2791
    %v2813 = vsel %vm192, %v2123, %v2793
    %v2814 = vsel %vm276, %v2812, %v2799
    %v2815 = vsel %vm276, %v2813, %v2801
    %v2816 = vsel %vm1426, %v2814, %v2807
    %v2817 = vsel %vm1426, %v2815, %v2809
    %v2818 = vpack.c.bf16 %v2817, %v2816
    %s2819 = scalar_lea.vmem %s9, 32
    %v2820 = vld [vmem:[%s2819] sm:$0xf]
    %v2821 = vld [vmem:[%s2819 + $0x4] sm:$0xf]
    %v2822 = vld [vmem:[%s2819 + $0x8] sm:$0xf]
    %v2823 = vld [vmem:[%s2819 + $0xc] sm:$0xf]
    %s2824 = scalar_lea.vmem [#allocation8], 2
    %v2825 = vld [vmem:[%s2824] sm:$0x1]
    %v2827 = vlaneseq
    %v2828 = vshrl.u32 %v2827, 7
    %v2829 = vsub.s32 0, %v2828
    %v2830 = vrot.slane %v2825, %v2829
    %v2836 = vunpack.c.l.b16 %v2820
    %v2837 = vunpack.c.l.b16 %v2821
    %v2838 = vunpack.c.l.b16 %v2822
    %v2839 = vunpack.c.l.b16 %v2823
    %v2840 = vpack.c.b16 %v2837, %v2836
    %v2841 = vpack.c.b16 %v2839, %v2838
    %v2845 = vsel %vm346, %v2818, 0
    %2847 = vmatprep.subr.bf16.mxu0 0
    %2848 = vmatpush1.bf16.msra.mxu0 %v2840
    %2849 = vmatprep.subr.bf16.mxu0 0
    %2850 = vmatpush1.bf16.msra.mxu0 %v2841
    %2851 = vmatprep.subr.bf16.mxu0 0
    %2852 = vmatpush1.bf16.msra.mxu0 0
    %2853 = vmatprep.subr.bf16.mxu0 0
    %2854 = vmatpush1.bf16.msra.mxu0 0
    %2855 = vmatprep.subr.bf16.mxu0 0
    %2856 = vmatpush1.bf16.msra.mxu0 0
    %2857 = vmatprep.subr.bf16.mxu0 0
    %2858 = vmatpush1.bf16.msra.mxu0 0
    %2859 = vmatprep.subr.bf16.mxu0 0
    %2860 = vmatpush1.bf16.msra.mxu0 0
    %2861 = vmatprep.subr.bf16.mxu0 0
    %2862 = vmatpush1.bf16.msra.mxu0 0
    %2863 = vmatprep.subr.bf16.mxu0 0
    %2864 = vmatpush1.bf16.msra.mxu0 0
    %2865 = vmatprep.subr.bf16.mxu0 0
    %2866 = vmatpush1.bf16.msra.mxu0 0
    %2867 = vmatprep.subr.bf16.mxu0 0
    %2868 = vmatpush1.bf16.msra.mxu0 0
    %2869 = vmatprep.subr.bf16.mxu0 0
    %2870 = vmatpush1.bf16.msra.mxu0 0
    %2871 = vmatprep.subr.bf16.mxu0 0
    %2872 = vmatpush1.bf16.msra.mxu0 0
    %2873 = vmatprep.subr.bf16.mxu0 0
    %2874 = vmatpush1.bf16.msra.mxu0 0
    %2875 = vmatprep.subr.bf16.mxu0 0
    %2876 = vmatpush1.bf16.msra.mxu0 0
    %2877 = vmatprep.subr.bf16.mxu0 0
    %2878 = vmatpush1.bf16.msra.mxu0 0
    %2879 = vmatprep.mubr.bf16.mxu0 0
    %2880 = vmatmul.mubr.bf16.gmra.mrb[0].mxu0 %v2845
    %v2881 = vpop.f32.mrb[0].mxu0
    %v2882 = vadd.f32 %v2830, %v2881
    %v2883 = vpop.f32.mrb[0].mxu0
    %v2884 = vpop.f32.mrb[0].mxu0
    %v2885 = vadd.f32 %v2830, %v2884
    %v2886 = vpop.f32.mrb[0].mxu0
    %2887 = vdwg.mxu0
    %s2888 = scalar_lea.vmem %s15, 8
    %v2889 = vld [vmem:[%s2888] sm:$0xf]
    %v2890 = vadd.f32 %v315, %v2882
    %v2891 = vadd.f32 %v318, %v2885
    %v2892 = vsel %vm346, %v2890, 0.0
    %2893 = vadd.xlane.f32.xlu0 %v2892
    %v2894 = vpop.xlane.xlu0 %2893
    %v2895 = vsel %vm346, %v2891, 0.0
    %2896 = vadd.xlane.f32.xlu0 %v2895
    %v2897 = vpop.xlane.xlu0 %2896
    %v2898 = vmul.f32 %v2894, %v1528
    %v2899 = vmul.f32 %v2897, %v1528
    %v2900 = vsub.f32 %v2890, %v2898
    %v2901 = vsub.f32 %v2891, %v2899
    %v2902 = vmul.f32 %v2900, %v2900
    %v2903 = vmul.f32 %v2901, %v2901
    %v2904 = vsel %vm346, %v2902, 0.0
    %2905 = vadd.xlane.f32.xlu0 %v2904
    %v2906 = vpop.xlane.xlu0 %2905
    %v2907 = vsel %vm346, %v2903, 0.0
    %2908 = vadd.xlane.f32.xlu0 %v2907
    %v2909 = vpop.xlane.xlu0 %2908
    %v2910 = vmul.f32 %v2906, %v1528
    %v2911 = vmul.f32 %v2909, %v1528
    %v2912 = vadd.f32 %v2910, 1e-05
    %v2913 = vadd.f32 %v2911, 1e-05
    %v2914 = vrsqrt.pop %v2912
    %v2915 = vrsqrt.pop %v2913
    %v2916 = vmul.f32 %v2900, %v2914
    %v2917 = vmul.f32 %v2901, %v2915
    %v2918 = vlaneseq
    %v2919 = vshrl.u32 %v2918, 7
    %v2920 = vsub.s32 0, %v2919
    %v2921 = vrot.slane %v2889, %v2920
    %v2922 = vmul.f32 %v2916, %v2921
    %v2923 = vmul.f32 %v2917, %v2921
    %v2924 = vlaneseq
    %v2925 = vshrl.u32 %v2924, 7
    %v2926 = vsub.s32 1, %v2925
    %v2927 = vrot.slane %v2889, %v2926
    %v2928 = vadd.f32 %v2922, %v2927
    %v2929 = vadd.f32 %v2923, %v2927
    %v2930 = vpack.c.bf16 %v2929, %v2928
    %s2931 = scalar_lea.vmem %s11, 32
    %v2932 = vld [vmem:[%s2931] sm:$0xf]
    %v2933 = vld [vmem:[%s2931 + $0x4] sm:$0xf]
    %v2934 = vld [vmem:[%s2931 + $0x8] sm:$0xf]
    %v2935 = vld [vmem:[%s2931 + $0xc] sm:$0xf]
    %s2936 = scalar_lea.vmem [#allocation10], 2
    %v2937 = vld [vmem:[%s2936] sm:$0x1]
    %v2939 = vlaneseq
    %v2940 = vshrl.u32 %v2939, 7
    %v2941 = vsub.s32 0, %v2940
    %v2942 = vrot.slane %v2937, %v2941
    %v2948 = vunpack.c.l.b16 %v2932
    %v2949 = vunpack.c.l.b16 %v2933
    %v2950 = vunpack.c.l.b16 %v2934
    %v2951 = vunpack.c.l.b16 %v2935
    %v2952 = vpack.c.b16 %v2949, %v2948
    %v2953 = vpack.c.b16 %v2951, %v2950
    %v2957 = vsel %vm346, %v2930, 0
    %2959 = vmatprep.subr.bf16.mxu0 0
    %2960 = vmatpush1.bf16.msra.mxu0 %v2952
    %2961 = vmatprep.subr.bf16.mxu0 0
    %2962 = vmatpush1.bf16.msra.mxu0 %v2953
    %2963 = vmatprep.subr.bf16.mxu0 0
    %2964 = vmatpush1.bf16.msra.mxu0 0
    %2965 = vmatprep.subr.bf16.mxu0 0
    %2966 = vmatpush1.bf16.msra.mxu0 0
    %2967 = vmatprep.subr.bf16.mxu0 0
    %2968 = vmatpush1.bf16.msra.mxu0 0
    %2969 = vmatprep.subr.bf16.mxu0 0
    %2970 = vmatpush1.bf16.msra.mxu0 0
    %2971 = vmatprep.subr.bf16.mxu0 0
    %2972 = vmatpush1.bf16.msra.mxu0 0
    %2973 = vmatprep.subr.bf16.mxu0 0
    %2974 = vmatpush1.bf16.msra.mxu0 0
    %2975 = vmatprep.subr.bf16.mxu0 0
    %2976 = vmatpush1.bf16.msra.mxu0 0
    %2977 = vmatprep.subr.bf16.mxu0 0
    %2978 = vmatpush1.bf16.msra.mxu0 0
    %2979 = vmatprep.subr.bf16.mxu0 0
    %2980 = vmatpush1.bf16.msra.mxu0 0
    %2981 = vmatprep.subr.bf16.mxu0 0
    %2982 = vmatpush1.bf16.msra.mxu0 0
    %2983 = vmatprep.subr.bf16.mxu0 0
    %2984 = vmatpush1.bf16.msra.mxu0 0
    %2985 = vmatprep.subr.bf16.mxu0 0
    %2986 = vmatpush1.bf16.msra.mxu0 0
    %2987 = vmatprep.subr.bf16.mxu0 0
    %2988 = vmatpush1.bf16.msra.mxu0 0
    %2989 = vmatprep.subr.bf16.mxu0 0
    %2990 = vmatpush1.bf16.msra.mxu0 0
    %2991 = vmatprep.mubr.bf16.mxu0 0
    %2992 = vmatmul.mubr.bf16.gmra.mrb[0].mxu0 %v2957
    %v2993 = vpop.f32.mrb[0].mxu0
    %v2994 = vadd.f32 %v2942, %v2993
    %v2995 = vpop.f32.mrb[0].mxu0
    %v2996 = vpop.f32.mrb[0].mxu0
    %v2997 = vadd.f32 %v2942, %v2996
    %v2998 = vpop.f32.mrb[0].mxu0
    %2999 = vdwg.mxu0
    %v3000 = vmax.f32 %v2994, 0.0
    %v3001 = vmax.f32 %v2997, 0.0
    %v3002 = vpack.c.bf16 %v3001, %v3000
    %s3003 = scalar_lea.vmem %s13, 64
    %v3004 = vld [vmem:[%s3003] sm:$0xf]
    %v3005 = vld [vmem:[%s3003 + $0x4] sm:$0xf]
    %v3006 = vld [vmem:[%s3003 + $0x8] sm:$0xf]
    %v3007 = vld [vmem:[%s3003 + $0xc] sm:$0xf]
    %v3008 = vld [vmem:[%s3003 + $0x10] sm:$0xf]
    %v3009 = vld [vmem:[%s3003 + $0x14] sm:$0xf]
    %v3010 = vld [vmem:[%s3003 + $0x18] sm:$0xf]
    %v3011 = vld [vmem:[%s3003 + $0x1c] sm:$0xf]
    %s3012 = scalar_lea.vmem [#allocation11], 2
    %v3013 = vld [vmem:[%s3012] sm:$0x1]
    %v3015 = vlaneseq
    %v3016 = vshrl.u32 %v3015, 7
    %v3017 = vsub.s32 0, %v3016
    %v3018 = vrot.slane %v3013, %v3017
    %v3028 = vunpack.c.l.b16 %v3004
    %v3029 = vunpack.c.l.b16 %v3005
    %v3030 = vunpack.c.l.b16 %v3006
    %v3031 = vunpack.c.l.b16 %v3007
    %v3032 = vunpack.c.l.b16 %v3008
    %v3033 = vunpack.c.l.b16 %v3009
    %v3034 = vunpack.c.l.b16 %v3010
    %v3035 = vunpack.c.l.b16 %v3011
    %v3036 = vpack.c.b16 %v3029, %v3028
    %v3037 = vpack.c.b16 %v3031, %v3030
    %v3038 = vpack.c.b16 %v3033, %v3032
    %v3039 = vpack.c.b16 %v3035, %v3034
    %v3045 = vsel %vm1710, %v3002, 0
    %3047 = vmatprep.subr.bf16.mxu0 0
    %3048 = vmatpush1.bf16.msra.mxu0 %v3036
    %3049 = vmatprep.subr.bf16.mxu0 0
    %3050 = vmatpush1.bf16.msra.mxu0 %v3037
    %3051 = vmatprep.subr.bf16.mxu0 0
    %3052 = vmatpush1.bf16.msra.mxu0 %v3038
    %3053 = vmatprep.subr.bf16.mxu0 0
    %3054 = vmatpush1.bf16.msra.mxu0 %v3039
    %3055 = vmatprep.subr.bf16.mxu0 0
    %3056 = vmatpush1.bf16.msra.mxu0 0
    %3057 = vmatprep.subr.bf16.mxu0 0
    %3058 = vmatpush1.bf16.msra.mxu0 0
    %3059 = vmatprep.subr.bf16.mxu0 0
    %3060 = vmatpush1.bf16.msra.mxu0 0
    %3061 = vmatprep.subr.bf16.mxu0 0
    %3062 = vmatpush1.bf16.msra.mxu0 0
    %3063 = vmatprep.subr.bf16.mxu0 0
    %3064 = vmatpush1.bf16.msra.mxu0 0
    %3065 = vmatprep.subr.bf16.mxu0 0
    %3066 = vmatpush1.bf16.msra.mxu0 0
    %3067 = vmatprep.subr.bf16.mxu0 0
    %3068 = vmatpush1.bf16.msra.mxu0 0
    %3069 = vmatprep.subr.bf16.mxu0 0
    %3070 = vmatpush1.bf16.msra.mxu0 0
    %3071 = vmatprep.subr.bf16.mxu0 0
    %3072 = vmatpush1.bf16.msra.mxu0 0
    %3073 = vmatprep.subr.bf16.mxu0 0
    %3074 = vmatpush1.bf16.msra.mxu0 0
    %3075 = vmatprep.subr.bf16.mxu0 0
    %3076 = vmatpush1.bf16.msra.mxu0 0
    %3077 = vmatprep.subr.bf16.mxu0 0
    %3078 = vmatpush1.bf16.msra.mxu0 0
    %3079 = vmatprep.mubr.bf16.mxu0 0
    %3080 = vmatmul.mubr.bf16.gmra.mrb[0].mxu0 %v3045
    %v3081 = vpop.f32.mrb[0].mxu0
    %v3082 = vadd.f32 %v3018, %v3081
    %v3083 = vpop.f32.mrb[0].mxu0
    %v3084 = vpop.f32.mrb[0].mxu0
    %v3085 = vadd.f32 %v3018, %v3084
    %v3086 = vpop.f32.mrb[0].mxu0
    %3087 = vdwg.mxu0
    %v3088 = vadd.f32 %v2928, %v3082
    %v3089 = vadd.f32 %v2929, %v3085
    %v3090 = vsel %vm346, %v3088, 0.0
    %3091 = vadd.xlane.f32.xlu0 %v3090
    %v3092 = vpop.xlane.xlu0 %3091
    %v3093 = vsel %vm346, %v3089, 0.0
    %3094 = vadd.xlane.f32.xlu0 %v3093
    %v3095 = vpop.xlane.xlu0 %3094
    %v3096 = vmul.f32 %v3092, %v1528
    %v3097 = vmul.f32 %v3095, %v1528
    %v3098 = vsub.f32 %v3088, %v3096
    %v3099 = vsub.f32 %v3089, %v3097
    %v3100 = vmul.f32 %v3098, %v3098
    %v3101 = vmul.f32 %v3099, %v3099
    %v3102 = vsel %vm346, %v3100, 0.0
    %3103 = vadd.xlane.f32.xlu0 %v3102
    %v3104 = vpop.xlane.xlu0 %3103
    %v3105 = vsel %vm346, %v3101, 0.0
    %3106 = vadd.xlane.f32.xlu0 %v3105
    %v3107 = vpop.xlane.xlu0 %3106
    %v3108 = vmul.f32 %v3104, %v1528
    %v3109 = vmul.f32 %v3107, %v1528
    %v3110 = vadd.f32 %v3108, 1e-05
    %v3111 = vadd.f32 %v3109, 1e-05
    %v3112 = vrsqrt.pop %v3110
    %v3113 = vrsqrt.pop %v3111
    %v3114 = vmul.f32 %v3098, %v3112
    %v3115 = vmul.f32 %v3099, %v3113
    %v3116 = vlaneseq
    %v3117 = vshrl.u32 %v3116, 7
    %v3118 = vsub.s32 2, %v3117
    %v3119 = vrot.slane %v2889, %v3118
    %v3120 = vmul.f32 %v3114, %v3119
    %v3121 = vmul.f32 %v3115, %v3119
    %v3122 = vlaneseq
    %v3123 = vshrl.u32 %v3122, 7
    %v3124 = vsub.s32 3, %v3123
    %v3125 = vrot.slane %v2889, %v3124
    %v3126 = vadd.f32 %v3120, %v3125
    %v3127 = vadd.f32 %v3121, %v3125
    %v3128 = vpack.c.bf16 %v1835, %v1834
    %v3129 = vpack.c.bf16 %v1837, %v1836
    %s3130 = scalar_lea.vmem %s7, 16
    %v3131 = vld [vmem:[%s3130] sm:$0xf]
    %v3132 = vld [vmem:[%s3130 + $0x4] sm:$0xf]
    %v3133 = vld [vmem:[%s3130 + $0x8] sm:$0xf]
    %v3134 = vld [vmem:[%s3130 + $0xc] sm:$0xf]
    %s3135 = scalar_lea.vmem [#allocation7], 1
    %v3136 = vld [vmem:[%s3135] sm:$0x1]
    %v3138 = vlaneseq
    %v3139 = vshrl.u32 %v3138, 7
    %v3140 = vsub.s32 0, %v3139
    %v3141 = vrot.slane %v3136, %v3140
    %v3147 = vunpack.c.l.b16 %v3131
    %v3148 = vunpack.c.l.b16 %v3132
    %v3149 = vunpack.c.l.b16 %v3133
    %v3150 = vunpack.c.l.b16 %v3134
    %v3151 = vpack.c.b16 %v3148, %v3147
    %v3152 = vpack.c.b16 %v3150, %v3149
    %v3156 = vsel %vm346, %v3128, 0
    %v3159 = vsel %vm346, %v3129, 0
    %3161 = vmatprep.subr.bf16.mxu0 0
    %3162 = vmatpush1.bf16.msra.mxu0 %v3151
    %3163 = vmatprep.subr.bf16.mxu0 0
    %3164 = vmatpush1.bf16.msra.mxu0 %v3152
    %3165 = vmatprep.subr.bf16.mxu0 0
    %3166 = vmatpush1.bf16.msra.mxu0 0
    %3167 = vmatprep.subr.bf16.mxu0 0
    %3168 = vmatpush1.bf16.msra.mxu0 0
    %3169 = vmatprep.subr.bf16.mxu0 0
    %3170 = vmatpush1.bf16.msra.mxu0 0
    %3171 = vmatprep.subr.bf16.mxu0 0
    %3172 = vmatpush1.bf16.msra.mxu0 0
    %3173 = vmatprep.subr.bf16.mxu0 0
    %3174 = vmatpush1.bf16.msra.mxu0 0
    %3175 = vmatprep.subr.bf16.mxu0 0
    %3176 = vmatpush1.bf16.msra.mxu0 0
    %3177 = vmatprep.subr.bf16.mxu0 0
    %3178 = vmatpush1.bf16.msra.mxu0 0
    %3179 = vmatprep.subr.bf16.mxu0 0
    %3180 = vmatpush1.bf16.msra.mxu0 0
    %3181 = vmatprep.subr.bf16.mxu0 0
    %3182 = vmatpush1.bf16.msra.mxu0 0
    %3183 = vmatprep.subr.bf16.mxu0 0
    %3184 = vmatpush1.bf16.msra.mxu0 0
    %3185 = vmatprep.subr.bf16.mxu0 0
    %3186 = vmatpush1.bf16.msra.mxu0 0
    %3187 = vmatprep.subr.bf16.mxu0 0
    %3188 = vmatpush1.bf16.msra.mxu0 0
    %3189 = vmatprep.subr.bf16.mxu0 0
    %3190 = vmatpush1.bf16.msra.mxu0 0
    %3191 = vmatprep.subr.bf16.mxu0 0
    %3192 = vmatpush1.bf16.msra.mxu0 0
    %3193 = vmatprep.mubr.bf16.mxu0 0
    %3194 = vmatmul.mubr.bf16.gmra.mrb[0].mxu0 %v3156
    %v3195 = vpop.f32.mrb[0].mxu0
    %v3196 = vadd.f32 %v3141, %v3195
    %v3197 = vpop.f32.mrb[0].mxu0
    %v3198 = vpop.f32.mrb[0].mxu0
    %v3199 = vadd.f32 %v3141, %v3198
    %v3200 = vpop.f32.mrb[0].mxu0
    %3201 = vmatprep.mubr.bf16.mxu0 0
    %3202 = vmatmul.mubr.bf16.gmra.mrb[0].mxu0 %v3159
    %v3203 = vpop.f32.mrb[0].mxu0
    %v3204 = vadd.f32 %v3141, %v3203
    %v3205 = vpop.f32.mrb[0].mxu0
    %v3206 = vpop.f32.mrb[0].mxu0
    %v3207 = vadd.f32 %v3141, %v3206
    %v3208 = vpop.f32.mrb[0].mxu0
    %3209 = vdwg.mxu0
    %v3210 = vpack.c.bf16 %v3199, %v3196
    %v3211 = vpack.c.bf16 %v3207, %v3204
    %3213 = vrot.lane.b32.xlu0 %v3210, 96
    %v3214 = vpop.permute.xlu0 %3213
    %v3216 = vsel %vm192, %v3210, 0
    %v3219 = vsel %vm192, %v3214, 0
    %3221 = vmatprep.subr.bf16.mxu0 0
    %3222 = vmatpush1.bf16.xpose.msra.mxu0 %v3219
    %3223 = vmatprep.subr.bf16.mxu0 0
    %3224 = vmatpush1.bf16.xpose.msra.mxu0 0
    %3225 = vmatprep.subr.bf16.mxu0 0
    %3226 = vmatpush1.bf16.xpose.msra.mxu0 0
    %3227 = vmatprep.subr.bf16.mxu0 0
    %3228 = vmatpush1.bf16.xpose.msra.mxu0 0
    %3229 = vmatprep.subr.bf16.mxu0 0
    %3230 = vmatpush1.bf16.xpose.msra.mxu0 0
    %3231 = vmatprep.subr.bf16.mxu0 0
    %3232 = vmatpush1.bf16.xpose.msra.mxu0 0
    %3233 = vmatprep.subr.bf16.mxu0 0
    %3234 = vmatpush1.bf16.xpose.msra.mxu0 0
    %3235 = vmatprep.subr.bf16.mxu0 0
    %3236 = vmatpush1.bf16.xpose.msra.mxu0 0
    %3237 = vmatprep.subr.bf16.mxu0 0
    %3238 = vmatpush1.bf16.xpose.msra.mxu0 0
    %3239 = vmatprep.subr.bf16.mxu0 0
    %3240 = vmatpush1.bf16.xpose.msra.mxu0 0
    %3241 = vmatprep.subr.bf16.mxu0 0
    %3242 = vmatpush1.bf16.xpose.msra.mxu0 0
    %3243 = vmatprep.subr.bf16.mxu0 0
    %3244 = vmatpush1.bf16.xpose.msra.mxu0 0
    %3245 = vmatprep.subr.bf16.mxu0 0
    %3246 = vmatpush1.bf16.xpose.msra.mxu0 0
    %3247 = vmatprep.subr.bf16.mxu0 0
    %3248 = vmatpush1.bf16.xpose.msra.mxu0 0
    %3249 = vmatprep.subr.bf16.mxu0 0
    %3250 = vmatpush1.bf16.xpose.msra.mxu0 0
    %3251 = vmatprep.subr.bf16.mxu0 0
    %3252 = vmatpush1.bf16.xpose.msra.mxu0 0
    %3253 = vmatprep.mubr.bf16.mxu0 0
    %3254 = vmatmul.mubr.bf16.gmra.mrb[0].mxu0 %v3216
    %v3255 = vpop.f32.mrb[0].mxu0
    %v3256 = vadd.f32 0.0, %v3255
    %v3257 = vpop.f32.mrb[0].mxu0
    %v3258 = vpop.f32.mrb[0].mxu0
    %v3259 = vadd.f32 0.0, %v3258
    %v3260 = vpop.f32.mrb[0].mxu0
    %3261 = vdwg.mxu0
    %3263 = vrot.lane.b32.xlu0 %v3211, 96
    %v3264 = vpop.permute.xlu0 %3263
    %v3266 = vsel %vm192, %v3211, 0
    %v3269 = vsel %vm192, %v3264, 0
    %3271 = vmatprep.subr.bf16.mxu0 0
    %3272 = vmatpush1.bf16.xpose.msra.mxu0 %v3269
    %3273 = vmatprep.subr.bf16.mxu0 0
    %3274 = vmatpush1.bf16.xpose.msra.mxu0 0
    %3275 = vmatprep.subr.bf16.mxu0 0
    %3276 = vmatpush1.bf16.xpose.msra.mxu0 0
    %3277 = vmatprep.subr.bf16.mxu0 0
    %3278 = vmatpush1.bf16.xpose.msra.mxu0 0
    %3279 = vmatprep.subr.bf16.mxu0 0
    %3280 = vmatpush1.bf16.xpose.msra.mxu0 0
    %3281 = vmatprep.subr.bf16.mxu0 0
    %3282 = vmatpush1.bf16.xpose.msra.mxu0 0
    %3283 = vmatprep.subr.bf16.mxu0 0
    %3284 = vmatpush1.bf16.xpose.msra.mxu0 0
    %3285 = vmatprep.subr.bf16.mxu0 0
    %3286 = vmatpush1.bf16.xpose.msra.mxu0 0
    %3287 = vmatprep.subr.bf16.mxu0 0
    %3288 = vmatpush1.bf16.xpose.msra.mxu0 0
    %3289 = vmatprep.subr.bf16.mxu0 0
    %3290 = vmatpush1.bf16.xpose.msra.mxu0 0
    %3291 = vmatprep.subr.bf16.mxu0 0
    %3292 = vmatpush1.bf16.xpose.msra.mxu0 0
    %3293 = vmatprep.subr.bf16.mxu0 0
    %3294 = vmatpush1.bf16.xpose.msra.mxu0 0
    %3295 = vmatprep.subr.bf16.mxu0 0
    %3296 = vmatpush1.bf16.xpose.msra.mxu0 0
    %3297 = vmatprep.subr.bf16.mxu0 0
    %3298 = vmatpush1.bf16.xpose.msra.mxu0 0
    %3299 = vmatprep.subr.bf16.mxu0 0
    %3300 = vmatpush1.bf16.xpose.msra.mxu0 0
    %3301 = vmatprep.subr.bf16.mxu0 0
    %3302 = vmatpush1.bf16.xpose.msra.mxu0 0
    %3303 = vmatprep.mubr.bf16.mxu0 0
    %3304 = vmatmul.mubr.bf16.gmra.mrb[0].mxu0 %v3266
    %v3305 = vpop.f32.mrb[0].mxu0
    %v3306 = vadd.f32 0.0, %v3305
    %v3307 = vpop.f32.mrb[0].mxu0
    %v3308 = vpop.f32.mrb[0].mxu0
    %v3309 = vadd.f32 0.0, %v3308
    %v3310 = vpop.f32.mrb[0].mxu0
    %3311 = vdwg.mxu0
    %v3312 = vsel %vm276, %v3256, -inf
    %3313 = vmax.xlane.f32.xlu0 %v3312
    %v3314 = vpop.xlane.xlu0 %3313
    %v3315 = vsel %vm276, %v3259, -inf
    %3316 = vmax.xlane.f32.xlu0 %v3315
    %v3317 = vpop.xlane.xlu0 %3316
    %v3318 = vsel %vm276, %v3306, -inf
    %3319 = vmax.xlane.f32.xlu0 %v3318
    %v3320 = vpop.xlane.xlu0 %3319
    %v3321 = vsel %vm276, %v3309, -inf
    %3322 = vmax.xlane.f32.xlu0 %v3321
    %v3323 = vpop.xlane.xlu0 %3322
    %v3324 = vsub.f32 %v3256, %v3314
    %v3325 = vsub.f32 %v3259, %v3317
    %v3326 = vsub.f32 %v3306, %v3320
    %v3327 = vsub.f32 %v3309, %v3323
    %v3328 = vmul.f32 %v3324, 1.442695
    %v3329 = vpow.pop %v3328
    %v3330 = vmul.f32 %v3325, 1.442695
    %v3331 = vpow.pop %v3330
    %v3332 = vmul.f32 %v3326, 1.442695
    %v3333 = vpow.pop %v3332
    %v3334 = vmul.f32 %v3327, 1.442695
    %v3335 = vpow.pop %v3334
    %v3336 = vsel %vm276, %v3329, 0.0
    %3337 = vadd.xlane.f32.xlu0 %v3336
    %v3338 = vpop.xlane.xlu0 %3337
    %v3339 = vsel %vm276, %v3331, 0.0
    %3340 = vadd.xlane.f32.xlu0 %v3339
    %v3341 = vpop.xlane.xlu0 %3340
    %v3342 = vsel %vm276, %v3333, 0.0
    %3343 = vadd.xlane.f32.xlu0 %v3342
    %v3344 = vpop.xlane.xlu0 %3343
    %v3345 = vsel %vm276, %v3335, 0.0
    %3346 = vadd.xlane.f32.xlu0 %v3345
    %v3347 = vpop.xlane.xlu0 %3346
    %v3348 = vrcp.pop %v3338
    %v3349 = vrcp.pop %v3341
    %v3350 = vrcp.pop %v3344
    %v3351 = vrcp.pop %v3347
    %v3352 = vmul.f32 %v3329, %v3348
    %v3353 = vmul.f32 %v3331, %v3349
    %v3354 = vmul.f32 %v3333, %v3350
    %v3355 = vmul.f32 %v3335, %v3351
    %v3356 = vpack.c.bf16 %v3353, %v3352
    %v3357 = vpack.c.bf16 %v3355, %v3354
    %3358 = vrot.lane.b32.xlu0 %v3210, 64
    %v3359 = vpop.permute.xlu0 %3358
    %v3362 = vsel %vm276, %v3356, 0
    %3364 = vmatprep.subr.bf16.mxu0 0
    %3365 = vmatpush1.bf16.msra.mxu0 %v3359
    %3366 = vmatprep.subr.bf16.mxu0 0
    %3367 = vmatpush1.bf16.msra.mxu0 0
    %3368 = vmatprep.subr.bf16.mxu0 0
    %3369 = vmatpush1.bf16.msra.mxu0 0
    %3370 = vmatprep.subr.bf16.mxu0 0
    %3371 = vmatpush1.bf16.msra.mxu0 0
    %3372 = vmatprep.subr.bf16.mxu0 0
    %3373 = vmatpush1.bf16.msra.mxu0 0
    %3374 = vmatprep.subr.bf16.mxu0 0
    %3375 = vmatpush1.bf16.msra.mxu0 0
    %3376 = vmatprep.subr.bf16.mxu0 0
    %3377 = vmatpush1.bf16.msra.mxu0 0
    %3378 = vmatprep.subr.bf16.mxu0 0
    %3379 = vmatpush1.bf16.msra.mxu0 0
    %3380 = vmatprep.subr.bf16.mxu0 0
    %3381 = vmatpush1.bf16.msra.mxu0 0
    %3382 = vmatprep.subr.bf16.mxu0 0
    %3383 = vmatpush1.bf16.msra.mxu0 0
    %3384 = vmatprep.subr.bf16.mxu0 0
    %3385 = vmatpush1.bf16.msra.mxu0 0
    %3386 = vmatprep.subr.bf16.mxu0 0
    %3387 = vmatpush1.bf16.msra.mxu0 0
    %3388 = vmatprep.subr.bf16.mxu0 0
    %3389 = vmatpush1.bf16.msra.mxu0 0
    %3390 = vmatprep.subr.bf16.mxu0 0
    %3391 = vmatpush1.bf16.msra.mxu0 0
    %3392 = vmatprep.subr.bf16.mxu0 0
    %3393 = vmatpush1.bf16.msra.mxu0 0
    %3394 = vmatprep.subr.bf16.mxu0 0
    %3395 = vmatpush1.bf16.msra.mxu0 0
    %3396 = vmatprep.mubr.bf16.mxu0 0
    %3397 = vmatmul.mubr.bf16.gmra.mrb[0].mxu0 %v3362
    %v3398 = vpop.f32.mrb[0].mxu0
    %v3399 = vadd.f32 0.0, %v3398
    %v3400 = vpop.f32.mrb[0].mxu0
    %v3401 = vpop.f32.mrb[0].mxu0
    %v3402 = vadd.f32 0.0, %v3401
    %v3403 = vpop.f32.mrb[0].mxu0
    %3404 = vdwg.mxu0
    %3405 = vrot.lane.b32.xlu0 %v3211, 64
    %v3406 = vpop.permute.xlu0 %3405
    %v3409 = vsel %vm276, %v3357, 0
    %3411 = vmatprep.subr.bf16.mxu0 0
    %3412 = vmatpush1.bf16.msra.mxu0 %v3406
    %3413 = vmatprep.subr.bf16.mxu0 0
    %3414 = vmatpush1.bf16.msra.mxu0 0
    %3415 = vmatprep.subr.bf16.mxu0 0
    %3416 = vmatpush1.bf16.msra.mxu0 0
    %3417 = vmatprep.subr.bf16.mxu0 0
    %3418 = vmatpush1.bf16.msra.mxu0 0
    %3419 = vmatprep.subr.bf16.mxu0 0
    %3420 = vmatpush1.bf16.msra.mxu0 0
    %3421 = vmatprep.subr.bf16.mxu0 0
    %3422 = vmatpush1.bf16.msra.mxu0 0
    %3423 = vmatprep.subr.bf16.mxu0 0
    %3424 = vmatpush1.bf16.msra.mxu0 0
    %3425 = vmatprep.subr.bf16.mxu0 0
    %3426 = vmatpush1.bf16.msra.mxu0 0
    %3427 = vmatprep.subr.bf16.mxu0 0
    %3428 = vmatpush1.bf16.msra.mxu0 0
    %3429 = vmatprep.subr.bf16.mxu0 0
    %3430 = vmatpush1.bf16.msra.mxu0 0
    %3431 = vmatprep.subr.bf16.mxu0 0
    %3432 = vmatpush1.bf16.msra.mxu0 0
    %3433 = vmatprep.subr.bf16.mxu0 0
    %3434 = vmatpush1.bf16.msra.mxu0 0
    %3435 = vmatprep.subr.bf16.mxu0 0
    %3436 = vmatpush1.bf16.msra.mxu0 0
    %3437 = vmatprep.subr.bf16.mxu0 0
    %3438 = vmatpush1.bf16.msra.mxu0 0
    %3439 = vmatprep.subr.bf16.mxu0 0
    %3440 = vmatpush1.bf16.msra.mxu0 0
    %3441 = vmatprep.subr.bf16.mxu0 0
    %3442 = vmatpush1.bf16.msra.mxu0 0
    %3443 = vmatprep.mubr.bf16.mxu0 0
    %3444 = vmatmul.mubr.bf16.gmra.mrb[0].mxu0 %v3409
    %v3445 = vpop.f32.mrb[0].mxu0
    %v3446 = vadd.f32 0.0, %v3445
    %v3447 = vpop.f32.mrb[0].mxu0
    %v3448 = vpop.f32.mrb[0].mxu0
    %v3449 = vadd.f32 0.0, %v3448
    %v3450 = vpop.f32.mrb[0].mxu0
    %3451 = vdwg.mxu0
    %3452 = vrot.lane.b32.xlu0 %v3210, 120
    %v3453 = vpop.permute.xlu0 %3452
    %3454 = vrot.lane.b32.xlu0 %v3210, 88
    %v3455 = vpop.permute.xlu0 %3454
    %v3457 = vsel %vm192, %v3453, 0
    %v3460 = vsel %vm192, %v3455, 0
    %3462 = vmatprep.subr.bf16.mxu0 0
    %3463 = vmatpush1.bf16.xpose.msra.mxu0 %v3460
    %3464 = vmatprep.subr.bf16.mxu0 0
    %3465 = vmatpush1.bf16.xpose.msra.mxu0 0
    %3466 = vmatprep.subr.bf16.mxu0 0
    %3467 = vmatpush1.bf16.xpose.msra.mxu0 0
    %3468 = vmatprep.subr.bf16.mxu0 0
    %3469 = vmatpush1.bf16.xpose.msra.mxu0 0
    %3470 = vmatprep.subr.bf16.mxu0 0
    %3471 = vmatpush1.bf16.xpose.msra.mxu0 0
    %3472 = vmatprep.subr.bf16.mxu0 0
    %3473 = vmatpush1.bf16.xpose.msra.mxu0 0
    %3474 = vmatprep.subr.bf16.mxu0 0
    %3475 = vmatpush1.bf16.xpose.msra.mxu0 0
    %3476 = vmatprep.subr.bf16.mxu0 0
    %3477 = vmatpush1.bf16.xpose.msra.mxu0 0
    %3478 = vmatprep.subr.bf16.mxu0 0
    %3479 = vmatpush1.bf16.xpose.msra.mxu0 0
    %3480 = vmatprep.subr.bf16.mxu0 0
    %3481 = vmatpush1.bf16.xpose.msra.mxu0 0
    %3482 = vmatprep.subr.bf16.mxu0 0
    %3483 = vmatpush1.bf16.xpose.msra.mxu0 0
    %3484 = vmatprep.subr.bf16.mxu0 0
    %3485 = vmatpush1.bf16.xpose.msra.mxu0 0
    %3486 = vmatprep.subr.bf16.mxu0 0
    %3487 = vmatpush1.bf16.xpose.msra.mxu0 0
    %3488 = vmatprep.subr.bf16.mxu0 0
    %3489 = vmatpush1.bf16.xpose.msra.mxu0 0
    %3490 = vmatprep.subr.bf16.mxu0 0
    %3491 = vmatpush1.bf16.xpose.msra.mxu0 0
    %3492 = vmatprep.subr.bf16.mxu0 0
    %3493 = vmatpush1.bf16.xpose.msra.mxu0 0
    %3494 = vmatprep.mubr.bf16.mxu0 0
    %3495 = vmatmul.mubr.bf16.gmra.mrb[0].mxu0 %v3457
    %v3496 = vpop.f32.mrb[0].mxu0
    %v3497 = vadd.f32 0.0, %v3496
    %v3498 = vpop.f32.mrb[0].mxu0
    %v3499 = vpop.f32.mrb[0].mxu0
    %v3500 = vadd.f32 0.0, %v3499
    %v3501 = vpop.f32.mrb[0].mxu0
    %3502 = vdwg.mxu0
    %3503 = vrot.lane.b32.xlu0 %v3211, 120
    %v3504 = vpop.permute.xlu0 %3503
    %3505 = vrot.lane.b32.xlu0 %v3211, 88
    %v3506 = vpop.permute.xlu0 %3505
    %v3508 = vsel %vm192, %v3504, 0
    %v3511 = vsel %vm192, %v3506, 0
    %3513 = vmatprep.subr.bf16.mxu0 0
    %3514 = vmatpush1.bf16.xpose.msra.mxu0 %v3511
    %3515 = vmatprep.subr.bf16.mxu0 0
    %3516 = vmatpush1.bf16.xpose.msra.mxu0 0
    %3517 = vmatprep.subr.bf16.mxu0 0
    %3518 = vmatpush1.bf16.xpose.msra.mxu0 0
    %3519 = vmatprep.subr.bf16.mxu0 0
    %3520 = vmatpush1.bf16.xpose.msra.mxu0 0
    %3521 = vmatprep.subr.bf16.mxu0 0
    %3522 = vmatpush1.bf16.xpose.msra.mxu0 0
    %3523 = vmatprep.subr.bf16.mxu0 0
    %3524 = vmatpush1.bf16.xpose.msra.mxu0 0
    %3525 = vmatprep.subr.bf16.mxu0 0
    %3526 = vmatpush1.bf16.xpose.msra.mxu0 0
    %3527 = vmatprep.subr.bf16.mxu0 0
    %3528 = vmatpush1.bf16.xpose.msra.mxu0 0
    %3529 = vmatprep.subr.bf16.mxu0 0
    %3530 = vmatpush1.bf16.xpose.msra.mxu0 0
    %3531 = vmatprep.subr.bf16.mxu0 0
    %3532 = vmatpush1.bf16.xpose.msra.mxu0 0
    %3533 = vmatprep.subr.bf16.mxu0 0
    %3534 = vmatpush1.bf16.xpose.msra.mxu0 0
    %3535 = vmatprep.subr.bf16.mxu0 0
    %3536 = vmatpush1.bf16.xpose.msra.mxu0 0
    %3537 = vmatprep.subr.bf16.mxu0 0
    %3538 = vmatpush1.bf16.xpose.msra.mxu0 0
    %3539 = vmatprep.subr.bf16.mxu0 0
    %3540 = vmatpush1.bf16.xpose.msra.mxu0 0
    %3541 = vmatprep.subr.bf16.mxu0 0
    %3542 = vmatpush1.bf16.xpose.msra.mxu0 0
    %3543 = vmatprep.subr.bf16.mxu0 0
    %3544 = vmatpush1.bf16.xpose.msra.mxu0 0
    %3545 = vmatprep.mubr.bf16.mxu0 0
    %3546 = vmatmul.mubr.bf16.gmra.mrb[0].mxu0 %v3508
    %v3547 = vpop.f32.mrb[0].mxu0
    %v3548 = vadd.f32 0.0, %v3547
    %v3549 = vpop.f32.mrb[0].mxu0
    %v3550 = vpop.f32.mrb[0].mxu0
    %v3551 = vadd.f32 0.0, %v3550
    %v3552 = vpop.f32.mrb[0].mxu0
    %3553 = vdwg.mxu0
    %v3554 = vsel %vm276, %v3497, -inf
    %3555 = vmax.xlane.f32.xlu0 %v3554
    %v3556 = vpop.xlane.xlu0 %3555
    %v3557 = vsel %vm276, %v3500, -inf
    %3558 = vmax.xlane.f32.xlu0 %v3557
    %v3559 = vpop.xlane.xlu0 %3558
    %v3560 = vsel %vm276, %v3548, -inf
    %3561 = vmax.xlane.f32.xlu0 %v3560
    %v3562 = vpop.xlane.xlu0 %3561
    %v3563 = vsel %vm276, %v3551, -inf
    %3564 = vmax.xlane.f32.xlu0 %v3563
    %v3565 = vpop.xlane.xlu0 %3564
    %v3566 = vsub.f32 %v3497, %v3556
    %v3567 = vsub.f32 %v3500, %v3559
    %v3568 = vsub.f32 %v3548, %v3562
    %v3569 = vsub.f32 %v3551, %v3565
    %v3570 = vmul.f32 %v3566, 1.442695
    %v3571 = vpow.pop %v3570
    %v3572 = vmul.f32 %v3567, 1.442695
    %v3573 = vpow.pop %v3572
    %v3574 = vmul.f32 %v3568, 1.442695
    %v3575 = vpow.pop %v3574
    %v3576 = vmul.f32 %v3569, 1.442695
    %v3577 = vpow.pop %v3576
    %v3578 = vsel %vm276, %v3571, 0.0
    %3579 = vadd.xlane.f32.xlu0 %v3578
    %v3580 = vpop.xlane.xlu0 %3579
    %v3581 = vsel %vm276, %v3573, 0.0
    %3582 = vadd.xlane.f32.xlu0 %v3581
    %v3583 = vpop.xlane.xlu0 %3582
    %v3584 = vsel %vm276, %v3575, 0.0
    %3585 = vadd.xlane.f32.xlu0 %v3584
    %v3586 = vpop.xlane.xlu0 %3585
    %v3587 = vsel %vm276, %v3577, 0.0
    %3588 = vadd.xlane.f32.xlu0 %v3587
    %v3589 = vpop.xlane.xlu0 %3588
    %v3590 = vrcp.pop %v3580
    %v3591 = vrcp.pop %v3583
    %v3592 = vrcp.pop %v3586
    %v3593 = vrcp.pop %v3589
    %v3594 = vmul.f32 %v3571, %v3590
    %v3595 = vmul.f32 %v3573, %v3591
    %v3596 = vmul.f32 %v3575, %v3592
    %v3597 = vmul.f32 %v3577, %v3593
    %v3598 = vpack.c.bf16 %v3595, %v3594
    %v3599 = vpack.c.bf16 %v3597, %v3596
    %3600 = vrot.lane.b32.xlu0 %v3210, 56
    %v3601 = vpop.permute.xlu0 %3600
    %v3604 = vsel %vm276, %v3598, 0
    %3606 = vmatprep.subr.bf16.mxu0 0
    %3607 = vmatpush1.bf16.msra.mxu0 %v3601
    %3608 = vmatprep.subr.bf16.mxu0 0
    %3609 = vmatpush1.bf16.msra.mxu0 0
    %3610 = vmatprep.subr.bf16.mxu0 0
    %3611 = vmatpush1.bf16.msra.mxu0 0
    %3612 = vmatprep.subr.bf16.mxu0 0
    %3613 = vmatpush1.bf16.msra.mxu0 0
    %3614 = vmatprep.subr.bf16.mxu0 0
    %3615 = vmatpush1.bf16.msra.mxu0 0
    %3616 = vmatprep.subr.bf16.mxu0 0
    %3617 = vmatpush1.bf16.msra.mxu0 0
    %3618 = vmatprep.subr.bf16.mxu0 0
    %3619 = vmatpush1.bf16.msra.mxu0 0
    %3620 = vmatprep.subr.bf16.mxu0 0
    %3621 = vmatpush1.bf16.msra.mxu0 0
    %3622 = vmatprep.subr.bf16.mxu0 0
    %3623 = vmatpush1.bf16.msra.mxu0 0
    %3624 = vmatprep.subr.bf16.mxu0 0
    %3625 = vmatpush1.bf16.msra.mxu0 0
    %3626 = vmatprep.subr.bf16.mxu0 0
    %3627 = vmatpush1.bf16.msra.mxu0 0
    %3628 = vmatprep.subr.bf16.mxu0 0
    %3629 = vmatpush1.bf16.msra.mxu0 0
    %3630 = vmatprep.subr.bf16.mxu0 0
    %3631 = vmatpush1.bf16.msra.mxu0 0
    %3632 = vmatprep.subr.bf16.mxu0 0
    %3633 = vmatpush1.bf16.msra.mxu0 0
    %3634 = vmatprep.subr.bf16.mxu0 0
    %3635 = vmatpush1.bf16.msra.mxu0 0
    %3636 = vmatprep.subr.bf16.mxu0 0
    %3637 = vmatpush1.bf16.msra.mxu0 0
    %3638 = vmatprep.mubr.bf16.mxu0 0
    %3639 = vmatmul.mubr.bf16.gmra.mrb[0].mxu0 %v3604
    %v3640 = vpop.f32.mrb[0].mxu0
    %v3641 = vadd.f32 0.0, %v3640
    %v3642 = vpop.f32.mrb[0].mxu0
    %v3643 = vpop.f32.mrb[0].mxu0
    %v3644 = vadd.f32 0.0, %v3643
    %v3645 = vpop.f32.mrb[0].mxu0
    %3646 = vdwg.mxu0
    %3647 = vrot.lane.b32.xlu0 %v3211, 56
    %v3648 = vpop.permute.xlu0 %3647
    %v3651 = vsel %vm276, %v3599, 0
    %3653 = vmatprep.subr.bf16.mxu0 0
    %3654 = vmatpush1.bf16.msra.mxu0 %v3648
    %3655 = vmatprep.subr.bf16.mxu0 0
    %3656 = vmatpush1.bf16.msra.mxu0 0
    %3657 = vmatprep.subr.bf16.mxu0 0
    %3658 = vmatpush1.bf16.msra.mxu0 0
    %3659 = vmatprep.subr.bf16.mxu0 0
    %3660 = vmatpush1.bf16.msra.mxu0 0
    %3661 = vmatprep.subr.bf16.mxu0 0
    %3662 = vmatpush1.bf16.msra.mxu0 0
    %3663 = vmatprep.subr.bf16.mxu0 0
    %3664 = vmatpush1.bf16.msra.mxu0 0
    %3665 = vmatprep.subr.bf16.mxu0 0
    %3666 = vmatpush1.bf16.msra.mxu0 0
    %3667 = vmatprep.subr.bf16.mxu0 0
    %3668 = vmatpush1.bf16.msra.mxu0 0
    %3669 = vmatprep.subr.bf16.mxu0 0
    %3670 = vmatpush1.bf16.msra.mxu0 0
    %3671 = vmatprep.subr.bf16.mxu0 0
    %3672 = vmatpush1.bf16.msra.mxu0 0
    %3673 = vmatprep.subr.bf16.mxu0 0
    %3674 = vmatpush1.bf16.msra.mxu0 0
    %3675 = vmatprep.subr.bf16.mxu0 0
    %3676 = vmatpush1.bf16.msra.mxu0 0
    %3677 = vmatprep.subr.bf16.mxu0 0
    %3678 = vmatpush1.bf16.msra.mxu0 0
    %3679 = vmatprep.subr.bf16.mxu0 0
    %3680 = vmatpush1.bf16.msra.mxu0 0
    %3681 = vmatprep.subr.bf16.mxu0 0
    %3682 = vmatpush1.bf16.msra.mxu0 0
    %3683 = vmatprep.subr.bf16.mxu0 0
    %3684 = vmatpush1.bf16.msra.mxu0 0
    %3685 = vmatprep.mubr.bf16.mxu0 0
    %3686 = vmatmul.mubr.bf16.gmra.mrb[0].mxu0 %v3651
    %v3687 = vpop.f32.mrb[0].mxu0
    %v3688 = vadd.f32 0.0, %v3687
    %v3689 = vpop.f32.mrb[0].mxu0
    %v3690 = vpop.f32.mrb[0].mxu0
    %v3691 = vadd.f32 0.0, %v3690
    %v3692 = vpop.f32.mrb[0].mxu0
    %3693 = vdwg.mxu0
    %3694 = vrot.lane.b32.xlu0 %v3210, 112
    %v3695 = vpop.permute.xlu0 %3694
    %3696 = vrot.lane.b32.xlu0 %v3210, 80
    %v3697 = vpop.permute.xlu0 %3696
    %v3699 = vsel %vm192, %v3695, 0
    %v3702 = vsel %vm192, %v3697, 0
    %3704 = vmatprep.subr.bf16.mxu0 0
    %3705 = vmatpush1.bf16.xpose.msra.mxu0 %v3702
    %3706 = vmatprep.subr.bf16.mxu0 0
    %3707 = vmatpush1.bf16.xpose.msra.mxu0 0
    %3708 = vmatprep.subr.bf16.mxu0 0
    %3709 = vmatpush1.bf16.xpose.msra.mxu0 0
    %3710 = vmatprep.subr.bf16.mxu0 0
    %3711 = vmatpush1.bf16.xpose.msra.mxu0 0
    %3712 = vmatprep.subr.bf16.mxu0 0
    %3713 = vmatpush1.bf16.xpose.msra.mxu0 0
    %3714 = vmatprep.subr.bf16.mxu0 0
    %3715 = vmatpush1.bf16.xpose.msra.mxu0 0
    %3716 = vmatprep.subr.bf16.mxu0 0
    %3717 = vmatpush1.bf16.xpose.msra.mxu0 0
    %3718 = vmatprep.subr.bf16.mxu0 0
    %3719 = vmatpush1.bf16.xpose.msra.mxu0 0
    %3720 = vmatprep.subr.bf16.mxu0 0
    %3721 = vmatpush1.bf16.xpose.msra.mxu0 0
    %3722 = vmatprep.subr.bf16.mxu0 0
    %3723 = vmatpush1.bf16.xpose.msra.mxu0 0
    %3724 = vmatprep.subr.bf16.mxu0 0
    %3725 = vmatpush1.bf16.xpose.msra.mxu0 0
    %3726 = vmatprep.subr.bf16.mxu0 0
    %3727 = vmatpush1.bf16.xpose.msra.mxu0 0
    %3728 = vmatprep.subr.bf16.mxu0 0
    %3729 = vmatpush1.bf16.xpose.msra.mxu0 0
    %3730 = vmatprep.subr.bf16.mxu0 0
    %3731 = vmatpush1.bf16.xpose.msra.mxu0 0
    %3732 = vmatprep.subr.bf16.mxu0 0
    %3733 = vmatpush1.bf16.xpose.msra.mxu0 0
    %3734 = vmatprep.subr.bf16.mxu0 0
    %3735 = vmatpush1.bf16.xpose.msra.mxu0 0
    %3736 = vmatprep.mubr.bf16.mxu0 0
    %3737 = vmatmul.mubr.bf16.gmra.mrb[0].mxu0 %v3699
    %v3738 = vpop.f32.mrb[0].mxu0
    %v3739 = vadd.f32 0.0, %v3738
    %v3740 = vpop.f32.mrb[0].mxu0
    %v3741 = vpop.f32.mrb[0].mxu0
    %v3742 = vadd.f32 0.0, %v3741
    %v3743 = vpop.f32.mrb[0].mxu0
    %3744 = vdwg.mxu0
    %3745 = vrot.lane.b32.xlu0 %v3211, 112
    %v3746 = vpop.permute.xlu0 %3745
    %3747 = vrot.lane.b32.xlu0 %v3211, 80
    %v3748 = vpop.permute.xlu0 %3747
    %v3750 = vsel %vm192, %v3746, 0
    %v3753 = vsel %vm192, %v3748, 0
    %3755 = vmatprep.subr.bf16.mxu0 0
    %3756 = vmatpush1.bf16.xpose.msra.mxu0 %v3753
    %3757 = vmatprep.subr.bf16.mxu0 0
    %3758 = vmatpush1.bf16.xpose.msra.mxu0 0
    %3759 = vmatprep.subr.bf16.mxu0 0
    %3760 = vmatpush1.bf16.xpose.msra.mxu0 0
    %3761 = vmatprep.subr.bf16.mxu0 0
    %3762 = vmatpush1.bf16.xpose.msra.mxu0 0
    %3763 = vmatprep.subr.bf16.mxu0 0
    %3764 = vmatpush1.bf16.xpose.msra.mxu0 0
    %3765 = vmatprep.subr.bf16.mxu0 0
    %3766 = vmatpush1.bf16.xpose.msra.mxu0 0
    %3767 = vmatprep.subr.bf16.mxu0 0
    %3768 = vmatpush1.bf16.xpose.msra.mxu0 0
    %3769 = vmatprep.subr.bf16.mxu0 0
    %3770 = vmatpush1.bf16.xpose.msra.mxu0 0
    %3771 = vmatprep.subr.bf16.mxu0 0
    %3772 = vmatpush1.bf16.xpose.msra.mxu0 0
    %3773 = vmatprep.subr.bf16.mxu0 0
    %3774 = vmatpush1.bf16.xpose.msra.mxu0 0
    %3775 = vmatprep.subr.bf16.mxu0 0
    %3776 = vmatpush1.bf16.xpose.msra.mxu0 0
    %3777 = vmatprep.subr.bf16.mxu0 0
    %3778 = vmatpush1.bf16.xpose.msra.mxu0 0
    %3779 = vmatprep.subr.bf16.mxu0 0
    %3780 = vmatpush1.bf16.xpose.msra.mxu0 0
    %3781 = vmatprep.subr.bf16.mxu0 0
    %3782 = vmatpush1.bf16.xpose.msra.mxu0 0
    %3783 = vmatprep.subr.bf16.mxu0 0
    %3784 = vmatpush1.bf16.xpose.msra.mxu0 0
    %3785 = vmatprep.subr.bf16.mxu0 0
    %3786 = vmatpush1.bf16.xpose.msra.mxu0 0
    %3787 = vmatprep.mubr.bf16.mxu0 0
    %3788 = vmatmul.mubr.bf16.gmra.mrb[0].mxu0 %v3750
    %v3789 = vpop.f32.mrb[0].mxu0
    %v3790 = vadd.f32 0.0, %v3789
    %v3791 = vpop.f32.mrb[0].mxu0
    %v3792 = vpop.f32.mrb[0].mxu0
    %v3793 = vadd.f32 0.0, %v3792
    %v3794 = vpop.f32.mrb[0].mxu0
    %3795 = vdwg.mxu0
    %v3796 = vsel %vm276, %v3739, -inf
    %3797 = vmax.xlane.f32.xlu0 %v3796
    %v3798 = vpop.xlane.xlu0 %3797
    %v3799 = vsel %vm276, %v3742, -inf
    %3800 = vmax.xlane.f32.xlu0 %v3799
    %v3801 = vpop.xlane.xlu0 %3800
    %v3802 = vsel %vm276, %v3790, -inf
    %3803 = vmax.xlane.f32.xlu0 %v3802
    %v3804 = vpop.xlane.xlu0 %3803
    %v3805 = vsel %vm276, %v3793, -inf
    %3806 = vmax.xlane.f32.xlu0 %v3805
    %v3807 = vpop.xlane.xlu0 %3806
    %v3808 = vsub.f32 %v3739, %v3798
    %v3809 = vsub.f32 %v3742, %v3801
    %v3810 = vsub.f32 %v3790, %v3804
    %v3811 = vsub.f32 %v3793, %v3807
    %v3812 = vmul.f32 %v3808, 1.442695
    %v3813 = vpow.pop %v3812
    %v3814 = vmul.f32 %v3809, 1.442695
    %v3815 = vpow.pop %v3814
    %v3816 = vmul.f32 %v3810, 1.442695
    %v3817 = vpow.pop %v3816
    %v3818 = vmul.f32 %v3811, 1.442695
    %v3819 = vpow.pop %v3818
    %v3820 = vsel %vm276, %v3813, 0.0
    %3821 = vadd.xlane.f32.xlu0 %v3820
    %v3822 = vpop.xlane.xlu0 %3821
    %v3823 = vsel %vm276, %v3815, 0.0
    %3824 = vadd.xlane.f32.xlu0 %v3823
    %v3825 = vpop.xlane.xlu0 %3824
    %v3826 = vsel %vm276, %v3817, 0.0
    %3827 = vadd.xlane.f32.xlu0 %v3826
    %v3828 = vpop.xlane.xlu0 %3827
    %v3829 = vsel %vm276, %v3819, 0.0
    %3830 = vadd.xlane.f32.xlu0 %v3829
    %v3831 = vpop.xlane.xlu0 %3830
    %v3832 = vrcp.pop %v3822
    %v3833 = vrcp.pop %v3825
    %v3834 = vrcp.pop %v3828
    %v3835 = vrcp.pop %v3831
    %v3836 = vmul.f32 %v3813, %v3832
    %v3837 = vmul.f32 %v3815, %v3833
    %v3838 = vmul.f32 %v3817, %v3834
    %v3839 = vmul.f32 %v3819, %v3835
    %v3840 = vpack.c.bf16 %v3837, %v3836
    %v3841 = vpack.c.bf16 %v3839, %v3838
    %3842 = vrot.lane.b32.xlu0 %v3210, 48
    %v3843 = vpop.permute.xlu0 %3842
    %v3846 = vsel %vm276, %v3840, 0
    %3848 = vmatprep.subr.bf16.mxu0 0
    %3849 = vmatpush1.bf16.msra.mxu0 %v3843
    %3850 = vmatprep.subr.bf16.mxu0 0
    %3851 = vmatpush1.bf16.msra.mxu0 0
    %3852 = vmatprep.subr.bf16.mxu0 0
    %3853 = vmatpush1.bf16.msra.mxu0 0
    %3854 = vmatprep.subr.bf16.mxu0 0
    %3855 = vmatpush1.bf16.msra.mxu0 0
    %3856 = vmatprep.subr.bf16.mxu0 0
    %3857 = vmatpush1.bf16.msra.mxu0 0
    %3858 = vmatprep.subr.bf16.mxu0 0
    %3859 = vmatpush1.bf16.msra.mxu0 0
    %3860 = vmatprep.subr.bf16.mxu0 0
    %3861 = vmatpush1.bf16.msra.mxu0 0
    %3862 = vmatprep.subr.bf16.mxu0 0
    %3863 = vmatpush1.bf16.msra.mxu0 0
    %3864 = vmatprep.subr.bf16.mxu0 0
    %3865 = vmatpush1.bf16.msra.mxu0 0
    %3866 = vmatprep.subr.bf16.mxu0 0
    %3867 = vmatpush1.bf16.msra.mxu0 0
    %3868 = vmatprep.subr.bf16.mxu0 0
    %3869 = vmatpush1.bf16.msra.mxu0 0
    %3870 = vmatprep.subr.bf16.mxu0 0
    %3871 = vmatpush1.bf16.msra.mxu0 0
    %3872 = vmatprep.subr.bf16.mxu0 0
    %3873 = vmatpush1.bf16.msra.mxu0 0
    %3874 = vmatprep.subr.bf16.mxu0 0
    %3875 = vmatpush1.bf16.msra.mxu0 0
    %3876 = vmatprep.subr.bf16.mxu0 0
    %3877 = vmatpush1.bf16.msra.mxu0 0
    %3878 = vmatprep.subr.bf16.mxu0 0
    %3879 = vmatpush1.bf16.msra.mxu0 0
    %3880 = vmatprep.mubr.bf16.mxu0 0
    %3881 = vmatmul.mubr.bf16.gmra.mrb[0].mxu0 %v3846
    %v3882 = vpop.f32.mrb[0].mxu0
    %v3883 = vadd.f32 0.0, %v3882
    %v3884 = vpop.f32.mrb[0].mxu0
    %v3885 = vpop.f32.mrb[0].mxu0
    %v3886 = vadd.f32 0.0, %v3885
    %v3887 = vpop.f32.mrb[0].mxu0
    %3888 = vdwg.mxu0
    %3889 = vrot.lane.b32.xlu0 %v3211, 48
    %v3890 = vpop.permute.xlu0 %3889
    %v3893 = vsel %vm276, %v3841, 0
    %3895 = vmatprep.subr.bf16.mxu0 0
    %3896 = vmatpush1.bf16.msra.mxu0 %v3890
    %3897 = vmatprep.subr.bf16.mxu0 0
    %3898 = vmatpush1.bf16.msra.mxu0 0
    %3899 = vmatprep.subr.bf16.mxu0 0
    %3900 = vmatpush1.bf16.msra.mxu0 0
    %3901 = vmatprep.subr.bf16.mxu0 0
    %3902 = vmatpush1.bf16.msra.mxu0 0
    %3903 = vmatprep.subr.bf16.mxu0 0
    %3904 = vmatpush1.bf16.msra.mxu0 0
    %3905 = vmatprep.subr.bf16.mxu0 0
    %3906 = vmatpush1.bf16.msra.mxu0 0
    %3907 = vmatprep.subr.bf16.mxu0 0
    %3908 = vmatpush1.bf16.msra.mxu0 0
    %3909 = vmatprep.subr.bf16.mxu0 0
    %3910 = vmatpush1.bf16.msra.mxu0 0
    %3911 = vmatprep.subr.bf16.mxu0 0
    %3912 = vmatpush1.bf16.msra.mxu0 0
    %3913 = vmatprep.subr.bf16.mxu0 0
    %3914 = vmatpush1.bf16.msra.mxu0 0
    %3915 = vmatprep.subr.bf16.mxu0 0
    %3916 = vmatpush1.bf16.msra.mxu0 0
    %3917 = vmatprep.subr.bf16.mxu0 0
    %3918 = vmatpush1.bf16.msra.mxu0 0
    %3919 = vmatprep.subr.bf16.mxu0 0
    %3920 = vmatpush1.bf16.msra.mxu0 0
    %3921 = vmatprep.subr.bf16.mxu0 0
    %3922 = vmatpush1.bf16.msra.mxu0 0
    %3923 = vmatprep.subr.bf16.mxu0 0
    %3924 = vmatpush1.bf16.msra.mxu0 0
    %3925 = vmatprep.subr.bf16.mxu0 0
    %3926 = vmatpush1.bf16.msra.mxu0 0
    %3927 = vmatprep.mubr.bf16.mxu0 0
    %3928 = vmatmul.mubr.bf16.gmra.mrb[0].mxu0 %v3893
    %v3929 = vpop.f32.mrb[0].mxu0
    %v3930 = vadd.f32 0.0, %v3929
    %v3931 = vpop.f32.mrb[0].mxu0
    %v3932 = vpop.f32.mrb[0].mxu0
    %v3933 = vadd.f32 0.0, %v3932
    %v3934 = vpop.f32.mrb[0].mxu0
    %3935 = vdwg.mxu0
    %3936 = vrot.lane.b32.xlu0 %v3210, 104
    %v3937 = vpop.permute.xlu0 %3936
    %3938 = vrot.lane.b32.xlu0 %v3210, 72
    %v3939 = vpop.permute.xlu0 %3938
    %v3941 = vsel %vm192, %v3937, 0
    %v3944 = vsel %vm192, %v3939, 0
    %3946 = vmatprep.subr.bf16.mxu0 0
    %3947 = vmatpush1.bf16.xpose.msra.mxu0 %v3944
    %3948 = vmatprep.subr.bf16.mxu0 0
    %3949 = vmatpush1.bf16.xpose.msra.mxu0 0
    %3950 = vmatprep.subr.bf16.mxu0 0
    %3951 = vmatpush1.bf16.xpose.msra.mxu0 0
    %3952 = vmatprep.subr.bf16.mxu0 0
    %3953 = vmatpush1.bf16.xpose.msra.mxu0 0
    %3954 = vmatprep.subr.bf16.mxu0 0
    %3955 = vmatpush1.bf16.xpose.msra.mxu0 0
    %3956 = vmatprep.subr.bf16.mxu0 0
    %3957 = vmatpush1.bf16.xpose.msra.mxu0 0
    %3958 = vmatprep.subr.bf16.mxu0 0
    %3959 = vmatpush1.bf16.xpose.msra.mxu0 0
    %3960 = vmatprep.subr.bf16.mxu0 0
    %3961 = vmatpush1.bf16.xpose.msra.mxu0 0
    %3962 = vmatprep.subr.bf16.mxu0 0
    %3963 = vmatpush1.bf16.xpose.msra.mxu0 0
    %3964 = vmatprep.subr.bf16.mxu0 0
    %3965 = vmatpush1.bf16.xpose.msra.mxu0 0
    %3966 = vmatprep.subr.bf16.mxu0 0
    %3967 = vmatpush1.bf16.xpose.msra.mxu0 0
    %3968 = vmatprep.subr.bf16.mxu0 0
    %3969 = vmatpush1.bf16.xpose.msra.mxu0 0
    %3970 = vmatprep.subr.bf16.mxu0 0
    %3971 = vmatpush1.bf16.xpose.msra.mxu0 0
    %3972 = vmatprep.subr.bf16.mxu0 0
    %3973 = vmatpush1.bf16.xpose.msra.mxu0 0
    %3974 = vmatprep.subr.bf16.mxu0 0
    %3975 = vmatpush1.bf16.xpose.msra.mxu0 0
    %3976 = vmatprep.subr.bf16.mxu0 0
    %3977 = vmatpush1.bf16.xpose.msra.mxu0 0
    %3978 = vmatprep.mubr.bf16.mxu0 0
    %3979 = vmatmul.mubr.bf16.gmra.mrb[0].mxu0 %v3941
    %v3980 = vpop.f32.mrb[0].mxu0
    %v3981 = vadd.f32 0.0, %v3980
    %v3982 = vpop.f32.mrb[0].mxu0
    %v3983 = vpop.f32.mrb[0].mxu0
    %v3984 = vadd.f32 0.0, %v3983
    %v3985 = vpop.f32.mrb[0].mxu0
    %3986 = vdwg.mxu0
    %3987 = vrot.lane.b32.xlu0 %v3211, 104
    %v3988 = vpop.permute.xlu0 %3987
    %3989 = vrot.lane.b32.xlu0 %v3211, 72
    %v3990 = vpop.permute.xlu0 %3989
    %v3992 = vsel %vm192, %v3988, 0
    %v3995 = vsel %vm192, %v3990, 0
    %3997 = vmatprep.subr.bf16.mxu0 0
    %3998 = vmatpush1.bf16.xpose.msra.mxu0 %v3995
    %3999 = vmatprep.subr.bf16.mxu0 0
    %4000 = vmatpush1.bf16.xpose.msra.mxu0 0
    %4001 = vmatprep.subr.bf16.mxu0 0
    %4002 = vmatpush1.bf16.xpose.msra.mxu0 0
    %4003 = vmatprep.subr.bf16.mxu0 0
    %4004 = vmatpush1.bf16.xpose.msra.mxu0 0
    %4005 = vmatprep.subr.bf16.mxu0 0
    %4006 = vmatpush1.bf16.xpose.msra.mxu0 0
    %4007 = vmatprep.subr.bf16.mxu0 0
    %4008 = vmatpush1.bf16.xpose.msra.mxu0 0
    %4009 = vmatprep.subr.bf16.mxu0 0
    %4010 = vmatpush1.bf16.xpose.msra.mxu0 0
    %4011 = vmatprep.subr.bf16.mxu0 0
    %4012 = vmatpush1.bf16.xpose.msra.mxu0 0
    %4013 = vmatprep.subr.bf16.mxu0 0
    %4014 = vmatpush1.bf16.xpose.msra.mxu0 0
    %4015 = vmatprep.subr.bf16.mxu0 0
    %4016 = vmatpush1.bf16.xpose.msra.mxu0 0
    %4017 = vmatprep.subr.bf16.mxu0 0
    %4018 = vmatpush1.bf16.xpose.msra.mxu0 0
    %4019 = vmatprep.subr.bf16.mxu0 0
    %4020 = vmatpush1.bf16.xpose.msra.mxu0 0
    %4021 = vmatprep.subr.bf16.mxu0 0
    %4022 = vmatpush1.bf16.xpose.msra.mxu0 0
    %4023 = vmatprep.subr.bf16.mxu0 0
    %4024 = vmatpush1.bf16.xpose.msra.mxu0 0
    %4025 = vmatprep.subr.bf16.mxu0 0
    %4026 = vmatpush1.bf16.xpose.msra.mxu0 0
    %4027 = vmatprep.subr.bf16.mxu0 0
    %4028 = vmatpush1.bf16.xpose.msra.mxu0 0
    %4029 = vmatprep.mubr.bf16.mxu0 0
    %4030 = vmatmul.mubr.bf16.gmra.mrb[0].mxu0 %v3992
    %v4031 = vpop.f32.mrb[0].mxu0
    %v4032 = vadd.f32 0.0, %v4031
    %v4033 = vpop.f32.mrb[0].mxu0
    %v4034 = vpop.f32.mrb[0].mxu0
    %v4035 = vadd.f32 0.0, %v4034
    %v4036 = vpop.f32.mrb[0].mxu0
    %4037 = vdwg.mxu0
    %v4038 = vsel %vm276, %v3981, -inf
    %4039 = vmax.xlane.f32.xlu0 %v4038
    %v4040 = vpop.xlane.xlu0 %4039
    %v4041 = vsel %vm276, %v3984, -inf
    %4042 = vmax.xlane.f32.xlu0 %v4041
    %v4043 = vpop.xlane.xlu0 %4042
    %v4044 = vsel %vm276, %v4032, -inf
    %4045 = vmax.xlane.f32.xlu0 %v4044
    %v4046 = vpop.xlane.xlu0 %4045
    %v4047 = vsel %vm276, %v4035, -inf
    %4048 = vmax.xlane.f32.xlu0 %v4047
    %v4049 = vpop.xlane.xlu0 %4048
    %v4050 = vsub.f32 %v3981, %v4040
    %v4051 = vsub.f32 %v3984, %v4043
    %v4052 = vsub.f32 %v4032, %v4046
    %v4053 = vsub.f32 %v4035, %v4049
    %v4054 = vmul.f32 %v4050, 1.442695
    %v4055 = vpow.pop %v4054
    %v4056 = vmul.f32 %v4051, 1.442695
    %v4057 = vpow.pop %v4056
    %v4058 = vmul.f32 %v4052, 1.442695
    %v4059 = vpow.pop %v4058
    %v4060 = vmul.f32 %v4053, 1.442695
    %v4061 = vpow.pop %v4060
    %v4062 = vsel %vm276, %v4055, 0.0
    %4063 = vadd.xlane.f32.xlu0 %v4062
    %v4064 = vpop.xlane.xlu0 %4063
    %v4065 = vsel %vm276, %v4057, 0.0
    %4066 = vadd.xlane.f32.xlu0 %v4065
    %v4067 = vpop.xlane.xlu0 %4066
    %v4068 = vsel %vm276, %v4059, 0.0
    %4069 = vadd.xlane.f32.xlu0 %v4068
    %v4070 = vpop.xlane.xlu0 %4069
    %v4071 = vsel %vm276, %v4061, 0.0
    %4072 = vadd.xlane.f32.xlu0 %v4071
    %v4073 = vpop.xlane.xlu0 %4072
    %v4074 = vrcp.pop %v4064
    %v4075 = vrcp.pop %v4067
    %v4076 = vrcp.pop %v4070
    %v4077 = vrcp.pop %v4073
    %v4078 = vmul.f32 %v4055, %v4074
    %v4079 = vmul.f32 %v4057, %v4075
    %v4080 = vmul.f32 %v4059, %v4076
    %v4081 = vmul.f32 %v4061, %v4077
    %v4082 = vpack.c.bf16 %v4079, %v4078
    %v4083 = vpack.c.bf16 %v4081, %v4080
    %4084 = vrot.lane.b32.xlu0 %v3210, 40
    %v4085 = vpop.permute.xlu0 %4084
    %v4088 = vsel %vm276, %v4082, 0
    %4090 = vmatprep.subr.bf16.mxu0 0
    %4091 = vmatpush1.bf16.msra.mxu0 %v4085
    %4092 = vmatprep.subr.bf16.mxu0 0
    %4093 = vmatpush1.bf16.msra.mxu0 0
    %4094 = vmatprep.subr.bf16.mxu0 0
    %4095 = vmatpush1.bf16.msra.mxu0 0
    %4096 = vmatprep.subr.bf16.mxu0 0
    %4097 = vmatpush1.bf16.msra.mxu0 0
    %4098 = vmatprep.subr.bf16.mxu0 0
    %4099 = vmatpush1.bf16.msra.mxu0 0
    %4100 = vmatprep.subr.bf16.mxu0 0
    %4101 = vmatpush1.bf16.msra.mxu0 0
    %4102 = vmatprep.subr.bf16.mxu0 0
    %4103 = vmatpush1.bf16.msra.mxu0 0
    %4104 = vmatprep.subr.bf16.mxu0 0
    %4105 = vmatpush1.bf16.msra.mxu0 0
    %4106 = vmatprep.subr.bf16.mxu0 0
    %4107 = vmatpush1.bf16.msra.mxu0 0
    %4108 = vmatprep.subr.bf16.mxu0 0
    %4109 = vmatpush1.bf16.msra.mxu0 0
    %4110 = vmatprep.subr.bf16.mxu0 0
    %4111 = vmatpush1.bf16.msra.mxu0 0
    %4112 = vmatprep.subr.bf16.mxu0 0
    %4113 = vmatpush1.bf16.msra.mxu0 0
    %4114 = vmatprep.subr.bf16.mxu0 0
    %4115 = vmatpush1.bf16.msra.mxu0 0
    %4116 = vmatprep.subr.bf16.mxu0 0
    %4117 = vmatpush1.bf16.msra.mxu0 0
    %4118 = vmatprep.subr.bf16.mxu0 0
    %4119 = vmatpush1.bf16.msra.mxu0 0
    %4120 = vmatprep.subr.bf16.mxu0 0
    %4121 = vmatpush1.bf16.msra.mxu0 0
    %4122 = vmatprep.mubr.bf16.mxu0 0
    %4123 = vmatmul.mubr.bf16.gmra.mrb[0].mxu0 %v4088
    %v4124 = vpop.f32.mrb[0].mxu0
    %v4125 = vadd.f32 0.0, %v4124
    %v4126 = vpop.f32.mrb[0].mxu0
    %v4127 = vpop.f32.mrb[0].mxu0
    %v4128 = vadd.f32 0.0, %v4127
    %v4129 = vpop.f32.mrb[0].mxu0
    %4130 = vdwg.mxu0
    %4131 = vrot.lane.b32.xlu0 %v3211, 40
    %v4132 = vpop.permute.xlu0 %4131
    %v4135 = vsel %vm276, %v4083, 0
    %4137 = vmatprep.subr.bf16.mxu0 0
    %4138 = vmatpush1.bf16.msra.mxu0 %v4132
    %4139 = vmatprep.subr.bf16.mxu0 0
    %4140 = vmatpush1.bf16.msra.mxu0 0
    %4141 = vmatprep.subr.bf16.mxu0 0
    %4142 = vmatpush1.bf16.msra.mxu0 0
    %4143 = vmatprep.subr.bf16.mxu0 0
    %4144 = vmatpush1.bf16.msra.mxu0 0
    %4145 = vmatprep.subr.bf16.mxu0 0
    %4146 = vmatpush1.bf16.msra.mxu0 0
    %4147 = vmatprep.subr.bf16.mxu0 0
    %4148 = vmatpush1.bf16.msra.mxu0 0
    %4149 = vmatprep.subr.bf16.mxu0 0
    %4150 = vmatpush1.bf16.msra.mxu0 0
    %4151 = vmatprep.subr.bf16.mxu0 0
    %4152 = vmatpush1.bf16.msra.mxu0 0
    %4153 = vmatprep.subr.bf16.mxu0 0
    %4154 = vmatpush1.bf16.msra.mxu0 0
    %4155 = vmatprep.subr.bf16.mxu0 0
    %4156 = vmatpush1.bf16.msra.mxu0 0
    %4157 = vmatprep.subr.bf16.mxu0 0
    %4158 = vmatpush1.bf16.msra.mxu0 0
    %4159 = vmatprep.subr.bf16.mxu0 0
    %4160 = vmatpush1.bf16.msra.mxu0 0
    %4161 = vmatprep.subr.bf16.mxu0 0
    %4162 = vmatpush1.bf16.msra.mxu0 0
    %4163 = vmatprep.subr.bf16.mxu0 0
    %4164 = vmatpush1.bf16.msra.mxu0 0
    %4165 = vmatprep.subr.bf16.mxu0 0
    %4166 = vmatpush1.bf16.msra.mxu0 0
    %4167 = vmatprep.subr.bf16.mxu0 0
    %4168 = vmatpush1.bf16.msra.mxu0 0
    %4169 = vmatprep.mubr.bf16.mxu0 0
    %4170 = vmatmul.mubr.bf16.gmra.mrb[0].mxu0 %v4135
    %v4171 = vpop.f32.mrb[0].mxu0
    %v4172 = vadd.f32 0.0, %v4171
    %v4173 = vpop.f32.mrb[0].mxu0
    %v4174 = vpop.f32.mrb[0].mxu0
    %v4175 = vadd.f32 0.0, %v4174
    %v4176 = vpop.f32.mrb[0].mxu0
    %4177 = vdwg.mxu0
    %4182 = vrot.lane.b32.xlu0 %v3641, 8
    %v4183 = vpop.permute.xlu0 %4182
    %4184 = vrot.lane.b32.xlu0 %v3644, 8
    %v4185 = vpop.permute.xlu0 %4184
    %4186 = vrot.lane.b32.xlu0 %v3688, 8
    %v4187 = vpop.permute.xlu0 %4186
    %4188 = vrot.lane.b32.xlu0 %v3691, 8
    %v4189 = vpop.permute.xlu0 %4188
    %4198 = vrot.lane.b32.xlu0 %v3883, 16
    %v4199 = vpop.permute.xlu0 %4198
    %4200 = vrot.lane.b32.xlu0 %v3886, 16
    %v4201 = vpop.permute.xlu0 %4200
    %4202 = vrot.lane.b32.xlu0 %v3930, 16
    %v4203 = vpop.permute.xlu0 %4202
    %4204 = vrot.lane.b32.xlu0 %v3933, 16
    %v4205 = vpop.permute.xlu0 %4204
    %4214 = vrot.lane.b32.xlu0 %v4125, 24
    %v4215 = vpop.permute.xlu0 %4214
    %4216 = vrot.lane.b32.xlu0 %v4128, 24
    %v4217 = vpop.permute.xlu0 %4216
    %4218 = vrot.lane.b32.xlu0 %v4172, 24
    %v4219 = vpop.permute.xlu0 %4218
    %4220 = vrot.lane.b32.xlu0 %v4175, 24
    %v4221 = vpop.permute.xlu0 %4220
    %v4226 = vsel %vm192, %v3399, %v4183
    %v4227 = vsel %vm192, %v3402, %v4185
    %v4228 = vsel %vm192, %v3446, %v4187
    %v4229 = vsel %vm192, %v3449, %v4189
    %v4230 = vsel %vm276, %v4226, %v4199
    %v4231 = vsel %vm276, %v4227, %v4201
    %v4232 = vsel %vm276, %v4228, %v4203
    %v4233 = vsel %vm276, %v4229, %v4205
    %v4234 = vsel %vm1426, %v4230, %v4215
    %v4235 = vsel %vm1426, %v4231, %v4217
    %v4236 = vsel %vm1426, %v4232, %v4219
    %v4237 = vsel %vm1426, %v4233, %v4221
    %v4238 = vpack.c.bf16 %v4235, %v4234
    %v4239 = vpack.c.bf16 %v4237, %v4236
    %s4240 = scalar_lea.vmem %s9, 16
    %v4241 = vld [vmem:[%s4240] sm:$0xf]
    %v4242 = vld [vmem:[%s4240 + $0x4] sm:$0xf]
    %v4243 = vld [vmem:[%s4240 + $0x8] sm:$0xf]
    %v4244 = vld [vmem:[%s4240 + $0xc] sm:$0xf]
    %s4245 = scalar_lea.vmem [#allocation8], 1
    %v4246 = vld [vmem:[%s4245] sm:$0x1]
    %v4248 = vlaneseq
    %v4249 = vshrl.u32 %v4248, 7
    %v4250 = vsub.s32 0, %v4249
    %v4251 = vrot.slane %v4246, %v4250
    %v4257 = vunpack.c.l.b16 %v4241
    %v4258 = vunpack.c.l.b16 %v4242
    %v4259 = vunpack.c.l.b16 %v4243
    %v4260 = vunpack.c.l.b16 %v4244
    %v4261 = vpack.c.b16 %v4258, %v4257
    %v4262 = vpack.c.b16 %v4260, %v4259
    %v4266 = vsel %vm346, %v4238, 0
    %v4269 = vsel %vm346, %v4239, 0
    %4271 = vmatprep.subr.bf16.mxu0 0
    %4272 = vmatpush1.bf16.msra.mxu0 %v4261
    %4273 = vmatprep.subr.bf16.mxu0 0
    %4274 = vmatpush1.bf16.msra.mxu0 %v4262
    %4275 = vmatprep.subr.bf16.mxu0 0
    %4276 = vmatpush1.bf16.msra.mxu0 0
    %4277 = vmatprep.subr.bf16.mxu0 0
    %4278 = vmatpush1.bf16.msra.mxu0 0
    %4279 = vmatprep.subr.bf16.mxu0 0
    %4280 = vmatpush1.bf16.msra.mxu0 0
    %4281 = vmatprep.subr.bf16.mxu0 0
    %4282 = vmatpush1.bf16.msra.mxu0 0
    %4283 = vmatprep.subr.bf16.mxu0 0
    %4284 = vmatpush1.bf16.msra.mxu0 0
    %4285 = vmatprep.subr.bf16.mxu0 0
    %4286 = vmatpush1.bf16.msra.mxu0 0
    %4287 = vmatprep.subr.bf16.mxu0 0
    %4288 = vmatpush1.bf16.msra.mxu0 0
    %4289 = vmatprep.subr.bf16.mxu0 0
    %4290 = vmatpush1.bf16.msra.mxu0 0
    %4291 = vmatprep.subr.bf16.mxu0 0
    %4292 = vmatpush1.bf16.msra.mxu0 0
    %4293 = vmatprep.subr.bf16.mxu0 0
    %4294 = vmatpush1.bf16.msra.mxu0 0
    %4295 = vmatprep.subr.bf16.mxu0 0
    %4296 = vmatpush1.bf16.msra.mxu0 0
    %4297 = vmatprep.subr.bf16.mxu0 0
    %4298 = vmatpush1.bf16.msra.mxu0 0
    %4299 = vmatprep.subr.bf16.mxu0 0
    %4300 = vmatpush1.bf16.msra.mxu0 0
    %4301 = vmatprep.subr.bf16.mxu0 0
    %4302 = vmatpush1.bf16.msra.mxu0 0
    %4303 = vmatprep.mubr.bf16.mxu0 0
    %4304 = vmatmul.mubr.bf16.gmra.mrb[0].mxu0 %v4266
    %v4305 = vpop.f32.mrb[0].mxu0
    %v4306 = vadd.f32 %v4251, %v4305
    %v4307 = vpop.f32.mrb[0].mxu0
    %v4308 = vpop.f32.mrb[0].mxu0
    %v4309 = vadd.f32 %v4251, %v4308
    %v4310 = vpop.f32.mrb[0].mxu0
    %4311 = vmatprep.mubr.bf16.mxu0 0
    %4312 = vmatmul.mubr.bf16.gmra.mrb[0].mxu0 %v4269
    %v4313 = vpop.f32.mrb[0].mxu0
    %v4314 = vadd.f32 %v4251, %v4313
    %v4315 = vpop.f32.mrb[0].mxu0
    %v4316 = vpop.f32.mrb[0].mxu0
    %v4317 = vadd.f32 %v4251, %v4316
    %v4318 = vpop.f32.mrb[0].mxu0
    %4319 = vdwg.mxu0
    %s4320 = scalar_lea.vmem %s15, 4
    %v4321 = vld [vmem:[%s4320] sm:$0xf]
    %v4322 = vadd.f32 %v1834, %v4306
    %v4323 = vadd.f32 %v1835, %v4309
    %v4324 = vadd.f32 %v1836, %v4314
    %v4325 = vadd.f32 %v1837, %v4317
    %v4326 = vsel %vm346, %v4322, 0.0
    %4327 = vadd.xlane.f32.xlu0 %v4326
    %v4328 = vpop.xlane.xlu0 %4327
    %v4329 = vsel %vm346, %v4323, 0.0
    %4330 = vadd.xlane.f32.xlu0 %v4329
    %v4331 = vpop.xlane.xlu0 %4330
    %v4332 = vsel %vm346, %v4324, 0.0
    %4333 = vadd.xlane.f32.xlu0 %v4332
    %v4334 = vpop.xlane.xlu0 %4333
    %v4335 = vsel %vm346, %v4325, 0.0
    %4336 = vadd.xlane.f32.xlu0 %v4335
    %v4337 = vpop.xlane.xlu0 %4336
    %v4338 = vmul.f32 %v4328, %v1528
    %v4339 = vmul.f32 %v4331, %v1528
    %v4340 = vmul.f32 %v4334, %v1528
    %v4341 = vmul.f32 %v4337, %v1528
    %v4342 = vsub.f32 %v4322, %v4338
    %v4343 = vsub.f32 %v4323, %v4339
    %v4344 = vsub.f32 %v4324, %v4340
    %v4345 = vsub.f32 %v4325, %v4341
    %v4346 = vmul.f32 %v4342, %v4342
    %v4347 = vmul.f32 %v4343, %v4343
    %v4348 = vmul.f32 %v4344, %v4344
    %v4349 = vmul.f32 %v4345, %v4345
    %v4350 = vsel %vm346, %v4346, 0.0
    %4351 = vadd.xlane.f32.xlu0 %v4350
    %v4352 = vpop.xlane.xlu0 %4351
    %v4353 = vsel %vm346, %v4347, 0.0
    %4354 = vadd.xlane.f32.xlu0 %v4353
    %v4355 = vpop.xlane.xlu0 %4354
    %v4356 = vsel %vm346, %v4348, 0.0
    %4357 = vadd.xlane.f32.xlu0 %v4356
    %v4358 = vpop.xlane.xlu0 %4357
    %v4359 = vsel %vm346, %v4349, 0.0
    %4360 = vadd.xlane.f32.xlu0 %v4359
    %v4361 = vpop.xlane.xlu0 %4360
    %v4362 = vmul.f32 %v4352, %v1528
    %v4363 = vmul.f32 %v4355, %v1528
    %v4364 = vmul.f32 %v4358, %v1528
    %v4365 = vmul.f32 %v4361, %v1528
    %v4366 = vadd.f32 %v4362, 1e-05
    %v4367 = vadd.f32 %v4363, 1e-05
    %v4368 = vadd.f32 %v4364, 1e-05
    %v4369 = vadd.f32 %v4365, 1e-05
    %v4370 = vrsqrt.pop %v4366
    %v4371 = vrsqrt.pop %v4367
    %v4372 = vrsqrt.pop %v4368
    %v4373 = vrsqrt.pop %v4369
    %v4374 = vmul.f32 %v4342, %v4370
    %v4375 = vmul.f32 %v4343, %v4371
    %v4376 = vmul.f32 %v4344, %v4372
    %v4377 = vmul.f32 %v4345, %v4373
    %v4378 = vlaneseq
    %v4379 = vshrl.u32 %v4378, 7
    %v4380 = vsub.s32 0, %v4379
    %v4381 = vrot.slane %v4321, %v4380
    %v4382 = vmul.f32 %v4374, %v4381
    %v4383 = vmul.f32 %v4375, %v4381
    %v4384 = vmul.f32 %v4376, %v4381
    %v4385 = vmul.f32 %v4377, %v4381
    %v4386 = vlaneseq
    %v4387 = vshrl.u32 %v4386, 7
    %v4388 = vsub.s32 1, %v4387
    %v4389 = vrot.slane %v4321, %v4388
    %v4390 = vadd.f32 %v4382, %v4389
    %v4391 = vadd.f32 %v4383, %v4389
    %v4392 = vadd.f32 %v4384, %v4389
    %v4393 = vadd.f32 %v4385, %v4389
    %v4394 = vpack.c.bf16 %v4391, %v4390
    %v4395 = vpack.c.bf16 %v4393, %v4392
    %s4396 = scalar_lea.vmem %s11, 16
    %v4397 = vld [vmem:[%s4396] sm:$0xf]
    %v4398 = vld [vmem:[%s4396 + $0x4] sm:$0xf]
    %v4399 = vld [vmem:[%s4396 + $0x8] sm:$0xf]
    %v4400 = vld [vmem:[%s4396 + $0xc] sm:$0xf]
    %s4401 = scalar_lea.vmem [#allocation10], 1
    %v4402 = vld [vmem:[%s4401] sm:$0x1]
    %v4404 = vlaneseq
    %v4405 = vshrl.u32 %v4404, 7
    %v4406 = vsub.s32 0, %v4405
    %v4407 = vrot.slane %v4402, %v4406
    %v4413 = vunpack.c.l.b16 %v4397
    %v4414 = vunpack.c.l.b16 %v4398
    %v4415 = vunpack.c.l.b16 %v4399
    %v4416 = vunpack.c.l.b16 %v4400
    %v4417 = vpack.c.b16 %v4414, %v4413
    %v4418 = vpack.c.b16 %v4416, %v4415
    %v4422 = vsel %vm346, %v4394, 0
    %v4425 = vsel %vm346, %v4395, 0
    %4427 = vmatprep.subr.bf16.mxu0 0
    %4428 = vmatpush1.bf16.msra.mxu0 %v4417
    %4429 = vmatprep.subr.bf16.mxu0 0
    %4430 = vmatpush1.bf16.msra.mxu0 %v4418
    %4431 = vmatprep.subr.bf16.mxu0 0
    %4432 = vmatpush1.bf16.msra.mxu0 0
    %4433 = vmatprep.subr.bf16.mxu0 0
    %4434 = vmatpush1.bf16.msra.mxu0 0
    %4435 = vmatprep.subr.bf16.mxu0 0
    %4436 = vmatpush1.bf16.msra.mxu0 0
    %4437 = vmatprep.subr.bf16.mxu0 0
    %4438 = vmatpush1.bf16.msra.mxu0 0
    %4439 = vmatprep.subr.bf16.mxu0 0
    %4440 = vmatpush1.bf16.msra.mxu0 0
    %4441 = vmatprep.subr.bf16.mxu0 0
    %4442 = vmatpush1.bf16.msra.mxu0 0
    %4443 = vmatprep.subr.bf16.mxu0 0
    %4444 = vmatpush1.bf16.msra.mxu0 0
    %4445 = vmatprep.subr.bf16.mxu0 0
    %4446 = vmatpush1.bf16.msra.mxu0 0
    %4447 = vmatprep.subr.bf16.mxu0 0
    %4448 = vmatpush1.bf16.msra.mxu0 0
    %4449 = vmatprep.subr.bf16.mxu0 0
    %4450 = vmatpush1.bf16.msra.mxu0 0
    %4451 = vmatprep.subr.bf16.mxu0 0
    %4452 = vmatpush1.bf16.msra.mxu0 0
    %4453 = vmatprep.subr.bf16.mxu0 0
    %4454 = vmatpush1.bf16.msra.mxu0 0
    %4455 = vmatprep.subr.bf16.mxu0 0
    %4456 = vmatpush1.bf16.msra.mxu0 0
    %4457 = vmatprep.subr.bf16.mxu0 0
    %4458 = vmatpush1.bf16.msra.mxu0 0
    %4459 = vmatprep.mubr.bf16.mxu0 0
    %4460 = vmatmul.mubr.bf16.gmra.mrb[0].mxu0 %v4422
    %v4461 = vpop.f32.mrb[0].mxu0
    %v4462 = vadd.f32 %v4407, %v4461
    %v4463 = vpop.f32.mrb[0].mxu0
    %v4464 = vpop.f32.mrb[0].mxu0
    %v4465 = vadd.f32 %v4407, %v4464
    %v4466 = vpop.f32.mrb[0].mxu0
    %4467 = vmatprep.mubr.bf16.mxu0 0
    %4468 = vmatmul.mubr.bf16.gmra.mrb[0].mxu0 %v4425
    %v4469 = vpop.f32.mrb[0].mxu0
    %v4470 = vadd.f32 %v4407, %v4469
    %v4471 = vpop.f32.mrb[0].mxu0
    %v4472 = vpop.f32.mrb[0].mxu0
    %v4473 = vadd.f32 %v4407, %v4472
    %v4474 = vpop.f32.mrb[0].mxu0
    %4475 = vdwg.mxu0
    %v4476 = vmax.f32 %v4462, 0.0
    %v4477 = vmax.f32 %v4465, 0.0
    %v4478 = vmax.f32 %v4470, 0.0
    %v4479 = vmax.f32 %v4473, 0.0
    %v4480 = vpack.c.bf16 %v4477, %v4476
    %v4481 = vpack.c.bf16 %v4479, %v4478
    %s4482 = scalar_lea.vmem %s13, 32
    %v4483 = vld [vmem:[%s4482] sm:$0xf]
    %v4484 = vld [vmem:[%s4482 + $0x4] sm:$0xf]
    %v4485 = vld [vmem:[%s4482 + $0x8] sm:$0xf]
    %v4486 = vld [vmem:[%s4482 + $0xc] sm:$0xf]
    %v4487 = vld [vmem:[%s4482 + $0x10] sm:$0xf]
    %v4488 = vld [vmem:[%s4482 + $0x14] sm:$0xf]
    %v4489 = vld [vmem:[%s4482 + $0x18] sm:$0xf]
    %v4490 = vld [vmem:[%s4482 + $0x1c] sm:$0xf]
    %s4491 = scalar_lea.vmem [#allocation11], 1
    %v4492 = vld [vmem:[%s4491] sm:$0x1]
    %v4494 = vlaneseq
    %v4495 = vshrl.u32 %v4494, 7
    %v4496 = vsub.s32 0, %v4495
    %v4497 = vrot.slane %v4492, %v4496
    %v4507 = vunpack.c.l.b16 %v4483
    %v4508 = vunpack.c.l.b16 %v4484
    %v4509 = vunpack.c.l.b16 %v4485
    %v4510 = vunpack.c.l.b16 %v4486
    %v4511 = vunpack.c.l.b16 %v4487
    %v4512 = vunpack.c.l.b16 %v4488
    %v4513 = vunpack.c.l.b16 %v4489
    %v4514 = vunpack.c.l.b16 %v4490
    %v4515 = vpack.c.b16 %v4508, %v4507
    %v4516 = vpack.c.b16 %v4510, %v4509
    %v4517 = vpack.c.b16 %v4512, %v4511
    %v4518 = vpack.c.b16 %v4514, %v4513
    %v4524 = vsel %vm1710, %v4480, 0
    %v4527 = vsel %vm1710, %v4481, 0
    %4529 = vmatprep.subr.bf16.mxu0 0
    %4530 = vmatpush1.bf16.msra.mxu0 %v4515
    %4531 = vmatprep.subr.bf16.mxu0 0
    %4532 = vmatpush1.bf16.msra.mxu0 %v4516
    %4533 = vmatprep.subr.bf16.mxu0 0
    %4534 = vmatpush1.bf16.msra.mxu0 %v4517
    %4535 = vmatprep.subr.bf16.mxu0 0
    %4536 = vmatpush1.bf16.msra.mxu0 %v4518
    %4537 = vmatprep.subr.bf16.mxu0 0
    %4538 = vmatpush1.bf16.msra.mxu0 0
    %4539 = vmatprep.subr.bf16.mxu0 0
    %4540 = vmatpush1.bf16.msra.mxu0 0
    %4541 = vmatprep.subr.bf16.mxu0 0
    %4542 = vmatpush1.bf16.msra.mxu0 0
    %4543 = vmatprep.subr.bf16.mxu0 0
    %4544 = vmatpush1.bf16.msra.mxu0 0
    %4545 = vmatprep.subr.bf16.mxu0 0
    %4546 = vmatpush1.bf16.msra.mxu0 0
    %4547 = vmatprep.subr.bf16.mxu0 0
    %4548 = vmatpush1.bf16.msra.mxu0 0
    %4549 = vmatprep.subr.bf16.mxu0 0
    %4550 = vmatpush1.bf16.msra.mxu0 0
    %4551 = vmatprep.subr.bf16.mxu0 0
    %4552 = vmatpush1.bf16.msra.mxu0 0
    %4553 = vmatprep.subr.bf16.mxu0 0
    %4554 = vmatpush1.bf16.msra.mxu0 0
    %4555 = vmatprep.subr.bf16.mxu0 0
    %4556 = vmatpush1.bf16.msra.mxu0 0
    %4557 = vmatprep.subr.bf16.mxu0 0
    %4558 = vmatpush1.bf16.msra.mxu0 0
    %4559 = vmatprep.subr.bf16.mxu0 0
    %4560 = vmatpush1.bf16.msra.mxu0 0
    %4561 = vmatprep.mubr.bf16.mxu0 0
    %4562 = vmatmul.mubr.bf16.gmra.mrb[0].mxu0 %v4524
    %v4563 = vpop.f32.mrb[0].mxu0
    %v4564 = vadd.f32 %v4497, %v4563
    %v4565 = vpop.f32.mrb[0].mxu0
    %v4566 = vpop.f32.mrb[0].mxu0
    %v4567 = vadd.f32 %v4497, %v4566
    %v4568 = vpop.f32.mrb[0].mxu0
    %4569 = vmatprep.mubr.bf16.mxu0 0
    %4570 = vmatmul.mubr.bf16.gmra.mrb[0].mxu0 %v4527
    %v4571 = vpop.f32.mrb[0].mxu0
    %v4572 = vadd.f32 %v4497, %v4571
    %v4573 = vpop.f32.mrb[0].mxu0
    %v4574 = vpop.f32.mrb[0].mxu0
    %v4575 = vadd.f32 %v4497, %v4574
    %v4576 = vpop.f32.mrb[0].mxu0
    %4577 = vdwg.mxu0
    %v4578 = vadd.f32 %v4390, %v4564
    %v4579 = vadd.f32 %v4391, %v4567
    %v4580 = vadd.f32 %v4392, %v4572
    %v4581 = vadd.f32 %v4393, %v4575
    %v4582 = vsel %vm346, %v4578, 0.0
    %4583 = vadd.xlane.f32.xlu0 %v4582
    %v4584 = vpop.xlane.xlu0 %4583
    %v4585 = vsel %vm346, %v4579, 0.0
    %4586 = vadd.xlane.f32.xlu0 %v4585
    %v4587 = vpop.xlane.xlu0 %4586
    %v4588 = vsel %vm346, %v4580, 0.0
    %4589 = vadd.xlane.f32.xlu0 %v4588
    %v4590 = vpop.xlane.xlu0 %4589
    %v4591 = vsel %vm346, %v4581, 0.0
    %4592 = vadd.xlane.f32.xlu0 %v4591
    %v4593 = vpop.xlane.xlu0 %4592
    %v4594 = vmul.f32 %v4584, %v1528
    %v4595 = vmul.f32 %v4587, %v1528
    %v4596 = vmul.f32 %v4590, %v1528
    %v4597 = vmul.f32 %v4593, %v1528
    %v4598 = vsub.f32 %v4578, %v4594
    %v4599 = vsub.f32 %v4579, %v4595
    %v4600 = vsub.f32 %v4580, %v4596
    %v4601 = vsub.f32 %v4581, %v4597
    %v4602 = vmul.f32 %v4598, %v4598
    %v4603 = vmul.f32 %v4599, %v4599
    %v4604 = vmul.f32 %v4600, %v4600
    %v4605 = vmul.f32 %v4601, %v4601
    %v4606 = vsel %vm346, %v4602, 0.0
    %4607 = vadd.xlane.f32.xlu0 %v4606
    %v4608 = vpop.xlane.xlu0 %4607
    %v4609 = vsel %vm346, %v4603, 0.0
    %4610 = vadd.xlane.f32.xlu0 %v4609
    %v4611 = vpop.xlane.xlu0 %4610
    %v4612 = vsel %vm346, %v4604, 0.0
    %4613 = vadd.xlane.f32.xlu0 %v4612
    %v4614 = vpop.xlane.xlu0 %4613
    %v4615 = vsel %vm346, %v4605, 0.0
    %4616 = vadd.xlane.f32.xlu0 %v4615
    %v4617 = vpop.xlane.xlu0 %4616
    %v4618 = vmul.f32 %v4608, %v1528
    %v4619 = vmul.f32 %v4611, %v1528
    %v4620 = vmul.f32 %v4614, %v1528
    %v4621 = vmul.f32 %v4617, %v1528
    %v4622 = vadd.f32 %v4618, 1e-05
    %v4623 = vadd.f32 %v4619, 1e-05
    %v4624 = vadd.f32 %v4620, 1e-05
    %v4625 = vadd.f32 %v4621, 1e-05
    %v4626 = vrsqrt.pop %v4622
    %v4627 = vrsqrt.pop %v4623
    %v4628 = vrsqrt.pop %v4624
    %v4629 = vrsqrt.pop %v4625
    %v4630 = vmul.f32 %v4598, %v4626
    %v4631 = vmul.f32 %v4599, %v4627
    %v4632 = vmul.f32 %v4600, %v4628
    %v4633 = vmul.f32 %v4601, %v4629
    %v4634 = vlaneseq
    %v4635 = vshrl.u32 %v4634, 7
    %v4636 = vsub.s32 2, %v4635
    %v4637 = vrot.slane %v4321, %v4636
    %v4638 = vmul.f32 %v4630, %v4637
    %v4639 = vmul.f32 %v4631, %v4637
    %v4640 = vmul.f32 %v4632, %v4637
    %v4641 = vmul.f32 %v4633, %v4637
    %v4642 = vlaneseq
    %v4643 = vshrl.u32 %v4642, 7
    %v4644 = vsub.s32 3, %v4643
    %v4645 = vrot.slane %v4321, %v4644
    %v4646 = vadd.f32 %v4638, %v4645
    %v4647 = vadd.f32 %v4639, %v4645
    %v4648 = vadd.f32 %v4640, %v4645
    %v4649 = vadd.f32 %v4641, %v4645
    %v4650 = vpack.c.bf16 %v3127, %v3126
    %s4651 = scalar_lea.vmem %s7, 48
    %v4652 = vld [vmem:[%s4651] sm:$0xf]
    %v4653 = vld [vmem:[%s4651 + $0x4] sm:$0xf]
    %v4654 = vld [vmem:[%s4651 + $0x8] sm:$0xf]
    %v4655 = vld [vmem:[%s4651 + $0xc] sm:$0xf]
    %s4656 = scalar_lea.vmem [#allocation7], 3
    %v4657 = vld [vmem:[%s4656] sm:$0x1]
    %v4659 = vlaneseq
    %v4660 = vshrl.u32 %v4659, 7
    %v4661 = vsub.s32 0, %v4660
    %v4662 = vrot.slane %v4657, %v4661
    %v4668 = vunpack.c.l.b16 %v4652
    %v4669 = vunpack.c.l.b16 %v4653
    %v4670 = vunpack.c.l.b16 %v4654
    %v4671 = vunpack.c.l.b16 %v4655
    %v4672 = vpack.c.b16 %v4669, %v4668
    %v4673 = vpack.c.b16 %v4671, %v4670
    %v4677 = vsel %vm346, %v4650, 0
    %4679 = vmatprep.subr.bf16.mxu0 0
    %4680 = vmatpush1.bf16.msra.mxu0 %v4672
    %4681 = vmatprep.subr.bf16.mxu0 0
    %4682 = vmatpush1.bf16.msra.mxu0 %v4673
    %4683 = vmatprep.subr.bf16.mxu0 0
    %4684 = vmatpush1.bf16.msra.mxu0 0
    %4685 = vmatprep.subr.bf16.mxu0 0
    %4686 = vmatpush1.bf16.msra.mxu0 0
    %4687 = vmatprep.subr.bf16.mxu0 0
    %4688 = vmatpush1.bf16.msra.mxu0 0
    %4689 = vmatprep.subr.bf16.mxu0 0
    %4690 = vmatpush1.bf16.msra.mxu0 0
    %4691 = vmatprep.subr.bf16.mxu0 0
    %4692 = vmatpush1.bf16.msra.mxu0 0
    %4693 = vmatprep.subr.bf16.mxu0 0
    %4694 = vmatpush1.bf16.msra.mxu0 0
    %4695 = vmatprep.subr.bf16.mxu0 0
    %4696 = vmatpush1.bf16.msra.mxu0 0
    %4697 = vmatprep.subr.bf16.mxu0 0
    %4698 = vmatpush1.bf16.msra.mxu0 0
    %4699 = vmatprep.subr.bf16.mxu0 0
    %4700 = vmatpush1.bf16.msra.mxu0 0
    %4701 = vmatprep.subr.bf16.mxu0 0
    %4702 = vmatpush1.bf16.msra.mxu0 0
    %4703 = vmatprep.subr.bf16.mxu0 0
    %4704 = vmatpush1.bf16.msra.mxu0 0
    %4705 = vmatprep.subr.bf16.mxu0 0
    %4706 = vmatpush1.bf16.msra.mxu0 0
    %4707 = vmatprep.subr.bf16.mxu0 0
    %4708 = vmatpush1.bf16.msra.mxu0 0
    %4709 = vmatprep.subr.bf16.mxu0 0
    %4710 = vmatpush1.bf16.msra.mxu0 0
    %4711 = vmatprep.mubr.bf16.mxu0 0
    %4712 = vmatmul.mubr.bf16.gmra.mrb[0].mxu0 %v4677
    %v4713 = vpop.f32.mrb[0].mxu0
    %v4714 = vadd.f32 %v4662, %v4713
    %v4715 = vpop.f32.mrb[0].mxu0
    %v4716 = vpop.f32.mrb[0].mxu0
    %v4717 = vadd.f32 %v4662, %v4716
    %v4718 = vpop.f32.mrb[0].mxu0
    %4719 = vdwg.mxu0
    %v4720 = vpack.c.bf16 %v4714, %v4714
    %v4721 = vpack.c.bf16 %v4717, %v4717
    %4723 = vrot.lane.b32.xlu0 %v4720, 96
    %v4724 = vpop.permute.xlu0 %4723
    %v4726 = vsel %vm192, %v4720, 0
    %v4729 = vsel %vm192, %v4724, 0
    %4731 = vmatprep.subr.bf16.mxu0 0
    %4732 = vmatpush1.bf16.xpose.msra.mxu0 %v4729
    %4733 = vmatprep.subr.bf16.mxu0 0
    %4734 = vmatpush1.bf16.xpose.msra.mxu0 0
    %4735 = vmatprep.subr.bf16.mxu0 0
    %4736 = vmatpush1.bf16.xpose.msra.mxu0 0
    %4737 = vmatprep.subr.bf16.mxu0 0
    %4738 = vmatpush1.bf16.xpose.msra.mxu0 0
    %4739 = vmatprep.subr.bf16.mxu0 0
    %4740 = vmatpush1.bf16.xpose.msra.mxu0 0
    %4741 = vmatprep.subr.bf16.mxu0 0
    %4742 = vmatpush1.bf16.xpose.msra.mxu0 0
    %4743 = vmatprep.subr.bf16.mxu0 0
    %4744 = vmatpush1.bf16.xpose.msra.mxu0 0
    %4745 = vmatprep.subr.bf16.mxu0 0
    %4746 = vmatpush1.bf16.xpose.msra.mxu0 0
    %4747 = vmatprep.subr.bf16.mxu0 0
    %4748 = vmatpush1.bf16.xpose.msra.mxu0 0
    %4749 = vmatprep.subr.bf16.mxu0 0
    %4750 = vmatpush1.bf16.xpose.msra.mxu0 0
    %4751 = vmatprep.subr.bf16.mxu0 0
    %4752 = vmatpush1.bf16.xpose.msra.mxu0 0
    %4753 = vmatprep.subr.bf16.mxu0 0
    %4754 = vmatpush1.bf16.xpose.msra.mxu0 0
    %4755 = vmatprep.subr.bf16.mxu0 0
    %4756 = vmatpush1.bf16.xpose.msra.mxu0 0
    %4757 = vmatprep.subr.bf16.mxu0 0
    %4758 = vmatpush1.bf16.xpose.msra.mxu0 0
    %4759 = vmatprep.subr.bf16.mxu0 0
    %4760 = vmatpush1.bf16.xpose.msra.mxu0 0
    %4761 = vmatprep.subr.bf16.mxu0 0
    %4762 = vmatpush1.bf16.xpose.msra.mxu0 0
    %4763 = vmatprep.mubr.bf16.mxu0 0
    %4764 = vmatmul.mubr.bf16.gmra.mrb[0].mxu0 %v4726
    %v4765 = vpop.f32.mrb[0].mxu0
    %v4766 = vadd.f32 0.0, %v4765
    %v4767 = vpop.f32.mrb[0].mxu0
    %v4768 = vpop.f32.mrb[0].mxu0
    %v4769 = vpop.f32.mrb[0].mxu0
    %4770 = vdwg.mxu0
    %4772 = vrot.lane.b32.xlu0 %v4721, 96
    %v4773 = vpop.permute.xlu0 %4772
    %v4775 = vsel %vm192, %v4721, 0
    %v4778 = vsel %vm192, %v4773, 0
    %4780 = vmatprep.subr.bf16.mxu0 0
    %4781 = vmatpush1.bf16.xpose.msra.mxu0 %v4778
    %4782 = vmatprep.subr.bf16.mxu0 0
    %4783 = vmatpush1.bf16.xpose.msra.mxu0 0
    %4784 = vmatprep.subr.bf16.mxu0 0
    %4785 = vmatpush1.bf16.xpose.msra.mxu0 0
    %4786 = vmatprep.subr.bf16.mxu0 0
    %4787 = vmatpush1.bf16.xpose.msra.mxu0 0
    %4788 = vmatprep.subr.bf16.mxu0 0
    %4789 = vmatpush1.bf16.xpose.msra.mxu0 0
    %4790 = vmatprep.subr.bf16.mxu0 0
    %4791 = vmatpush1.bf16.xpose.msra.mxu0 0
    %4792 = vmatprep.subr.bf16.mxu0 0
    %4793 = vmatpush1.bf16.xpose.msra.mxu0 0
    %4794 = vmatprep.subr.bf16.mxu0 0
    %4795 = vmatpush1.bf16.xpose.msra.mxu0 0
    %4796 = vmatprep.subr.bf16.mxu0 0
    %4797 = vmatpush1.bf16.xpose.msra.mxu0 0
    %4798 = vmatprep.subr.bf16.mxu0 0
    %4799 = vmatpush1.bf16.xpose.msra.mxu0 0
    %4800 = vmatprep.subr.bf16.mxu0 0
    %4801 = vmatpush1.bf16.xpose.msra.mxu0 0
    %4802 = vmatprep.subr.bf16.mxu0 0
    %4803 = vmatpush1.bf16.xpose.msra.mxu0 0
    %4804 = vmatprep.subr.bf16.mxu0 0
    %4805 = vmatpush1.bf16.xpose.msra.mxu0 0
    %4806 = vmatprep.subr.bf16.mxu0 0
    %4807 = vmatpush1.bf16.xpose.msra.mxu0 0
    %4808 = vmatprep.subr.bf16.mxu0 0
    %4809 = vmatpush1.bf16.xpose.msra.mxu0 0
    %4810 = vmatprep.subr.bf16.mxu0 0
    %4811 = vmatpush1.bf16.xpose.msra.mxu0 0
    %4812 = vmatprep.mubr.bf16.mxu0 0
    %4813 = vmatmul.mubr.bf16.gmra.mrb[0].mxu0 %v4775
    %v4814 = vpop.f32.mrb[0].mxu0
    %v4815 = vadd.f32 0.0, %v4814
    %v4816 = vpop.f32.mrb[0].mxu0
    %v4817 = vpop.f32.mrb[0].mxu0
    %v4818 = vpop.f32.mrb[0].mxu0
    %4819 = vdwg.mxu0
    %v4820 = vsel %vm192, %v4766, -inf
    %4821 = vmax.xlane.f32.xlu0 %v4820
    %v4822 = vpop.xlane.xlu0 %4821
    %v4823 = vsel %vm192, %v4815, -inf
    %4824 = vmax.xlane.f32.xlu0 %v4823
    %v4825 = vpop.xlane.xlu0 %4824
    %v4826 = vsub.f32 %v4766, %v4822
    %v4827 = vsub.f32 %v4815, %v4825
    %v4828 = vmul.f32 %v4826, 1.442695
    %v4829 = vpow.pop %v4828
    %v4830 = vmul.f32 %v4827, 1.442695
    %v4831 = vpow.pop %v4830
    %v4832 = vsel %vm192, %v4829, 0.0
    %4833 = vadd.xlane.f32.xlu0 %v4832
    %v4834 = vpop.xlane.xlu0 %4833
    %v4835 = vsel %vm192, %v4831, 0.0
    %4836 = vadd.xlane.f32.xlu0 %v4835
    %v4837 = vpop.xlane.xlu0 %4836
    %v4838 = vrcp.pop %v4834
    %v4839 = vrcp.pop %v4837
    %v4840 = vmul.f32 %v4829, %v4838
    %v4841 = vmul.f32 %v4831, %v4839
    %v4842 = vpack.c.bf16 %v4840, %v4840
    %v4843 = vpack.c.bf16 %v4841, %v4841
    %4844 = vrot.lane.b32.xlu0 %v4720, 64
    %v4845 = vpop.permute.xlu0 %4844
    %v4847 = vsel %vm192, %v4842, 0
    %v4850 = vsel %vm199, %v4845, 0
    %4852 = vmatprep.subr.bf16.mxu0 0
    %4853 = vmatpush1.bf16.msra.mxu0 %v4850
    %4854 = vmatprep.subr.bf16.mxu0 0
    %4855 = vmatpush1.bf16.msra.mxu0 0
    %4856 = vmatprep.subr.bf16.mxu0 0
    %4857 = vmatpush1.bf16.msra.mxu0 0
    %4858 = vmatprep.subr.bf16.mxu0 0
    %4859 = vmatpush1.bf16.msra.mxu0 0
    %4860 = vmatprep.subr.bf16.mxu0 0
    %4861 = vmatpush1.bf16.msra.mxu0 0
    %4862 = vmatprep.subr.bf16.mxu0 0
    %4863 = vmatpush1.bf16.msra.mxu0 0
    %4864 = vmatprep.subr.bf16.mxu0 0
    %4865 = vmatpush1.bf16.msra.mxu0 0
    %4866 = vmatprep.subr.bf16.mxu0 0
    %4867 = vmatpush1.bf16.msra.mxu0 0
    %4868 = vmatprep.subr.bf16.mxu0 0
    %4869 = vmatpush1.bf16.msra.mxu0 0
    %4870 = vmatprep.subr.bf16.mxu0 0
    %4871 = vmatpush1.bf16.msra.mxu0 0
    %4872 = vmatprep.subr.bf16.mxu0 0
    %4873 = vmatpush1.bf16.msra.mxu0 0
    %4874 = vmatprep.subr.bf16.mxu0 0
    %4875 = vmatpush1.bf16.msra.mxu0 0
    %4876 = vmatprep.subr.bf16.mxu0 0
    %4877 = vmatpush1.bf16.msra.mxu0 0
    %4878 = vmatprep.subr.bf16.mxu0 0
    %4879 = vmatpush1.bf16.msra.mxu0 0
    %4880 = vmatprep.subr.bf16.mxu0 0
    %4881 = vmatpush1.bf16.msra.mxu0 0
    %4882 = vmatprep.subr.bf16.mxu0 0
    %4883 = vmatpush1.bf16.msra.mxu0 0
    %4884 = vmatprep.mubr.bf16.mxu0 0
    %4885 = vmatmul.mubr.bf16.gmra.mrb[0].mxu0 %v4847
    %v4886 = vpop.f32.mrb[0].mxu0
    %v4887 = vadd.f32 0.0, %v4886
    %v4888 = vpop.f32.mrb[0].mxu0
    %v4889 = vpop.f32.mrb[0].mxu0
    %v4890 = vpop.f32.mrb[0].mxu0
    %4891 = vdwg.mxu0
    %4892 = vrot.lane.b32.xlu0 %v4721, 64
    %v4893 = vpop.permute.xlu0 %4892
    %v4895 = vsel %vm192, %v4843, 0
    %v4898 = vsel %vm199, %v4893, 0
    %4900 = vmatprep.subr.bf16.mxu0 0
    %4901 = vmatpush1.bf16.msra.mxu0 %v4898
    %4902 = vmatprep.subr.bf16.mxu0 0
    %4903 = vmatpush1.bf16.msra.mxu0 0
    %4904 = vmatprep.subr.bf16.mxu0 0
    %4905 = vmatpush1.bf16.msra.mxu0 0
    %4906 = vmatprep.subr.bf16.mxu0 0
    %4907 = vmatpush1.bf16.msra.mxu0 0
    %4908 = vmatprep.subr.bf16.mxu0 0
    %4909 = vmatpush1.bf16.msra.mxu0 0
    %4910 = vmatprep.subr.bf16.mxu0 0
    %4911 = vmatpush1.bf16.msra.mxu0 0
    %4912 = vmatprep.subr.bf16.mxu0 0
    %4913 = vmatpush1.bf16.msra.mxu0 0
    %4914 = vmatprep.subr.bf16.mxu0 0
    %4915 = vmatpush1.bf16.msra.mxu0 0
    %4916 = vmatprep.subr.bf16.mxu0 0
    %4917 = vmatpush1.bf16.msra.mxu0 0
    %4918 = vmatprep.subr.bf16.mxu0 0
    %4919 = vmatpush1.bf16.msra.mxu0 0
    %4920 = vmatprep.subr.bf16.mxu0 0
    %4921 = vmatpush1.bf16.msra.mxu0 0
    %4922 = vmatprep.subr.bf16.mxu0 0
    %4923 = vmatpush1.bf16.msra.mxu0 0
    %4924 = vmatprep.subr.bf16.mxu0 0
    %4925 = vmatpush1.bf16.msra.mxu0 0
    %4926 = vmatprep.subr.bf16.mxu0 0
    %4927 = vmatpush1.bf16.msra.mxu0 0
    %4928 = vmatprep.subr.bf16.mxu0 0
    %4929 = vmatpush1.bf16.msra.mxu0 0
    %4930 = vmatprep.subr.bf16.mxu0 0
    %4931 = vmatpush1.bf16.msra.mxu0 0
    %4932 = vmatprep.mubr.bf16.mxu0 0
    %4933 = vmatmul.mubr.bf16.gmra.mrb[0].mxu0 %v4895
    %v4934 = vpop.f32.mrb[0].mxu0
    %v4935 = vadd.f32 0.0, %v4934
    %v4936 = vpop.f32.mrb[0].mxu0
    %v4937 = vpop.f32.mrb[0].mxu0
    %v4938 = vpop.f32.mrb[0].mxu0
    %4939 = vdwg.mxu0
    %4940 = vrot.lane.b32.xlu0 %v4720, 120
    %v4941 = vpop.permute.xlu0 %4940
    %4942 = vrot.lane.b32.xlu0 %v4720, 88
    %v4943 = vpop.permute.xlu0 %4942
    %v4945 = vsel %vm192, %v4941, 0
    %v4948 = vsel %vm192, %v4943, 0
    %4950 = vmatprep.subr.bf16.mxu0 0
    %4951 = vmatpush1.bf16.xpose.msra.mxu0 %v4948
    %4952 = vmatprep.subr.bf16.mxu0 0
    %4953 = vmatpush1.bf16.xpose.msra.mxu0 0
    %4954 = vmatprep.subr.bf16.mxu0 0
    %4955 = vmatpush1.bf16.xpose.msra.mxu0 0
    %4956 = vmatprep.subr.bf16.mxu0 0
    %4957 = vmatpush1.bf16.xpose.msra.mxu0 0
    %4958 = vmatprep.subr.bf16.mxu0 0
    %4959 = vmatpush1.bf16.xpose.msra.mxu0 0
    %4960 = vmatprep.subr.bf16.mxu0 0
    %4961 = vmatpush1.bf16.xpose.msra.mxu0 0
    %4962 = vmatprep.subr.bf16.mxu0 0
    %4963 = vmatpush1.bf16.xpose.msra.mxu0 0
    %4964 = vmatprep.subr.bf16.mxu0 0
    %4965 = vmatpush1.bf16.xpose.msra.mxu0 0
    %4966 = vmatprep.subr.bf16.mxu0 0
    %4967 = vmatpush1.bf16.xpose.msra.mxu0 0
    %4968 = vmatprep.subr.bf16.mxu0 0
    %4969 = vmatpush1.bf16.xpose.msra.mxu0 0
    %4970 = vmatprep.subr.bf16.mxu0 0
    %4971 = vmatpush1.bf16.xpose.msra.mxu0 0
    %4972 = vmatprep.subr.bf16.mxu0 0
    %4973 = vmatpush1.bf16.xpose.msra.mxu0 0
    %4974 = vmatprep.subr.bf16.mxu0 0
    %4975 = vmatpush1.bf16.xpose.msra.mxu0 0
    %4976 = vmatprep.subr.bf16.mxu0 0
    %4977 = vmatpush1.bf16.xpose.msra.mxu0 0
    %4978 = vmatprep.subr.bf16.mxu0 0
    %4979 = vmatpush1.bf16.xpose.msra.mxu0 0
    %4980 = vmatprep.subr.bf16.mxu0 0
    %4981 = vmatpush1.bf16.xpose.msra.mxu0 0
    %4982 = vmatprep.mubr.bf16.mxu0 0
    %4983 = vmatmul.mubr.bf16.gmra.mrb[0].mxu0 %v4945
    %v4984 = vpop.f32.mrb[0].mxu0
    %v4985 = vadd.f32 0.0, %v4984
    %v4986 = vpop.f32.mrb[0].mxu0
    %v4987 = vpop.f32.mrb[0].mxu0
    %v4988 = vpop.f32.mrb[0].mxu0
    %4989 = vdwg.mxu0
    %4990 = vrot.lane.b32.xlu0 %v4721, 120
    %v4991 = vpop.permute.xlu0 %4990
    %4992 = vrot.lane.b32.xlu0 %v4721, 88
    %v4993 = vpop.permute.xlu0 %4992
    %v4995 = vsel %vm192, %v4991, 0
    %v4998 = vsel %vm192, %v4993, 0
    %5000 = vmatprep.subr.bf16.mxu0 0
    %5001 = vmatpush1.bf16.xpose.msra.mxu0 %v4998
    %5002 = vmatprep.subr.bf16.mxu0 0
    %5003 = vmatpush1.bf16.xpose.msra.mxu0 0
    %5004 = vmatprep.subr.bf16.mxu0 0
    %5005 = vmatpush1.bf16.xpose.msra.mxu0 0
    %5006 = vmatprep.subr.bf16.mxu0 0
    %5007 = vmatpush1.bf16.xpose.msra.mxu0 0
    %5008 = vmatprep.subr.bf16.mxu0 0
    %5009 = vmatpush1.bf16.xpose.msra.mxu0 0
    %5010 = vmatprep.subr.bf16.mxu0 0
    %5011 = vmatpush1.bf16.xpose.msra.mxu0 0
    %5012 = vmatprep.subr.bf16.mxu0 0
    %5013 = vmatpush1.bf16.xpose.msra.mxu0 0
    %5014 = vmatprep.subr.bf16.mxu0 0
    %5015 = vmatpush1.bf16.xpose.msra.mxu0 0
    %5016 = vmatprep.subr.bf16.mxu0 0
    %5017 = vmatpush1.bf16.xpose.msra.mxu0 0
    %5018 = vmatprep.subr.bf16.mxu0 0
    %5019 = vmatpush1.bf16.xpose.msra.mxu0 0
    %5020 = vmatprep.subr.bf16.mxu0 0
    %5021 = vmatpush1.bf16.xpose.msra.mxu0 0
    %5022 = vmatprep.subr.bf16.mxu0 0
    %5023 = vmatpush1.bf16.xpose.msra.mxu0 0
    %5024 = vmatprep.subr.bf16.mxu0 0
    %5025 = vmatpush1.bf16.xpose.msra.mxu0 0
    %5026 = vmatprep.subr.bf16.mxu0 0
    %5027 = vmatpush1.bf16.xpose.msra.mxu0 0
    %5028 = vmatprep.subr.bf16.mxu0 0
    %5029 = vmatpush1.bf16.xpose.msra.mxu0 0
    %5030 = vmatprep.subr.bf16.mxu0 0
    %5031 = vmatpush1.bf16.xpose.msra.mxu0 0
    %5032 = vmatprep.mubr.bf16.mxu0 0
    %5033 = vmatmul.mubr.bf16.gmra.mrb[0].mxu0 %v4995
    %v5034 = vpop.f32.mrb[0].mxu0
    %v5035 = vadd.f32 0.0, %v5034
    %v5036 = vpop.f32.mrb[0].mxu0
    %v5037 = vpop.f32.mrb[0].mxu0
    %v5038 = vpop.f32.mrb[0].mxu0
    %5039 = vdwg.mxu0
    %v5040 = vsel %vm192, %v4985, -inf
    %5041 = vmax.xlane.f32.xlu0 %v5040
    %v5042 = vpop.xlane.xlu0 %5041
    %v5043 = vsel %vm192, %v5035, -inf
    %5044 = vmax.xlane.f32.xlu0 %v5043
    %v5045 = vpop.xlane.xlu0 %5044
    %v5046 = vsub.f32 %v4985, %v5042
    %v5047 = vsub.f32 %v5035, %v5045
    %v5048 = vmul.f32 %v5046, 1.442695
    %v5049 = vpow.pop %v5048
    %v5050 = vmul.f32 %v5047, 1.442695
    %v5051 = vpow.pop %v5050
    %v5052 = vsel %vm192, %v5049, 0.0
    %5053 = vadd.xlane.f32.xlu0 %v5052
    %v5054 = vpop.xlane.xlu0 %5053
    %v5055 = vsel %vm192, %v5051, 0.0
    %5056 = vadd.xlane.f32.xlu0 %v5055
    %v5057 = vpop.xlane.xlu0 %5056
    %v5058 = vrcp.pop %v5054
    %v5059 = vrcp.pop %v5057
    %v5060 = vmul.f32 %v5049, %v5058
    %v5061 = vmul.f32 %v5051, %v5059
    %v5062 = vpack.c.bf16 %v5060, %v5060
    %v5063 = vpack.c.bf16 %v5061, %v5061
    %5064 = vrot.lane.b32.xlu0 %v4720, 56
    %v5065 = vpop.permute.xlu0 %5064
    %v5067 = vsel %vm192, %v5062, 0
    %v5070 = vsel %vm199, %v5065, 0
    %5072 = vmatprep.subr.bf16.mxu0 0
    %5073 = vmatpush1.bf16.msra.mxu0 %v5070
    %5074 = vmatprep.subr.bf16.mxu0 0
    %5075 = vmatpush1.bf16.msra.mxu0 0
    %5076 = vmatprep.subr.bf16.mxu0 0
    %5077 = vmatpush1.bf16.msra.mxu0 0
    %5078 = vmatprep.subr.bf16.mxu0 0
    %5079 = vmatpush1.bf16.msra.mxu0 0
    %5080 = vmatprep.subr.bf16.mxu0 0
    %5081 = vmatpush1.bf16.msra.mxu0 0
    %5082 = vmatprep.subr.bf16.mxu0 0
    %5083 = vmatpush1.bf16.msra.mxu0 0
    %5084 = vmatprep.subr.bf16.mxu0 0
    %5085 = vmatpush1.bf16.msra.mxu0 0
    %5086 = vmatprep.subr.bf16.mxu0 0
    %5087 = vmatpush1.bf16.msra.mxu0 0
    %5088 = vmatprep.subr.bf16.mxu0 0
    %5089 = vmatpush1.bf16.msra.mxu0 0
    %5090 = vmatprep.subr.bf16.mxu0 0
    %5091 = vmatpush1.bf16.msra.mxu0 0
    %5092 = vmatprep.subr.bf16.mxu0 0
    %5093 = vmatpush1.bf16.msra.mxu0 0
    %5094 = vmatprep.subr.bf16.mxu0 0
    %5095 = vmatpush1.bf16.msra.mxu0 0
    %5096 = vmatprep.subr.bf16.mxu0 0
    %5097 = vmatpush1.bf16.msra.mxu0 0
    %5098 = vmatprep.subr.bf16.mxu0 0
    %5099 = vmatpush1.bf16.msra.mxu0 0
    %5100 = vmatprep.subr.bf16.mxu0 0
    %5101 = vmatpush1.bf16.msra.mxu0 0
    %5102 = vmatprep.subr.bf16.mxu0 0
    %5103 = vmatpush1.bf16.msra.mxu0 0
    %5104 = vmatprep.mubr.bf16.mxu0 0
    %5105 = vmatmul.mubr.bf16.gmra.mrb[0].mxu0 %v5067
    %v5106 = vpop.f32.mrb[0].mxu0
    %v5107 = vadd.f32 0.0, %v5106
    %v5108 = vpop.f32.mrb[0].mxu0
    %v5109 = vpop.f32.mrb[0].mxu0
    %v5110 = vpop.f32.mrb[0].mxu0
    %5111 = vdwg.mxu0
    %5112 = vrot.lane.b32.xlu0 %v4721, 56
    %v5113 = vpop.permute.xlu0 %5112
    %v5115 = vsel %vm192, %v5063, 0
    %v5118 = vsel %vm199, %v5113, 0
    %5120 = vmatprep.subr.bf16.mxu0 0
    %5121 = vmatpush1.bf16.msra.mxu0 %v5118
    %5122 = vmatprep.subr.bf16.mxu0 0
    %5123 = vmatpush1.bf16.msra.mxu0 0
    %5124 = vmatprep.subr.bf16.mxu0 0
    %5125 = vmatpush1.bf16.msra.mxu0 0
    %5126 = vmatprep.subr.bf16.mxu0 0
    %5127 = vmatpush1.bf16.msra.mxu0 0
    %5128 = vmatprep.subr.bf16.mxu0 0
    %5129 = vmatpush1.bf16.msra.mxu0 0
    %5130 = vmatprep.subr.bf16.mxu0 0
    %5131 = vmatpush1.bf16.msra.mxu0 0
    %5132 = vmatprep.subr.bf16.mxu0 0
    %5133 = vmatpush1.bf16.msra.mxu0 0
    %5134 = vmatprep.subr.bf16.mxu0 0
    %5135 = vmatpush1.bf16.msra.mxu0 0
    %5136 = vmatprep.subr.bf16.mxu0 0
    %5137 = vmatpush1.bf16.msra.mxu0 0
    %5138 = vmatprep.subr.bf16.mxu0 0
    %5139 = vmatpush1.bf16.msra.mxu0 0
    %5140 = vmatprep.subr.bf16.mxu0 0
    %5141 = vmatpush1.bf16.msra.mxu0 0
    %5142 = vmatprep.subr.bf16.mxu0 0
    %5143 = vmatpush1.bf16.msra.mxu0 0
    %5144 = vmatprep.subr.bf16.mxu0 0
    %5145 = vmatpush1.bf16.msra.mxu0 0
    %5146 = vmatprep.subr.bf16.mxu0 0
    %5147 = vmatpush1.bf16.msra.mxu0 0
    %5148 = vmatprep.subr.bf16.mxu0 0
    %5149 = vmatpush1.bf16.msra.mxu0 0
    %5150 = vmatprep.subr.bf16.mxu0 0
    %5151 = vmatpush1.bf16.msra.mxu0 0
    %5152 = vmatprep.mubr.bf16.mxu0 0
    %5153 = vmatmul.mubr.bf16.gmra.mrb[0].mxu0 %v5115
    %v5154 = vpop.f32.mrb[0].mxu0
    %v5155 = vadd.f32 0.0, %v5154
    %v5156 = vpop.f32.mrb[0].mxu0
    %v5157 = vpop.f32.mrb[0].mxu0
    %v5158 = vpop.f32.mrb[0].mxu0
    %5159 = vdwg.mxu0
    %5160 = vrot.lane.b32.xlu0 %v4720, 112
    %v5161 = vpop.permute.xlu0 %5160
    %5162 = vrot.lane.b32.xlu0 %v4720, 80
    %v5163 = vpop.permute.xlu0 %5162
    %v5165 = vsel %vm192, %v5161, 0
    %v5168 = vsel %vm192, %v5163, 0
    %5170 = vmatprep.subr.bf16.mxu0 0
    %5171 = vmatpush1.bf16.xpose.msra.mxu0 %v5168
    %5172 = vmatprep.subr.bf16.mxu0 0
    %5173 = vmatpush1.bf16.xpose.msra.mxu0 0
    %5174 = vmatprep.subr.bf16.mxu0 0
    %5175 = vmatpush1.bf16.xpose.msra.mxu0 0
    %5176 = vmatprep.subr.bf16.mxu0 0
    %5177 = vmatpush1.bf16.xpose.msra.mxu0 0
    %5178 = vmatprep.subr.bf16.mxu0 0
    %5179 = vmatpush1.bf16.xpose.msra.mxu0 0
    %5180 = vmatprep.subr.bf16.mxu0 0
    %5181 = vmatpush1.bf16.xpose.msra.mxu0 0
    %5182 = vmatprep.subr.bf16.mxu0 0
    %5183 = vmatpush1.bf16.xpose.msra.mxu0 0
    %5184 = vmatprep.subr.bf16.mxu0 0
    %5185 = vmatpush1.bf16.xpose.msra.mxu0 0
    %5186 = vmatprep.subr.bf16.mxu0 0
    %5187 = vmatpush1.bf16.xpose.msra.mxu0 0
    %5188 = vmatprep.subr.bf16.mxu0 0
    %5189 = vmatpush1.bf16.xpose.msra.mxu0 0
    %5190 = vmatprep.subr.bf16.mxu0 0
    %5191 = vmatpush1.bf16.xpose.msra.mxu0 0
    %5192 = vmatprep.subr.bf16.mxu0 0
    %5193 = vmatpush1.bf16.xpose.msra.mxu0 0
    %5194 = vmatprep.subr.bf16.mxu0 0
    %5195 = vmatpush1.bf16.xpose.msra.mxu0 0
    %5196 = vmatprep.subr.bf16.mxu0 0
    %5197 = vmatpush1.bf16.xpose.msra.mxu0 0
    %5198 = vmatprep.subr.bf16.mxu0 0
    %5199 = vmatpush1.bf16.xpose.msra.mxu0 0
    %5200 = vmatprep.subr.bf16.mxu0 0
    %5201 = vmatpush1.bf16.xpose.msra.mxu0 0
    %5202 = vmatprep.mubr.bf16.mxu0 0
    %5203 = vmatmul.mubr.bf16.gmra.mrb[0].mxu0 %v5165
    %v5204 = vpop.f32.mrb[0].mxu0
    %v5205 = vadd.f32 0.0, %v5204
    %v5206 = vpop.f32.mrb[0].mxu0
    %v5207 = vpop.f32.mrb[0].mxu0
    %v5208 = vpop.f32.mrb[0].mxu0
    %5209 = vdwg.mxu0
    %5210 = vrot.lane.b32.xlu0 %v4721, 112
    %v5211 = vpop.permute.xlu0 %5210
    %5212 = vrot.lane.b32.xlu0 %v4721, 80
    %v5213 = vpop.permute.xlu0 %5212
    %v5215 = vsel %vm192, %v5211, 0
    %v5218 = vsel %vm192, %v5213, 0
    %5220 = vmatprep.subr.bf16.mxu0 0
    %5221 = vmatpush1.bf16.xpose.msra.mxu0 %v5218
    %5222 = vmatprep.subr.bf16.mxu0 0
    %5223 = vmatpush1.bf16.xpose.msra.mxu0 0
    %5224 = vmatprep.subr.bf16.mxu0 0
    %5225 = vmatpush1.bf16.xpose.msra.mxu0 0
    %5226 = vmatprep.subr.bf16.mxu0 0
    %5227 = vmatpush1.bf16.xpose.msra.mxu0 0
    %5228 = vmatprep.subr.bf16.mxu0 0
    %5229 = vmatpush1.bf16.xpose.msra.mxu0 0
    %5230 = vmatprep.subr.bf16.mxu0 0
    %5231 = vmatpush1.bf16.xpose.msra.mxu0 0
    %5232 = vmatprep.subr.bf16.mxu0 0
    %5233 = vmatpush1.bf16.xpose.msra.mxu0 0
    %5234 = vmatprep.subr.bf16.mxu0 0
    %5235 = vmatpush1.bf16.xpose.msra.mxu0 0
    %5236 = vmatprep.subr.bf16.mxu0 0
    %5237 = vmatpush1.bf16.xpose.msra.mxu0 0
    %5238 = vmatprep.subr.bf16.mxu0 0
    %5239 = vmatpush1.bf16.xpose.msra.mxu0 0
    %5240 = vmatprep.subr.bf16.mxu0 0
    %5241 = vmatpush1.bf16.xpose.msra.mxu0 0
    %5242 = vmatprep.subr.bf16.mxu0 0
    %5243 = vmatpush1.bf16.xpose.msra.mxu0 0
    %5244 = vmatprep.subr.bf16.mxu0 0
    %5245 = vmatpush1.bf16.xpose.msra.mxu0 0
    %5246 = vmatprep.subr.bf16.mxu0 0
    %5247 = vmatpush1.bf16.xpose.msra.mxu0 0
    %5248 = vmatprep.subr.bf16.mxu0 0
    %5249 = vmatpush1.bf16.xpose.msra.mxu0 0
    %5250 = vmatprep.subr.bf16.mxu0 0
    %5251 = vmatpush1.bf16.xpose.msra.mxu0 0
    %5252 = vmatprep.mubr.bf16.mxu0 0
    %5253 = vmatmul.mubr.bf16.gmra.mrb[0].mxu0 %v5215
    %v5254 = vpop.f32.mrb[0].mxu0
    %v5255 = vadd.f32 0.0, %v5254
    %v5256 = vpop.f32.mrb[0].mxu0
    %v5257 = vpop.f32.mrb[0].mxu0
    %v5258 = vpop.f32.mrb[0].mxu0
    %5259 = vdwg.mxu0
    %v5260 = vsel %vm192, %v5205, -inf
    %5261 = vmax.xlane.f32.xlu0 %v5260
    %v5262 = vpop.xlane.xlu0 %5261
    %v5263 = vsel %vm192, %v5255, -inf
    %5264 = vmax.xlane.f32.xlu0 %v5263
    %v5265 = vpop.xlane.xlu0 %5264
    %v5266 = vsub.f32 %v5205, %v5262
    %v5267 = vsub.f32 %v5255, %v5265
    %v5268 = vmul.f32 %v5266, 1.442695
    %v5269 = vpow.pop %v5268
    %v5270 = vmul.f32 %v5267, 1.442695
    %v5271 = vpow.pop %v5270
    %v5272 = vsel %vm192, %v5269, 0.0
    %5273 = vadd.xlane.f32.xlu0 %v5272
    %v5274 = vpop.xlane.xlu0 %5273
    %v5275 = vsel %vm192, %v5271, 0.0
    %5276 = vadd.xlane.f32.xlu0 %v5275
    %v5277 = vpop.xlane.xlu0 %5276
    %v5278 = vrcp.pop %v5274
    %v5279 = vrcp.pop %v5277
    %v5280 = vmul.f32 %v5269, %v5278
    %v5281 = vmul.f32 %v5271, %v5279
    %v5282 = vpack.c.bf16 %v5280, %v5280
    %v5283 = vpack.c.bf16 %v5281, %v5281
    %5284 = vrot.lane.b32.xlu0 %v4720, 48
    %v5285 = vpop.permute.xlu0 %5284
    %v5287 = vsel %vm192, %v5282, 0
    %v5290 = vsel %vm199, %v5285, 0
    %5292 = vmatprep.subr.bf16.mxu0 0
    %5293 = vmatpush1.bf16.msra.mxu0 %v5290
    %5294 = vmatprep.subr.bf16.mxu0 0
    %5295 = vmatpush1.bf16.msra.mxu0 0
    %5296 = vmatprep.subr.bf16.mxu0 0
    %5297 = vmatpush1.bf16.msra.mxu0 0
    %5298 = vmatprep.subr.bf16.mxu0 0
    %5299 = vmatpush1.bf16.msra.mxu0 0
    %5300 = vmatprep.subr.bf16.mxu0 0
    %5301 = vmatpush1.bf16.msra.mxu0 0
    %5302 = vmatprep.subr.bf16.mxu0 0
    %5303 = vmatpush1.bf16.msra.mxu0 0
    %5304 = vmatprep.subr.bf16.mxu0 0
    %5305 = vmatpush1.bf16.msra.mxu0 0
    %5306 = vmatprep.subr.bf16.mxu0 0
    %5307 = vmatpush1.bf16.msra.mxu0 0
    %5308 = vmatprep.subr.bf16.mxu0 0
    %5309 = vmatpush1.bf16.msra.mxu0 0
    %5310 = vmatprep.subr.bf16.mxu0 0
    %5311 = vmatpush1.bf16.msra.mxu0 0
    %5312 = vmatprep.subr.bf16.mxu0 0
    %5313 = vmatpush1.bf16.msra.mxu0 0
    %5314 = vmatprep.subr.bf16.mxu0 0
    %5315 = vmatpush1.bf16.msra.mxu0 0
    %5316 = vmatprep.subr.bf16.mxu0 0
    %5317 = vmatpush1.bf16.msra.mxu0 0
    %5318 = vmatprep.subr.bf16.mxu0 0
    %5319 = vmatpush1.bf16.msra.mxu0 0
    %5320 = vmatprep.subr.bf16.mxu0 0
    %5321 = vmatpush1.bf16.msra.mxu0 0
    %5322 = vmatprep.subr.bf16.mxu0 0
    %5323 = vmatpush1.bf16.msra.mxu0 0
    %5324 = vmatprep.mubr.bf16.mxu0 0
    %5325 = vmatmul.mubr.bf16.gmra.mrb[0].mxu0 %v5287
    %v5326 = vpop.f32.mrb[0].mxu0
    %v5327 = vadd.f32 0.0, %v5326
    %v5328 = vpop.f32.mrb[0].mxu0
    %v5329 = vpop.f32.mrb[0].mxu0
    %v5330 = vpop.f32.mrb[0].mxu0
    %5331 = vdwg.mxu0
    %5332 = vrot.lane.b32.xlu0 %v4721, 48
    %v5333 = vpop.permute.xlu0 %5332
    %v5335 = vsel %vm192, %v5283, 0
    %v5338 = vsel %vm199, %v5333, 0
    %5340 = vmatprep.subr.bf16.mxu0 0
    %5341 = vmatpush1.bf16.msra.mxu0 %v5338
    %5342 = vmatprep.subr.bf16.mxu0 0
    %5343 = vmatpush1.bf16.msra.mxu0 0
    %5344 = vmatprep.subr.bf16.mxu0 0
    %5345 = vmatpush1.bf16.msra.mxu0 0
    %5346 = vmatprep.subr.bf16.mxu0 0
    %5347 = vmatpush1.bf16.msra.mxu0 0
    %5348 = vmatprep.subr.bf16.mxu0 0
    %5349 = vmatpush1.bf16.msra.mxu0 0
    %5350 = vmatprep.subr.bf16.mxu0 0
    %5351 = vmatpush1.bf16.msra.mxu0 0
    %5352 = vmatprep.subr.bf16.mxu0 0
    %5353 = vmatpush1.bf16.msra.mxu0 0
    %5354 = vmatprep.subr.bf16.mxu0 0
    %5355 = vmatpush1.bf16.msra.mxu0 0
    %5356 = vmatprep.subr.bf16.mxu0 0
    %5357 = vmatpush1.bf16.msra.mxu0 0
    %5358 = vmatprep.subr.bf16.mxu0 0
    %5359 = vmatpush1.bf16.msra.mxu0 0
    %5360 = vmatprep.subr.bf16.mxu0 0
    %5361 = vmatpush1.bf16.msra.mxu0 0
    %5362 = vmatprep.subr.bf16.mxu0 0
    %5363 = vmatpush1.bf16.msra.mxu0 0
    %5364 = vmatprep.subr.bf16.mxu0 0
    %5365 = vmatpush1.bf16.msra.mxu0 0
    %5366 = vmatprep.subr.bf16.mxu0 0
    %5367 = vmatpush1.bf16.msra.mxu0 0
    %5368 = vmatprep.subr.bf16.mxu0 0
    %5369 = vmatpush1.bf16.msra.mxu0 0
    %5370 = vmatprep.subr.bf16.mxu0 0
    %5371 = vmatpush1.bf16.msra.mxu0 0
    %5372 = vmatprep.mubr.bf16.mxu0 0
    %5373 = vmatmul.mubr.bf16.gmra.mrb[0].mxu0 %v5335
    %v5374 = vpop.f32.mrb[0].mxu0
    %v5375 = vadd.f32 0.0, %v5374
    %v5376 = vpop.f32.mrb[0].mxu0
    %v5377 = vpop.f32.mrb[0].mxu0
    %v5378 = vpop.f32.mrb[0].mxu0
    %5379 = vdwg.mxu0
    %5380 = vrot.lane.b32.xlu0 %v4720, 104
    %v5381 = vpop.permute.xlu0 %5380
    %5382 = vrot.lane.b32.xlu0 %v4720, 72
    %v5383 = vpop.permute.xlu0 %5382
    %v5385 = vsel %vm192, %v5381, 0
    %v5388 = vsel %vm192, %v5383, 0
    %5390 = vmatprep.subr.bf16.mxu0 0
    %5391 = vmatpush1.bf16.xpose.msra.mxu0 %v5388
    %5392 = vmatprep.subr.bf16.mxu0 0
    %5393 = vmatpush1.bf16.xpose.msra.mxu0 0
    %5394 = vmatprep.subr.bf16.mxu0 0
    %5395 = vmatpush1.bf16.xpose.msra.mxu0 0
    %5396 = vmatprep.subr.bf16.mxu0 0
    %5397 = vmatpush1.bf16.xpose.msra.mxu0 0
    %5398 = vmatprep.subr.bf16.mxu0 0
    %5399 = vmatpush1.bf16.xpose.msra.mxu0 0
    %5400 = vmatprep.subr.bf16.mxu0 0
    %5401 = vmatpush1.bf16.xpose.msra.mxu0 0
    %5402 = vmatprep.subr.bf16.mxu0 0
    %5403 = vmatpush1.bf16.xpose.msra.mxu0 0
    %5404 = vmatprep.subr.bf16.mxu0 0
    %5405 = vmatpush1.bf16.xpose.msra.mxu0 0
    %5406 = vmatprep.subr.bf16.mxu0 0
    %5407 = vmatpush1.bf16.xpose.msra.mxu0 0
    %5408 = vmatprep.subr.bf16.mxu0 0
    %5409 = vmatpush1.bf16.xpose.msra.mxu0 0
    %5410 = vmatprep.subr.bf16.mxu0 0
    %5411 = vmatpush1.bf16.xpose.msra.mxu0 0
    %5412 = vmatprep.subr.bf16.mxu0 0
    %5413 = vmatpush1.bf16.xpose.msra.mxu0 0
    %5414 = vmatprep.subr.bf16.mxu0 0
    %5415 = vmatpush1.bf16.xpose.msra.mxu0 0
    %5416 = vmatprep.subr.bf16.mxu0 0
    %5417 = vmatpush1.bf16.xpose.msra.mxu0 0
    %5418 = vmatprep.subr.bf16.mxu0 0
    %5419 = vmatpush1.bf16.xpose.msra.mxu0 0
    %5420 = vmatprep.subr.bf16.mxu0 0
    %5421 = vmatpush1.bf16.xpose.msra.mxu0 0
    %5422 = vmatprep.mubr.bf16.mxu0 0
    %5423 = vmatmul.mubr.bf16.gmra.mrb[0].mxu0 %v5385
    %v5424 = vpop.f32.mrb[0].mxu0
    %v5425 = vadd.f32 0.0, %v5424
    %v5426 = vpop.f32.mrb[0].mxu0
    %v5427 = vpop.f32.mrb[0].mxu0
    %v5428 = vpop.f32.mrb[0].mxu0
    %5429 = vdwg.mxu0
    %5430 = vrot.lane.b32.xlu0 %v4721, 104
    %v5431 = vpop.permute.xlu0 %5430
    %5432 = vrot.lane.b32.xlu0 %v4721, 72
    %v5433 = vpop.permute.xlu0 %5432
    %v5435 = vsel %vm192, %v5431, 0
    %v5438 = vsel %vm192, %v5433, 0
    %5440 = vmatprep.subr.bf16.mxu0 0
    %5441 = vmatpush1.bf16.xpose.msra.mxu0 %v5438
    %5442 = vmatprep.subr.bf16.mxu0 0
    %5443 = vmatpush1.bf16.xpose.msra.mxu0 0
    %5444 = vmatprep.subr.bf16.mxu0 0
    %5445 = vmatpush1.bf16.xpose.msra.mxu0 0
    %5446 = vmatprep.subr.bf16.mxu0 0
    %5447 = vmatpush1.bf16.xpose.msra.mxu0 0
    %5448 = vmatprep.subr.bf16.mxu0 0
    %5449 = vmatpush1.bf16.xpose.msra.mxu0 0
    %5450 = vmatprep.subr.bf16.mxu0 0
    %5451 = vmatpush1.bf16.xpose.msra.mxu0 0
    %5452 = vmatprep.subr.bf16.mxu0 0
    %5453 = vmatpush1.bf16.xpose.msra.mxu0 0
    %5454 = vmatprep.subr.bf16.mxu0 0
    %5455 = vmatpush1.bf16.xpose.msra.mxu0 0
    %5456 = vmatprep.subr.bf16.mxu0 0
    %5457 = vmatpush1.bf16.xpose.msra.mxu0 0
    %5458 = vmatprep.subr.bf16.mxu0 0
    %5459 = vmatpush1.bf16.xpose.msra.mxu0 0
    %5460 = vmatprep.subr.bf16.mxu0 0
    %5461 = vmatpush1.bf16.xpose.msra.mxu0 0
    %5462 = vmatprep.subr.bf16.mxu0 0
    %5463 = vmatpush1.bf16.xpose.msra.mxu0 0
    %5464 = vmatprep.subr.bf16.mxu0 0
    %5465 = vmatpush1.bf16.xpose.msra.mxu0 0
    %5466 = vmatprep.subr.bf16.mxu0 0
    %5467 = vmatpush1.bf16.xpose.msra.mxu0 0
    %5468 = vmatprep.subr.bf16.mxu0 0
    %5469 = vmatpush1.bf16.xpose.msra.mxu0 0
    %5470 = vmatprep.subr.bf16.mxu0 0
    %5471 = vmatpush1.bf16.xpose.msra.mxu0 0
    %5472 = vmatprep.mubr.bf16.mxu0 0
    %5473 = vmatmul.mubr.bf16.gmra.mrb[0].mxu0 %v5435
    %v5474 = vpop.f32.mrb[0].mxu0
    %v5475 = vadd.f32 0.0, %v5474
    %v5476 = vpop.f32.mrb[0].mxu0
    %v5477 = vpop.f32.mrb[0].mxu0
    %v5478 = vpop.f32.mrb[0].mxu0
    %5479 = vdwg.mxu0
    %v5480 = vsel %vm192, %v5425, -inf
    %5481 = vmax.xlane.f32.xlu0 %v5480
    %v5482 = vpop.xlane.xlu0 %5481
    %v5483 = vsel %vm192, %v5475, -inf
    %5484 = vmax.xlane.f32.xlu0 %v5483
    %v5485 = vpop.xlane.xlu0 %5484
    %v5486 = vsub.f32 %v5425, %v5482
    %v5487 = vsub.f32 %v5475, %v5485
    %v5488 = vmul.f32 %v5486, 1.442695
    %v5489 = vpow.pop %v5488
    %v5490 = vmul.f32 %v5487, 1.442695
    %v5491 = vpow.pop %v5490
    %v5492 = vsel %vm192, %v5489, 0.0
    %5493 = vadd.xlane.f32.xlu0 %v5492
    %v5494 = vpop.xlane.xlu0 %5493
    %v5495 = vsel %vm192, %v5491, 0.0
    %5496 = vadd.xlane.f32.xlu0 %v5495
    %v5497 = vpop.xlane.xlu0 %5496
    %v5498 = vrcp.pop %v5494
    %v5499 = vrcp.pop %v5497
    %v5500 = vmul.f32 %v5489, %v5498
    %v5501 = vmul.f32 %v5491, %v5499
    %v5502 = vpack.c.bf16 %v5500, %v5500
    %v5503 = vpack.c.bf16 %v5501, %v5501
    %5504 = vrot.lane.b32.xlu0 %v4720, 40
    %v5505 = vpop.permute.xlu0 %5504
    %v5507 = vsel %vm192, %v5502, 0
    %v5510 = vsel %vm199, %v5505, 0
    %5512 = vmatprep.subr.bf16.mxu0 0
    %5513 = vmatpush1.bf16.msra.mxu0 %v5510
    %5514 = vmatprep.subr.bf16.mxu0 0
    %5515 = vmatpush1.bf16.msra.mxu0 0
    %5516 = vmatprep.subr.bf16.mxu0 0
    %5517 = vmatpush1.bf16.msra.mxu0 0
    %5518 = vmatprep.subr.bf16.mxu0 0
    %5519 = vmatpush1.bf16.msra.mxu0 0
    %5520 = vmatprep.subr.bf16.mxu0 0
    %5521 = vmatpush1.bf16.msra.mxu0 0
    %5522 = vmatprep.subr.bf16.mxu0 0
    %5523 = vmatpush1.bf16.msra.mxu0 0
    %5524 = vmatprep.subr.bf16.mxu0 0
    %5525 = vmatpush1.bf16.msra.mxu0 0
    %5526 = vmatprep.subr.bf16.mxu0 0
    %5527 = vmatpush1.bf16.msra.mxu0 0
    %5528 = vmatprep.subr.bf16.mxu0 0
    %5529 = vmatpush1.bf16.msra.mxu0 0
    %5530 = vmatprep.subr.bf16.mxu0 0
    %5531 = vmatpush1.bf16.msra.mxu0 0
    %5532 = vmatprep.subr.bf16.mxu0 0
    %5533 = vmatpush1.bf16.msra.mxu0 0
    %5534 = vmatprep.subr.bf16.mxu0 0
    %5535 = vmatpush1.bf16.msra.mxu0 0
    %5536 = vmatprep.subr.bf16.mxu0 0
    %5537 = vmatpush1.bf16.msra.mxu0 0
    %5538 = vmatprep.subr.bf16.mxu0 0
    %5539 = vmatpush1.bf16.msra.mxu0 0
    %5540 = vmatprep.subr.bf16.mxu0 0
    %5541 = vmatpush1.bf16.msra.mxu0 0
    %5542 = vmatprep.subr.bf16.mxu0 0
    %5543 = vmatpush1.bf16.msra.mxu0 0
    %5544 = vmatprep.mubr.bf16.mxu0 0
    %5545 = vmatmul.mubr.bf16.gmra.mrb[0].mxu0 %v5507
    %v5546 = vpop.f32.mrb[0].mxu0
    %v5547 = vadd.f32 0.0, %v5546
    %v5548 = vpop.f32.mrb[0].mxu0
    %v5549 = vpop.f32.mrb[0].mxu0
    %v5550 = vpop.f32.mrb[0].mxu0
    %5551 = vdwg.mxu0
    %5552 = vrot.lane.b32.xlu0 %v4721, 40
    %v5553 = vpop.permute.xlu0 %5552
    %v5555 = vsel %vm192, %v5503, 0
    %v5558 = vsel %vm199, %v5553, 0
    %5560 = vmatprep.subr.bf16.mxu0 0
    %5561 = vmatpush1.bf16.msra.mxu0 %v5558
    %5562 = vmatprep.subr.bf16.mxu0 0
    %5563 = vmatpush1.bf16.msra.mxu0 0
    %5564 = vmatprep.subr.bf16.mxu0 0
    %5565 = vmatpush1.bf16.msra.mxu0 0
    %5566 = vmatprep.subr.bf16.mxu0 0
    %5567 = vmatpush1.bf16.msra.mxu0 0
    %5568 = vmatprep.subr.bf16.mxu0 0
    %5569 = vmatpush1.bf16.msra.mxu0 0
    %5570 = vmatprep.subr.bf16.mxu0 0
    %5571 = vmatpush1.bf16.msra.mxu0 0
    %5572 = vmatprep.subr.bf16.mxu0 0
    %5573 = vmatpush1.bf16.msra.mxu0 0
    %5574 = vmatprep.subr.bf16.mxu0 0
    %5575 = vmatpush1.bf16.msra.mxu0 0
    %5576 = vmatprep.subr.bf16.mxu0 0
    %5577 = vmatpush1.bf16.msra.mxu0 0
    %5578 = vmatprep.subr.bf16.mxu0 0
    %5579 = vmatpush1.bf16.msra.mxu0 0
    %5580 = vmatprep.subr.bf16.mxu0 0
    %5581 = vmatpush1.bf16.msra.mxu0 0
    %5582 = vmatprep.subr.bf16.mxu0 0
    %5583 = vmatpush1.bf16.msra.mxu0 0
    %5584 = vmatprep.subr.bf16.mxu0 0
    %5585 = vmatpush1.bf16.msra.mxu0 0
    %5586 = vmatprep.subr.bf16.mxu0 0
    %5587 = vmatpush1.bf16.msra.mxu0 0
    %5588 = vmatprep.subr.bf16.mxu0 0
    %5589 = vmatpush1.bf16.msra.mxu0 0
    %5590 = vmatprep.subr.bf16.mxu0 0
    %5591 = vmatpush1.bf16.msra.mxu0 0
    %5592 = vmatprep.mubr.bf16.mxu0 0
    %5593 = vmatmul.mubr.bf16.gmra.mrb[0].mxu0 %v5555
    %v5594 = vpop.f32.mrb[0].mxu0
    %v5595 = vadd.f32 0.0, %v5594
    %v5596 = vpop.f32.mrb[0].mxu0
    %v5597 = vpop.f32.mrb[0].mxu0
    %v5598 = vpop.f32.mrb[0].mxu0
    %5599 = vdwg.mxu0
    %5602 = vrot.lane.b32.xlu0 %v5107, 8
    %v5603 = vpop.permute.xlu0 %5602
    %5604 = vrot.lane.b32.xlu0 %v5155, 8
    %v5605 = vpop.permute.xlu0 %5604
    %5610 = vrot.lane.b32.xlu0 %v5327, 16
    %v5611 = vpop.permute.xlu0 %5610
    %5612 = vrot.lane.b32.xlu0 %v5375, 16
    %v5613 = vpop.permute.xlu0 %5612
    %5618 = vrot.lane.b32.xlu0 %v5547, 24
    %v5619 = vpop.permute.xlu0 %5618
    %5620 = vrot.lane.b32.xlu0 %v5595, 24
    %v5621 = vpop.permute.xlu0 %5620
    %v5624 = vsel %vm192, %v4887, %v5603
    %v5625 = vsel %vm192, %v4935, %v5605
    %v5626 = vsel %vm276, %v5624, %v5611
    %v5627 = vsel %vm276, %v5625, %v5613
    %v5628 = vsel %vm1426, %v5626, %v5619
    %v5629 = vsel %vm1426, %v5627, %v5621
    %v5630 = vpack.c.bf16 %v5629, %v5628
    %s5631 = scalar_lea.vmem %s9, 48
    %v5632 = vld [vmem:[%s5631] sm:$0xf]
    %v5633 = vld [vmem:[%s5631 + $0x4] sm:$0xf]
    %v5634 = vld [vmem:[%s5631 + $0x8] sm:$0xf]
    %v5635 = vld [vmem:[%s5631 + $0xc] sm:$0xf]
    %s5636 = scalar_lea.vmem [#allocation8], 3
    %v5637 = vld [vmem:[%s5636] sm:$0x1]
    %v5639 = vlaneseq
    %v5640 = vshrl.u32 %v5639, 7
    %v5641 = vsub.s32 0, %v5640
    %v5642 = vrot.slane %v5637, %v5641
    %v5648 = vunpack.c.l.b16 %v5632
    %v5649 = vunpack.c.l.b16 %v5633
    %v5650 = vunpack.c.l.b16 %v5634
    %v5651 = vunpack.c.l.b16 %v5635
    %v5652 = vpack.c.b16 %v5649, %v5648
    %v5653 = vpack.c.b16 %v5651, %v5650
    %v5657 = vsel %vm346, %v5630, 0
    %5659 = vmatprep.subr.bf16.mxu0 0
    %5660 = vmatpush1.bf16.msra.mxu0 %v5652
    %5661 = vmatprep.subr.bf16.mxu0 0
    %5662 = vmatpush1.bf16.msra.mxu0 %v5653
    %5663 = vmatprep.subr.bf16.mxu0 0
    %5664 = vmatpush1.bf16.msra.mxu0 0
    %5665 = vmatprep.subr.bf16.mxu0 0
    %5666 = vmatpush1.bf16.msra.mxu0 0
    %5667 = vmatprep.subr.bf16.mxu0 0
    %5668 = vmatpush1.bf16.msra.mxu0 0
    %5669 = vmatprep.subr.bf16.mxu0 0
    %5670 = vmatpush1.bf16.msra.mxu0 0
    %5671 = vmatprep.subr.bf16.mxu0 0
    %5672 = vmatpush1.bf16.msra.mxu0 0
    %5673 = vmatprep.subr.bf16.mxu0 0
    %5674 = vmatpush1.bf16.msra.mxu0 0
    %5675 = vmatprep.subr.bf16.mxu0 0
    %5676 = vmatpush1.bf16.msra.mxu0 0
    %5677 = vmatprep.subr.bf16.mxu0 0
    %5678 = vmatpush1.bf16.msra.mxu0 0
    %5679 = vmatprep.subr.bf16.mxu0 0
    %5680 = vmatpush1.bf16.msra.mxu0 0
    %5681 = vmatprep.subr.bf16.mxu0 0
    %5682 = vmatpush1.bf16.msra.mxu0 0
    %5683 = vmatprep.subr.bf16.mxu0 0
    %5684 = vmatpush1.bf16.msra.mxu0 0
    %5685 = vmatprep.subr.bf16.mxu0 0
    %5686 = vmatpush1.bf16.msra.mxu0 0
    %5687 = vmatprep.subr.bf16.mxu0 0
    %5688 = vmatpush1.bf16.msra.mxu0 0
    %5689 = vmatprep.subr.bf16.mxu0 0
    %5690 = vmatpush1.bf16.msra.mxu0 0
    %5691 = vmatprep.mubr.bf16.mxu0 0
    %5692 = vmatmul.mubr.bf16.gmra.mrb[0].mxu0 %v5657
    %v5693 = vpop.f32.mrb[0].mxu0
    %v5694 = vadd.f32 %v5642, %v5693
    %v5695 = vpop.f32.mrb[0].mxu0
    %v5696 = vpop.f32.mrb[0].mxu0
    %v5697 = vadd.f32 %v5642, %v5696
    %v5698 = vpop.f32.mrb[0].mxu0
    %5699 = vdwg.mxu0
    %s5700 = scalar_lea.vmem %s15, 12
    %v5701 = vld [vmem:[%s5700] sm:$0xf]
    %v5702 = vadd.f32 %v3126, %v5694
    %v5703 = vadd.f32 %v3127, %v5697
    %v5704 = vsel %vm346, %v5702, 0.0
    %5705 = vadd.xlane.f32.xlu0 %v5704
    %v5706 = vpop.xlane.xlu0 %5705
    %v5707 = vsel %vm346, %v5703, 0.0
    %5708 = vadd.xlane.f32.xlu0 %v5707
    %v5709 = vpop.xlane.xlu0 %5708
    %v5710 = vmul.f32 %v5706, %v1528
    %v5711 = vmul.f32 %v5709, %v1528
    %v5712 = vsub.f32 %v5702, %v5710
    %v5713 = vsub.f32 %v5703, %v5711
    %v5714 = vmul.f32 %v5712, %v5712
    %v5715 = vmul.f32 %v5713, %v5713
    %v5716 = vsel %vm346, %v5714, 0.0
    %5717 = vadd.xlane.f32.xlu0 %v5716
    %v5718 = vpop.xlane.xlu0 %5717
    %v5719 = vsel %vm346, %v5715, 0.0
    %5720 = vadd.xlane.f32.xlu0 %v5719
    %v5721 = vpop.xlane.xlu0 %5720
    %v5722 = vmul.f32 %v5718, %v1528
    %v5723 = vmul.f32 %v5721, %v1528
    %v5724 = vadd.f32 %v5722, 1e-05
    %v5725 = vadd.f32 %v5723, 1e-05
    %v5726 = vrsqrt.pop %v5724
    %v5727 = vrsqrt.pop %v5725
    %v5728 = vmul.f32 %v5712, %v5726
    %v5729 = vmul.f32 %v5713, %v5727
    %v5730 = vlaneseq
    %v5731 = vshrl.u32 %v5730, 7
    %v5732 = vsub.s32 0, %v5731
    %v5733 = vrot.slane %v5701, %v5732
    %v5734 = vmul.f32 %v5728, %v5733
    %v5735 = vmul.f32 %v5729, %v5733
    %v5736 = vlaneseq
    %v5737 = vshrl.u32 %v5736, 7
    %v5738 = vsub.s32 1, %v5737
    %v5739 = vrot.slane %v5701, %v5738
    %v5740 = vadd.f32 %v5734, %v5739
    %v5741 = vadd.f32 %v5735, %v5739
    %v5742 = vpack.c.bf16 %v5741, %v5740
    %s5743 = scalar_lea.vmem %s11, 48
    %v5744 = vld [vmem:[%s5743] sm:$0xf]
    %v5745 = vld [vmem:[%s5743 + $0x4] sm:$0xf]
    %v5746 = vld [vmem:[%s5743 + $0x8] sm:$0xf]
    %v5747 = vld [vmem:[%s5743 + $0xc] sm:$0xf]
    %s5748 = scalar_lea.vmem [#allocation10], 3
    %v5749 = vld [vmem:[%s5748] sm:$0x1]
    %v5751 = vlaneseq
    %v5752 = vshrl.u32 %v5751, 7
    %v5753 = vsub.s32 0, %v5752
    %v5754 = vrot.slane %v5749, %v5753
    %v5760 = vunpack.c.l.b16 %v5744
    %v5761 = vunpack.c.l.b16 %v5745
    %v5762 = vunpack.c.l.b16 %v5746
    %v5763 = vunpack.c.l.b16 %v5747
    %v5764 = vpack.c.b16 %v5761, %v5760
    %v5765 = vpack.c.b16 %v5763, %v5762
    %v5769 = vsel %vm346, %v5742, 0
    %5771 = vmatprep.subr.bf16.mxu0 0
    %5772 = vmatpush1.bf16.msra.mxu0 %v5764
    %5773 = vmatprep.subr.bf16.mxu0 0
    %5774 = vmatpush1.bf16.msra.mxu0 %v5765
    %5775 = vmatprep.subr.bf16.mxu0 0
    %5776 = vmatpush1.bf16.msra.mxu0 0
    %5777 = vmatprep.subr.bf16.mxu0 0
    %5778 = vmatpush1.bf16.msra.mxu0 0
    %5779 = vmatprep.subr.bf16.mxu0 0
    %5780 = vmatpush1.bf16.msra.mxu0 0
    %5781 = vmatprep.subr.bf16.mxu0 0
    %5782 = vmatpush1.bf16.msra.mxu0 0
    %5783 = vmatprep.subr.bf16.mxu0 0
    %5784 = vmatpush1.bf16.msra.mxu0 0
    %5785 = vmatprep.subr.bf16.mxu0 0
    %5786 = vmatpush1.bf16.msra.mxu0 0
    %5787 = vmatprep.subr.bf16.mxu0 0
    %5788 = vmatpush1.bf16.msra.mxu0 0
    %5789 = vmatprep.subr.bf16.mxu0 0
    %5790 = vmatpush1.bf16.msra.mxu0 0
    %5791 = vmatprep.subr.bf16.mxu0 0
    %5792 = vmatpush1.bf16.msra.mxu0 0
    %5793 = vmatprep.subr.bf16.mxu0 0
    %5794 = vmatpush1.bf16.msra.mxu0 0
    %5795 = vmatprep.subr.bf16.mxu0 0
    %5796 = vmatpush1.bf16.msra.mxu0 0
    %5797 = vmatprep.subr.bf16.mxu0 0
    %5798 = vmatpush1.bf16.msra.mxu0 0
    %5799 = vmatprep.subr.bf16.mxu0 0
    %5800 = vmatpush1.bf16.msra.mxu0 0
    %5801 = vmatprep.subr.bf16.mxu0 0
    %5802 = vmatpush1.bf16.msra.mxu0 0
    %5803 = vmatprep.mubr.bf16.mxu0 0
    %5804 = vmatmul.mubr.bf16.gmra.mrb[0].mxu0 %v5769
    %v5805 = vpop.f32.mrb[0].mxu0
    %v5806 = vadd.f32 %v5754, %v5805
    %v5807 = vpop.f32.mrb[0].mxu0
    %v5808 = vpop.f32.mrb[0].mxu0
    %v5809 = vadd.f32 %v5754, %v5808
    %v5810 = vpop.f32.mrb[0].mxu0
    %5811 = vdwg.mxu0
    %v5812 = vmax.f32 %v5806, 0.0
    %v5813 = vmax.f32 %v5809, 0.0
    %v5814 = vpack.c.bf16 %v5813, %v5812
    %s5815 = scalar_lea.vmem %s13, 96
    %v5816 = vld [vmem:[%s5815] sm:$0xf]
    %v5817 = vld [vmem:[%s5815 + $0x4] sm:$0xf]
    %v5818 = vld [vmem:[%s5815 + $0x8] sm:$0xf]
    %v5819 = vld [vmem:[%s5815 + $0xc] sm:$0xf]
    %v5820 = vld [vmem:[%s5815 + $0x10] sm:$0xf]
    %v5821 = vld [vmem:[%s5815 + $0x14] sm:$0xf]
    %v5822 = vld [vmem:[%s5815 + $0x18] sm:$0xf]
    %v5823 = vld [vmem:[%s5815 + $0x1c] sm:$0xf]
    %s5824 = scalar_lea.vmem [#allocation11], 3
    %v5825 = vld [vmem:[%s5824] sm:$0x1]
    %v5827 = vlaneseq
    %v5828 = vshrl.u32 %v5827, 7
    %v5829 = vsub.s32 0, %v5828
    %v5830 = vrot.slane %v5825, %v5829
    %v5840 = vunpack.c.l.b16 %v5816
    %v5841 = vunpack.c.l.b16 %v5817
    %v5842 = vunpack.c.l.b16 %v5818
    %v5843 = vunpack.c.l.b16 %v5819
    %v5844 = vunpack.c.l.b16 %v5820
    %v5845 = vunpack.c.l.b16 %v5821
    %v5846 = vunpack.c.l.b16 %v5822
    %v5847 = vunpack.c.l.b16 %v5823
    %v5848 = vpack.c.b16 %v5841, %v5840
    %v5849 = vpack.c.b16 %v5843, %v5842
    %v5850 = vpack.c.b16 %v5845, %v5844
    %v5851 = vpack.c.b16 %v5847, %v5846
    %v5857 = vsel %vm1710, %v5814, 0
    %5859 = vmatprep.subr.bf16.mxu0 0
    %5860 = vmatpush1.bf16.msra.mxu0 %v5848
    %5861 = vmatprep.subr.bf16.mxu0 0
    %5862 = vmatpush1.bf16.msra.mxu0 %v5849
    %5863 = vmatprep.subr.bf16.mxu0 0
    %5864 = vmatpush1.bf16.msra.mxu0 %v5850
    %5865 = vmatprep.subr.bf16.mxu0 0
    %5866 = vmatpush1.bf16.msra.mxu0 %v5851
    %5867 = vmatprep.subr.bf16.mxu0 0
    %5868 = vmatpush1.bf16.msra.mxu0 0
    %5869 = vmatprep.subr.bf16.mxu0 0
    %5870 = vmatpush1.bf16.msra.mxu0 0
    %5871 = vmatprep.subr.bf16.mxu0 0
    %5872 = vmatpush1.bf16.msra.mxu0 0
    %5873 = vmatprep.subr.bf16.mxu0 0
    %5874 = vmatpush1.bf16.msra.mxu0 0
    %5875 = vmatprep.subr.bf16.mxu0 0
    %5876 = vmatpush1.bf16.msra.mxu0 0
    %5877 = vmatprep.subr.bf16.mxu0 0
    %5878 = vmatpush1.bf16.msra.mxu0 0
    %5879 = vmatprep.subr.bf16.mxu0 0
    %5880 = vmatpush1.bf16.msra.mxu0 0
    %5881 = vmatprep.subr.bf16.mxu0 0
    %5882 = vmatpush1.bf16.msra.mxu0 0
    %5883 = vmatprep.subr.bf16.mxu0 0
    %5884 = vmatpush1.bf16.msra.mxu0 0
    %5885 = vmatprep.subr.bf16.mxu0 0
    %5886 = vmatpush1.bf16.msra.mxu0 0
    %5887 = vmatprep.subr.bf16.mxu0 0
    %5888 = vmatpush1.bf16.msra.mxu0 0
    %5889 = vmatprep.subr.bf16.mxu0 0
    %5890 = vmatpush1.bf16.msra.mxu0 0
    %5891 = vmatprep.mubr.bf16.mxu0 0
    %5892 = vmatmul.mubr.bf16.gmra.mrb[0].mxu0 %v5857
    %v5893 = vpop.f32.mrb[0].mxu0
    %v5894 = vadd.f32 %v5830, %v5893
    %v5895 = vpop.f32.mrb[0].mxu0
    %v5896 = vpop.f32.mrb[0].mxu0
    %v5897 = vadd.f32 %v5830, %v5896
    %v5898 = vpop.f32.mrb[0].mxu0
    %5899 = vdwg.mxu0
    %v5900 = vadd.f32 %v5740, %v5894
    %v5901 = vadd.f32 %v5741, %v5897
    %v5902 = vsel %vm346, %v5900, 0.0
    %5903 = vadd.xlane.f32.xlu0 %v5902
    %v5904 = vpop.xlane.xlu0 %5903
    %v5905 = vsel %vm346, %v5901, 0.0
    %5906 = vadd.xlane.f32.xlu0 %v5905
    %v5907 = vpop.xlane.xlu0 %5906
    %v5908 = vmul.f32 %v5904, %v1528
    %v5909 = vmul.f32 %v5907, %v1528
    %v5910 = vsub.f32 %v5900, %v5908
    %v5911 = vsub.f32 %v5901, %v5909
    %v5912 = vmul.f32 %v5910, %v5910
    %v5913 = vmul.f32 %v5911, %v5911
    %v5914 = vsel %vm346, %v5912, 0.0
    %5915 = vadd.xlane.f32.xlu0 %v5914
    %v5916 = vpop.xlane.xlu0 %5915
    %v5917 = vsel %vm346, %v5913, 0.0
    %5918 = vadd.xlane.f32.xlu0 %v5917
    %v5919 = vpop.xlane.xlu0 %5918
    %v5920 = vmul.f32 %v5916, %v1528
    %v5921 = vmul.f32 %v5919, %v1528
    %v5922 = vadd.f32 %v5920, 1e-05
    %v5923 = vadd.f32 %v5921, 1e-05
    %v5924 = vrsqrt.pop %v5922
    %v5925 = vrsqrt.pop %v5923
    %v5926 = vmul.f32 %v5910, %v5924
    %v5927 = vmul.f32 %v5911, %v5925
    %v5928 = vlaneseq
    %v5929 = vshrl.u32 %v5928, 7
    %v5930 = vsub.s32 2, %v5929
    %v5931 = vrot.slane %v5701, %v5930
    %v5932 = vmul.f32 %v5926, %v5931
    %v5933 = vmul.f32 %v5927, %v5931
    %v5934 = vlaneseq
    %v5935 = vshrl.u32 %v5934, 7
    %v5936 = vsub.s32 3, %v5935
    %v5937 = vrot.slane %v5701, %v5936
    %v5938 = vadd.f32 %v5932, %v5937
    %v5939 = vadd.f32 %v5933, %v5937
    %v5940 = vld [vmem:[%s16] sm:$0xff]
    %v5941 = vld [vmem:[%s16 + $0x8] sm:$0xff]
    %v5942 = vmul.f32 %v4646, %v5940
    %v5943 = vmul.f32 %v4647, %v5941
    %v5944 = vmul.f32 %v4648, %v5940
    %v5945 = vmul.f32 %v4649, %v5941
    %v5946 = vsel %vm346, %v5942, 0.0
    %5947 = vadd.xlane.f32.xlu0 %v5946
    %v5948 = vpop.xlane.xlu0 %5947
    %v5949 = vsel %vm346, %v5943, 0.0
    %5950 = vadd.xlane.f32.xlu0 %v5949
    %v5951 = vpop.xlane.xlu0 %5950
    %v5952 = vsel %vm346, %v5944, 0.0
    %5953 = vadd.xlane.f32.xlu0 %v5952
    %v5954 = vpop.xlane.xlu0 %5953
    %v5955 = vsel %vm346, %v5945, 0.0
    %5956 = vadd.xlane.f32.xlu0 %v5955
    %v5957 = vpop.xlane.xlu0 %5956
    %v5962 = vlaneseq
    %v5963 = vand.u32 %v5962, 127
    %v5964 = vlaneseq
    %v5965 = vshrl.u32 %v5964, 7
    %v5966 = vsub.s32 %v5963, %v5965
    %v5967 = vrot.slane %v5948, %v5966
    %v5968 = vadd.s32 %v5963, 4294967288
    %v5969 = vlaneseq
    %v5970 = vshrl.u32 %v5969, 7
    %v5971 = vsub.s32 %v5968, %v5970
    %v5972 = vrot.slane %v5951, %v5971
    %vm5973 = vcmask 130112
    %v5974 = vsel %vm5973, %v5972, %v5967
    %v5975 = vlaneseq
    %v5976 = vshrl.u32 %v5975, 7
    %v5977 = vsub.s32 %v5963, %v5976
    %v5978 = vrot.slane %v5954, %v5977
    %v5979 = vlaneseq
    %v5980 = vshrl.u32 %v5979, 7
    %v5981 = vsub.s32 %v5968, %v5980
    %v5982 = vrot.slane %v5957, %v5981
    %v5983 = vsel %vm5973, %v5982, %v5978
    %vm5984 = vcmask 1041409
    %v5985 = vsel %vm5984, %v5983, %v5974
    %vm5987 = vcmask 123904
    %v5988 = vsel %vm5987, %v5985, 0.0
    %5989 = vadd.xlane.f32.xlu0 %v5988
    %v5990 = vpop.xlane.xlu0 %5989
    %s5991 = scalar_lea.vmem %s16, 16
    %v5992 = vld [vmem:[%s5991] sm:$0xff]
    %v5993 = vld [vmem:[%s5991 + $0x8] sm:$0xff]
    %v5994 = vmul.f32 %v4646, %v5992
    %v5995 = vmul.f32 %v4647, %v5993
    %v5996 = vmul.f32 %v4648, %v5992
    %v5997 = vmul.f32 %v4649, %v5993
    %v5998 = vsel %vm346, %v5994, 0.0
    %5999 = vadd.xlane.f32.xlu0 %v5998
    %v6000 = vpop.xlane.xlu0 %5999
    %v6001 = vsel %vm346, %v5995, 0.0
    %6002 = vadd.xlane.f32.xlu0 %v6001
    %v6003 = vpop.xlane.xlu0 %6002
    %v6004 = vsel %vm346, %v5996, 0.0
    %6005 = vadd.xlane.f32.xlu0 %v6004
    %v6006 = vpop.xlane.xlu0 %6005
    %v6007 = vsel %vm346, %v5997, 0.0
    %6008 = vadd.xlane.f32.xlu0 %v6007
    %v6009 = vpop.xlane.xlu0 %6008
    %v6014 = vlaneseq
    %v6015 = vshrl.u32 %v6014, 7
    %v6016 = vsub.s32 %v5963, %v6015
    %v6017 = vrot.slane %v6000, %v6016
    %v6018 = vlaneseq
    %v6019 = vshrl.u32 %v6018, 7
    %v6020 = vsub.s32 %v5968, %v6019
    %v6021 = vrot.slane %v6003, %v6020
    %v6022 = vsel %vm5973, %v6021, %v6017
    %v6023 = vlaneseq
    %v6024 = vshrl.u32 %v6023, 7
    %v6025 = vsub.s32 %v5963, %v6024
    %v6026 = vrot.slane %v6006, %v6025
    %v6027 = vlaneseq
    %v6028 = vshrl.u32 %v6027, 7
    %v6029 = vsub.s32 %v5968, %v6028
    %v6030 = vrot.slane %v6009, %v6029
    %v6031 = vsel %vm5973, %v6030, %v6026
    %v6032 = vsel %vm5984, %v6031, %v6022
    %v6034 = vsel %vm5987, %v6032, 0.0
    %6035 = vadd.xlane.f32.xlu0 %v6034
    %v6036 = vpop.xlane.xlu0 %6035
    %vm6037 = vcmask 7168
    %v6038 = vsel %vm6037, %v5990, %v6036
    %v6039 = vld [vmem:[#allocation13] sm:$0xff]
    %v6040 = vmul.f32 %v5938, %v6039
    %v6041 = vmul.f32 %v5939, %v6039
    %v6042 = vsel %vm346, %v6040, 0.0
    %6043 = vadd.xlane.f32.xlu0 %v6042
    %v6044 = vpop.xlane.xlu0 %6043
    %v6045 = vsel %vm346, %v6041, 0.0
    %6046 = vadd.xlane.f32.xlu0 %v6045
    %v6047 = vpop.xlane.xlu0 %6046
    %v6050 = vlaneseq
    %v6051 = vshrl.u32 %v6050, 7
    %v6052 = vsub.s32 %v5963, %v6051
    %v6053 = vrot.slane %v6044, %v6052
    %v6054 = vlaneseq
    %v6055 = vshrl.u32 %v6054, 7
    %v6056 = vsub.s32 %v5963, %v6055
    %v6057 = vrot.slane %v6047, %v6056
    %v6058 = vsel %vm5984, %v6057, %v6053
    %vm6060 = vcmask 58368
    %v6061 = vsel %vm6060, %v6058, 0.0
    %6062 = vadd.xlane.f32.xlu0 %v6061
    %v6063 = vpop.xlane.xlu0 %6062
    %s6064 = scalar_lea.vmem [#allocation13], 8
    %v6065 = vld [vmem:[%s6064] sm:$0xff]
    %v6066 = vmul.f32 %v5938, %v6065
    %v6067 = vmul.f32 %v5939, %v6065
    %v6068 = vsel %vm346, %v6066, 0.0
    %6069 = vadd.xlane.f32.xlu0 %v6068
    %v6070 = vpop.xlane.xlu0 %6069
    %v6071 = vsel %vm346, %v6067, 0.0
    %6072 = vadd.xlane.f32.xlu0 %v6071
    %v6073 = vpop.xlane.xlu0 %6072
    %v6076 = vlaneseq
    %v6077 = vshrl.u32 %v6076, 7
    %v6078 = vsub.s32 %v5963, %v6077
    %v6079 = vrot.slane %v6070, %v6078
    %v6080 = vlaneseq
    %v6081 = vshrl.u32 %v6080, 7
    %v6082 = vsub.s32 %v5963, %v6081
    %v6083 = vrot.slane %v6073, %v6082
    %v6084 = vsel %vm5984, %v6083, %v6079
    %v6086 = vsel %vm6060, %v6084, 0.0
    %6087 = vadd.xlane.f32.xlu0 %v6086
    %v6088 = vpop.xlane.xlu0 %6087
    %v6089 = vsel %vm6037, %v6063, %v6088
    %v6090 = vadd.f32 %v6038, %v6089
    %v6091 = vld [vmem:[%s18] sm:$0x1]
    %v6093 = vlaneseq
    %v6094 = vshrl.u32 %v6093, 7
    %v6095 = vsub.s32 0, %v6094
    %v6096 = vrot.slane %v6091, %v6095
    %v6098 = vadd.f32 %v6090, %v6096
    %vm6099 = vcmask 9216
    %v6100 = vsel %vm6099, %v6098, -inf
    %6101 = vmax.xlane.f32.xlu0 %v6100
    %v6102 = vpop.xlane.xlu0 %6101
    %v6103 = vsub.f32 %v6098, %v6102
    %v6104 = vmul.f32 %v6103, 1.442695
    %v6105 = vpow.pop %v6104
    %v6106 = vsel %vm6099, %v6105, 0.0
    %6107 = vadd.xlane.f32.xlu0 %v6106
    %v6108 = vpop.xlane.xlu0 %6107
    %v6109 = vrcp.pop %v6108
    %v6110 = vmul.f32 %v6105, %v6109
    %v6111 = vld [vmem:[%s19] sm:$0xff]
    %v6112 = vld [vmem:[%s19 + $0x8] sm:$0xff]
    %v6113 = vmul.f32 %v4646, %v6111
    %v6114 = vmul.f32 %v4647, %v6112
    %v6115 = vmul.f32 %v4648, %v6111
    %v6116 = vmul.f32 %v4649, %v6112
    %v6117 = vsel %vm346, %v6113, 0.0
    %6118 = vadd.xlane.f32.xlu0 %v6117
    %v6119 = vpop.xlane.xlu0 %6118
    %v6120 = vsel %vm346, %v6114, 0.0
    %6121 = vadd.xlane.f32.xlu0 %v6120
    %v6122 = vpop.xlane.xlu0 %6121
    %v6123 = vsel %vm346, %v6115, 0.0
    %6124 = vadd.xlane.f32.xlu0 %v6123
    %v6125 = vpop.xlane.xlu0 %6124
    %v6126 = vsel %vm346, %v6116, 0.0
    %6127 = vadd.xlane.f32.xlu0 %v6126
    %v6128 = vpop.xlane.xlu0 %6127
    %v6133 = vlaneseq
    %v6134 = vshrl.u32 %v6133, 7
    %v6135 = vsub.s32 %v5963, %v6134
    %v6136 = vrot.slane %v6119, %v6135
    %v6137 = vlaneseq
    %v6138 = vshrl.u32 %v6137, 7
    %v6139 = vsub.s32 %v5968, %v6138
    %v6140 = vrot.slane %v6122, %v6139
    %v6141 = vsel %vm5973, %v6140, %v6136
    %v6142 = vlaneseq
    %v6143 = vshrl.u32 %v6142, 7
    %v6144 = vsub.s32 %v5963, %v6143
    %v6145 = vrot.slane %v6125, %v6144
    %v6146 = vlaneseq
    %v6147 = vshrl.u32 %v6146, 7
    %v6148 = vsub.s32 %v5968, %v6147
    %v6149 = vrot.slane %v6128, %v6148
    %v6150 = vsel %vm5973, %v6149, %v6145
    %v6151 = vsel %vm5984, %v6150, %v6141
    %v6153 = vsel %vm5987, %v6151, 0.0
    %6154 = vadd.xlane.f32.xlu0 %v6153
    %v6155 = vpop.xlane.xlu0 %6154
    %s6156 = scalar_lea.vmem %s19, 16
    %v6157 = vld [vmem:[%s6156] sm:$0xff]
    %v6158 = vld [vmem:[%s6156 + $0x8] sm:$0xff]
    %v6159 = vmul.f32 %v4646, %v6157
    %v6160 = vmul.f32 %v4647, %v6158
    %v6161 = vmul.f32 %v4648, %v6157
    %v6162 = vmul.f32 %v4649, %v6158
    %v6163 = vsel %vm346, %v6159, 0.0
    %6164 = vadd.xlane.f32.xlu0 %v6163
    %v6165 = vpop.xlane.xlu0 %6164
    %v6166 = vsel %vm346, %v6160, 0.0
    %6167 = vadd.xlane.f32.xlu0 %v6166
    %v6168 = vpop.xlane.xlu0 %6167
    %v6169 = vsel %vm346, %v6161, 0.0
    %6170 = vadd.xlane.f32.xlu0 %v6169
    %v6171 = vpop.xlane.xlu0 %6170
    %v6172 = vsel %vm346, %v6162, 0.0
    %6173 = vadd.xlane.f32.xlu0 %v6172
    %v6174 = vpop.xlane.xlu0 %6173
    %v6179 = vlaneseq
    %v6180 = vshrl.u32 %v6179, 7
    %v6181 = vsub.s32 %v5963, %v6180
    %v6182 = vrot.slane %v6165, %v6181
    %v6183 = vlaneseq
    %v6184 = vshrl.u32 %v6183, 7
    %v6185 = vsub.s32 %v5968, %v6184
    %v6186 = vrot.slane %v6168, %v6185
    %v6187 = vsel %vm5973, %v6186, %v6182
    %v6188 = vlaneseq
    %v6189 = vshrl.u32 %v6188, 7
    %v6190 = vsub.s32 %v5963, %v6189
    %v6191 = vrot.slane %v6171, %v6190
    %v6192 = vlaneseq
    %v6193 = vshrl.u32 %v6192, 7
    %v6194 = vsub.s32 %v5968, %v6193
    %v6195 = vrot.slane %v6174, %v6194
    %v6196 = vsel %vm5973, %v6195, %v6191
    %v6197 = vsel %vm5984, %v6196, %v6187
    %v6199 = vsel %vm5987, %v6197, 0.0
    %6200 = vadd.xlane.f32.xlu0 %v6199
    %v6201 = vpop.xlane.xlu0 %6200
    %s6202 = scalar_lea.vmem %s19, 32
    %v6203 = vld [vmem:[%s6202] sm:$0xff]
    %v6204 = vld [vmem:[%s6202 + $0x8] sm:$0xff]
    %v6205 = vmul.f32 %v4646, %v6203
    %v6206 = vmul.f32 %v4647, %v6204
    %v6207 = vmul.f32 %v4648, %v6203
    %v6208 = vmul.f32 %v4649, %v6204
    %v6209 = vsel %vm346, %v6205, 0.0
    %6210 = vadd.xlane.f32.xlu0 %v6209
    %v6211 = vpop.xlane.xlu0 %6210
    %v6212 = vsel %vm346, %v6206, 0.0
    %6213 = vadd.xlane.f32.xlu0 %v6212
    %v6214 = vpop.xlane.xlu0 %6213
    %v6215 = vsel %vm346, %v6207, 0.0
    %6216 = vadd.xlane.f32.xlu0 %v6215
    %v6217 = vpop.xlane.xlu0 %6216
    %v6218 = vsel %vm346, %v6208, 0.0
    %6219 = vadd.xlane.f32.xlu0 %v6218
    %v6220 = vpop.xlane.xlu0 %6219
    %v6225 = vlaneseq
    %v6226 = vshrl.u32 %v6225, 7
    %v6227 = vsub.s32 %v5963, %v6226
    %v6228 = vrot.slane %v6211, %v6227
    %v6229 = vlaneseq
    %v6230 = vshrl.u32 %v6229, 7
    %v6231 = vsub.s32 %v5968, %v6230
    %v6232 = vrot.slane %v6214, %v6231
    %v6233 = vsel %vm5973, %v6232, %v6228
    %v6234 = vlaneseq
    %v6235 = vshrl.u32 %v6234, 7
    %v6236 = vsub.s32 %v5963, %v6235
    %v6237 = vrot.slane %v6217, %v6236
    %v6238 = vlaneseq
    %v6239 = vshrl.u32 %v6238, 7
    %v6240 = vsub.s32 %v5968, %v6239
    %v6241 = vrot.slane %v6220, %v6240
    %v6242 = vsel %vm5973, %v6241, %v6237
    %v6243 = vsel %vm5984, %v6242, %v6233
    %v6245 = vsel %vm5987, %v6243, 0.0
    %6246 = vadd.xlane.f32.xlu0 %v6245
    %v6247 = vpop.xlane.xlu0 %6246
    %s6248 = scalar_lea.vmem %s19, 48
    %v6249 = vld [vmem:[%s6248] sm:$0xff]
    %v6250 = vld [vmem:[%s6248 + $0x8] sm:$0xff]
    %v6251 = vmul.f32 %v4646, %v6249
    %v6252 = vmul.f32 %v4647, %v6250
    %v6253 = vmul.f32 %v4648, %v6249
    %v6254 = vmul.f32 %v4649, %v6250
    %v6255 = vsel %vm346, %v6251, 0.0
    %6256 = vadd.xlane.f32.xlu0 %v6255
    %v6257 = vpop.xlane.xlu0 %6256
    %v6258 = vsel %vm346, %v6252, 0.0
    %6259 = vadd.xlane.f32.xlu0 %v6258
    %v6260 = vpop.xlane.xlu0 %6259
    %v6261 = vsel %vm346, %v6253, 0.0
    %6262 = vadd.xlane.f32.xlu0 %v6261
    %v6263 = vpop.xlane.xlu0 %6262
    %v6264 = vsel %vm346, %v6254, 0.0
    %6265 = vadd.xlane.f32.xlu0 %v6264
    %v6266 = vpop.xlane.xlu0 %6265
    %v6271 = vlaneseq
    %v6272 = vshrl.u32 %v6271, 7
    %v6273 = vsub.s32 %v5963, %v6272
    %v6274 = vrot.slane %v6257, %v6273
    %v6275 = vlaneseq
    %v6276 = vshrl.u32 %v6275, 7
    %v6277 = vsub.s32 %v5968, %v6276
    %v6278 = vrot.slane %v6260, %v6277
    %v6279 = vsel %vm5973, %v6278, %v6274
    %v6280 = vlaneseq
    %v6281 = vshrl.u32 %v6280, 7
    %v6282 = vsub.s32 %v5963, %v6281
    %v6283 = vrot.slane %v6263, %v6282
    %v6284 = vlaneseq
    %v6285 = vshrl.u32 %v6284, 7
    %v6286 = vsub.s32 %v5968, %v6285
    %v6287 = vrot.slane %v6266, %v6286
    %v6288 = vsel %vm5973, %v6287, %v6283
    %v6289 = vsel %vm5984, %v6288, %v6279
    %v6291 = vsel %vm5987, %v6289, 0.0
    %6292 = vadd.xlane.f32.xlu0 %v6291
    %v6293 = vpop.xlane.xlu0 %6292
    %v6294 = vsel %vm6037, %v6155, %v6201
    %vm6295 = vcmask 15360
    %v6296 = vsel %vm6295, %v6294, %v6247
    %vm6297 = vcmask 23552
    %v6298 = vsel %vm6297, %v6296, %v6293
    %6300 = vset.pattern.permute.xlu0 0
    %6301 = vperm.xlu0 %6300, %v6110
    %v6302 = vpop.permute.xlu0 %6301
    %v6304 = vmul.f32 %v6302, %v6298
    %v6305 = vld [vmem:[%s20] sm:$0xff]
    %v6306 = vmul.f32 %v5938, %v6305
    %v6307 = vmul.f32 %v5939, %v6305
    %v6308 = vsel %vm346, %v6306, 0.0
    %6309 = vadd.xlane.f32.xlu0 %v6308
    %v6310 = vpop.xlane.xlu0 %6309
    %v6311 = vsel %vm346, %v6307, 0.0
    %6312 = vadd.xlane.f32.xlu0 %v6311
    %v6313 = vpop.xlane.xlu0 %6312
    %v6316 = vlaneseq
    %v6317 = vshrl.u32 %v6316, 7
    %v6318 = vsub.s32 %v5963, %v6317
    %v6319 = vrot.slane %v6310, %v6318
    %v6320 = vlaneseq
    %v6321 = vshrl.u32 %v6320, 7
    %v6322 = vsub.s32 %v5963, %v6321
    %v6323 = vrot.slane %v6313, %v6322
    %v6324 = vsel %vm5984, %v6323, %v6319
    %v6326 = vsel %vm6060, %v6324, 0.0
    %6327 = vadd.xlane.f32.xlu0 %v6326
    %v6328 = vpop.xlane.xlu0 %6327
    %s6329 = scalar_lea.vmem %s20, 8
    %v6330 = vld [vmem:[%s6329] sm:$0xff]
    %v6331 = vmul.f32 %v5938, %v6330
    %v6332 = vmul.f32 %v5939, %v6330
    %v6333 = vsel %vm346, %v6331, 0.0
    %6334 = vadd.xlane.f32.xlu0 %v6333
    %v6335 = vpop.xlane.xlu0 %6334
    %v6336 = vsel %vm346, %v6332, 0.0
    %6337 = vadd.xlane.f32.xlu0 %v6336
    %v6338 = vpop.xlane.xlu0 %6337
    %v6341 = vlaneseq
    %v6342 = vshrl.u32 %v6341, 7
    %v6343 = vsub.s32 %v5963, %v6342
    %v6344 = vrot.slane %v6335, %v6343
    %v6345 = vlaneseq
    %v6346 = vshrl.u32 %v6345, 7
    %v6347 = vsub.s32 %v5963, %v6346
    %v6348 = vrot.slane %v6338, %v6347
    %v6349 = vsel %vm5984, %v6348, %v6344
    %v6351 = vsel %vm6060, %v6349, 0.0
    %6352 = vadd.xlane.f32.xlu0 %v6351
    %v6353 = vpop.xlane.xlu0 %6352
    %s6354 = scalar_lea.vmem %s20, 16
    %v6355 = vld [vmem:[%s6354] sm:$0xff]
    %v6356 = vmul.f32 %v5938, %v6355
    %v6357 = vmul.f32 %v5939, %v6355
    %v6358 = vsel %vm346, %v6356, 0.0
    %6359 = vadd.xlane.f32.xlu0 %v6358
    %v6360 = vpop.xlane.xlu0 %6359
    %v6361 = vsel %vm346, %v6357, 0.0
    %6362 = vadd.xlane.f32.xlu0 %v6361
    %v6363 = vpop.xlane.xlu0 %6362
    %v6366 = vlaneseq
    %v6367 = vshrl.u32 %v6366, 7
    %v6368 = vsub.s32 %v5963, %v6367
    %v6369 = vrot.slane %v6360, %v6368
    %v6370 = vlaneseq
    %v6371 = vshrl.u32 %v6370, 7
    %v6372 = vsub.s32 %v5963, %v6371
    %v6373 = vrot.slane %v6363, %v6372
    %v6374 = vsel %vm5984, %v6373, %v6369
    %v6376 = vsel %vm6060, %v6374, 0.0
    %6377 = vadd.xlane.f32.xlu0 %v6376
    %v6378 = vpop.xlane.xlu0 %6377
    %s6379 = scalar_lea.vmem %s20, 24
    %v6380 = vld [vmem:[%s6379] sm:$0xff]
    %v6381 = vmul.f32 %v5938, %v6380
    %v6382 = vmul.f32 %v5939, %v6380
    %v6383 = vsel %vm346, %v6381, 0.0
    %6384 = vadd.xlane.f32.xlu0 %v6383
    %v6385 = vpop.xlane.xlu0 %6384
    %v6386 = vsel %vm346, %v6382, 0.0
    %6387 = vadd.xlane.f32.xlu0 %v6386
    %v6388 = vpop.xlane.xlu0 %6387
    %v6391 = vlaneseq
    %v6392 = vshrl.u32 %v6391, 7
    %v6393 = vsub.s32 %v5963, %v6392
    %v6394 = vrot.slane %v6385, %v6393
    %v6395 = vlaneseq
    %v6396 = vshrl.u32 %v6395, 7
    %v6397 = vsub.s32 %v5963, %v6396
    %v6398 = vrot.slane %v6388, %v6397
    %v6399 = vsel %vm5984, %v6398, %v6394
    %v6401 = vsel %vm6060, %v6399, 0.0
    %6402 = vadd.xlane.f32.xlu0 %v6401
    %v6403 = vpop.xlane.xlu0 %6402
    %v6404 = vsel %vm6037, %v6328, %v6353
    %v6405 = vsel %vm6295, %v6404, %v6378
    %v6406 = vsel %vm6297, %v6405, %v6403
    %6407 = vset.pattern.permute.xlu0 1
    %6408 = vperm.xlu0 %6407, %v6110
    %v6409 = vpop.permute.xlu0 %6408
    %v6411 = vmul.f32 %v6409, %v6406
    %v6412 = vadd.f32 %v6304, %v6411
    %v6413 = vld [vmem:[#allocation14] sm:$0x1]
    %v6415 = vlaneseq
    %v6416 = vshrl.u32 %v6415, 7
    %v6417 = vsub.s32 0, %v6416
    %v6418 = vrot.slane %v6413, %v6417
    %v6420 = vadd.f32 %v6412, %v6418
    %vm6421 = vcmask 25600
    %6422 = vst.msk [vmem:[#allocation16] sm:$0x3] %vm6421, %v6420
    // Predicated region
    $region122: #{transformer_forward.1} parent=1 // pred_check
      _
    $region123: #{transformer_forward.1} parent=1 // pred_check_branch
      %6424 = sbr.rel (0) target = $region125
    $region124: #{transformer_forward.1} parent=1 // pred_region
      %s6426 = ssub.s32 32, 32
      %6427 = vsyncadd [#allocation4], %s6426
      %s6429 = sshll.u32 [#allocation16], 4
      %s6430 = int_to_ptr.vmem [resolvable:$true] %s6429
      %6432 = dma.vmem_to_hbm [thread:$0]  %s6430, 32, %s22, [#allocation4]
    $region125: #{transformer_forward.1} parent=1 // pred_fallthru
      _
    // Predicated region
    $region126: #{transformer_forward.1} parent=1 // pred_check
      _
    $region127: #{transformer_forward.1} parent=1 // pred_check_branch
      %6434 = sbr.rel (0) target = $region129
    $region128: #{transformer_forward.1} parent=1 // pred_region
      %6435 = dma.done [#allocation4], 32
    $region129: #{transformer_forward.1} parent=1 // pred_fallthru
      _
    %6436 = vsyncpa [#allocation3], 1
    %6437 = vsyncpa [#allocation6], 1
    %6438 = vsyncpa [#allocation9], 1
    %6439 = vsyncpa [#allocation12], 1
    %6440 = vsyncpa [#allocation15], 1
    %6441 = vsyncpa [#allocation4], 1

</llo_original>
